<compile_context>
chip_gen: v7x
topology: tpu7x:2x2x1
jax: 0.10.0
libtpu: 0.0.40
codegen_flags: <defaults>
</compile_context>

<pallas_src>
import jax
import jax.numpy as jnp
from jax import lax
from jax.experimental import pallas as pl
from jax.experimental.pallas import tpu as pltpu

HID = 128      # hidden_size
SEQ = 64       # decoding steps / encoder length
ATTN = 64      # attn linear out features
H1 = 50        # head hidden
OUT = 2        # head out / softmax classes
H1P = 64       # head hidden, lane-padded
OUTP = 128     # head out, lane-padded

UNROLL = 9                       # 63 remaining steps = 7 * 9
OUTER = (SEQ - 1) // UNROLL
assert OUTER * UNROLL == SEQ - 1

# fused-RHS column layout (lane-aligned, scores drain first):
#   wf_rest  (128, 640): [ scores 0:64 | pad 64:128 | comb_x 128:256 | gh 256:640 ]
#   wf_first (128, 512): [ scores 0:64 | pad 64:128 |                  gh 128:512 ]
REST_COLS = 5 * HID
FIRST_COLS = 4 * HID


def decoder_kernel(
    h0_ref, enc_wca_ref, wf_first_ref, wf_rest_ref,
    w_ih_ref, b_ih_ref, b_hh_ref, b_attn_ref, b_comb_ref,
    w1_ref, b1_ref, w2_ref, b2_ref,
    out_ref, hfin_ref,
    seq_scr,
):
    f32 = jnp.float32

    # ---- hoist biases into vregs for the whole recurrence (~8 vregs) -------
    b_attn = b_attn_ref[...]          # (1, 64)
    b_comb = b_comb_ref[...]          # (1, 128)
    b_ih = b_ih_ref[...]              # (1, 384)
    b_hh = b_hh_ref[...]              # (1, 384)

    def cell(scores_lin, comb_x_lin, gh_lin, h):
        # attention softmax with deferred normalization:
        #   applied = (exp(s - max) @ enc_wca) * 1/sum(exp)   (scalar factors out)
        s = scores_lin + b_attn                                            # (1, 64)
        s = s - jnp.max(s, axis=1, keepdims=True)
        e = jnp.exp(s)
        applied = jnp.dot(e, enc_wca_ref[...], preferred_element_type=f32)  # (1, 128)
        inv = pl.reciprocal(jnp.sum(e, axis=1, keepdims=True), approx=True)
        # attn_combine (x-half already in comb_x_lin; enc@W_comb_a hoisted)
        comb = comb_x_lin + applied * inv + b_comb                          # (1, 128)
        g = jnp.maximum(comb, 0.0)
        # GRU cell, PyTorch gate order (r, z, n)
        gi = jnp.dot(g, w_ih_ref[...], preferred_element_type=f32) + b_ih
        gh = gh_lin + b_hh
        rz = jax.nn.sigmoid(gi[:, :2 * HID] + gh[:, :2 * HID])             # r, z in one EUP pass
        r = rz[:, :HID]
        z = rz[:, HID:]
        n = jnp.tanh(gi[:, 2 * HID:] + r * gh[:, 2 * HID:])
        return (1.0 - z) * n + z * h                                        # (1, 128)

    # ---- step 0 (peeled): x == 0, h == h0; only h-side weights survive -----
    h0 = h0_ref[...]
    hw0 = jnp.dot(h0, wf_first_ref[...], preferred_element_type=f32)        # (1, 512)
    h = cell(hw0[:, :ATTN], jnp.zeros((1, HID), f32), hw0[:, HID:], h0)
    seq_scr[0:1, :] = h

    # ---- steps 1..63: x == h -> single fused h-matmul per step -------------
    def outer_body(t, h):
        for u in range(UNROLL):                 # unroll factor 9 inside fori body
            idx = t * UNROLL + u + 1
            hw = jnp.dot(h, wf_rest_ref[...],
                         preferred_element_type=f32)                        # (1, 640)
            h = cell(hw[:, :ATTN], hw[:, HID:2 * HID], hw[:, 2 * HID:], h)
            seq_scr[pl.ds(idx, 1), :] = h
        return h

    h = lax.fori_loop(0, OUTER, outer_body, h)
    hfin_ref[...] = h

    # ---- head: Linear(128,50) -> ReLU -> Linear(50,2) -> Softmax(dim=1) ----
    # (lane-padded weights; padded logits sit at -1e30 -> probability 0)
    seq = seq_scr[...]                                                       # (64, 128)
    h1 = jnp.maximum(
        jnp.dot(seq, w1_ref[...], preferred_element_type=f32) + b1_ref[...], 0.0)
    logits = jnp.dot(h1, w2_ref[...], preferred_element_type=f32) + b2_ref[...]
    logits = logits - jnp.max(logits, axis=1, keepdims=True)
    e = jnp.exp(logits)
    out_ref[...] = e * pl.reciprocal(jnp.sum(e, axis=1, keepdims=True), approx=True)


def decoder_forward(encoder_outputs, hidden, p):
    f32 = jnp.float32
    h0 = hidden.reshape(1, HID).astype(f32)

    # split torch (out, in) weights and transpose to (in, out)
    w_attn_x = p["w_attn"][:, :HID].T            # (128, 64)
    w_attn_h = p["w_attn"][:, HID:].T            # (128, 64)
    w_comb_x = p["w_comb"][:, :HID].T            # (128, 128)
    w_comb_a = p["w_comb"][:, HID:].T            # (128, 128)
    w_ih_t = p["w_ih"].T                         # (128, 384)
    w_hh_t = p["w_hh"].T                         # (128, 384)

    # hoist enc @ W_comb_a out of the recurrence (full f32 precision)
    enc_wca = jnp.dot(encoder_outputs, w_comb_a, precision=lax.Precision.HIGHEST)

    # fused h-side RHS matrices, score columns FIRST (drain early from the MXU);
    # zero-pad scores 64 -> 128 so all downstream slices stay 128-lane aligned.
    zpad = jnp.zeros((HID, HID - ATTN), f32)
    wf_rest = jnp.concatenate(
        [w_attn_x + w_attn_h, zpad, w_comb_x, w_hh_t], axis=1)   # (128, 640)
    wf_first = jnp.concatenate(
        [w_attn_h, zpad, w_hh_t], axis=1)                        # (128, 512)
    assert wf_rest.shape == (HID, REST_COLS)
    assert wf_first.shape == (HID, FIRST_COLS)

    # lane-padded output head (50 -> 64, 2 -> 128)
    w1p = jnp.zeros((HID, H1P), f32).at[:, :H1].set(p["w1"].T)
    b1p = jnp.zeros((1, H1P), f32).at[:, :H1].set(p["b1"])
    w2p = jnp.zeros((H1P, OUTP), f32).at[:H1, :OUT].set(p["w2"].T)
    b2p = jnp.full((1, OUTP), -1e30, f32).at[:, :OUT].set(p["b2"])

    args = (
        h0, enc_wca, wf_first, wf_rest,
        w_ih_t, p["b_ih"].reshape(1, 3 * HID), p["b_hh"].reshape(1, 3 * HID),
        p["b_attn"].reshape(1, ATTN), p["b_comb"].reshape(1, HID),
        w1p, b1p, w2p, b2p,
    )
    out_pad, hfin = pl.pallas_call(
        decoder_kernel,
        out_shape=(jax.ShapeDtypeStruct((SEQ, OUTP), f32),
                   jax.ShapeDtypeStruct((1, HID), f32)),
        in_specs=[pl.BlockSpec(memory_space=pltpu.MemorySpace.VMEM)] * len(args),
        out_specs=(pl.BlockSpec(memory_space=pltpu.MemorySpace.VMEM),
                   pl.BlockSpec(memory_space=pltpu.MemorySpace.VMEM)),
        scratch_shapes=[pltpu.VMEM((SEQ, HID), jnp.float32)],   # decoded-output history
    )(*args)
    return out_pad[:, :OUT], hfin.reshape(1, 1, HID)


def decoder_reference(encoder_outputs, hidden, p):
    """Pure-JAX mirror of the PyTorch forward, for verification."""
    x = jnp.zeros((1, HID), jnp.float32)
    h = hidden.reshape(1, HID)
    rows = []
    for _ in range(SEQ):
        cat = jnp.concatenate([x, h], axis=1)
        aw = jax.nn.softmax(cat @ p["w_attn"].T + p["b_attn"], axis=1)
        applied = aw @ encoder_outputs
        comb = jnp.concatenate([x, applied], axis=1) @ p["w_comb"].T + p["b_comb"]
        g = jnp.maximum(comb, 0.0)
        gi = g @ p["w_ih"].T + p["b_ih"]
        gh = h @ p["w_hh"].T + p["b_hh"]
        r = jax.nn.sigmoid(gi[:, :HID] + gh[:, :HID])
        z = jax.nn.sigmoid(gi[:, HID:2 * HID] + gh[:, HID:2 * HID])
        n = jnp.tanh(gi[:, 2 * HID:] + r * gh[:, 2 * HID:])
        h = (1.0 - z) * n + z * h
        x = h
        rows.append(h[0])
    seq = jnp.stack(rows)
    h1 = jnp.maximum(seq @ p["w1"].T + p["b1"], 0.0)
    logits = h1 @ p["w2"].T + p["b2"]
    return jax.nn.softmax(logits, axis=1), h.reshape(1, 1, HID)


def init_params(key):
    """Deterministic synthetic parameters (PyTorch (out, in) layout)."""
    ks = jax.random.split(key, 12)

    def u(k, shape, fan_in):
        b = 1.0 / jnp.sqrt(jnp.float32(fan_in))
        return jax.random.uniform(k, shape, jnp.float32, -b, b)

    return dict(
        w_attn=u(ks[0], (ATTN, 2 * HID), 2 * HID),
        b_attn=u(ks[1], (ATTN,), 2 * HID),
        w_comb=u(ks[2], (HID, 2 * HID), 2 * HID),
        b_comb=u(ks[3], (HID,), 2 * HID),
        w_ih=u(ks[4], (3 * HID, HID), HID),
        w_hh=u(ks[5], (3 * HID, HID), HID),
        b_ih=u(ks[6], (3 * HID,), HID),
        b_hh=u(ks[7], (3 * HID,), HID),
        w1=u(ks[8], (H1, HID), HID),
        b1=u(ks[9], (H1,), HID),
        w2=u(ks[10], (OUT, H1), H1),
        b2=u(ks[11], (OUT,), H1),
    )


if __name__ == "__main__":
    key = jax.random.PRNGKey(0)
    k_enc, k_hid, k_par = jax.random.split(key, 3)

    # shapes implied by the torch forward: encoder_outputs (64, 128), hidden (1, 1, 128)
    encoder_outputs = jax.random.normal(k_enc, (SEQ, HID), jnp.float32)
    hidden = jax.random.normal(k_hid, (1, 1, HID), jnp.float32) * 0.1
    params = init_params(k_par)

    out, hfin = jax.block_until_ready(decoder_forward(encoder_outputs, hidden, params))
    ref_out, ref_hfin = decoder_reference(encoder_outputs, hidden, params)

    assert out.shape == (SEQ, OUT) and hfin.shape == (1, 1, HID)
    # approx-reciprocal softmax (x64 recurrent steps) and the enc@W_comb_a /
    # deferred-normalization re-associations change rounding vs. the exact
    # reference -> keep the previously-validated 2e-3 tolerance.
    assert jnp.allclose(out, ref_out, atol=2e-3, rtol=2e-3)
    assert jnp.allclose(hfin, ref_hfin, atol=2e-3, rtol=2e-3)
    print("KERNEL_OK")
</pallas_src>

<mosaic_0001>
module attributes {stable_mosaic.version = 11 : i64} {
  func.func @decoder_kernel(%arg0: memref<1x128xf32, #tpu.memory_space<vmem>>, %arg1: memref<64x128xf32, #tpu.memory_space<vmem>>, %arg2: memref<128x512xf32, #tpu.memory_space<vmem>>, %arg3: memref<128x640xf32, #tpu.memory_space<vmem>>, %arg4: memref<128x384xf32, #tpu.memory_space<vmem>>, %arg5: memref<1x384xf32, #tpu.memory_space<vmem>>, %arg6: memref<1x384xf32, #tpu.memory_space<vmem>>, %arg7: memref<1x64xf32, #tpu.memory_space<vmem>>, %arg8: memref<1x128xf32, #tpu.memory_space<vmem>>, %arg9: memref<128x64xf32, #tpu.memory_space<vmem>>, %arg10: memref<1x64xf32, #tpu.memory_space<vmem>>, %arg11: memref<64x128xf32, #tpu.memory_space<vmem>>, %arg12: memref<1x128xf32, #tpu.memory_space<vmem>>, %arg13: memref<64x128xf32, #tpu.memory_space<vmem>>, %arg14: memref<1x128xf32, #tpu.memory_space<vmem>>, %arg15: memref<64x128xf32, #tpu.memory_space<vmem>>) attributes {dimension_semantics = [], scalar_prefetch = 0 : i64, scratch_operands = 1 : i64, tpu.core_type = #tpu.core_type<tc>} {
    %c0 = arith.constant 0 : index
    %c0_0 = arith.constant 0 : index
    %0 = vector.load %arg7[%c0, %c0_0] : memref<1x64xf32, #tpu.memory_space<vmem>>, vector<1x64xf32>
    %c0_1 = arith.constant 0 : index
    %c0_2 = arith.constant 0 : index
    %1 = vector.load %arg8[%c0_1, %c0_2] : memref<1x128xf32, #tpu.memory_space<vmem>>, vector<1x128xf32>
    %c0_3 = arith.constant 0 : index
    %c0_4 = arith.constant 0 : index
    %2 = vector.load %arg5[%c0_3, %c0_4] : memref<1x384xf32, #tpu.memory_space<vmem>>, vector<1x384xf32>
    %c0_5 = arith.constant 0 : index
    %c0_6 = arith.constant 0 : index
    %3 = vector.load %arg6[%c0_5, %c0_6] : memref<1x384xf32, #tpu.memory_space<vmem>>, vector<1x384xf32>
    %c0_7 = arith.constant 0 : index
    %c0_8 = arith.constant 0 : index
    %4 = vector.load %arg0[%c0_7, %c0_8] : memref<1x128xf32, #tpu.memory_space<vmem>>, vector<1x128xf32>
    %c0_9 = arith.constant 0 : index
    %c0_10 = arith.constant 0 : index
    %5 = vector.load %arg2[%c0_9, %c0_10] : memref<128x512xf32, #tpu.memory_space<vmem>>, vector<128x512xf32>
    %cst = arith.constant dense<0.000000e+00> : vector<1x512xf32>
    %6 = tpu.matmul %4, %5, %cst {dimension_numbers = #tpu.dot_dimension_numbers<[1], [0], [0], [1], [0, 0, 1, 1], [], []>} : vector<1x128xf32>, vector<128x512xf32>, vector<1x512xf32> -> vector<1x512xf32>
    %7 = vector.extract_strided_slice %6 {offsets = [0, 0], sizes = [1, 64], strides = [1, 1]} : vector<1x512xf32> to vector<1x64xf32>
    %cst_11 = arith.constant 0.000000e+00 : f32
    %8 = vector.broadcast %cst_11 : f32 to vector<1x128xf32>
    %9 = vector.extract_strided_slice %6 {offsets = [0, 128], sizes = [1, 384], strides = [1, 1]} : vector<1x512xf32> to vector<1x384xf32>
    %10 = arith.addf %7, %0 : vector<1x64xf32>
    %cst_12 = arith.constant dense<0xFF800000> : vector<1xf32>
    %11 = vector.multi_reduction <maximumf>, %10, %cst_12 [1] : vector<1x64xf32> to vector<1xf32>
    %12 = vector.shape_cast %11 : vector<1xf32> to vector<1x1xf32>
    %13 = vector.broadcast %12 : vector<1x1xf32> to vector<1x64xf32>
    %14 = arith.subf %10, %13 : vector<1x64xf32>
    %15 = math.exp %14 : vector<1x64xf32>
    %c0_13 = arith.constant 0 : index
    %c0_14 = arith.constant 0 : index
    %16 = vector.load %arg1[%c0_13, %c0_14] : memref<64x128xf32, #tpu.memory_space<vmem>>, vector<64x128xf32>
    %cst_15 = arith.constant dense<0.000000e+00> : vector<1x128xf32>
    %17 = tpu.matmul %15, %16, %cst_15 {dimension_numbers = #tpu.dot_dimension_numbers<[1], [0], [0], [1], [0, 0, 1, 1], [], []>} : vector<1x64xf32>, vector<64x128xf32>, vector<1x128xf32> -> vector<1x128xf32>
    %cst_16 = arith.constant dense<0.000000e+00> : vector<1xf32>
    %18 = vector.multi_reduction <add>, %15, %cst_16 [1] : vector<1x64xf32> to vector<1xf32>
    %19 = vector.shape_cast %18 : vector<1xf32> to vector<1x1xf32>
    %20 = tpu.reciprocal %19 {approx = true} : vector<1x1xf32> -> vector<1x1xf32>
    %21 = vector.broadcast %20 : vector<1x1xf32> to vector<1x128xf32>
    %22 = arith.mulf %17, %21 : vector<1x128xf32>
    %23 = arith.addf %8, %22 : vector<1x128xf32>
    %24 = arith.addf %23, %1 : vector<1x128xf32>
    %cst_17 = arith.constant 0.000000e+00 : f32
    %25 = vector.broadcast %cst_17 : f32 to vector<1x128xf32>
    %26 = arith.maximumf %24, %25 : vector<1x128xf32>
    %c0_18 = arith.constant 0 : index
    %c0_19 = arith.constant 0 : index
    %27 = vector.load %arg4[%c0_18, %c0_19] : memref<128x384xf32, #tpu.memory_space<vmem>>, vector<128x384xf32>
    %cst_20 = arith.constant dense<0.000000e+00> : vector<1x384xf32>
    %28 = tpu.matmul %26, %27, %cst_20 {dimension_numbers = #tpu.dot_dimension_numbers<[1], [0], [0], [1], [0, 0, 1, 1], [], []>} : vector<1x128xf32>, vector<128x384xf32>, vector<1x384xf32> -> vector<1x384xf32>
    %29 = arith.addf %28, %2 : vector<1x384xf32>
    %30 = arith.addf %9, %3 : vector<1x384xf32>
    %31 = vector.extract_strided_slice %29 {offsets = [0, 0], sizes = [1, 256], strides = [1, 1]} : vector<1x384xf32> to vector<1x256xf32>
    %32 = vector.extract_strided_slice %30 {offsets = [0, 0], sizes = [1, 256], strides = [1, 1]} : vector<1x384xf32> to vector<1x256xf32>
    %33 = arith.addf %31, %32 : vector<1x256xf32>
    %34 = arith.negf %33 : vector<1x256xf32>
    %35 = math.exp %34 : vector<1x256xf32>
    %cst_21 = arith.constant 1.000000e+00 : f32
    %36 = vector.broadcast %cst_21 : f32 to vector<1x256xf32>
    %37 = arith.addf %36, %35 : vector<1x256xf32>
    %38 = arith.divf %36, %37 : vector<1x256xf32>
    %39 = vector.extract_strided_slice %38 {offsets = [0, 0], sizes = [1, 128], strides = [1, 1]} : vector<1x256xf32> to vector<1x128xf32>
    %40 = vector.extract_strided_slice %38 {offsets = [0, 128], sizes = [1, 128], strides = [1, 1]} : vector<1x256xf32> to vector<1x128xf32>
    %41 = vector.extract_strided_slice %29 {offsets = [0, 256], sizes = [1, 128], strides = [1, 1]} : vector<1x384xf32> to vector<1x128xf32>
    %42 = vector.extract_strided_slice %30 {offsets = [0, 256], sizes = [1, 128], strides = [1, 1]} : vector<1x384xf32> to vector<1x128xf32>
    %43 = arith.mulf %39, %42 : vector<1x128xf32>
    %44 = arith.addf %41, %43 : vector<1x128xf32>
    %45 = math.tanh %44 : vector<1x128xf32>
    %cst_22 = arith.constant 1.000000e+00 : f32
    %46 = vector.broadcast %cst_22 : f32 to vector<1x128xf32>
    %47 = arith.subf %46, %40 : vector<1x128xf32>
    %48 = arith.mulf %47, %45 : vector<1x128xf32>
    %49 = arith.mulf %40, %4 : vector<1x128xf32>
    %50 = arith.addf %48, %49 : vector<1x128xf32>
    %c0_23 = arith.constant 0 : index
    %c0_24 = arith.constant 0 : index
    %51 = vector.load %arg15[%c0_23, %c0_24] : memref<64x128xf32, #tpu.memory_space<vmem>>, vector<1x128xf32>
    tpu.vector_store %arg15[%c0_23, %c0_24], %50 {strides = array<i32>} : memref<64x128xf32, #tpu.memory_space<vmem>>, vector<1x128xf32>,
    %c0_i32 = arith.constant 0 : i32
    %c7_i32 = arith.constant 7 : i32
    %52 = arith.addi %c0_i32, %c7_i32 : i32
    %c1_i32 = arith.constant 1 : i32
    %53 = scf.for %arg16 = %c0_i32 to %52 step %c1_i32 iter_args(%arg17 = %50) -> (vector<1x128xf32>)  : i32 {
      %c9_i32 = arith.constant 9 : i32
      %79 = arith.muli %arg16, %c9_i32 : i32
      %c0_i32_45 = arith.constant 0 : i32
      %80 = arith.addi %79, %c0_i32_45 : i32
      %c1_i32_46 = arith.constant 1 : i32
      %81 = arith.addi %80, %c1_i32_46 : i32
      %c0_47 = arith.constant 0 : index
      %c0_48 = arith.constant 0 : index
      %82 = vector.load %arg3[%c0_47, %c0_48] : memref<128x640xf32, #tpu.memory_space<vmem>>, vector<128x640xf32>
      %cst_49 = arith.constant dense<0.000000e+00> : vector<1x640xf32>
      %83 = tpu.matmul %arg17, %82, %cst_49 {dimension_numbers = #tpu.dot_dimension_numbers<[1], [0], [0], [1], [0, 0, 1, 1], [], []>} : vector<1x128xf32>, vector<128x640xf32>, vector<1x640xf32> -> vector<1x640xf32>
      %84 = vector.extract_strided_slice %83 {offsets = [0, 0], sizes = [1, 64], strides = [1, 1]} : vector<1x640xf32> to vector<1x64xf32>
      %85 = vector.extract_strided_slice %83 {offsets = [0, 128], sizes = [1, 128], strides = [1, 1]} : vector<1x640xf32> to vector<1x128xf32>
      %86 = vector.extract_strided_slice %83 {offsets = [0, 256], sizes = [1, 384], strides = [1, 1]} : vector<1x640xf32> to vector<1x384xf32>
      %87 = arith.addf %84, %0 : vector<1x64xf32>
      %cst_50 = arith.constant dense<0xFF800000> : vector<1xf32>
      %88 = vector.multi_reduction <maximumf>, %87, %cst_50 [1] : vector<1x64xf32> to vector<1xf32>
      %89 = vector.shape_cast %88 : vector<1xf32> to vector<1x1xf32>
      %90 = vector.broadcast %89 : vector<1x1xf32> to vector<1x64xf32>
      %91 = arith.subf %87, %90 : vector<1x64xf32>
      %92 = math.exp %91 : vector<1x64xf32>
      %c0_51 = arith.constant 0 : index
      %c0_52 = arith.constant 0 : index
      %93 = vector.load %arg1[%c0_51, %c0_52] : memref<64x128xf32, #tpu.memory_space<vmem>>, vector<64x128xf32>
      %cst_53 = arith.constant dense<0.000000e+00> : vector<1x128xf32>
      %94 = tpu.matmul %92, %93, %cst_53 {dimension_numbers = #tpu.dot_dimension_numbers<[1], [0], [0], [1], [0, 0, 1, 1], [], []>} : vector<1x64xf32>, vector<64x128xf32>, vector<1x128xf32> -> vector<1x128xf32>
      %cst_54 = arith.constant dense<0.000000e+00> : vector<1xf32>
      %95 = vector.multi_reduction <add>, %92, %cst_54 [1] : vector<1x64xf32> to vector<1xf32>
      %96 = vector.shape_cast %95 : vector<1xf32> to vector<1x1xf32>
      %97 = tpu.reciprocal %96 {approx = true} : vector<1x1xf32> -> vector<1x1xf32>
      %98 = vector.broadcast %97 : vector<1x1xf32> to vector<1x128xf32>
      %99 = arith.mulf %94, %98 : vector<1x128xf32>
      %100 = arith.addf %85, %99 : vector<1x128xf32>
      %101 = arith.addf %100, %1 : vector<1x128xf32>
      %cst_55 = arith.constant 0.000000e+00 : f32
      %102 = vector.broadcast %cst_55 : f32 to vector<1x128xf32>
      %103 = arith.maximumf %101, %102 : vector<1x128xf32>
      %c0_56 = arith.constant 0 : index
      %c0_57 = arith.constant 0 : index
      %104 = vector.load %arg4[%c0_56, %c0_57] : memref<128x384xf32, #tpu.memory_space<vmem>>, vector<128x384xf32>
      %cst_58 = arith.constant dense<0.000000e+00> : vector<1x384xf32>
      %105 = tpu.matmul %103, %104, %cst_58 {dimension_numbers = #tpu.dot_dimension_numbers<[1], [0], [0], [1], [0, 0, 1, 1], [], []>} : vector<1x128xf32>, vector<128x384xf32>, vector<1x384xf32> -> vector<1x384xf32>
      %106 = arith.addf %105, %2 : vector<1x384xf32>
      %107 = arith.addf %86, %3 : vector<1x384xf32>
      %108 = vector.extract_strided_slice %106 {offsets = [0, 0], sizes = [1, 256], strides = [1, 1]} : vector<1x384xf32> to vector<1x256xf32>
      %109 = vector.extract_strided_slice %107 {offsets = [0, 0], sizes = [1, 256], strides = [1, 1]} : vector<1x384xf32> to vector<1x256xf32>
      %110 = arith.addf %108, %109 : vector<1x256xf32>
      %111 = arith.negf %110 : vector<1x256xf32>
      %112 = math.exp %111 : vector<1x256xf32>
      %cst_59 = arith.constant 1.000000e+00 : f32
      %113 = vector.broadcast %cst_59 : f32 to vector<1x256xf32>
      %114 = arith.addf %113, %112 : vector<1x256xf32>
      %115 = arith.divf %113, %114 : vector<1x256xf32>
      %116 = vector.extract_strided_slice %115 {offsets = [0, 0], sizes = [1, 128], strides = [1, 1]} : vector<1x256xf32> to vector<1x128xf32>
      %117 = vector.extract_strided_slice %115 {offsets = [0, 128], sizes = [1, 128], strides = [1, 1]} : vector<1x256xf32> to vector<1x128xf32>
      %118 = vector.extract_strided_slice %106 {offsets = [0, 256], sizes = [1, 128], strides = [1, 1]} : vector<1x384xf32> to vector<1x128xf32>
      %119 = vector.extract_strided_slice %107 {offsets = [0, 256], sizes = [1, 128], strides = [1, 1]} : vector<1x384xf32> to vector<1x128xf32>
      %120 = arith.mulf %116, %119 : vector<1x128xf32>
      %121 = arith.addf %118, %120 : vector<1x128xf32>
      %122 = math.tanh %121 : vector<1x128xf32>
      %cst_60 = arith.constant 1.000000e+00 : f32
      %123 = vector.broadcast %cst_60 : f32 to vector<1x128xf32>
      %124 = arith.subf %123, %117 : vector<1x128xf32>
      %125 = arith.mulf %124, %122 : vector<1x128xf32>
      %126 = arith.mulf %117, %arg17 : vector<1x128xf32>
      %127 = arith.addf %125, %126 : vector<1x128xf32>
      %128 = arith.index_cast %81 : i32 to index
      %c0_61 = arith.constant 0 : index
      %129 = vector.load %arg15[%128, %c0_61] : memref<64x128xf32, #tpu.memory_space<vmem>>, vector<1x128xf32>
      tpu.vector_store %arg15[%128, %c0_61], %127 {strides = array<i32>} : memref<64x128xf32, #tpu.memory_space<vmem>>, vector<1x128xf32>,
      %c9_i32_62 = arith.constant 9 : i32
      %130 = arith.muli %arg16, %c9_i32_62 : i32
      %c1_i32_63 = arith.constant 1 : i32
      %131 = arith.addi %130, %c1_i32_63 : i32
      %c1_i32_64 = arith.constant 1 : i32
      %132 = arith.addi %131, %c1_i32_64 : i32
      %c0_65 = arith.constant 0 : index
      %c0_66 = arith.constant 0 : index
      %133 = vector.load %arg3[%c0_65, %c0_66] : memref<128x640xf32, #tpu.memory_space<vmem>>, vector<128x640xf32>
      %cst_67 = arith.constant dense<0.000000e+00> : vector<1x640xf32>
      %134 = tpu.matmul %127, %133, %cst_67 {dimension_numbers = #tpu.dot_dimension_numbers<[1], [0], [0], [1], [0, 0, 1, 1], [], []>} : vector<1x128xf32>, vector<128x640xf32>, vector<1x640xf32> -> vector<1x640xf32>
      %135 = vector.extract_strided_slice %134 {offsets = [0, 0], sizes = [1, 64], strides = [1, 1]} : vector<1x640xf32> to vector<1x64xf32>
      %136 = vector.extract_strided_slice %134 {offsets = [0, 128], sizes = [1, 128], strides = [1, 1]} : vector<1x640xf32> to vector<1x128xf32>
      %137 = vector.extract_strided_slice %134 {offsets = [0, 256], sizes = [1, 384], strides = [1, 1]} : vector<1x640xf32> to vector<1x384xf32>
      %138 = arith.addf %135, %0 : vector<1x64xf32>
      %cst_68 = arith.constant dense<0xFF800000> : vector<1xf32>
      %139 = vector.multi_reduction <maximumf>, %138, %cst_68 [1] : vector<1x64xf32> to vector<1xf32>
      %140 = vector.shape_cast %139 : vector<1xf32> to vector<1x1xf32>
      %141 = vector.broadcast %140 : vector<1x1xf32> to vector<1x64xf32>
      %142 = arith.subf %138, %141 : vector<1x64xf32>
      %143 = math.exp %142 : vector<1x64xf32>
      %c0_69 = arith.constant 0 : index
      %c0_70 = arith.constant 0 : index
      %144 = vector.load %arg1[%c0_69, %c0_70] : memref<64x128xf32, #tpu.memory_space<vmem>>, vector<64x128xf32>
      %cst_71 = arith.constant dense<0.000000e+00> : vector<1x128xf32>
      %145 = tpu.matmul %143, %144, %cst_71 {dimension_numbers = #tpu.dot_dimension_numbers<[1], [0], [0], [1], [0, 0, 1, 1], [], []>} : vector<1x64xf32>, vector<64x128xf32>, vector<1x128xf32> -> vector<1x128xf32>
      %cst_72 = arith.constant dense<0.000000e+00> : vector<1xf32>
      %146 = vector.multi_reduction <add>, %143, %cst_72 [1] : vector<1x64xf32> to vector<1xf32>
      %147 = vector.shape_cast %146 : vector<1xf32> to vector<1x1xf32>
      %148 = tpu.reciprocal %147 {approx = true} : vector<1x1xf32> -> vector<1x1xf32>
      %149 = vector.broadcast %148 : vector<1x1xf32> to vector<1x128xf32>
      %150 = arith.mulf %145, %149 : vector<1x128xf32>
      %151 = arith.addf %136, %150 : vector<1x128xf32>
      %152 = arith.addf %151, %1 : vector<1x128xf32>
      %cst_73 = arith.constant 0.000000e+00 : f32
      %153 = vector.broadcast %cst_73 : f32 to vector<1x128xf32>
      %154 = arith.maximumf %152, %153 : vector<1x128xf32>
      %c0_74 = arith.constant 0 : index
      %c0_75 = arith.constant 0 : index
      %155 = vector.load %arg4[%c0_74, %c0_75] : memref<128x384xf32, #tpu.memory_space<vmem>>, vector<128x384xf32>
      %cst_76 = arith.constant dense<0.000000e+00> : vector<1x384xf32>
      %156 = tpu.matmul %154, %155, %cst_76 {dimension_numbers = #tpu.dot_dimension_numbers<[1], [0], [0], [1], [0, 0, 1, 1], [], []>} : vector<1x128xf32>, vector<128x384xf32>, vector<1x384xf32> -> vector<1x384xf32>
      %157 = arith.addf %156, %2 : vector<1x384xf32>
      %158 = arith.addf %137, %3 : vector<1x384xf32>
      %159 = vector.extract_strided_slice %157 {offsets = [0, 0], sizes = [1, 256], strides = [1, 1]} : vector<1x384xf32> to vector<1x256xf32>
      %160 = vector.extract_strided_slice %158 {offsets = [0, 0], sizes = [1, 256], strides = [1, 1]} : vector<1x384xf32> to vector<1x256xf32>
      %161 = arith.addf %159, %160 : vector<1x256xf32>
      %162 = arith.negf %161 : vector<1x256xf32>
      %163 = math.exp %162 : vector<1x256xf32>
      %cst_77 = arith.constant 1.000000e+00 : f32
      %164 = vector.broadcast %cst_77 : f32 to vector<1x256xf32>
      %165 = arith.addf %164, %163 : vector<1x256xf32>
      %166 = arith.divf %164, %165 : vector<1x256xf32>
      %167 = vector.extract_strided_slice %166 {offsets = [0, 0], sizes = [1, 128], strides = [1, 1]} : vector<1x256xf32> to vector<1x128xf32>
      %168 = vector.extract_strided_slice %166 {offsets = [0, 128], sizes = [1, 128], strides = [1, 1]} : vector<1x256xf32> to vector<1x128xf32>
      %169 = vector.extract_strided_slice %157 {offsets = [0, 256], sizes = [1, 128], strides = [1, 1]} : vector<1x384xf32> to vector<1x128xf32>
      %170 = vector.extract_strided_slice %158 {offsets = [0, 256], sizes = [1, 128], strides = [1, 1]} : vector<1x384xf32> to vector<1x128xf32>
      %171 = arith.mulf %167, %170 : vector<1x128xf32>
      %172 = arith.addf %169, %171 : vector<1x128xf32>
      %173 = math.tanh %172 : vector<1x128xf32>
      %cst_78 = arith.constant 1.000000e+00 : f32
      %174 = vector.broadcast %cst_78 : f32 to vector<1x128xf32>
      %175 = arith.subf %174, %168 : vector<1x128xf32>
      %176 = arith.mulf %175, %173 : vector<1x128xf32>
      %177 = arith.mulf %168, %127 : vector<1x128xf32>
      %178 = arith.addf %176, %177 : vector<1x128xf32>
      %179 = arith.index_cast %132 : i32 to index
      %c0_79 = arith.constant 0 : index
      %180 = vector.load %arg15[%179, %c0_79] : memref<64x128xf32, #tpu.memory_space<vmem>>, vector<1x128xf32>
      tpu.vector_store %arg15[%179, %c0_79], %178 {strides = array<i32>} : memref<64x128xf32, #tpu.memory_space<vmem>>, vector<1x128xf32>,
      %c9_i32_80 = arith.constant 9 : i32
      %181 = arith.muli %arg16, %c9_i32_80 : i32
      %c2_i32 = arith.constant 2 : i32
      %182 = arith.addi %181, %c2_i32 : i32
      %c1_i32_81 = arith.constant 1 : i32
      %183 = arith.addi %182, %c1_i32_81 : i32
      %c0_82 = arith.constant 0 : index
      %c0_83 = arith.constant 0 : index
      %184 = vector.load %arg3[%c0_82, %c0_83] : memref<128x640xf32, #tpu.memory_space<vmem>>, vector<128x640xf32>
      %cst_84 = arith.constant dense<0.000000e+00> : vector<1x640xf32>
      %185 = tpu.matmul %178, %184, %cst_84 {dimension_numbers = #tpu.dot_dimension_numbers<[1], [0], [0], [1], [0, 0, 1, 1], [], []>} : vector<1x128xf32>, vector<128x640xf32>, vector<1x640xf32> -> vector<1x640xf32>
      %186 = vector.extract_strided_slice %185 {offsets = [0, 0], sizes = [1, 64], strides = [1, 1]} : vector<1x640xf32> to vector<1x64xf32>
      %187 = vector.extract_strided_slice %185 {offsets = [0, 128], sizes = [1, 128], strides = [1, 1]} : vector<1x640xf32> to vector<1x128xf32>
      %188 = vector.extract_strided_slice %185 {offsets = [0, 256], sizes = [1, 384], strides = [1, 1]} : vector<1x640xf32> to vector<1x384xf32>
      %189 = arith.addf %186, %0 : vector<1x64xf32>
      %cst_85 = arith.constant dense<0xFF800000> : vector<1xf32>
      %190 = vector.multi_reduction <maximumf>, %189, %cst_85 [1] : vector<1x64xf32> to vector<1xf32>
      %191 = vector.shape_cast %190 : vector<1xf32> to vector<1x1xf32>
      %192 = vector.broadcast %191 : vector<1x1xf32> to vector<1x64xf32>
      %193 = arith.subf %189, %192 : vector<1x64xf32>
      %194 = math.exp %193 : vector<1x64xf32>
      %c0_86 = arith.constant 0 : index
      %c0_87 = arith.constant 0 : index
      %195 = vector.load %arg1[%c0_86, %c0_87] : memref<64x128xf32, #tpu.memory_space<vmem>>, vector<64x128xf32>
      %cst_88 = arith.constant dense<0.000000e+00> : vector<1x128xf32>
      %196 = tpu.matmul %194, %195, %cst_88 {dimension_numbers = #tpu.dot_dimension_numbers<[1], [0], [0], [1], [0, 0, 1, 1], [], []>} : vector<1x64xf32>, vector<64x128xf32>, vector<1x128xf32> -> vector<1x128xf32>
      %cst_89 = arith.constant dense<0.000000e+00> : vector<1xf32>
      %197 = vector.multi_reduction <add>, %194, %cst_89 [1] : vector<1x64xf32> to vector<1xf32>
      %198 = vector.shape_cast %197 : vector<1xf32> to vector<1x1xf32>
      %199 = tpu.reciprocal %198 {approx = true} : vector<1x1xf32> -> vector<1x1xf32>
      %200 = vector.broadcast %199 : vector<1x1xf32> to vector<1x128xf32>
      %201 = arith.mulf %196, %200 : vector<1x128xf32>
      %202 = arith.addf %187, %201 : vector<1x128xf32>
      %203 = arith.addf %202, %1 : vector<1x128xf32>
      %cst_90 = arith.constant 0.000000e+00 : f32
      %204 = vector.broadcast %cst_90 : f32 to vector<1x128xf32>
      %205 = arith.maximumf %203, %204 : vector<1x128xf32>
      %c0_91 = arith.constant 0 : index
      %c0_92 = arith.constant 0 : index
      %206 = vector.load %arg4[%c0_91, %c0_92] : memref<128x384xf32, #tpu.memory_space<vmem>>, vector<128x384xf32>
      %cst_93 = arith.constant dense<0.000000e+00> : vector<1x384xf32>
      %207 = tpu.matmul %205, %206, %cst_93 {dimension_numbers = #tpu.dot_dimension_numbers<[1], [0], [0], [1], [0, 0, 1, 1], [], []>} : vector<1x128xf32>, vector<128x384xf32>, vector<1x384xf32> -> vector<1x384xf32>
      %208 = arith.addf %207, %2 : vector<1x384xf32>
      %209 = arith.addf %188, %3 : vector<1x384xf32>
      %210 = vector.extract_strided_slice %208 {offsets = [0, 0], sizes = [1, 256], strides = [1, 1]} : vector<1x384xf32> to vector<1x256xf32>
      %211 = vector.extract_strided_slice %209 {offsets = [0, 0], sizes = [1, 256], strides = [1, 1]} : vector<1x384xf32> to vector<1x256xf32>
      %212 = arith.addf %210, %211 : vector<1x256xf32>
      %213 = arith.negf %212 : vector<1x256xf32>
      %214 = math.exp %213 : vector<1x256xf32>
      %cst_94 = arith.constant 1.000000e+00 : f32
      %215 = vector.broadcast %cst_94 : f32 to vector<1x256xf32>
      %216 = arith.addf %215, %214 : vector<1x256xf32>
      %217 = arith.divf %215, %216 : vector<1x256xf32>
      %218 = vector.extract_strided_slice %217 {offsets = [0, 0], sizes = [1, 128], strides = [1, 1]} : vector<1x256xf32> to vector<1x128xf32>
      %219 = vector.extract_strided_slice %217 {offsets = [0, 128], sizes = [1, 128], strides = [1, 1]} : vector<1x256xf32> to vector<1x128xf32>
      %220 = vector.extract_strided_slice %208 {offsets = [0, 256], sizes = [1, 128], strides = [1, 1]} : vector<1x384xf32> to vector<1x128xf32>
      %221 = vector.extract_strided_slice %209 {offsets = [0, 256], sizes = [1, 128], strides = [1, 1]} : vector<1x384xf32> to vector<1x128xf32>
      %222 = arith.mulf %218, %221 : vector<1x128xf32>
      %223 = arith.addf %220, %222 : vector<1x128xf32>
      %224 = math.tanh %223 : vector<1x128xf32>
      %cst_95 = arith.constant 1.000000e+00 : f32
      %225 = vector.broadcast %cst_95 : f32 to vector<1x128xf32>
      %226 = arith.subf %225, %219 : vector<1x128xf32>
      %227 = arith.mulf %226, %224 : vector<1x128xf32>
      %228 = arith.mulf %219, %178 : vector<1x128xf32>
      %229 = arith.addf %227, %228 : vector<1x128xf32>
      %230 = arith.index_cast %183 : i32 to index
      %c0_96 = arith.constant 0 : index
      %231 = vector.load %arg15[%230, %c0_96] : memref<64x128xf32, #tpu.memory_space<vmem>>, vector<1x128xf32>
      tpu.vector_store %arg15[%230, %c0_96], %229 {strides = array<i32>} : memref<64x128xf32, #tpu.memory_space<vmem>>, vector<1x128xf32>,
      %c9_i32_97 = arith.constant 9 : i32
      %232 = arith.muli %arg16, %c9_i32_97 : i32
      %c3_i32 = arith.constant 3 : i32
      %233 = arith.addi %232, %c3_i32 : i32
      %c1_i32_98 = arith.constant 1 : i32
      %234 = arith.addi %233, %c1_i32_98 : i32
      %c0_99 = arith.constant 0 : index
      %c0_100 = arith.constant 0 : index
      %235 = vector.load %arg3[%c0_99, %c0_100] : memref<128x640xf32, #tpu.memory_space<vmem>>, vector<128x640xf32>
      %cst_101 = arith.constant dense<0.000000e+00> : vector<1x640xf32>
      %236 = tpu.matmul %229, %235, %cst_101 {dimension_numbers = #tpu.dot_dimension_numbers<[1], [0], [0], [1], [0, 0, 1, 1], [], []>} : vector<1x128xf32>, vector<128x640xf32>, vector<1x640xf32> -> vector<1x640xf32>
      %237 = vector.extract_strided_slice %236 {offsets = [0, 0], sizes = [1, 64], strides = [1, 1]} : vector<1x640xf32> to vector<1x64xf32>
      %238 = vector.extract_strided_slice %236 {offsets = [0, 128], sizes = [1, 128], strides = [1, 1]} : vector<1x640xf32> to vector<1x128xf32>
      %239 = vector.extract_strided_slice %236 {offsets = [0, 256], sizes = [1, 384], strides = [1, 1]} : vector<1x640xf32> to vector<1x384xf32>
      %240 = arith.addf %237, %0 : vector<1x64xf32>
      %cst_102 = arith.constant dense<0xFF800000> : vector<1xf32>
      %241 = vector.multi_reduction <maximumf>, %240, %cst_102 [1] : vector<1x64xf32> to vector<1xf32>
      %242 = vector.shape_cast %241 : vector<1xf32> to vector<1x1xf32>
      %243 = vector.broadcast %242 : vector<1x1xf32> to vector<1x64xf32>
      %244 = arith.subf %240, %243 : vector<1x64xf32>
      %245 = math.exp %244 : vector<1x64xf32>
      %c0_103 = arith.constant 0 : index
      %c0_104 = arith.constant 0 : index
      %246 = vector.load %arg1[%c0_103, %c0_104] : memref<64x128xf32, #tpu.memory_space<vmem>>, vector<64x128xf32>
      %cst_105 = arith.constant dense<0.000000e+00> : vector<1x128xf32>
      %247 = tpu.matmul %245, %246, %cst_105 {dimension_numbers = #tpu.dot_dimension_numbers<[1], [0], [0], [1], [0, 0, 1, 1], [], []>} : vector<1x64xf32>, vector<64x128xf32>, vector<1x128xf32> -> vector<1x128xf32>
      %cst_106 = arith.constant dense<0.000000e+00> : vector<1xf32>
      %248 = vector.multi_reduction <add>, %245, %cst_106 [1] : vector<1x64xf32> to vector<1xf32>
      %249 = vector.shape_cast %248 : vector<1xf32> to vector<1x1xf32>
      %250 = tpu.reciprocal %249 {approx = true} : vector<1x1xf32> -> vector<1x1xf32>
      %251 = vector.broadcast %250 : vector<1x1xf32> to vector<1x128xf32>
      %252 = arith.mulf %247, %251 : vector<1x128xf32>
      %253 = arith.addf %238, %252 : vector<1x128xf32>
      %254 = arith.addf %253, %1 : vector<1x128xf32>
      %cst_107 = arith.constant 0.000000e+00 : f32
      %255 = vector.broadcast %cst_107 : f32 to vector<1x128xf32>
      %256 = arith.maximumf %254, %255 : vector<1x128xf32>
      %c0_108 = arith.constant 0 : index
      %c0_109 = arith.constant 0 : index
      %257 = vector.load %arg4[%c0_108, %c0_109] : memref<128x384xf32, #tpu.memory_space<vmem>>, vector<128x384xf32>
      %cst_110 = arith.constant dense<0.000000e+00> : vector<1x384xf32>
      %258 = tpu.matmul %256, %257, %cst_110 {dimension_numbers = #tpu.dot_dimension_numbers<[1], [0], [0], [1], [0, 0, 1, 1], [], []>} : vector<1x128xf32>, vector<128x384xf32>, vector<1x384xf32> -> vector<1x384xf32>
      %259 = arith.addf %258, %2 : vector<1x384xf32>
      %260 = arith.addf %239, %3 : vector<1x384xf32>
      %261 = vector.extract_strided_slice %259 {offsets = [0, 0], sizes = [1, 256], strides = [1, 1]} : vector<1x384xf32> to vector<1x256xf32>
      %262 = vector.extract_strided_slice %260 {offsets = [0, 0], sizes = [1, 256], strides = [1, 1]} : vector<1x384xf32> to vector<1x256xf32>
      %263 = arith.addf %261, %262 : vector<1x256xf32>
      %264 = arith.negf %263 : vector<1x256xf32>
      %265 = math.exp %264 : vector<1x256xf32>
      %cst_111 = arith.constant 1.000000e+00 : f32
      %266 = vector.broadcast %cst_111 : f32 to vector<1x256xf32>
      %267 = arith.addf %266, %265 : vector<1x256xf32>
      %268 = arith.divf %266, %267 : vector<1x256xf32>
      %269 = vector.extract_strided_slice %268 {offsets = [0, 0], sizes = [1, 128], strides = [1, 1]} : vector<1x256xf32> to vector<1x128xf32>
      %270 = vector.extract_strided_slice %268 {offsets = [0, 128], sizes = [1, 128], strides = [1, 1]} : vector<1x256xf32> to vector<1x128xf32>
      %271 = vector.extract_strided_slice %259 {offsets = [0, 256], sizes = [1, 128], strides = [1, 1]} : vector<1x384xf32> to vector<1x128xf32>
      %272 = vector.extract_strided_slice %260 {offsets = [0, 256], sizes = [1, 128], strides = [1, 1]} : vector<1x384xf32> to vector<1x128xf32>
      %273 = arith.mulf %269, %272 : vector<1x128xf32>
      %274 = arith.addf %271, %273 : vector<1x128xf32>
      %275 = math.tanh %274 : vector<1x128xf32>
      %cst_112 = arith.constant 1.000000e+00 : f32
      %276 = vector.broadcast %cst_112 : f32 to vector<1x128xf32>
      %277 = arith.subf %276, %270 : vector<1x128xf32>
      %278 = arith.mulf %277, %275 : vector<1x128xf32>
      %279 = arith.mulf %270, %229 : vector<1x128xf32>
      %280 = arith.addf %278, %279 : vector<1x128xf32>
      %281 = arith.index_cast %234 : i32 to index
      %c0_113 = arith.constant 0 : index
      %282 = vector.load %arg15[%281, %c0_113] : memref<64x128xf32, #tpu.memory_space<vmem>>, vector<1x128xf32>
      tpu.vector_store %arg15[%281, %c0_113], %280 {strides = array<i32>} : memref<64x128xf32, #tpu.memory_space<vmem>>, vector<1x128xf32>,
      %c9_i32_114 = arith.constant 9 : i32
      %283 = arith.muli %arg16, %c9_i32_114 : i32
      %c4_i32 = arith.constant 4 : i32
      %284 = arith.addi %283, %c4_i32 : i32
      %c1_i32_115 = arith.constant 1 : i32
      %285 = arith.addi %284, %c1_i32_115 : i32
      %c0_116 = arith.constant 0 : index
      %c0_117 = arith.constant 0 : index
      %286 = vector.load %arg3[%c0_116, %c0_117] : memref<128x640xf32, #tpu.memory_space<vmem>>, vector<128x640xf32>
      %cst_118 = arith.constant dense<0.000000e+00> : vector<1x640xf32>
      %287 = tpu.matmul %280, %286, %cst_118 {dimension_numbers = #tpu.dot_dimension_numbers<[1], [0], [0], [1], [0, 0, 1, 1], [], []>} : vector<1x128xf32>, vector<128x640xf32>, vector<1x640xf32> -> vector<1x640xf32>
      %288 = vector.extract_strided_slice %287 {offsets = [0, 0], sizes = [1, 64], strides = [1, 1]} : vector<1x640xf32> to vector<1x64xf32>
      %289 = vector.extract_strided_slice %287 {offsets = [0, 128], sizes = [1, 128], strides = [1, 1]} : vector<1x640xf32> to vector<1x128xf32>
      %290 = vector.extract_strided_slice %287 {offsets = [0, 256], sizes = [1, 384], strides = [1, 1]} : vector<1x640xf32> to vector<1x384xf32>
      %291 = arith.addf %288, %0 : vector<1x64xf32>
      %cst_119 = arith.constant dense<0xFF800000> : vector<1xf32>
      %292 = vector.multi_reduction <maximumf>, %291, %cst_119 [1] : vector<1x64xf32> to vector<1xf32>
      %293 = vector.shape_cast %292 : vector<1xf32> to vector<1x1xf32>
      %294 = vector.broadcast %293 : vector<1x1xf32> to vector<1x64xf32>
      %295 = arith.subf %291, %294 : vector<1x64xf32>
      %296 = math.exp %295 : vector<1x64xf32>
      %c0_120 = arith.constant 0 : index
      %c0_121 = arith.constant 0 : index
      %297 = vector.load %arg1[%c0_120, %c0_121] : memref<64x128xf32, #tpu.memory_space<vmem>>, vector<64x128xf32>
      %cst_122 = arith.constant dense<0.000000e+00> : vector<1x128xf32>
      %298 = tpu.matmul %296, %297, %cst_122 {dimension_numbers = #tpu.dot_dimension_numbers<[1], [0], [0], [1], [0, 0, 1, 1], [], []>} : vector<1x64xf32>, vector<64x128xf32>, vector<1x128xf32> -> vector<1x128xf32>
      %cst_123 = arith.constant dense<0.000000e+00> : vector<1xf32>
      %299 = vector.multi_reduction <add>, %296, %cst_123 [1] : vector<1x64xf32> to vector<1xf32>
      %300 = vector.shape_cast %299 : vector<1xf32> to vector<1x1xf32>
      %301 = tpu.reciprocal %300 {approx = true} : vector<1x1xf32> -> vector<1x1xf32>
      %302 = vector.broadcast %301 : vector<1x1xf32> to vector<1x128xf32>
      %303 = arith.mulf %298, %302 : vector<1x128xf32>
      %304 = arith.addf %289, %303 : vector<1x128xf32>
      %305 = arith.addf %304, %1 : vector<1x128xf32>
      %cst_124 = arith.constant 0.000000e+00 : f32
      %306 = vector.broadcast %cst_124 : f32 to vector<1x128xf32>
      %307 = arith.maximumf %305, %306 : vector<1x128xf32>
      %c0_125 = arith.constant 0 : index
      %c0_126 = arith.constant 0 : index
      %308 = vector.load %arg4[%c0_125, %c0_126] : memref<128x384xf32, #tpu.memory_space<vmem>>, vector<128x384xf32>
      %cst_127 = arith.constant dense<0.000000e+00> : vector<1x384xf32>
      %309 = tpu.matmul %307, %308, %cst_127 {dimension_numbers = #tpu.dot_dimension_numbers<[1], [0], [0], [1], [0, 0, 1, 1], [], []>} : vector<1x128xf32>, vector<128x384xf32>, vector<1x384xf32> -> vector<1x384xf32>
      %310 = arith.addf %309, %2 : vector<1x384xf32>
      %311 = arith.addf %290, %3 : vector<1x384xf32>
      %312 = vector.extract_strided_slice %310 {offsets = [0, 0], sizes = [1, 256], strides = [1, 1]} : vector<1x384xf32> to vector<1x256xf32>
      %313 = vector.extract_strided_slice %311 {offsets = [0, 0], sizes = [1, 256], strides = [1, 1]} : vector<1x384xf32> to vector<1x256xf32>
      %314 = arith.addf %312, %313 : vector<1x256xf32>
      %315 = arith.negf %314 : vector<1x256xf32>
      %316 = math.exp %315 : vector<1x256xf32>
      %cst_128 = arith.constant 1.000000e+00 : f32
      %317 = vector.broadcast %cst_128 : f32 to vector<1x256xf32>
      %318 = arith.addf %317, %316 : vector<1x256xf32>
      %319 = arith.divf %317, %318 : vector<1x256xf32>
      %320 = vector.extract_strided_slice %319 {offsets = [0, 0], sizes = [1, 128], strides = [1, 1]} : vector<1x256xf32> to vector<1x128xf32>
      %321 = vector.extract_strided_slice %319 {offsets = [0, 128], sizes = [1, 128], strides = [1, 1]} : vector<1x256xf32> to vector<1x128xf32>
      %322 = vector.extract_strided_slice %310 {offsets = [0, 256], sizes = [1, 128], strides = [1, 1]} : vector<1x384xf32> to vector<1x128xf32>
      %323 = vector.extract_strided_slice %311 {offsets = [0, 256], sizes = [1, 128], strides = [1, 1]} : vector<1x384xf32> to vector<1x128xf32>
      %324 = arith.mulf %320, %323 : vector<1x128xf32>
      %325 = arith.addf %322, %324 : vector<1x128xf32>
      %326 = math.tanh %325 : vector<1x128xf32>
      %cst_129 = arith.constant 1.000000e+00 : f32
      %327 = vector.broadcast %cst_129 : f32 to vector<1x128xf32>
      %328 = arith.subf %327, %321 : vector<1x128xf32>
      %329 = arith.mulf %328, %326 : vector<1x128xf32>
      %330 = arith.mulf %321, %280 : vector<1x128xf32>
      %331 = arith.addf %329, %330 : vector<1x128xf32>
      %332 = arith.index_cast %285 : i32 to index
      %c0_130 = arith.constant 0 : index
      %333 = vector.load %arg15[%332, %c0_130] : memref<64x128xf32, #tpu.memory_space<vmem>>, vector<1x128xf32>
      tpu.vector_store %arg15[%332, %c0_130], %331 {strides = array<i32>} : memref<64x128xf32, #tpu.memory_space<vmem>>, vector<1x128xf32>,
      %c9_i32_131 = arith.constant 9 : i32
      %334 = arith.muli %arg16, %c9_i32_131 : i32
      %c5_i32 = arith.constant 5 : i32
      %335 = arith.addi %334, %c5_i32 : i32
      %c1_i32_132 = arith.constant 1 : i32
      %336 = arith.addi %335, %c1_i32_132 : i32
      %c0_133 = arith.constant 0 : index
      %c0_134 = arith.constant 0 : index
      %337 = vector.load %arg3[%c0_133, %c0_134] : memref<128x640xf32, #tpu.memory_space<vmem>>, vector<128x640xf32>
      %cst_135 = arith.constant dense<0.000000e+00> : vector<1x640xf32>
      %338 = tpu.matmul %331, %337, %cst_135 {dimension_numbers = #tpu.dot_dimension_numbers<[1], [0], [0], [1], [0, 0, 1, 1], [], []>} : vector<1x128xf32>, vector<128x640xf32>, vector<1x640xf32> -> vector<1x640xf32>
      %339 = vector.extract_strided_slice %338 {offsets = [0, 0], sizes = [1, 64], strides = [1, 1]} : vector<1x640xf32> to vector<1x64xf32>
      %340 = vector.extract_strided_slice %338 {offsets = [0, 128], sizes = [1, 128], strides = [1, 1]} : vector<1x640xf32> to vector<1x128xf32>
      %341 = vector.extract_strided_slice %338 {offsets = [0, 256], sizes = [1, 384], strides = [1, 1]} : vector<1x640xf32> to vector<1x384xf32>
      %342 = arith.addf %339, %0 : vector<1x64xf32>
      %cst_136 = arith.constant dense<0xFF800000> : vector<1xf32>
      %343 = vector.multi_reduction <maximumf>, %342, %cst_136 [1] : vector<1x64xf32> to vector<1xf32>
      %344 = vector.shape_cast %343 : vector<1xf32> to vector<1x1xf32>
      %345 = vector.broadcast %344 : vector<1x1xf32> to vector<1x64xf32>
      %346 = arith.subf %342, %345 : vector<1x64xf32>
      %347 = math.exp %346 : vector<1x64xf32>
      %c0_137 = arith.constant 0 : index
      %c0_138 = arith.constant 0 : index
      %348 = vector.load %arg1[%c0_137, %c0_138] : memref<64x128xf32, #tpu.memory_space<vmem>>, vector<64x128xf32>
      %cst_139 = arith.constant dense<0.000000e+00> : vector<1x128xf32>
      %349 = tpu.matmul %347, %348, %cst_139 {dimension_numbers = #tpu.dot_dimension_numbers<[1], [0], [0], [1], [0, 0, 1, 1], [], []>} : vector<1x64xf32>, vector<64x128xf32>, vector<1x128xf32> -> vector<1x128xf32>
      %cst_140 = arith.constant dense<0.000000e+00> : vector<1xf32>
      %350 = vector.multi_reduction <add>, %347, %cst_140 [1] : vector<1x64xf32> to vector<1xf32>
      %351 = vector.shape_cast %350 : vector<1xf32> to vector<1x1xf32>
      %352 = tpu.reciprocal %351 {approx = true} : vector<1x1xf32> -> vector<1x1xf32>
      %353 = vector.broadcast %352 : vector<1x1xf32> to vector<1x128xf32>
      %354 = arith.mulf %349, %353 : vector<1x128xf32>
      %355 = arith.addf %340, %354 : vector<1x128xf32>
      %356 = arith.addf %355, %1 : vector<1x128xf32>
      %cst_141 = arith.constant 0.000000e+00 : f32
      %357 = vector.broadcast %cst_141 : f32 to vector<1x128xf32>
      %358 = arith.maximumf %356, %357 : vector<1x128xf32>
      %c0_142 = arith.constant 0 : index
      %c0_143 = arith.constant 0 : index
      %359 = vector.load %arg4[%c0_142, %c0_143] : memref<128x384xf32, #tpu.memory_space<vmem>>, vector<128x384xf32>
      %cst_144 = arith.constant dense<0.000000e+00> : vector<1x384xf32>
      %360 = tpu.matmul %358, %359, %cst_144 {dimension_numbers = #tpu.dot_dimension_numbers<[1], [0], [0], [1], [0, 0, 1, 1], [], []>} : vector<1x128xf32>, vector<128x384xf32>, vector<1x384xf32> -> vector<1x384xf32>
      %361 = arith.addf %360, %2 : vector<1x384xf32>
      %362 = arith.addf %341, %3 : vector<1x384xf32>
      %363 = vector.extract_strided_slice %361 {offsets = [0, 0], sizes = [1, 256], strides = [1, 1]} : vector<1x384xf32> to vector<1x256xf32>
      %364 = vector.extract_strided_slice %362 {offsets = [0, 0], sizes = [1, 256], strides = [1, 1]} : vector<1x384xf32> to vector<1x256xf32>
      %365 = arith.addf %363, %364 : vector<1x256xf32>
      %366 = arith.negf %365 : vector<1x256xf32>
      %367 = math.exp %366 : vector<1x256xf32>
      %cst_145 = arith.constant 1.000000e+00 : f32
      %368 = vector.broadcast %cst_145 : f32 to vector<1x256xf32>
      %369 = arith.addf %368, %367 : vector<1x256xf32>
      %370 = arith.divf %368, %369 : vector<1x256xf32>
      %371 = vector.extract_strided_slice %370 {offsets = [0, 0], sizes = [1, 128], strides = [1, 1]} : vector<1x256xf32> to vector<1x128xf32>
      %372 = vector.extract_strided_slice %370 {offsets = [0, 128], sizes = [1, 128], strides = [1, 1]} : vector<1x256xf32> to vector<1x128xf32>
      %373 = vector.extract_strided_slice %361 {offsets = [0, 256], sizes = [1, 128], strides = [1, 1]} : vector<1x384xf32> to vector<1x128xf32>
      %374 = vector.extract_strided_slice %362 {offsets = [0, 256], sizes = [1, 128], strides = [1, 1]} : vector<1x384xf32> to vector<1x128xf32>
      %375 = arith.mulf %371, %374 : vector<1x128xf32>
      %376 = arith.addf %373, %375 : vector<1x128xf32>
      %377 = math.tanh %376 : vector<1x128xf32>
      %cst_146 = arith.constant 1.000000e+00 : f32
      %378 = vector.broadcast %cst_146 : f32 to vector<1x128xf32>
      %379 = arith.subf %378, %372 : vector<1x128xf32>
      %380 = arith.mulf %379, %377 : vector<1x128xf32>
      %381 = arith.mulf %372, %331 : vector<1x128xf32>
      %382 = arith.addf %380, %381 : vector<1x128xf32>
      %383 = arith.index_cast %336 : i32 to index
      %c0_147 = arith.constant 0 : index
      %384 = vector.load %arg15[%383, %c0_147] : memref<64x128xf32, #tpu.memory_space<vmem>>, vector<1x128xf32>
      tpu.vector_store %arg15[%383, %c0_147], %382 {strides = array<i32>} : memref<64x128xf32, #tpu.memory_space<vmem>>, vector<1x128xf32>,
      %c9_i32_148 = arith.constant 9 : i32
      %385 = arith.muli %arg16, %c9_i32_148 : i32
      %c6_i32 = arith.constant 6 : i32
      %386 = arith.addi %385, %c6_i32 : i32
      %c1_i32_149 = arith.constant 1 : i32
      %387 = arith.addi %386, %c1_i32_149 : i32
      %c0_150 = arith.constant 0 : index
      %c0_151 = arith.constant 0 : index
      %388 = vector.load %arg3[%c0_150, %c0_151] : memref<128x640xf32, #tpu.memory_space<vmem>>, vector<128x640xf32>
      %cst_152 = arith.constant dense<0.000000e+00> : vector<1x640xf32>
      %389 = tpu.matmul %382, %388, %cst_152 {dimension_numbers = #tpu.dot_dimension_numbers<[1], [0], [0], [1], [0, 0, 1, 1], [], []>} : vector<1x128xf32>, vector<128x640xf32>, vector<1x640xf32> -> vector<1x640xf32>
      %390 = vector.extract_strided_slice %389 {offsets = [0, 0], sizes = [1, 64], strides = [1, 1]} : vector<1x640xf32> to vector<1x64xf32>
      %391 = vector.extract_strided_slice %389 {offsets = [0, 128], sizes = [1, 128], strides = [1, 1]} : vector<1x640xf32> to vector<1x128xf32>
      %392 = vector.extract_strided_slice %389 {offsets = [0, 256], sizes = [1, 384], strides = [1, 1]} : vector<1x640xf32> to vector<1x384xf32>
      %393 = arith.addf %390, %0 : vector<1x64xf32>
      %cst_153 = arith.constant dense<0xFF800000> : vector<1xf32>
      %394 = vector.multi_reduction <maximumf>, %393, %cst_153 [1] : vector<1x64xf32> to vector<1xf32>
      %395 = vector.shape_cast %394 : vector<1xf32> to vector<1x1xf32>
      %396 = vector.broadcast %395 : vector<1x1xf32> to vector<1x64xf32>
      %397 = arith.subf %393, %396 : vector<1x64xf32>
      %398 = math.exp %397 : vector<1x64xf32>
      %c0_154 = arith.constant 0 : index
      %c0_155 = arith.constant 0 : index
      %399 = vector.load %arg1[%c0_154, %c0_155] : memref<64x128xf32, #tpu.memory_space<vmem>>, vector<64x128xf32>
      %cst_156 = arith.constant dense<0.000000e+00> : vector<1x128xf32>
      %400 = tpu.matmul %398, %399, %cst_156 {dimension_numbers = #tpu.dot_dimension_numbers<[1], [0], [0], [1], [0, 0, 1, 1], [], []>} : vector<1x64xf32>, vector<64x128xf32>, vector<1x128xf32> -> vector<1x128xf32>
      %cst_157 = arith.constant dense<0.000000e+00> : vector<1xf32>
      %401 = vector.multi_reduction <add>, %398, %cst_157 [1] : vector<1x64xf32> to vector<1xf32>
      %402 = vector.shape_cast %401 : vector<1xf32> to vector<1x1xf32>
      %403 = tpu.reciprocal %402 {approx = true} : vector<1x1xf32> -> vector<1x1xf32>
      %404 = vector.broadcast %403 : vector<1x1xf32> to vector<1x128xf32>
      %405 = arith.mulf %400, %404 : vector<1x128xf32>
      %406 = arith.addf %391, %405 : vector<1x128xf32>
      %407 = arith.addf %406, %1 : vector<1x128xf32>
      %cst_158 = arith.constant 0.000000e+00 : f32
      %408 = vector.broadcast %cst_158 : f32 to vector<1x128xf32>
      %409 = arith.maximumf %407, %408 : vector<1x128xf32>
      %c0_159 = arith.constant 0 : index
      %c0_160 = arith.constant 0 : index
      %410 = vector.load %arg4[%c0_159, %c0_160] : memref<128x384xf32, #tpu.memory_space<vmem>>, vector<128x384xf32>
      %cst_161 = arith.constant dense<0.000000e+00> : vector<1x384xf32>
      %411 = tpu.matmul %409, %410, %cst_161 {dimension_numbers = #tpu.dot_dimension_numbers<[1], [0], [0], [1], [0, 0, 1, 1], [], []>} : vector<1x128xf32>, vector<128x384xf32>, vector<1x384xf32> -> vector<1x384xf32>
      %412 = arith.addf %411, %2 : vector<1x384xf32>
      %413 = arith.addf %392, %3 : vector<1x384xf32>
      %414 = vector.extract_strided_slice %412 {offsets = [0, 0], sizes = [1, 256], strides = [1, 1]} : vector<1x384xf32> to vector<1x256xf32>
      %415 = vector.extract_strided_slice %413 {offsets = [0, 0], sizes = [1, 256], strides = [1, 1]} : vector<1x384xf32> to vector<1x256xf32>
      %416 = arith.addf %414, %415 : vector<1x256xf32>
      %417 = arith.negf %416 : vector<1x256xf32>
      %418 = math.exp %417 : vector<1x256xf32>
      %cst_162 = arith.constant 1.000000e+00 : f32
      %419 = vector.broadcast %cst_162 : f32 to vector<1x256xf32>
      %420 = arith.addf %419, %418 : vector<1x256xf32>
      %421 = arith.divf %419, %420 : vector<1x256xf32>
      %422 = vector.extract_strided_slice %421 {offsets = [0, 0], sizes = [1, 128], strides = [1, 1]} : vector<1x256xf32> to vector<1x128xf32>
      %423 = vector.extract_strided_slice %421 {offsets = [0, 128], sizes = [1, 128], strides = [1, 1]} : vector<1x256xf32> to vector<1x128xf32>
      %424 = vector.extract_strided_slice %412 {offsets = [0, 256], sizes = [1, 128], strides = [1, 1]} : vector<1x384xf32> to vector<1x128xf32>
      %425 = vector.extract_strided_slice %413 {offsets = [0, 256], sizes = [1, 128], strides = [1, 1]} : vector<1x384xf32> to vector<1x128xf32>
      %426 = arith.mulf %422, %425 : vector<1x128xf32>
      %427 = arith.addf %424, %426 : vector<1x128xf32>
      %428 = math.tanh %427 : vector<1x128xf32>
      %cst_163 = arith.constant 1.000000e+00 : f32
      %429 = vector.broadcast %cst_163 : f32 to vector<1x128xf32>
      %430 = arith.subf %429, %423 : vector<1x128xf32>
      %431 = arith.mulf %430, %428 : vector<1x128xf32>
      %432 = arith.mulf %423, %382 : vector<1x128xf32>
      %433 = arith.addf %431, %432 : vector<1x128xf32>
      %434 = arith.index_cast %387 : i32 to index
      %c0_164 = arith.constant 0 : index
      %435 = vector.load %arg15[%434, %c0_164] : memref<64x128xf32, #tpu.memory_space<vmem>>, vector<1x128xf32>
      tpu.vector_store %arg15[%434, %c0_164], %433 {strides = array<i32>} : memref<64x128xf32, #tpu.memory_space<vmem>>, vector<1x128xf32>,
      %c9_i32_165 = arith.constant 9 : i32
      %436 = arith.muli %arg16, %c9_i32_165 : i32
      %c7_i32_166 = arith.constant 7 : i32
      %437 = arith.addi %436, %c7_i32_166 : i32
      %c1_i32_167 = arith.constant 1 : i32
      %438 = arith.addi %437, %c1_i32_167 : i32
      %c0_168 = arith.constant 0 : index
      %c0_169 = arith.constant 0 : index
      %439 = vector.load %arg3[%c0_168, %c0_169] : memref<128x640xf32, #tpu.memory_space<vmem>>, vector<128x640xf32>
      %cst_170 = arith.constant dense<0.000000e+00> : vector<1x640xf32>
      %440 = tpu.matmul %433, %439, %cst_170 {dimension_numbers = #tpu.dot_dimension_numbers<[1], [0], [0], [1], [0, 0, 1, 1], [], []>} : vector<1x128xf32>, vector<128x640xf32>, vector<1x640xf32> -> vector<1x640xf32>
      %441 = vector.extract_strided_slice %440 {offsets = [0, 0], sizes = [1, 64], strides = [1, 1]} : vector<1x640xf32> to vector<1x64xf32>
      %442 = vector.extract_strided_slice %440 {offsets = [0, 128], sizes = [1, 128], strides = [1, 1]} : vector<1x640xf32> to vector<1x128xf32>
      %443 = vector.extract_strided_slice %440 {offsets = [0, 256], sizes = [1, 384], strides = [1, 1]} : vector<1x640xf32> to vector<1x384xf32>
      %444 = arith.addf %441, %0 : vector<1x64xf32>
      %cst_171 = arith.constant dense<0xFF800000> : vector<1xf32>
      %445 = vector.multi_reduction <maximumf>, %444, %cst_171 [1] : vector<1x64xf32> to vector<1xf32>
      %446 = vector.shape_cast %445 : vector<1xf32> to vector<1x1xf32>
      %447 = vector.broadcast %446 : vector<1x1xf32> to vector<1x64xf32>
      %448 = arith.subf %444, %447 : vector<1x64xf32>
      %449 = math.exp %448 : vector<1x64xf32>
      %c0_172 = arith.constant 0 : index
      %c0_173 = arith.constant 0 : index
      %450 = vector.load %arg1[%c0_172, %c0_173] : memref<64x128xf32, #tpu.memory_space<vmem>>, vector<64x128xf32>
      %cst_174 = arith.constant dense<0.000000e+00> : vector<1x128xf32>
      %451 = tpu.matmul %449, %450, %cst_174 {dimension_numbers = #tpu.dot_dimension_numbers<[1], [0], [0], [1], [0, 0, 1, 1], [], []>} : vector<1x64xf32>, vector<64x128xf32>, vector<1x128xf32> -> vector<1x128xf32>
      %cst_175 = arith.constant dense<0.000000e+00> : vector<1xf32>
      %452 = vector.multi_reduction <add>, %449, %cst_175 [1] : vector<1x64xf32> to vector<1xf32>
      %453 = vector.shape_cast %452 : vector<1xf32> to vector<1x1xf32>
      %454 = tpu.reciprocal %453 {approx = true} : vector<1x1xf32> -> vector<1x1xf32>
      %455 = vector.broadcast %454 : vector<1x1xf32> to vector<1x128xf32>
      %456 = arith.mulf %451, %455 : vector<1x128xf32>
      %457 = arith.addf %442, %456 : vector<1x128xf32>
      %458 = arith.addf %457, %1 : vector<1x128xf32>
      %cst_176 = arith.constant 0.000000e+00 : f32
      %459 = vector.broadcast %cst_176 : f32 to vector<1x128xf32>
      %460 = arith.maximumf %458, %459 : vector<1x128xf32>
      %c0_177 = arith.constant 0 : index
      %c0_178 = arith.constant 0 : index
      %461 = vector.load %arg4[%c0_177, %c0_178] : memref<128x384xf32, #tpu.memory_space<vmem>>, vector<128x384xf32>
      %cst_179 = arith.constant dense<0.000000e+00> : vector<1x384xf32>
      %462 = tpu.matmul %460, %461, %cst_179 {dimension_numbers = #tpu.dot_dimension_numbers<[1], [0], [0], [1], [0, 0, 1, 1], [], []>} : vector<1x128xf32>, vector<128x384xf32>, vector<1x384xf32> -> vector<1x384xf32>
      %463 = arith.addf %462, %2 : vector<1x384xf32>
      %464 = arith.addf %443, %3 : vector<1x384xf32>
      %465 = vector.extract_strided_slice %463 {offsets = [0, 0], sizes = [1, 256], strides = [1, 1]} : vector<1x384xf32> to vector<1x256xf32>
      %466 = vector.extract_strided_slice %464 {offsets = [0, 0], sizes = [1, 256], strides = [1, 1]} : vector<1x384xf32> to vector<1x256xf32>
      %467 = arith.addf %465, %466 : vector<1x256xf32>
      %468 = arith.negf %467 : vector<1x256xf32>
      %469 = math.exp %468 : vector<1x256xf32>
      %cst_180 = arith.constant 1.000000e+00 : f32
      %470 = vector.broadcast %cst_180 : f32 to vector<1x256xf32>
      %471 = arith.addf %470, %469 : vector<1x256xf32>
      %472 = arith.divf %470, %471 : vector<1x256xf32>
      %473 = vector.extract_strided_slice %472 {offsets = [0, 0], sizes = [1, 128], strides = [1, 1]} : vector<1x256xf32> to vector<1x128xf32>
      %474 = vector.extract_strided_slice %472 {offsets = [0, 128], sizes = [1, 128], strides = [1, 1]} : vector<1x256xf32> to vector<1x128xf32>
      %475 = vector.extract_strided_slice %463 {offsets = [0, 256], sizes = [1, 128], strides = [1, 1]} : vector<1x384xf32> to vector<1x128xf32>
      %476 = vector.extract_strided_slice %464 {offsets = [0, 256], sizes = [1, 128], strides = [1, 1]} : vector<1x384xf32> to vector<1x128xf32>
      %477 = arith.mulf %473, %476 : vector<1x128xf32>
      %478 = arith.addf %475, %477 : vector<1x128xf32>
      %479 = math.tanh %478 : vector<1x128xf32>
      %cst_181 = arith.constant 1.000000e+00 : f32
      %480 = vector.broadcast %cst_181 : f32 to vector<1x128xf32>
      %481 = arith.subf %480, %474 : vector<1x128xf32>
      %482 = arith.mulf %481, %479 : vector<1x128xf32>
      %483 = arith.mulf %474, %433 : vector<1x128xf32>
      %484 = arith.addf %482, %483 : vector<1x128xf32>
      %485 = arith.index_cast %438 : i32 to index
      %c0_182 = arith.constant 0 : index
      %486 = vector.load %arg15[%485, %c0_182] : memref<64x128xf32, #tpu.memory_space<vmem>>, vector<1x128xf32>
      tpu.vector_store %arg15[%485, %c0_182], %484 {strides = array<i32>} : memref<64x128xf32, #tpu.memory_space<vmem>>, vector<1x128xf32>,
      %c9_i32_183 = arith.constant 9 : i32
      %487 = arith.muli %arg16, %c9_i32_183 : i32
      %c8_i32 = arith.constant 8 : i32
      %488 = arith.addi %487, %c8_i32 : i32
      %c1_i32_184 = arith.constant 1 : i32
      %489 = arith.addi %488, %c1_i32_184 : i32
      %c0_185 = arith.constant 0 : index
      %c0_186 = arith.constant 0 : index
      %490 = vector.load %arg3[%c0_185, %c0_186] : memref<128x640xf32, #tpu.memory_space<vmem>>, vector<128x640xf32>
      %cst_187 = arith.constant dense<0.000000e+00> : vector<1x640xf32>
      %491 = tpu.matmul %484, %490, %cst_187 {dimension_numbers = #tpu.dot_dimension_numbers<[1], [0], [0], [1], [0, 0, 1, 1], [], []>} : vector<1x128xf32>, vector<128x640xf32>, vector<1x640xf32> -> vector<1x640xf32>
      %492 = vector.extract_strided_slice %491 {offsets = [0, 0], sizes = [1, 64], strides = [1, 1]} : vector<1x640xf32> to vector<1x64xf32>
      %493 = vector.extract_strided_slice %491 {offsets = [0, 128], sizes = [1, 128], strides = [1, 1]} : vector<1x640xf32> to vector<1x128xf32>
      %494 = vector.extract_strided_slice %491 {offsets = [0, 256], sizes = [1, 384], strides = [1, 1]} : vector<1x640xf32> to vector<1x384xf32>
      %495 = arith.addf %492, %0 : vector<1x64xf32>
      %cst_188 = arith.constant dense<0xFF800000> : vector<1xf32>
      %496 = vector.multi_reduction <maximumf>, %495, %cst_188 [1] : vector<1x64xf32> to vector<1xf32>
      %497 = vector.shape_cast %496 : vector<1xf32> to vector<1x1xf32>
      %498 = vector.broadcast %497 : vector<1x1xf32> to vector<1x64xf32>
      %499 = arith.subf %495, %498 : vector<1x64xf32>
      %500 = math.exp %499 : vector<1x64xf32>
      %c0_189 = arith.constant 0 : index
      %c0_190 = arith.constant 0 : index
      %501 = vector.load %arg1[%c0_189, %c0_190] : memref<64x128xf32, #tpu.memory_space<vmem>>, vector<64x128xf32>
      %cst_191 = arith.constant dense<0.000000e+00> : vector<1x128xf32>
      %502 = tpu.matmul %500, %501, %cst_191 {dimension_numbers = #tpu.dot_dimension_numbers<[1], [0], [0], [1], [0, 0, 1, 1], [], []>} : vector<1x64xf32>, vector<64x128xf32>, vector<1x128xf32> -> vector<1x128xf32>
      %cst_192 = arith.constant dense<0.000000e+00> : vector<1xf32>
      %503 = vector.multi_reduction <add>, %500, %cst_192 [1] : vector<1x64xf32> to vector<1xf32>
      %504 = vector.shape_cast %503 : vector<1xf32> to vector<1x1xf32>
      %505 = tpu.reciprocal %504 {approx = true} : vector<1x1xf32> -> vector<1x1xf32>
      %506 = vector.broadcast %505 : vector<1x1xf32> to vector<1x128xf32>
      %507 = arith.mulf %502, %506 : vector<1x128xf32>
      %508 = arith.addf %493, %507 : vector<1x128xf32>
      %509 = arith.addf %508, %1 : vector<1x128xf32>
      %cst_193 = arith.constant 0.000000e+00 : f32
      %510 = vector.broadcast %cst_193 : f32 to vector<1x128xf32>
      %511 = arith.maximumf %509, %510 : vector<1x128xf32>
      %c0_194 = arith.constant 0 : index
      %c0_195 = arith.constant 0 : index
      %512 = vector.load %arg4[%c0_194, %c0_195] : memref<128x384xf32, #tpu.memory_space<vmem>>, vector<128x384xf32>
      %cst_196 = arith.constant dense<0.000000e+00> : vector<1x384xf32>
      %513 = tpu.matmul %511, %512, %cst_196 {dimension_numbers = #tpu.dot_dimension_numbers<[1], [0], [0], [1], [0, 0, 1, 1], [], []>} : vector<1x128xf32>, vector<128x384xf32>, vector<1x384xf32> -> vector<1x384xf32>
      %514 = arith.addf %513, %2 : vector<1x384xf32>
      %515 = arith.addf %494, %3 : vector<1x384xf32>
      %516 = vector.extract_strided_slice %514 {offsets = [0, 0], sizes = [1, 256], strides = [1, 1]} : vector<1x384xf32> to vector<1x256xf32>
      %517 = vector.extract_strided_slice %515 {offsets = [0, 0], sizes = [1, 256], strides = [1, 1]} : vector<1x384xf32> to vector<1x256xf32>
      %518 = arith.addf %516, %517 : vector<1x256xf32>
      %519 = arith.negf %518 : vector<1x256xf32>
      %520 = math.exp %519 : vector<1x256xf32>
      %cst_197 = arith.constant 1.000000e+00 : f32
      %521 = vector.broadcast %cst_197 : f32 to vector<1x256xf32>
      %522 = arith.addf %521, %520 : vector<1x256xf32>
      %523 = arith.divf %521, %522 : vector<1x256xf32>
      %524 = vector.extract_strided_slice %523 {offsets = [0, 0], sizes = [1, 128], strides = [1, 1]} : vector<1x256xf32> to vector<1x128xf32>
      %525 = vector.extract_strided_slice %523 {offsets = [0, 128], sizes = [1, 128], strides = [1, 1]} : vector<1x256xf32> to vector<1x128xf32>
      %526 = vector.extract_strided_slice %514 {offsets = [0, 256], sizes = [1, 128], strides = [1, 1]} : vector<1x384xf32> to vector<1x128xf32>
      %527 = vector.extract_strided_slice %515 {offsets = [0, 256], sizes = [1, 128], strides = [1, 1]} : vector<1x384xf32> to vector<1x128xf32>
      %528 = arith.mulf %524, %527 : vector<1x128xf32>
      %529 = arith.addf %526, %528 : vector<1x128xf32>
      %530 = math.tanh %529 : vector<1x128xf32>
      %cst_198 = arith.constant 1.000000e+00 : f32
      %531 = vector.broadcast %cst_198 : f32 to vector<1x128xf32>
      %532 = arith.subf %531, %525 : vector<1x128xf32>
      %533 = arith.mulf %532, %530 : vector<1x128xf32>
      %534 = arith.mulf %525, %484 : vector<1x128xf32>
      %535 = arith.addf %533, %534 : vector<1x128xf32>
      %536 = arith.index_cast %489 : i32 to index
      %c0_199 = arith.constant 0 : index
      %537 = vector.load %arg15[%536, %c0_199] : memref<64x128xf32, #tpu.memory_space<vmem>>, vector<1x128xf32>
      tpu.vector_store %arg15[%536, %c0_199], %535 {strides = array<i32>} : memref<64x128xf32, #tpu.memory_space<vmem>>, vector<1x128xf32>,
      scf.yield %535 : vector<1x128xf32>
    }
    %c7_i32_25 = arith.constant 7 : i32
    %c0_26 = arith.constant 0 : index
    %c0_27 = arith.constant 0 : index
    %54 = vector.load %arg14[%c0_26, %c0_27] : memref<1x128xf32, #tpu.memory_space<vmem>>, vector<1x128xf32>
    tpu.vector_store %arg14[%c0_26, %c0_27], %53 {strides = array<i32>} : memref<1x128xf32, #tpu.memory_space<vmem>>, vector<1x128xf32>,
    %c0_28 = arith.constant 0 : index
    %c0_29 = arith.constant 0 : index
    %55 = vector.load %arg15[%c0_28, %c0_29] : memref<64x128xf32, #tpu.memory_space<vmem>>, vector<64x128xf32>
    %c0_30 = arith.constant 0 : index
    %c0_31 = arith.constant 0 : index
    %56 = vector.load %arg9[%c0_30, %c0_31] : memref<128x64xf32, #tpu.memory_space<vmem>>, vector<128x64xf32>
    %cst_32 = arith.constant dense<0.000000e+00> : vector<64x64xf32>
    %57 = tpu.matmul %55, %56, %cst_32 {dimension_numbers = #tpu.dot_dimension_numbers<[1], [0], [0], [1], [0, 0, 1, 1], [], []>} : vector<64x128xf32>, vector<128x64xf32>, vector<64x64xf32> -> vector<64x64xf32>
    %c0_33 = arith.constant 0 : index
    %c0_34 = arith.constant 0 : index
    %58 = vector.load %arg10[%c0_33, %c0_34] : memref<1x64xf32, #tpu.memory_space<vmem>>, vector<1x64xf32>
    %59 = vector.broadcast %58 : vector<1x64xf32> to vector<64x64xf32>
    %60 = arith.addf %57, %59 : vector<64x64xf32>
    %cst_35 = arith.constant 0.000000e+00 : f32
    %61 = vector.broadcast %cst_35 : f32 to vector<64x64xf32>
    %62 = arith.maximumf %60, %61 : vector<64x64xf32>
    %c0_36 = arith.constant 0 : index
    %c0_37 = arith.constant 0 : index
    %63 = vector.load %arg11[%c0_36, %c0_37] : memref<64x128xf32, #tpu.memory_space<vmem>>, vector<64x128xf32>
    %cst_38 = arith.constant dense<0.000000e+00> : vector<64x128xf32>
    %64 = tpu.matmul %62, %63, %cst_38 {dimension_numbers = #tpu.dot_dimension_numbers<[1], [0], [0], [1], [0, 0, 1, 1], [], []>} : vector<64x64xf32>, vector<64x128xf32>, vector<64x128xf32> -> vector<64x128xf32>
    %c0_39 = arith.constant 0 : index
    %c0_40 = arith.constant 0 : index
    %65 = vector.load %arg12[%c0_39, %c0_40] : memref<1x128xf32, #tpu.memory_space<vmem>>, vector<1x128xf32>
    %66 = vector.broadcast %65 : vector<1x128xf32> to vector<64x128xf32>
    %67 = arith.addf %64, %66 : vector<64x128xf32>
    %cst_41 = arith.constant dense<0xFF800000> : vector<64xf32>
    %68 = vector.multi_reduction <maximumf>, %67, %cst_41 [1] : vector<64x128xf32> to vector<64xf32>
    %69 = vector.shape_cast %68 : vector<64xf32> to vector<64x1xf32>
    %70 = vector.broadcast %69 : vector<64x1xf32> to vector<64x128xf32>
    %71 = arith.subf %67, %70 : vector<64x128xf32>
    %72 = math.exp %71 : vector<64x128xf32>
    %cst_42 = arith.constant dense<0.000000e+00> : vector<64xf32>
    %73 = vector.multi_reduction <add>, %72, %cst_42 [1] : vector<64x128xf32> to vector<64xf32>
    %74 = vector.shape_cast %73 : vector<64xf32> to vector<64x1xf32>
    %75 = tpu.reciprocal %74 {approx = true} : vector<64x1xf32> -> vector<64x1xf32>
    %76 = vector.broadcast %75 : vector<64x1xf32> to vector<64x128xf32>
    %77 = arith.mulf %72, %76 : vector<64x128xf32>
    %c0_43 = arith.constant 0 : index
    %c0_44 = arith.constant 0 : index
    %78 = vector.load %arg13[%c0_43, %c0_44] : memref<64x128xf32, #tpu.memory_space<vmem>>, vector<64x128xf32>
    tpu.vector_store %arg13[%c0_43, %c0_44], %77 {strides = array<i32>} : memref<64x128xf32, #tpu.memory_space<vmem>>, vector<64x128xf32>,
    return
  }
}

</mosaic_0001>

<llo_original>
// kernel: tpu_custom_call.1
$region0: #{tpu_custom_call.1}
  #allocation0 [shape = 'u32[]', space=smem, size = 0x4, offset = 0x4, fixed_abs, tag = 'smem constant byte address 0x4 - core index']
  #allocation1 [shape = 'u32[144,128]{1,0:T(1,128)}', space=vmem, size = 0x12000, scoped, tag = 'internal scratch']
  #allocation2 [shape = 'f32[64,128]{1,0:T(8,128)}', space=vmem, size = 0x8000, scoped, tag = 'scratch operand']
  %s0 = inlined_call_operand.vmem [shape: f32[1,128], index: 0, kind: input, shape index: {}]
  %s1 = inlined_call_operand.vmem [shape: f32[64,128], index: 1, kind: input, shape index: {}]
  %s2 = inlined_call_operand.hbm [shape: f32[128,512], index: 2, kind: input, shape index: {}]
  %s3 = inlined_call_operand.hbm [shape: f32[128,640], index: 3, kind: input, shape index: {}]
  %s4 = inlined_call_operand.hbm [shape: f32[128,384], index: 4, kind: input, shape index: {}]
  %s5 = inlined_call_operand.vmem [shape: f32[1,384], index: 5, kind: input, shape index: {}]
  %s6 = inlined_call_operand.vmem [shape: f32[1,384], index: 6, kind: input, shape index: {}]
  %s7 = inlined_call_operand.vmem [shape: f32[1,64], index: 7, kind: input, shape index: {}]
  %s8 = inlined_call_operand.vmem [shape: f32[1,128], index: 8, kind: input, shape index: {}]
  %s9 = inlined_call_operand.vmem [shape: f32[128,64], index: 9, kind: input, shape index: {}]
  %s10 = inlined_call_operand.vmem [shape: f32[1,64], index: 10, kind: input, shape index: {}]
  %s11 = inlined_call_operand.vmem [shape: f32[64,128], index: 11, kind: input, shape index: {}]
  %s12 = inlined_call_operand.vmem [shape: f32[1,128], index: 12, kind: input, shape index: {}]
  %s13 = inlined_call_operand.hbm [shape: f32[64,128], index: 13, kind: output, shape index: {0}]
  %s14 = inlined_call_operand.hbm [shape: f32[1,128], index: 14, kind: output, shape index: {1}]
  %15 = xla_tuple %s13, %s14
  %s16 = sld [smem:[#allocation0]]
  $region89: #{tpu_custom_call.1} parent=0
    _
  %s18 = ssub.s32 1, %s16
  %s19 = scalar_select 0, %s18, %s16
  $region1: #{tpu_custom_call.1} parent=0
    #allocation3 [shape = 'u8[262144]{0}', space=vmem, size = 0x40000, scoped, tag = 'input window, operand 2, single buffered']
    #allocation4 [shape = 's32[1]{0}', space=sflag, size = 0x4, scoped, tag = 'scoped memory for tpu_custom_call.1']
    #allocation5 [shape = 's32[1]{0}', space=sflag, size = 0x4, scoped, tag = 'scoped memory for tpu_custom_call.1']
    #allocation6 [shape = 'u8[327680]{0}', space=vmem, size = 0x50000, scoped, tag = 'input window, operand 3, single buffered']
    #allocation7 [shape = 's32[1]{0}', space=sflag, size = 0x4, scoped, tag = 'scoped memory for tpu_custom_call.1']
    #allocation8 [shape = 'u8[196608]{0}', space=vmem, size = 0x30000, scoped, tag = 'input window, operand 4, single buffered']
    #allocation9 [shape = 'u8[32768]{0}', space=vmem, size = 0x8000, scoped, tag = 'output window, operand 0, single buffered']
    #allocation10 [shape = 'u8[512]{0}', space=vmem, size = 0x400, scoped, tag = 'output window, operand 1, single buffered']
    #allocation11 [shape = 's32[1]{0}', space=sflag, size = 0x4, scoped, tag = 'scoped memory for tpu_custom_call.1']
    %20 = vsyncpa [#allocation4], 0
    %21 = vsyncpa [#allocation7], 0
    %22 = vsyncpa [#allocation5], 0
    %23 = vsyncpa [#allocation11], 0
    // Predicated region
    $region2: #{tpu_custom_call.1} parent=1 // pred_check
      _
    $region3: #{tpu_custom_call.1} parent=1 // pred_check_branch
      %25 = sbr.rel (0) target = $region5
    $region4: #{tpu_custom_call.1} parent=1 // pred_region
      _
    $region5: #{tpu_custom_call.1} parent=1 // pred_fallthru
      _
    // Predicated region
    $region6: #{tpu_custom_call.1} parent=1 // pred_check
      _
    $region7: #{tpu_custom_call.1} parent=1 // pred_check_branch
      %27 = sbr.rel (0) target = $region9
    $region8: #{tpu_custom_call.1} parent=1 // pred_region
      _
    $region9: #{tpu_custom_call.1} parent=1 // pred_fallthru
      _
    // Predicated region
    $region10: #{tpu_custom_call.1} parent=1 // pred_check
      _
    $region11: #{tpu_custom_call.1} parent=1 // pred_check_branch
      %29 = sbr.rel (0) target = $region13
    $region12: #{tpu_custom_call.1} parent=1 // pred_region
      %s31 = ssub.s32 8192, 8192
      %32 = vsyncadd [#allocation4], %s31
      %s33 = sshll.u32 [#allocation3], 4
      %s34 = int_to_ptr.vmem [resolvable:$true] %s33
      %39 = dma.hbm_to_vmem [thread:$0]  %s2, 8192, %s34, [#allocation4], 512, 512, 32
    $region13: #{tpu_custom_call.1} parent=1 // pred_fallthru
      _
    // Predicated region
    $region14: #{tpu_custom_call.1} parent=1 // pred_check
      _
    $region15: #{tpu_custom_call.1} parent=1 // pred_check_branch
      %41 = sbr.rel (0) target = $region17
    $region16: #{tpu_custom_call.1} parent=1 // pred_region
      %s43 = ssub.s32 10240, 10240
      %44 = vsyncadd [#allocation7], %s43
      %s45 = sshll.u32 [#allocation6], 4
      %s46 = int_to_ptr.vmem [resolvable:$true] %s45
      %51 = dma.hbm_to_vmem [thread:$0]  %s3, 10240, %s46, [#allocation7], 640, 640, 40
    $region17: #{tpu_custom_call.1} parent=1 // pred_fallthru
      _
    // Predicated region
    $region18: #{tpu_custom_call.1} parent=1 // pred_check
      _
    $region19: #{tpu_custom_call.1} parent=1 // pred_check_branch
      %53 = sbr.rel (0) target = $region21
    $region20: #{tpu_custom_call.1} parent=1 // pred_region
      %s55 = ssub.s32 6144, 6144
      %56 = vsyncadd [#allocation7], %s55
      %s57 = sshll.u32 [#allocation8], 4
      %s58 = int_to_ptr.vmem [resolvable:$true] %s57
      %63 = dma.hbm_to_vmem [thread:$0]  %s4, 6144, %s58, [#allocation7], 384, 384, 24
    $region21: #{tpu_custom_call.1} parent=1 // pred_fallthru
      _
    // Predicated region
    $region22: #{tpu_custom_call.1} parent=1 // pred_check
      _
    $region23: #{tpu_custom_call.1} parent=1 // pred_check_branch
      %65 = sbr.rel (0) target = $region25
    $region24: #{tpu_custom_call.1} parent=1 // pred_region
      _
    $region25: #{tpu_custom_call.1} parent=1 // pred_fallthru
      _
    // Predicated region
    $region26: #{tpu_custom_call.1} parent=1 // pred_check
      _
    $region27: #{tpu_custom_call.1} parent=1 // pred_check_branch
      %67 = sbr.rel (0) target = $region29
    $region28: #{tpu_custom_call.1} parent=1 // pred_region
      _
    $region29: #{tpu_custom_call.1} parent=1 // pred_fallthru
      _
    // Predicated region
    $region30: #{tpu_custom_call.1} parent=1 // pred_check
      _
    $region31: #{tpu_custom_call.1} parent=1 // pred_check_branch
      %69 = sbr.rel (0) target = $region33
    $region32: #{tpu_custom_call.1} parent=1 // pred_region
      _
    $region33: #{tpu_custom_call.1} parent=1 // pred_fallthru
      _
    // Predicated region
    $region34: #{tpu_custom_call.1} parent=1 // pred_check
      _
    $region35: #{tpu_custom_call.1} parent=1 // pred_check_branch
      %71 = sbr.rel (0) target = $region37
    $region36: #{tpu_custom_call.1} parent=1 // pred_region
      _
    $region37: #{tpu_custom_call.1} parent=1 // pred_fallthru
      _
    // Predicated region
    $region38: #{tpu_custom_call.1} parent=1 // pred_check
      _
    $region39: #{tpu_custom_call.1} parent=1 // pred_check_branch
      %73 = sbr.rel (0) target = $region41
    $region40: #{tpu_custom_call.1} parent=1 // pred_region
      _
    $region41: #{tpu_custom_call.1} parent=1 // pred_fallthru
      _
    // Predicated region
    $region42: #{tpu_custom_call.1} parent=1 // pred_check
      _
    $region43: #{tpu_custom_call.1} parent=1 // pred_check_branch
      %75 = sbr.rel (0) target = $region45
    $region44: #{tpu_custom_call.1} parent=1 // pred_region
      _
    $region45: #{tpu_custom_call.1} parent=1 // pred_fallthru
      _
    // Predicated region
    $region46: #{tpu_custom_call.1} parent=1 // pred_check
      _
    $region47: #{tpu_custom_call.1} parent=1 // pred_check_branch
      %77 = sbr.rel (0) target = $region49
    $region48: #{tpu_custom_call.1} parent=1 // pred_region
      _
    $region49: #{tpu_custom_call.1} parent=1 // pred_fallthru
      _
    // Predicated region
    $region50: #{tpu_custom_call.1} parent=1 // pred_check
      _
    $region51: #{tpu_custom_call.1} parent=1 // pred_check_branch
      %79 = sbr.rel (0) target = $region53
    $region52: #{tpu_custom_call.1} parent=1 // pred_region
      _
    $region53: #{tpu_custom_call.1} parent=1 // pred_fallthru
      _
    // Predicated region
    $region54: #{tpu_custom_call.1} parent=1 // pred_check
      _
    $region55: #{tpu_custom_call.1} parent=1 // pred_check_branch
      %81 = sbr.rel (0) target = $region57
    $region56: #{tpu_custom_call.1} parent=1 // pred_region
      %82 = dma.done [#allocation4], 8192
    $region57: #{tpu_custom_call.1} parent=1 // pred_fallthru
      _
    // Predicated region
    $region58: #{tpu_custom_call.1} parent=1 // pred_check
      _
    $region59: #{tpu_custom_call.1} parent=1 // pred_check_branch
      %84 = sbr.rel (0) target = $region61
    $region60: #{tpu_custom_call.1} parent=1 // pred_region
      %85 = dma.done [#allocation7], 10240
    $region61: #{tpu_custom_call.1} parent=1 // pred_fallthru
      _
    // Predicated region
    $region62: #{tpu_custom_call.1} parent=1 // pred_check
      _
    $region63: #{tpu_custom_call.1} parent=1 // pred_check_branch
      %87 = sbr.rel (0) target = $region65
    $region64: #{tpu_custom_call.1} parent=1 // pred_region
      %88 = dma.done [#allocation7], 6144
    $region65: #{tpu_custom_call.1} parent=1 // pred_fallthru
      _
    %v89 = vld [vmem:[%s7] sm:$0x1]
    %v90 = vld [vmem:[%s8] sm:$0x1]
    %v91 = vld [vmem:[%s5] sm:$0x7]
    %v92 = vld [vmem:[%s6] sm:$0x7]
    %v93 = vld [vmem:[%s0] sm:$0x1]
    %v94 = vld [vmem:[#allocation3] sm:$0xff]
    %v95 = vld [vmem:[#allocation3 + $0x8] sm:$0xff]
    %v96 = vld [vmem:[#allocation3 + $0x10] sm:$0xff]
    %v97 = vld [vmem:[#allocation3 + $0x18] sm:$0xff]
    %v98 = vld [vmem:[#allocation3 + $0x20] sm:$0xff]
    %v99 = vld [vmem:[#allocation3 + $0x28] sm:$0xff]
    %v100 = vld [vmem:[#allocation3 + $0x30] sm:$0xff]
    %v101 = vld [vmem:[#allocation3 + $0x38] sm:$0xff]
    %v102 = vld [vmem:[#allocation3 + $0x40] sm:$0xff]
    %v103 = vld [vmem:[#allocation3 + $0x48] sm:$0xff]
    %v104 = vld [vmem:[#allocation3 + $0x50] sm:$0xff]
    %v105 = vld [vmem:[#allocation3 + $0x58] sm:$0xff]
    %v106 = vld [vmem:[#allocation3 + $0x60] sm:$0xff]
    %v107 = vld [vmem:[#allocation3 + $0x68] sm:$0xff]
    %v108 = vld [vmem:[#allocation3 + $0x70] sm:$0xff]
    %v109 = vld [vmem:[#allocation3 + $0x78] sm:$0xff]
    %v110 = vld [vmem:[#allocation3 + $0x80] sm:$0xff]
    %v111 = vld [vmem:[#allocation3 + $0x88] sm:$0xff]
    %v112 = vld [vmem:[#allocation3 + $0x90] sm:$0xff]
    %v113 = vld [vmem:[#allocation3 + $0x98] sm:$0xff]
    %v114 = vld [vmem:[#allocation3 + $0xa0] sm:$0xff]
    %v115 = vld [vmem:[#allocation3 + $0xa8] sm:$0xff]
    %v116 = vld [vmem:[#allocation3 + $0xb0] sm:$0xff]
    %v117 = vld [vmem:[#allocation3 + $0xb8] sm:$0xff]
    %v118 = vld [vmem:[#allocation3 + $0xc0] sm:$0xff]
    %v119 = vld [vmem:[#allocation3 + $0xc8] sm:$0xff]
    %v120 = vld [vmem:[#allocation3 + $0xd0] sm:$0xff]
    %v121 = vld [vmem:[#allocation3 + $0xd8] sm:$0xff]
    %v122 = vld [vmem:[#allocation3 + $0xe0] sm:$0xff]
    %v123 = vld [vmem:[#allocation3 + $0xe8] sm:$0xff]
    %v124 = vld [vmem:[#allocation3 + $0xf0] sm:$0xff]
    %v125 = vld [vmem:[#allocation3 + $0xf8] sm:$0xff]
    %v126 = vld [vmem:[#allocation3 + $0x100] sm:$0xff]
    %v127 = vld [vmem:[#allocation3 + $0x108] sm:$0xff]
    %v128 = vld [vmem:[#allocation3 + $0x110] sm:$0xff]
    %v129 = vld [vmem:[#allocation3 + $0x118] sm:$0xff]
    %v130 = vld [vmem:[#allocation3 + $0x120] sm:$0xff]
    %v131 = vld [vmem:[#allocation3 + $0x128] sm:$0xff]
    %v132 = vld [vmem:[#allocation3 + $0x130] sm:$0xff]
    %v133 = vld [vmem:[#allocation3 + $0x138] sm:$0xff]
    %v134 = vld [vmem:[#allocation3 + $0x140] sm:$0xff]
    %v135 = vld [vmem:[#allocation3 + $0x148] sm:$0xff]
    %v136 = vld [vmem:[#allocation3 + $0x150] sm:$0xff]
    %v137 = vld [vmem:[#allocation3 + $0x158] sm:$0xff]
    %v138 = vld [vmem:[#allocation3 + $0x160] sm:$0xff]
    %v139 = vld [vmem:[#allocation3 + $0x168] sm:$0xff]
    %v140 = vld [vmem:[#allocation3 + $0x170] sm:$0xff]
    %v141 = vld [vmem:[#allocation3 + $0x178] sm:$0xff]
    %v142 = vld [vmem:[#allocation3 + $0x180] sm:$0xff]
    %v143 = vld [vmem:[#allocation3 + $0x188] sm:$0xff]
    %v144 = vld [vmem:[#allocation3 + $0x190] sm:$0xff]
    %v145 = vld [vmem:[#allocation3 + $0x198] sm:$0xff]
    %v146 = vld [vmem:[#allocation3 + $0x1a0] sm:$0xff]
    %v147 = vld [vmem:[#allocation3 + $0x1a8] sm:$0xff]
    %v148 = vld [vmem:[#allocation3 + $0x1b0] sm:$0xff]
    %v149 = vld [vmem:[#allocation3 + $0x1b8] sm:$0xff]
    %v150 = vld [vmem:[#allocation3 + $0x1c0] sm:$0xff]
    %v151 = vld [vmem:[#allocation3 + $0x1c8] sm:$0xff]
    %v152 = vld [vmem:[#allocation3 + $0x1d0] sm:$0xff]
    %v153 = vld [vmem:[#allocation3 + $0x1d8] sm:$0xff]
    %v154 = vld [vmem:[#allocation3 + $0x1e0] sm:$0xff]
    %v155 = vld [vmem:[#allocation3 + $0x1e8] sm:$0xff]
    %v156 = vld [vmem:[#allocation3 + $0x1f0] sm:$0xff]
    %v157 = vld [vmem:[#allocation3 + $0x1f8] sm:$0xff]
    %158 = vmatprep.subr.mxu0 %v95
    %159 = vmatpush1.msra.mxu0 %v94
    %160 = vmatprep.subr.mxu0 %v99
    %161 = vmatpush1.msra.mxu0 %v98
    %162 = vmatprep.subr.mxu0 %v103
    %163 = vmatpush1.msra.mxu0 %v102
    %164 = vmatprep.subr.mxu0 %v107
    %165 = vmatpush1.msra.mxu0 %v106
    %166 = vmatprep.subr.mxu0 %v111
    %167 = vmatpush1.msra.mxu0 %v110
    %168 = vmatprep.subr.mxu0 %v115
    %169 = vmatpush1.msra.mxu0 %v114
    %170 = vmatprep.subr.mxu0 %v119
    %171 = vmatpush1.msra.mxu0 %v118
    %172 = vmatprep.subr.mxu0 %v123
    %173 = vmatpush1.msra.mxu0 %v122
    %174 = vmatprep.subr.mxu0 %v127
    %175 = vmatpush1.msra.mxu0 %v126
    %176 = vmatprep.subr.mxu0 %v131
    %177 = vmatpush1.msra.mxu0 %v130
    %178 = vmatprep.subr.mxu0 %v135
    %179 = vmatpush1.msra.mxu0 %v134
    %180 = vmatprep.subr.mxu0 %v139
    %181 = vmatpush1.msra.mxu0 %v138
    %182 = vmatprep.subr.mxu0 %v143
    %183 = vmatpush1.msra.mxu0 %v142
    %184 = vmatprep.subr.mxu0 %v147
    %185 = vmatpush1.msra.mxu0 %v146
    %186 = vmatprep.subr.mxu0 %v151
    %187 = vmatpush1.msra.mxu0 %v150
    %188 = vmatprep.subr.mxu0 %v155
    %189 = vmatpush1.msra.mxu0 %v154
    %190 = vmatprep.subr.mxu0 0.0
    %191 = vmatpush1.msra.mxu0 0.0
    %192 = vmatprep.subr.mxu0 0.0
    %193 = vmatpush1.msra.mxu0 0.0
    %194 = vmatprep.subr.mxu0 0.0
    %195 = vmatpush1.msra.mxu0 0.0
    %196 = vmatprep.subr.mxu0 0.0
    %197 = vmatpush1.msra.mxu0 0.0
    %198 = vmatprep.subr.mxu0 0.0
    %199 = vmatpush1.msra.mxu0 0.0
    %200 = vmatprep.subr.mxu0 0.0
    %201 = vmatpush1.msra.mxu0 0.0
    %202 = vmatprep.subr.mxu0 0.0
    %203 = vmatpush1.msra.mxu0 0.0
    %204 = vmatprep.subr.mxu0 0.0
    %205 = vmatpush1.msra.mxu0 0.0
    %206 = vmatprep.subr.mxu0 0.0
    %207 = vmatpush1.msra.mxu0 0.0
    %208 = vmatprep.subr.mxu0 0.0
    %209 = vmatpush1.msra.mxu0 0.0
    %210 = vmatprep.subr.mxu0 0.0
    %211 = vmatpush1.msra.mxu0 0.0
    %212 = vmatprep.subr.mxu0 0.0
    %213 = vmatpush1.msra.mxu0 0.0
    %214 = vmatprep.subr.mxu0 0.0
    %215 = vmatpush1.msra.mxu0 0.0
    %216 = vmatprep.subr.mxu0 0.0
    %217 = vmatpush1.msra.mxu0 0.0
    %218 = vmatprep.subr.mxu0 0.0
    %219 = vmatpush1.msra.mxu0 0.0
    %220 = vmatprep.subr.mxu0 0.0
    %221 = vmatpush1.msra.mxu0 0.0
    %222 = vmatprep.mubr.f32.mxu0 0.0
    %223 = vmatmul.mubr.f32.gmra.mrb[0].mxu0 %v93
    %v224 = vpop.f32.mrb[0].mxu0
    %v225 = vadd.f32 0.0, %v224
    %v226 = vpop.f32.mrb[0].mxu0
    %v227 = vadd.f32 0.0, %v226
    %228 = vdwg.mxu0
    %229 = vmatprep.subr.mxu0 %v97
    %230 = vmatpush1.msra.mxu0 %v96
    %231 = vmatprep.subr.mxu0 %v101
    %232 = vmatpush1.msra.mxu0 %v100
    %233 = vmatprep.subr.mxu0 %v105
    %234 = vmatpush1.msra.mxu0 %v104
    %235 = vmatprep.subr.mxu0 %v109
    %236 = vmatpush1.msra.mxu0 %v108
    %237 = vmatprep.subr.mxu0 %v113
    %238 = vmatpush1.msra.mxu0 %v112
    %239 = vmatprep.subr.mxu0 %v117
    %240 = vmatpush1.msra.mxu0 %v116
    %241 = vmatprep.subr.mxu0 %v121
    %242 = vmatpush1.msra.mxu0 %v120
    %243 = vmatprep.subr.mxu0 %v125
    %244 = vmatpush1.msra.mxu0 %v124
    %245 = vmatprep.subr.mxu0 %v129
    %246 = vmatpush1.msra.mxu0 %v128
    %247 = vmatprep.subr.mxu0 %v133
    %248 = vmatpush1.msra.mxu0 %v132
    %249 = vmatprep.subr.mxu0 %v137
    %250 = vmatpush1.msra.mxu0 %v136
    %251 = vmatprep.subr.mxu0 %v141
    %252 = vmatpush1.msra.mxu0 %v140
    %253 = vmatprep.subr.mxu0 %v145
    %254 = vmatpush1.msra.mxu0 %v144
    %255 = vmatprep.subr.mxu0 %v149
    %256 = vmatpush1.msra.mxu0 %v148
    %257 = vmatprep.subr.mxu0 %v153
    %258 = vmatpush1.msra.mxu0 %v152
    %259 = vmatprep.subr.mxu0 %v157
    %260 = vmatpush1.msra.mxu0 %v156
    %261 = vmatprep.subr.mxu0 0.0
    %262 = vmatpush1.msra.mxu0 0.0
    %263 = vmatprep.subr.mxu0 0.0
    %264 = vmatpush1.msra.mxu0 0.0
    %265 = vmatprep.subr.mxu0 0.0
    %266 = vmatpush1.msra.mxu0 0.0
    %267 = vmatprep.subr.mxu0 0.0
    %268 = vmatpush1.msra.mxu0 0.0
    %269 = vmatprep.subr.mxu0 0.0
    %270 = vmatpush1.msra.mxu0 0.0
    %271 = vmatprep.subr.mxu0 0.0
    %272 = vmatpush1.msra.mxu0 0.0
    %273 = vmatprep.subr.mxu0 0.0
    %274 = vmatpush1.msra.mxu0 0.0
    %275 = vmatprep.subr.mxu0 0.0
    %276 = vmatpush1.msra.mxu0 0.0
    %277 = vmatprep.subr.mxu0 0.0
    %278 = vmatpush1.msra.mxu0 0.0
    %279 = vmatprep.subr.mxu0 0.0
    %280 = vmatpush1.msra.mxu0 0.0
    %281 = vmatprep.subr.mxu0 0.0
    %282 = vmatpush1.msra.mxu0 0.0
    %283 = vmatprep.subr.mxu0 0.0
    %284 = vmatpush1.msra.mxu0 0.0
    %285 = vmatprep.subr.mxu0 0.0
    %286 = vmatpush1.msra.mxu0 0.0
    %287 = vmatprep.subr.mxu0 0.0
    %288 = vmatpush1.msra.mxu0 0.0
    %289 = vmatprep.subr.mxu0 0.0
    %290 = vmatpush1.msra.mxu0 0.0
    %291 = vmatprep.subr.mxu0 0.0
    %292 = vmatpush1.msra.mxu0 0.0
    %293 = vmatprep.mubr.f32.mxu0 0.0
    %294 = vmatmul.mubr.f32.gmra.mrb[0].mxu0 %v93
    %v295 = vpop.f32.mrb[0].mxu0
    %v296 = vadd.f32 0.0, %v295
    %v297 = vpop.f32.mrb[0].mxu0
    %v298 = vadd.f32 0.0, %v297
    %299 = vdwg.mxu0
    %v300 = vadd.f32 %v225, %v89
    %vm301 = vcmask 516096
    %v302 = vsel %vm301, %v300, -inf
    %303 = vmax.xlane.f32.xlu0 %v302
    %v304 = vpop.xlane.xlu0 %303
    %v305 = vsub.f32 %v300, %v304
    %v306 = vmul.f32 %v305, 1.442695
    %v307 = vpow.pop %v306
    %v308 = vld [vmem:[%s1] sm:$0xff]
    %v309 = vld [vmem:[%s1 + $0x8] sm:$0xff]
    %v310 = vld [vmem:[%s1 + $0x10] sm:$0xff]
    %v311 = vld [vmem:[%s1 + $0x18] sm:$0xff]
    %v312 = vld [vmem:[%s1 + $0x20] sm:$0xff]
    %v313 = vld [vmem:[%s1 + $0x28] sm:$0xff]
    %v314 = vld [vmem:[%s1 + $0x30] sm:$0xff]
    %v315 = vld [vmem:[%s1 + $0x38] sm:$0xff]
    %vm316 = vcmask 523264
    %v318 = vsel %vm316, %v307, 0
    %320 = vmatprep.subr.mxu0 0.0
    %321 = vmatpush1.msra.mxu0 %v308
    %322 = vmatprep.subr.mxu0 0.0
    %323 = vmatpush1.msra.mxu0 %v309
    %324 = vmatprep.subr.mxu0 0.0
    %325 = vmatpush1.msra.mxu0 %v310
    %326 = vmatprep.subr.mxu0 0.0
    %327 = vmatpush1.msra.mxu0 %v311
    %328 = vmatprep.subr.mxu0 0.0
    %329 = vmatpush1.msra.mxu0 %v312
    %330 = vmatprep.subr.mxu0 0.0
    %331 = vmatpush1.msra.mxu0 %v313
    %332 = vmatprep.subr.mxu0 0.0
    %333 = vmatpush1.msra.mxu0 %v314
    %334 = vmatprep.subr.mxu0 0.0
    %335 = vmatpush1.msra.mxu0 %v315
    %336 = vmatprep.subr.mxu0 0.0
    %337 = vmatpush1.msra.mxu0 0.0
    %338 = vmatprep.subr.mxu0 0.0
    %339 = vmatpush1.msra.mxu0 0.0
    %340 = vmatprep.subr.mxu0 0.0
    %341 = vmatpush1.msra.mxu0 0.0
    %342 = vmatprep.subr.mxu0 0.0
    %343 = vmatpush1.msra.mxu0 0.0
    %344 = vmatprep.subr.mxu0 0.0
    %345 = vmatpush1.msra.mxu0 0.0
    %346 = vmatprep.subr.mxu0 0.0
    %347 = vmatpush1.msra.mxu0 0.0
    %348 = vmatprep.subr.mxu0 0.0
    %349 = vmatpush1.msra.mxu0 0.0
    %350 = vmatprep.subr.mxu0 0.0
    %351 = vmatpush1.msra.mxu0 0.0
    %352 = vmatprep.subr.mxu0 0.0
    %353 = vmatpush1.msra.mxu0 0.0
    %354 = vmatprep.subr.mxu0 0.0
    %355 = vmatpush1.msra.mxu0 0.0
    %356 = vmatprep.subr.mxu0 0.0
    %357 = vmatpush1.msra.mxu0 0.0
    %358 = vmatprep.subr.mxu0 0.0
    %359 = vmatpush1.msra.mxu0 0.0
    %360 = vmatprep.subr.mxu0 0.0
    %361 = vmatpush1.msra.mxu0 0.0
    %362 = vmatprep.subr.mxu0 0.0
    %363 = vmatpush1.msra.mxu0 0.0
    %364 = vmatprep.subr.mxu0 0.0
    %365 = vmatpush1.msra.mxu0 0.0
    %366 = vmatprep.subr.mxu0 0.0
    %367 = vmatpush1.msra.mxu0 0.0
    %368 = vmatprep.subr.mxu0 0.0
    %369 = vmatpush1.msra.mxu0 0.0
    %370 = vmatprep.subr.mxu0 0.0
    %371 = vmatpush1.msra.mxu0 0.0
    %372 = vmatprep.subr.mxu0 0.0
    %373 = vmatpush1.msra.mxu0 0.0
    %374 = vmatprep.subr.mxu0 0.0
    %375 = vmatpush1.msra.mxu0 0.0
    %376 = vmatprep.subr.mxu0 0.0
    %377 = vmatpush1.msra.mxu0 0.0
    %378 = vmatprep.subr.mxu0 0.0
    %379 = vmatpush1.msra.mxu0 0.0
    %380 = vmatprep.subr.mxu0 0.0
    %381 = vmatpush1.msra.mxu0 0.0
    %382 = vmatprep.subr.mxu0 0.0
    %383 = vmatpush1.msra.mxu0 0.0
    %384 = vmatprep.mubr.f32.mxu0 0.0
    %385 = vmatmul.mubr.f32.gmra.mrb[0].mxu0 %v318
    %v386 = vpop.f32.mrb[0].mxu0
    %v387 = vadd.f32 0.0, %v386
    %v388 = vpop.f32.mrb[0].mxu0
    %389 = vdwg.mxu0
    %v390 = vsel %vm301, %v307, 0.0
    %391 = vadd.xlane.f32.xlu0 %v390
    %v392 = vpop.xlane.xlu0 %391
    %v393 = vrcp.pop %v392
    %v394 = vmul.f32 %v387, %v393
    %v395 = vadd.f32 %v394, 0.0
    %v396 = vadd.f32 %v395, %v90
    %v397 = vmax.f32 %v396, 0.0
    %v398 = vld [vmem:[#allocation8] sm:$0xff]
    %v399 = vld [vmem:[#allocation8 + $0x8] sm:$0xff]
    %v400 = vld [vmem:[#allocation8 + $0x10] sm:$0xff]
    %v401 = vld [vmem:[#allocation8 + $0x18] sm:$0xff]
    %v402 = vld [vmem:[#allocation8 + $0x20] sm:$0xff]
    %v403 = vld [vmem:[#allocation8 + $0x28] sm:$0xff]
    %v404 = vld [vmem:[#allocation8 + $0x30] sm:$0xff]
    %v405 = vld [vmem:[#allocation8 + $0x38] sm:$0xff]
    %v406 = vld [vmem:[#allocation8 + $0x40] sm:$0xff]
    %v407 = vld [vmem:[#allocation8 + $0x48] sm:$0xff]
    %v408 = vld [vmem:[#allocation8 + $0x50] sm:$0xff]
    %v409 = vld [vmem:[#allocation8 + $0x58] sm:$0xff]
    %v410 = vld [vmem:[#allocation8 + $0x60] sm:$0xff]
    %v411 = vld [vmem:[#allocation8 + $0x68] sm:$0xff]
    %v412 = vld [vmem:[#allocation8 + $0x70] sm:$0xff]
    %v413 = vld [vmem:[#allocation8 + $0x78] sm:$0xff]
    %v414 = vld [vmem:[#allocation8 + $0x80] sm:$0xff]
    %v415 = vld [vmem:[#allocation8 + $0x88] sm:$0xff]
    %v416 = vld [vmem:[#allocation8 + $0x90] sm:$0xff]
    %v417 = vld [vmem:[#allocation8 + $0x98] sm:$0xff]
    %v418 = vld [vmem:[#allocation8 + $0xa0] sm:$0xff]
    %v419 = vld [vmem:[#allocation8 + $0xa8] sm:$0xff]
    %v420 = vld [vmem:[#allocation8 + $0xb0] sm:$0xff]
    %v421 = vld [vmem:[#allocation8 + $0xb8] sm:$0xff]
    %v422 = vld [vmem:[#allocation8 + $0xc0] sm:$0xff]
    %v423 = vld [vmem:[#allocation8 + $0xc8] sm:$0xff]
    %v424 = vld [vmem:[#allocation8 + $0xd0] sm:$0xff]
    %v425 = vld [vmem:[#allocation8 + $0xd8] sm:$0xff]
    %v426 = vld [vmem:[#allocation8 + $0xe0] sm:$0xff]
    %v427 = vld [vmem:[#allocation8 + $0xe8] sm:$0xff]
    %v428 = vld [vmem:[#allocation8 + $0xf0] sm:$0xff]
    %v429 = vld [vmem:[#allocation8 + $0xf8] sm:$0xff]
    %v430 = vld [vmem:[#allocation8 + $0x100] sm:$0xff]
    %v431 = vld [vmem:[#allocation8 + $0x108] sm:$0xff]
    %v432 = vld [vmem:[#allocation8 + $0x110] sm:$0xff]
    %v433 = vld [vmem:[#allocation8 + $0x118] sm:$0xff]
    %v434 = vld [vmem:[#allocation8 + $0x120] sm:$0xff]
    %v435 = vld [vmem:[#allocation8 + $0x128] sm:$0xff]
    %v436 = vld [vmem:[#allocation8 + $0x130] sm:$0xff]
    %v437 = vld [vmem:[#allocation8 + $0x138] sm:$0xff]
    %v438 = vld [vmem:[#allocation8 + $0x140] sm:$0xff]
    %v439 = vld [vmem:[#allocation8 + $0x148] sm:$0xff]
    %v440 = vld [vmem:[#allocation8 + $0x150] sm:$0xff]
    %v441 = vld [vmem:[#allocation8 + $0x158] sm:$0xff]
    %v442 = vld [vmem:[#allocation8 + $0x160] sm:$0xff]
    %v443 = vld [vmem:[#allocation8 + $0x168] sm:$0xff]
    %v444 = vld [vmem:[#allocation8 + $0x170] sm:$0xff]
    %v445 = vld [vmem:[#allocation8 + $0x178] sm:$0xff]
    %v447 = vlaneseq
    %v448 = vshrl.u32 %v447, 7
    %v449 = vsub.s32 0, %v448
    %v450 = vrot.slane %v91, %v449
    %v451 = vlaneseq
    %v452 = vshrl.u32 %v451, 7
    %v453 = vsub.s32 1, %v452
    %v454 = vrot.slane %v91, %v453
    %v455 = vlaneseq
    %v456 = vshrl.u32 %v455, 7
    %v457 = vsub.s32 2, %v456
    %v458 = vrot.slane %v91, %v457
    %462 = vmatprep.subr.mxu0 %v399
    %463 = vmatpush1.msra.mxu0 %v398
    %464 = vmatprep.subr.mxu0 %v402
    %465 = vmatpush1.msra.mxu0 %v401
    %466 = vmatprep.subr.mxu0 %v405
    %467 = vmatpush1.msra.mxu0 %v404
    %468 = vmatprep.subr.mxu0 %v408
    %469 = vmatpush1.msra.mxu0 %v407
    %470 = vmatprep.subr.mxu0 %v411
    %471 = vmatpush1.msra.mxu0 %v410
    %472 = vmatprep.subr.mxu0 %v414
    %473 = vmatpush1.msra.mxu0 %v413
    %474 = vmatprep.subr.mxu0 %v417
    %475 = vmatpush1.msra.mxu0 %v416
    %476 = vmatprep.subr.mxu0 %v420
    %477 = vmatpush1.msra.mxu0 %v419
    %478 = vmatprep.subr.mxu0 %v423
    %479 = vmatpush1.msra.mxu0 %v422
    %480 = vmatprep.subr.mxu0 %v426
    %481 = vmatpush1.msra.mxu0 %v425
    %482 = vmatprep.subr.mxu0 %v429
    %483 = vmatpush1.msra.mxu0 %v428
    %484 = vmatprep.subr.mxu0 %v432
    %485 = vmatpush1.msra.mxu0 %v431
    %486 = vmatprep.subr.mxu0 %v435
    %487 = vmatpush1.msra.mxu0 %v434
    %488 = vmatprep.subr.mxu0 %v438
    %489 = vmatpush1.msra.mxu0 %v437
    %490 = vmatprep.subr.mxu0 %v441
    %491 = vmatpush1.msra.mxu0 %v440
    %492 = vmatprep.subr.mxu0 %v444
    %493 = vmatpush1.msra.mxu0 %v443
    %494 = vmatprep.subr.mxu0 0.0
    %495 = vmatpush1.msra.mxu0 0.0
    %496 = vmatprep.subr.mxu0 0.0
    %497 = vmatpush1.msra.mxu0 0.0
    %498 = vmatprep.subr.mxu0 0.0
    %499 = vmatpush1.msra.mxu0 0.0
    %500 = vmatprep.subr.mxu0 0.0
    %501 = vmatpush1.msra.mxu0 0.0
    %502 = vmatprep.subr.mxu0 0.0
    %503 = vmatpush1.msra.mxu0 0.0
    %504 = vmatprep.subr.mxu0 0.0
    %505 = vmatpush1.msra.mxu0 0.0
    %506 = vmatprep.subr.mxu0 0.0
    %507 = vmatpush1.msra.mxu0 0.0
    %508 = vmatprep.subr.mxu0 0.0
    %509 = vmatpush1.msra.mxu0 0.0
    %510 = vmatprep.subr.mxu0 0.0
    %511 = vmatpush1.msra.mxu0 0.0
    %512 = vmatprep.subr.mxu0 0.0
    %513 = vmatpush1.msra.mxu0 0.0
    %514 = vmatprep.subr.mxu0 0.0
    %515 = vmatpush1.msra.mxu0 0.0
    %516 = vmatprep.subr.mxu0 0.0
    %517 = vmatpush1.msra.mxu0 0.0
    %518 = vmatprep.subr.mxu0 0.0
    %519 = vmatpush1.msra.mxu0 0.0
    %520 = vmatprep.subr.mxu0 0.0
    %521 = vmatpush1.msra.mxu0 0.0
    %522 = vmatprep.subr.mxu0 0.0
    %523 = vmatpush1.msra.mxu0 0.0
    %524 = vmatprep.subr.mxu0 0.0
    %525 = vmatpush1.msra.mxu0 0.0
    %526 = vmatprep.mubr.f32.mxu0 0.0
    %527 = vmatmul.mubr.f32.gmra.mrb[0].mxu0 %v397
    %v528 = vpop.f32.mrb[0].mxu0
    %v529 = vadd.f32 %v450, %v528
    %v530 = vpop.f32.mrb[0].mxu0
    %v531 = vadd.f32 %v454, %v530
    %532 = vdwg.mxu0
    %533 = vmatprep.subr.mxu0 0.0
    %534 = vmatpush1.msra.mxu0 %v400
    %535 = vmatprep.subr.mxu0 0.0
    %536 = vmatpush1.msra.mxu0 %v403
    %537 = vmatprep.subr.mxu0 0.0
    %538 = vmatpush1.msra.mxu0 %v406
    %539 = vmatprep.subr.mxu0 0.0
    %540 = vmatpush1.msra.mxu0 %v409
    %541 = vmatprep.subr.mxu0 0.0
    %542 = vmatpush1.msra.mxu0 %v412
    %543 = vmatprep.subr.mxu0 0.0
    %544 = vmatpush1.msra.mxu0 %v415
    %545 = vmatprep.subr.mxu0 0.0
    %546 = vmatpush1.msra.mxu0 %v418
    %547 = vmatprep.subr.mxu0 0.0
    %548 = vmatpush1.msra.mxu0 %v421
    %549 = vmatprep.subr.mxu0 0.0
    %550 = vmatpush1.msra.mxu0 %v424
    %551 = vmatprep.subr.mxu0 0.0
    %552 = vmatpush1.msra.mxu0 %v427
    %553 = vmatprep.subr.mxu0 0.0
    %554 = vmatpush1.msra.mxu0 %v430
    %555 = vmatprep.subr.mxu0 0.0
    %556 = vmatpush1.msra.mxu0 %v433
    %557 = vmatprep.subr.mxu0 0.0
    %558 = vmatpush1.msra.mxu0 %v436
    %559 = vmatprep.subr.mxu0 0.0
    %560 = vmatpush1.msra.mxu0 %v439
    %561 = vmatprep.subr.mxu0 0.0
    %562 = vmatpush1.msra.mxu0 %v442
    %563 = vmatprep.subr.mxu0 0.0
    %564 = vmatpush1.msra.mxu0 %v445
    %565 = vmatprep.subr.mxu0 0.0
    %566 = vmatpush1.msra.mxu0 0.0
    %567 = vmatprep.subr.mxu0 0.0
    %568 = vmatpush1.msra.mxu0 0.0
    %569 = vmatprep.subr.mxu0 0.0
    %570 = vmatpush1.msra.mxu0 0.0
    %571 = vmatprep.subr.mxu0 0.0
    %572 = vmatpush1.msra.mxu0 0.0
    %573 = vmatprep.subr.mxu0 0.0
    %574 = vmatpush1.msra.mxu0 0.0
    %575 = vmatprep.subr.mxu0 0.0
    %576 = vmatpush1.msra.mxu0 0.0
    %577 = vmatprep.subr.mxu0 0.0
    %578 = vmatpush1.msra.mxu0 0.0
    %579 = vmatprep.subr.mxu0 0.0
    %580 = vmatpush1.msra.mxu0 0.0
    %581 = vmatprep.subr.mxu0 0.0
    %582 = vmatpush1.msra.mxu0 0.0
    %583 = vmatprep.subr.mxu0 0.0
    %584 = vmatpush1.msra.mxu0 0.0
    %585 = vmatprep.subr.mxu0 0.0
    %586 = vmatpush1.msra.mxu0 0.0
    %587 = vmatprep.subr.mxu0 0.0
    %588 = vmatpush1.msra.mxu0 0.0
    %589 = vmatprep.subr.mxu0 0.0
    %590 = vmatpush1.msra.mxu0 0.0
    %591 = vmatprep.subr.mxu0 0.0
    %592 = vmatpush1.msra.mxu0 0.0
    %593 = vmatprep.subr.mxu0 0.0
    %594 = vmatpush1.msra.mxu0 0.0
    %595 = vmatprep.subr.mxu0 0.0
    %596 = vmatpush1.msra.mxu0 0.0
    %597 = vmatprep.mubr.f32.mxu0 0.0
    %598 = vmatmul.mubr.f32.gmra.mrb[0].mxu0 %v397
    %v599 = vpop.f32.mrb[0].mxu0
    %v600 = vadd.f32 %v458, %v599
    %v601 = vpop.f32.mrb[0].mxu0
    %602 = vdwg.mxu0
    %v604 = vlaneseq
    %v605 = vshrl.u32 %v604, 7
    %v606 = vsub.s32 0, %v605
    %v607 = vrot.slane %v92, %v606
    %v608 = vlaneseq
    %v609 = vshrl.u32 %v608, 7
    %v610 = vsub.s32 1, %v609
    %v611 = vrot.slane %v92, %v610
    %v612 = vlaneseq
    %v613 = vshrl.u32 %v612, 7
    %v614 = vsub.s32 2, %v613
    %v615 = vrot.slane %v92, %v614
    %v619 = vadd.f32 %v227, %v607
    %v620 = vadd.f32 %v296, %v611
    %v621 = vadd.f32 %v298, %v615
    %v622 = vadd.f32 %v529, %v619
    %v623 = vadd.f32 %v531, %v620
    %v624 = vxor.u32 %v622, 2147483648
    %v625 = vxor.u32 %v623, 2147483648
    %v626 = vmul.f32 %v624, 1.442695
    %v627 = vpow.pop %v626
    %v628 = vmul.f32 %v625, 1.442695
    %v629 = vpow.pop %v628
    %v630 = vadd.f32 %v627, 1.0
    %v631 = vadd.f32 %v629, 1.0
    %v632 = vrcp.pop %v630
    %v633 = vmul.f32 1.0, %v632
    %v634 = vrcp.pop %v631
    %v635 = vmul.f32 1.0, %v634
    %v636 = vmul.f32 %v633, %v621
    %v637 = vadd.f32 %v600, %v636
    %v638 = vtanh.pop %v637
    %v639 = vsub.f32 1.0, %v635
    %v640 = vmul.f32 %v639, %v638
    %v641 = vmul.f32 %v635, %v93
    %v642 = vadd.f32 %v640, %v641
    %643 = vst [vmem:[#allocation2] sm:$0x1] %v642
    loop: start=0, step=1, limit=7
    $region66: #{tpu_custom_call.1} parent=1 // loop_pre_header
      _
    $region67: #{tpu_custom_call.1} parent=1 // loop_header
      %s645 = sphi 0, %s649
      %p646 = scmp.ge.s32.totalorder %s645, 7
      %v650 = vphi %v642, %v6085
    $region68: #{tpu_custom_call.1} parent=1 // loop_header_branch
      %648 = sbr.rel (%p646) target = $region72
    $region69: #{tpu_custom_call.1} parent=1 // loop_body
      %s651 = smul.u32 %s645, 9
      %s652 = sadd.s32 %s651, 1
      %v653 = vld [vmem:[#allocation6] sm:$0xff]
      %v654 = vld [vmem:[#allocation6 + $0x8] sm:$0xff]
      %v655 = vld [vmem:[#allocation6 + $0x10] sm:$0xff]
      %v656 = vld [vmem:[#allocation6 + $0x18] sm:$0xff]
      %v657 = vld [vmem:[#allocation6 + $0x20] sm:$0xff]
      %v658 = vld [vmem:[#allocation6 + $0x28] sm:$0xff]
      %v659 = vld [vmem:[#allocation6 + $0x30] sm:$0xff]
      %v660 = vld [vmem:[#allocation6 + $0x38] sm:$0xff]
      %v661 = vld [vmem:[#allocation6 + $0x40] sm:$0xff]
      %v662 = vld [vmem:[#allocation6 + $0x48] sm:$0xff]
      %v663 = vld [vmem:[#allocation6 + $0x50] sm:$0xff]
      %v664 = vld [vmem:[#allocation6 + $0x58] sm:$0xff]
      %v665 = vld [vmem:[#allocation6 + $0x60] sm:$0xff]
      %v666 = vld [vmem:[#allocation6 + $0x68] sm:$0xff]
      %v667 = vld [vmem:[#allocation6 + $0x70] sm:$0xff]
      %v668 = vld [vmem:[#allocation6 + $0x78] sm:$0xff]
      %v669 = vld [vmem:[#allocation6 + $0x80] sm:$0xff]
      %v670 = vld [vmem:[#allocation6 + $0x88] sm:$0xff]
      %v671 = vld [vmem:[#allocation6 + $0x90] sm:$0xff]
      %v672 = vld [vmem:[#allocation6 + $0x98] sm:$0xff]
      %v673 = vld [vmem:[#allocation6 + $0xa0] sm:$0xff]
      %v674 = vld [vmem:[#allocation6 + $0xa8] sm:$0xff]
      %v675 = vld [vmem:[#allocation6 + $0xb0] sm:$0xff]
      %v676 = vld [vmem:[#allocation6 + $0xb8] sm:$0xff]
      %v677 = vld [vmem:[#allocation6 + $0xc0] sm:$0xff]
      %v678 = vld [vmem:[#allocation6 + $0xc8] sm:$0xff]
      %v679 = vld [vmem:[#allocation6 + $0xd0] sm:$0xff]
      %v680 = vld [vmem:[#allocation6 + $0xd8] sm:$0xff]
      %v681 = vld [vmem:[#allocation6 + $0xe0] sm:$0xff]
      %v682 = vld [vmem:[#allocation6 + $0xe8] sm:$0xff]
      %v683 = vld [vmem:[#allocation6 + $0xf0] sm:$0xff]
      %v684 = vld [vmem:[#allocation6 + $0xf8] sm:$0xff]
      %v685 = vld [vmem:[#allocation6 + $0x100] sm:$0xff]
      %v686 = vld [vmem:[#allocation6 + $0x108] sm:$0xff]
      %v687 = vld [vmem:[#allocation6 + $0x110] sm:$0xff]
      %v688 = vld [vmem:[#allocation6 + $0x118] sm:$0xff]
      %v689 = vld [vmem:[#allocation6 + $0x120] sm:$0xff]
      %v690 = vld [vmem:[#allocation6 + $0x128] sm:$0xff]
      %v691 = vld [vmem:[#allocation6 + $0x130] sm:$0xff]
      %v692 = vld [vmem:[#allocation6 + $0x138] sm:$0xff]
      %v693 = vld [vmem:[#allocation6 + $0x140] sm:$0xff]
      %v694 = vld [vmem:[#allocation6 + $0x148] sm:$0xff]
      %v695 = vld [vmem:[#allocation6 + $0x150] sm:$0xff]
      %v696 = vld [vmem:[#allocation6 + $0x158] sm:$0xff]
      %v697 = vld [vmem:[#allocation6 + $0x160] sm:$0xff]
      %v698 = vld [vmem:[#allocation6 + $0x168] sm:$0xff]
      %v699 = vld [vmem:[#allocation6 + $0x170] sm:$0xff]
      %v700 = vld [vmem:[#allocation6 + $0x178] sm:$0xff]
      %v701 = vld [vmem:[#allocation6 + $0x180] sm:$0xff]
      %v702 = vld [vmem:[#allocation6 + $0x188] sm:$0xff]
      %v703 = vld [vmem:[#allocation6 + $0x190] sm:$0xff]
      %v704 = vld [vmem:[#allocation6 + $0x198] sm:$0xff]
      %v705 = vld [vmem:[#allocation6 + $0x1a0] sm:$0xff]
      %v706 = vld [vmem:[#allocation6 + $0x1a8] sm:$0xff]
      %v707 = vld [vmem:[#allocation6 + $0x1b0] sm:$0xff]
      %v708 = vld [vmem:[#allocation6 + $0x1b8] sm:$0xff]
      %v709 = vld [vmem:[#allocation6 + $0x1c0] sm:$0xff]
      %v710 = vld [vmem:[#allocation6 + $0x1c8] sm:$0xff]
      %v711 = vld [vmem:[#allocation6 + $0x1d0] sm:$0xff]
      %v712 = vld [vmem:[#allocation6 + $0x1d8] sm:$0xff]
      %v713 = vld [vmem:[#allocation6 + $0x1e0] sm:$0xff]
      %v714 = vld [vmem:[#allocation6 + $0x1e8] sm:$0xff]
      %v715 = vld [vmem:[#allocation6 + $0x1f0] sm:$0xff]
      %v716 = vld [vmem:[#allocation6 + $0x1f8] sm:$0xff]
      %v717 = vld [vmem:[#allocation6 + $0x200] sm:$0xff]
      %v718 = vld [vmem:[#allocation6 + $0x208] sm:$0xff]
      %v719 = vld [vmem:[#allocation6 + $0x210] sm:$0xff]
      %v720 = vld [vmem:[#allocation6 + $0x218] sm:$0xff]
      %v721 = vld [vmem:[#allocation6 + $0x220] sm:$0xff]
      %v722 = vld [vmem:[#allocation6 + $0x228] sm:$0xff]
      %v723 = vld [vmem:[#allocation6 + $0x230] sm:$0xff]
      %v724 = vld [vmem:[#allocation6 + $0x238] sm:$0xff]
      %v725 = vld [vmem:[#allocation6 + $0x240] sm:$0xff]
      %v726 = vld [vmem:[#allocation6 + $0x248] sm:$0xff]
      %v727 = vld [vmem:[#allocation6 + $0x250] sm:$0xff]
      %v728 = vld [vmem:[#allocation6 + $0x258] sm:$0xff]
      %v729 = vld [vmem:[#allocation6 + $0x260] sm:$0xff]
      %v730 = vld [vmem:[#allocation6 + $0x268] sm:$0xff]
      %v731 = vld [vmem:[#allocation6 + $0x270] sm:$0xff]
      %v732 = vld [vmem:[#allocation6 + $0x278] sm:$0xff]
      %733 = vmatprep.subr.mxu0 %v654
      %734 = vmatpush1.msra.mxu0 %v653
      %735 = vmatprep.subr.mxu0 %v659
      %736 = vmatpush1.msra.mxu0 %v658
      %737 = vmatprep.subr.mxu0 %v664
      %738 = vmatpush1.msra.mxu0 %v663
      %739 = vmatprep.subr.mxu0 %v669
      %740 = vmatpush1.msra.mxu0 %v668
      %741 = vmatprep.subr.mxu0 %v674
      %742 = vmatpush1.msra.mxu0 %v673
      %743 = vmatprep.subr.mxu0 %v679
      %744 = vmatpush1.msra.mxu0 %v678
      %745 = vmatprep.subr.mxu0 %v684
      %746 = vmatpush1.msra.mxu0 %v683
      %747 = vmatprep.subr.mxu0 %v689
      %748 = vmatpush1.msra.mxu0 %v688
      %749 = vmatprep.subr.mxu0 %v694
      %750 = vmatpush1.msra.mxu0 %v693
      %751 = vmatprep.subr.mxu0 %v699
      %752 = vmatpush1.msra.mxu0 %v698
      %753 = vmatprep.subr.mxu0 %v704
      %754 = vmatpush1.msra.mxu0 %v703
      %755 = vmatprep.subr.mxu0 %v709
      %756 = vmatpush1.msra.mxu0 %v708
      %757 = vmatprep.subr.mxu0 %v714
      %758 = vmatpush1.msra.mxu0 %v713
      %759 = vmatprep.subr.mxu0 %v719
      %760 = vmatpush1.msra.mxu0 %v718
      %761 = vmatprep.subr.mxu0 %v724
      %762 = vmatpush1.msra.mxu0 %v723
      %763 = vmatprep.subr.mxu0 %v729
      %764 = vmatpush1.msra.mxu0 %v728
      %765 = vmatprep.subr.mxu0 0.0
      %766 = vmatpush1.msra.mxu0 0.0
      %767 = vmatprep.subr.mxu0 0.0
      %768 = vmatpush1.msra.mxu0 0.0
      %769 = vmatprep.subr.mxu0 0.0
      %770 = vmatpush1.msra.mxu0 0.0
      %771 = vmatprep.subr.mxu0 0.0
      %772 = vmatpush1.msra.mxu0 0.0
      %773 = vmatprep.subr.mxu0 0.0
      %774 = vmatpush1.msra.mxu0 0.0
      %775 = vmatprep.subr.mxu0 0.0
      %776 = vmatpush1.msra.mxu0 0.0
      %777 = vmatprep.subr.mxu0 0.0
      %778 = vmatpush1.msra.mxu0 0.0
      %779 = vmatprep.subr.mxu0 0.0
      %780 = vmatpush1.msra.mxu0 0.0
      %781 = vmatprep.subr.mxu0 0.0
      %782 = vmatpush1.msra.mxu0 0.0
      %783 = vmatprep.subr.mxu0 0.0
      %784 = vmatpush1.msra.mxu0 0.0
      %785 = vmatprep.subr.mxu0 0.0
      %786 = vmatpush1.msra.mxu0 0.0
      %787 = vmatprep.subr.mxu0 0.0
      %788 = vmatpush1.msra.mxu0 0.0
      %789 = vmatprep.subr.mxu0 0.0
      %790 = vmatpush1.msra.mxu0 0.0
      %791 = vmatprep.subr.mxu0 0.0
      %792 = vmatpush1.msra.mxu0 0.0
      %793 = vmatprep.subr.mxu0 0.0
      %794 = vmatpush1.msra.mxu0 0.0
      %795 = vmatprep.subr.mxu0 0.0
      %796 = vmatpush1.msra.mxu0 0.0
      %797 = vmatprep.mubr.f32.mxu0 0.0
      %798 = vmatmul.mubr.f32.gmra.mrb[0].mxu0 %v650
      %v799 = vpop.f32.mrb[0].mxu0
      %v800 = vadd.f32 0.0, %v799
      %v801 = vpop.f32.mrb[0].mxu0
      %v802 = vadd.f32 0.0, %v801
      %803 = vdwg.mxu0
      %804 = vmatprep.subr.mxu0 %v656
      %805 = vmatpush1.msra.mxu0 %v655
      %806 = vmatprep.subr.mxu0 %v661
      %807 = vmatpush1.msra.mxu0 %v660
      %808 = vmatprep.subr.mxu0 %v666
      %809 = vmatpush1.msra.mxu0 %v665
      %810 = vmatprep.subr.mxu0 %v671
      %811 = vmatpush1.msra.mxu0 %v670
      %812 = vmatprep.subr.mxu0 %v676
      %813 = vmatpush1.msra.mxu0 %v675
      %814 = vmatprep.subr.mxu0 %v681
      %815 = vmatpush1.msra.mxu0 %v680
      %816 = vmatprep.subr.mxu0 %v686
      %817 = vmatpush1.msra.mxu0 %v685
      %818 = vmatprep.subr.mxu0 %v691
      %819 = vmatpush1.msra.mxu0 %v690
      %820 = vmatprep.subr.mxu0 %v696
      %821 = vmatpush1.msra.mxu0 %v695
      %822 = vmatprep.subr.mxu0 %v701
      %823 = vmatpush1.msra.mxu0 %v700
      %824 = vmatprep.subr.mxu0 %v706
      %825 = vmatpush1.msra.mxu0 %v705
      %826 = vmatprep.subr.mxu0 %v711
      %827 = vmatpush1.msra.mxu0 %v710
      %828 = vmatprep.subr.mxu0 %v716
      %829 = vmatpush1.msra.mxu0 %v715
      %830 = vmatprep.subr.mxu0 %v721
      %831 = vmatpush1.msra.mxu0 %v720
      %832 = vmatprep.subr.mxu0 %v726
      %833 = vmatpush1.msra.mxu0 %v725
      %834 = vmatprep.subr.mxu0 %v731
      %835 = vmatpush1.msra.mxu0 %v730
      %836 = vmatprep.subr.mxu0 0.0
      %837 = vmatpush1.msra.mxu0 0.0
      %838 = vmatprep.subr.mxu0 0.0
      %839 = vmatpush1.msra.mxu0 0.0
      %840 = vmatprep.subr.mxu0 0.0
      %841 = vmatpush1.msra.mxu0 0.0
      %842 = vmatprep.subr.mxu0 0.0
      %843 = vmatpush1.msra.mxu0 0.0
      %844 = vmatprep.subr.mxu0 0.0
      %845 = vmatpush1.msra.mxu0 0.0
      %846 = vmatprep.subr.mxu0 0.0
      %847 = vmatpush1.msra.mxu0 0.0
      %848 = vmatprep.subr.mxu0 0.0
      %849 = vmatpush1.msra.mxu0 0.0
      %850 = vmatprep.subr.mxu0 0.0
      %851 = vmatpush1.msra.mxu0 0.0
      %852 = vmatprep.subr.mxu0 0.0
      %853 = vmatpush1.msra.mxu0 0.0
      %854 = vmatprep.subr.mxu0 0.0
      %855 = vmatpush1.msra.mxu0 0.0
      %856 = vmatprep.subr.mxu0 0.0
      %857 = vmatpush1.msra.mxu0 0.0
      %858 = vmatprep.subr.mxu0 0.0
      %859 = vmatpush1.msra.mxu0 0.0
      %860 = vmatprep.subr.mxu0 0.0
      %861 = vmatpush1.msra.mxu0 0.0
      %862 = vmatprep.subr.mxu0 0.0
      %863 = vmatpush1.msra.mxu0 0.0
      %864 = vmatprep.subr.mxu0 0.0
      %865 = vmatpush1.msra.mxu0 0.0
      %866 = vmatprep.subr.mxu0 0.0
      %867 = vmatpush1.msra.mxu0 0.0
      %868 = vmatprep.mubr.f32.mxu0 0.0
      %869 = vmatmul.mubr.f32.gmra.mrb[0].mxu0 %v650
      %v870 = vpop.f32.mrb[0].mxu0
      %v871 = vadd.f32 0.0, %v870
      %v872 = vpop.f32.mrb[0].mxu0
      %v873 = vadd.f32 0.0, %v872
      %874 = vdwg.mxu0
      %875 = vmatprep.subr.mxu0 0.0
      %876 = vmatpush1.msra.mxu0 %v657
      %877 = vmatprep.subr.mxu0 0.0
      %878 = vmatpush1.msra.mxu0 %v662
      %879 = vmatprep.subr.mxu0 0.0
      %880 = vmatpush1.msra.mxu0 %v667
      %881 = vmatprep.subr.mxu0 0.0
      %882 = vmatpush1.msra.mxu0 %v672
      %883 = vmatprep.subr.mxu0 0.0
      %884 = vmatpush1.msra.mxu0 %v677
      %885 = vmatprep.subr.mxu0 0.0
      %886 = vmatpush1.msra.mxu0 %v682
      %887 = vmatprep.subr.mxu0 0.0
      %888 = vmatpush1.msra.mxu0 %v687
      %889 = vmatprep.subr.mxu0 0.0
      %890 = vmatpush1.msra.mxu0 %v692
      %891 = vmatprep.subr.mxu0 0.0
      %892 = vmatpush1.msra.mxu0 %v697
      %893 = vmatprep.subr.mxu0 0.0
      %894 = vmatpush1.msra.mxu0 %v702
      %895 = vmatprep.subr.mxu0 0.0
      %896 = vmatpush1.msra.mxu0 %v707
      %897 = vmatprep.subr.mxu0 0.0
      %898 = vmatpush1.msra.mxu0 %v712
      %899 = vmatprep.subr.mxu0 0.0
      %900 = vmatpush1.msra.mxu0 %v717
      %901 = vmatprep.subr.mxu0 0.0
      %902 = vmatpush1.msra.mxu0 %v722
      %903 = vmatprep.subr.mxu0 0.0
      %904 = vmatpush1.msra.mxu0 %v727
      %905 = vmatprep.subr.mxu0 0.0
      %906 = vmatpush1.msra.mxu0 %v732
      %907 = vmatprep.subr.mxu0 0.0
      %908 = vmatpush1.msra.mxu0 0.0
      %909 = vmatprep.subr.mxu0 0.0
      %910 = vmatpush1.msra.mxu0 0.0
      %911 = vmatprep.subr.mxu0 0.0
      %912 = vmatpush1.msra.mxu0 0.0
      %913 = vmatprep.subr.mxu0 0.0
      %914 = vmatpush1.msra.mxu0 0.0
      %915 = vmatprep.subr.mxu0 0.0
      %916 = vmatpush1.msra.mxu0 0.0
      %917 = vmatprep.subr.mxu0 0.0
      %918 = vmatpush1.msra.mxu0 0.0
      %919 = vmatprep.subr.mxu0 0.0
      %920 = vmatpush1.msra.mxu0 0.0
      %921 = vmatprep.subr.mxu0 0.0
      %922 = vmatpush1.msra.mxu0 0.0
      %923 = vmatprep.subr.mxu0 0.0
      %924 = vmatpush1.msra.mxu0 0.0
      %925 = vmatprep.subr.mxu0 0.0
      %926 = vmatpush1.msra.mxu0 0.0
      %927 = vmatprep.subr.mxu0 0.0
      %928 = vmatpush1.msra.mxu0 0.0
      %929 = vmatprep.subr.mxu0 0.0
      %930 = vmatpush1.msra.mxu0 0.0
      %931 = vmatprep.subr.mxu0 0.0
      %932 = vmatpush1.msra.mxu0 0.0
      %933 = vmatprep.subr.mxu0 0.0
      %934 = vmatpush1.msra.mxu0 0.0
      %935 = vmatprep.subr.mxu0 0.0
      %936 = vmatpush1.msra.mxu0 0.0
      %937 = vmatprep.subr.mxu0 0.0
      %938 = vmatpush1.msra.mxu0 0.0
      %939 = vmatprep.mubr.f32.mxu0 0.0
      %940 = vmatmul.mubr.f32.gmra.mrb[0].mxu0 %v650
      %v941 = vpop.f32.mrb[0].mxu0
      %v942 = vadd.f32 0.0, %v941
      %v943 = vpop.f32.mrb[0].mxu0
      %944 = vdwg.mxu0
      %v945 = vadd.f32 %v800, %v89
      %v946 = vsel %vm301, %v945, -inf
      %947 = vmax.xlane.f32.xlu0 %v946
      %v948 = vpop.xlane.xlu0 %947
      %v949 = vsub.f32 %v945, %v948
      %v950 = vmul.f32 %v949, 1.442695
      %v951 = vpow.pop %v950
      %v952 = vld [vmem:[%s1] sm:$0xff]
      %v953 = vld [vmem:[%s1 + $0x8] sm:$0xff]
      %v954 = vld [vmem:[%s1 + $0x10] sm:$0xff]
      %v955 = vld [vmem:[%s1 + $0x18] sm:$0xff]
      %v956 = vld [vmem:[%s1 + $0x20] sm:$0xff]
      %v957 = vld [vmem:[%s1 + $0x28] sm:$0xff]
      %v958 = vld [vmem:[%s1 + $0x30] sm:$0xff]
      %v959 = vld [vmem:[%s1 + $0x38] sm:$0xff]
      %v961 = vsel %vm316, %v951, 0
      %963 = vmatprep.subr.mxu0 0.0
      %964 = vmatpush1.msra.mxu0 %v952
      %965 = vmatprep.subr.mxu0 0.0
      %966 = vmatpush1.msra.mxu0 %v953
      %967 = vmatprep.subr.mxu0 0.0
      %968 = vmatpush1.msra.mxu0 %v954
      %969 = vmatprep.subr.mxu0 0.0
      %970 = vmatpush1.msra.mxu0 %v955
      %971 = vmatprep.subr.mxu0 0.0
      %972 = vmatpush1.msra.mxu0 %v956
      %973 = vmatprep.subr.mxu0 0.0
      %974 = vmatpush1.msra.mxu0 %v957
      %975 = vmatprep.subr.mxu0 0.0
      %976 = vmatpush1.msra.mxu0 %v958
      %977 = vmatprep.subr.mxu0 0.0
      %978 = vmatpush1.msra.mxu0 %v959
      %979 = vmatprep.subr.mxu0 0.0
      %980 = vmatpush1.msra.mxu0 0.0
      %981 = vmatprep.subr.mxu0 0.0
      %982 = vmatpush1.msra.mxu0 0.0
      %983 = vmatprep.subr.mxu0 0.0
      %984 = vmatpush1.msra.mxu0 0.0
      %985 = vmatprep.subr.mxu0 0.0
      %986 = vmatpush1.msra.mxu0 0.0
      %987 = vmatprep.subr.mxu0 0.0
      %988 = vmatpush1.msra.mxu0 0.0
      %989 = vmatprep.subr.mxu0 0.0
      %990 = vmatpush1.msra.mxu0 0.0
      %991 = vmatprep.subr.mxu0 0.0
      %992 = vmatpush1.msra.mxu0 0.0
      %993 = vmatprep.subr.mxu0 0.0
      %994 = vmatpush1.msra.mxu0 0.0
      %995 = vmatprep.subr.mxu0 0.0
      %996 = vmatpush1.msra.mxu0 0.0
      %997 = vmatprep.subr.mxu0 0.0
      %998 = vmatpush1.msra.mxu0 0.0
      %999 = vmatprep.subr.mxu0 0.0
      %1000 = vmatpush1.msra.mxu0 0.0
      %1001 = vmatprep.subr.mxu0 0.0
      %1002 = vmatpush1.msra.mxu0 0.0
      %1003 = vmatprep.subr.mxu0 0.0
      %1004 = vmatpush1.msra.mxu0 0.0
      %1005 = vmatprep.subr.mxu0 0.0
      %1006 = vmatpush1.msra.mxu0 0.0
      %1007 = vmatprep.subr.mxu0 0.0
      %1008 = vmatpush1.msra.mxu0 0.0
      %1009 = vmatprep.subr.mxu0 0.0
      %1010 = vmatpush1.msra.mxu0 0.0
      %1011 = vmatprep.subr.mxu0 0.0
      %1012 = vmatpush1.msra.mxu0 0.0
      %1013 = vmatprep.subr.mxu0 0.0
      %1014 = vmatpush1.msra.mxu0 0.0
      %1015 = vmatprep.subr.mxu0 0.0
      %1016 = vmatpush1.msra.mxu0 0.0
      %1017 = vmatprep.subr.mxu0 0.0
      %1018 = vmatpush1.msra.mxu0 0.0
      %1019 = vmatprep.subr.mxu0 0.0
      %1020 = vmatpush1.msra.mxu0 0.0
      %1021 = vmatprep.subr.mxu0 0.0
      %1022 = vmatpush1.msra.mxu0 0.0
      %1023 = vmatprep.subr.mxu0 0.0
      %1024 = vmatpush1.msra.mxu0 0.0
      %1025 = vmatprep.subr.mxu0 0.0
      %1026 = vmatpush1.msra.mxu0 0.0
      %1027 = vmatprep.mubr.f32.mxu0 0.0
      %1028 = vmatmul.mubr.f32.gmra.mrb[0].mxu0 %v961
      %v1029 = vpop.f32.mrb[0].mxu0
      %v1030 = vadd.f32 0.0, %v1029
      %v1031 = vpop.f32.mrb[0].mxu0
      %1032 = vdwg.mxu0
      %v1033 = vsel %vm301, %v951, 0.0
      %1034 = vadd.xlane.f32.xlu0 %v1033
      %v1035 = vpop.xlane.xlu0 %1034
      %v1036 = vrcp.pop %v1035
      %v1037 = vmul.f32 %v1030, %v1036
      %v1038 = vadd.f32 %v802, %v1037
      %v1039 = vadd.f32 %v1038, %v90
      %v1040 = vmax.f32 %v1039, 0.0
      %v1041 = vld [vmem:[#allocation8] sm:$0xff]
      %v1042 = vld [vmem:[#allocation8 + $0x8] sm:$0xff]
      %v1043 = vld [vmem:[#allocation8 + $0x10] sm:$0xff]
      %v1044 = vld [vmem:[#allocation8 + $0x18] sm:$0xff]
      %v1045 = vld [vmem:[#allocation8 + $0x20] sm:$0xff]
      %v1046 = vld [vmem:[#allocation8 + $0x28] sm:$0xff]
      %v1047 = vld [vmem:[#allocation8 + $0x30] sm:$0xff]
      %v1048 = vld [vmem:[#allocation8 + $0x38] sm:$0xff]
      %v1049 = vld [vmem:[#allocation8 + $0x40] sm:$0xff]
      %v1050 = vld [vmem:[#allocation8 + $0x48] sm:$0xff]
      %v1051 = vld [vmem:[#allocation8 + $0x50] sm:$0xff]
      %v1052 = vld [vmem:[#allocation8 + $0x58] sm:$0xff]
      %v1053 = vld [vmem:[#allocation8 + $0x60] sm:$0xff]
      %v1054 = vld [vmem:[#allocation8 + $0x68] sm:$0xff]
      %v1055 = vld [vmem:[#allocation8 + $0x70] sm:$0xff]
      %v1056 = vld [vmem:[#allocation8 + $0x78] sm:$0xff]
      %v1057 = vld [vmem:[#allocation8 + $0x80] sm:$0xff]
      %v1058 = vld [vmem:[#allocation8 + $0x88] sm:$0xff]
      %v1059 = vld [vmem:[#allocation8 + $0x90] sm:$0xff]
      %v1060 = vld [vmem:[#allocation8 + $0x98] sm:$0xff]
      %v1061 = vld [vmem:[#allocation8 + $0xa0] sm:$0xff]
      %v1062 = vld [vmem:[#allocation8 + $0xa8] sm:$0xff]
      %v1063 = vld [vmem:[#allocation8 + $0xb0] sm:$0xff]
      %v1064 = vld [vmem:[#allocation8 + $0xb8] sm:$0xff]
      %v1065 = vld [vmem:[#allocation8 + $0xc0] sm:$0xff]
      %v1066 = vld [vmem:[#allocation8 + $0xc8] sm:$0xff]
      %v1067 = vld [vmem:[#allocation8 + $0xd0] sm:$0xff]
      %v1068 = vld [vmem:[#allocation8 + $0xd8] sm:$0xff]
      %v1069 = vld [vmem:[#allocation8 + $0xe0] sm:$0xff]
      %v1070 = vld [vmem:[#allocation8 + $0xe8] sm:$0xff]
      %v1071 = vld [vmem:[#allocation8 + $0xf0] sm:$0xff]
      %v1072 = vld [vmem:[#allocation8 + $0xf8] sm:$0xff]
      %v1073 = vld [vmem:[#allocation8 + $0x100] sm:$0xff]
      %v1074 = vld [vmem:[#allocation8 + $0x108] sm:$0xff]
      %v1075 = vld [vmem:[#allocation8 + $0x110] sm:$0xff]
      %v1076 = vld [vmem:[#allocation8 + $0x118] sm:$0xff]
      %v1077 = vld [vmem:[#allocation8 + $0x120] sm:$0xff]
      %v1078 = vld [vmem:[#allocation8 + $0x128] sm:$0xff]
      %v1079 = vld [vmem:[#allocation8 + $0x130] sm:$0xff]
      %v1080 = vld [vmem:[#allocation8 + $0x138] sm:$0xff]
      %v1081 = vld [vmem:[#allocation8 + $0x140] sm:$0xff]
      %v1082 = vld [vmem:[#allocation8 + $0x148] sm:$0xff]
      %v1083 = vld [vmem:[#allocation8 + $0x150] sm:$0xff]
      %v1084 = vld [vmem:[#allocation8 + $0x158] sm:$0xff]
      %v1085 = vld [vmem:[#allocation8 + $0x160] sm:$0xff]
      %v1086 = vld [vmem:[#allocation8 + $0x168] sm:$0xff]
      %v1087 = vld [vmem:[#allocation8 + $0x170] sm:$0xff]
      %v1088 = vld [vmem:[#allocation8 + $0x178] sm:$0xff]
      %1089 = vmatprep.subr.mxu0 %v1042
      %1090 = vmatpush1.msra.mxu0 %v1041
      %1091 = vmatprep.subr.mxu0 %v1045
      %1092 = vmatpush1.msra.mxu0 %v1044
      %1093 = vmatprep.subr.mxu0 %v1048
      %1094 = vmatpush1.msra.mxu0 %v1047
      %1095 = vmatprep.subr.mxu0 %v1051
      %1096 = vmatpush1.msra.mxu0 %v1050
      %1097 = vmatprep.subr.mxu0 %v1054
      %1098 = vmatpush1.msra.mxu0 %v1053
      %1099 = vmatprep.subr.mxu0 %v1057
      %1100 = vmatpush1.msra.mxu0 %v1056
      %1101 = vmatprep.subr.mxu0 %v1060
      %1102 = vmatpush1.msra.mxu0 %v1059
      %1103 = vmatprep.subr.mxu0 %v1063
      %1104 = vmatpush1.msra.mxu0 %v1062
      %1105 = vmatprep.subr.mxu0 %v1066
      %1106 = vmatpush1.msra.mxu0 %v1065
      %1107 = vmatprep.subr.mxu0 %v1069
      %1108 = vmatpush1.msra.mxu0 %v1068
      %1109 = vmatprep.subr.mxu0 %v1072
      %1110 = vmatpush1.msra.mxu0 %v1071
      %1111 = vmatprep.subr.mxu0 %v1075
      %1112 = vmatpush1.msra.mxu0 %v1074
      %1113 = vmatprep.subr.mxu0 %v1078
      %1114 = vmatpush1.msra.mxu0 %v1077
      %1115 = vmatprep.subr.mxu0 %v1081
      %1116 = vmatpush1.msra.mxu0 %v1080
      %1117 = vmatprep.subr.mxu0 %v1084
      %1118 = vmatpush1.msra.mxu0 %v1083
      %1119 = vmatprep.subr.mxu0 %v1087
      %1120 = vmatpush1.msra.mxu0 %v1086
      %1121 = vmatprep.subr.mxu0 0.0
      %1122 = vmatpush1.msra.mxu0 0.0
      %1123 = vmatprep.subr.mxu0 0.0
      %1124 = vmatpush1.msra.mxu0 0.0
      %1125 = vmatprep.subr.mxu0 0.0
      %1126 = vmatpush1.msra.mxu0 0.0
      %1127 = vmatprep.subr.mxu0 0.0
      %1128 = vmatpush1.msra.mxu0 0.0
      %1129 = vmatprep.subr.mxu0 0.0
      %1130 = vmatpush1.msra.mxu0 0.0
      %1131 = vmatprep.subr.mxu0 0.0
      %1132 = vmatpush1.msra.mxu0 0.0
      %1133 = vmatprep.subr.mxu0 0.0
      %1134 = vmatpush1.msra.mxu0 0.0
      %1135 = vmatprep.subr.mxu0 0.0
      %1136 = vmatpush1.msra.mxu0 0.0
      %1137 = vmatprep.subr.mxu0 0.0
      %1138 = vmatpush1.msra.mxu0 0.0
      %1139 = vmatprep.subr.mxu0 0.0
      %1140 = vmatpush1.msra.mxu0 0.0
      %1141 = vmatprep.subr.mxu0 0.0
      %1142 = vmatpush1.msra.mxu0 0.0
      %1143 = vmatprep.subr.mxu0 0.0
      %1144 = vmatpush1.msra.mxu0 0.0
      %1145 = vmatprep.subr.mxu0 0.0
      %1146 = vmatpush1.msra.mxu0 0.0
      %1147 = vmatprep.subr.mxu0 0.0
      %1148 = vmatpush1.msra.mxu0 0.0
      %1149 = vmatprep.subr.mxu0 0.0
      %1150 = vmatpush1.msra.mxu0 0.0
      %1151 = vmatprep.subr.mxu0 0.0
      %1152 = vmatpush1.msra.mxu0 0.0
      %1153 = vmatprep.mubr.f32.mxu0 0.0
      %1154 = vmatmul.mubr.f32.gmra.mrb[0].mxu0 %v1040
      %v1155 = vpop.f32.mrb[0].mxu0
      %v1156 = vadd.f32 %v450, %v1155
      %v1157 = vpop.f32.mrb[0].mxu0
      %v1158 = vadd.f32 %v454, %v1157
      %1159 = vdwg.mxu0
      %1160 = vmatprep.subr.mxu0 0.0
      %1161 = vmatpush1.msra.mxu0 %v1043
      %1162 = vmatprep.subr.mxu0 0.0
      %1163 = vmatpush1.msra.mxu0 %v1046
      %1164 = vmatprep.subr.mxu0 0.0
      %1165 = vmatpush1.msra.mxu0 %v1049
      %1166 = vmatprep.subr.mxu0 0.0
      %1167 = vmatpush1.msra.mxu0 %v1052
      %1168 = vmatprep.subr.mxu0 0.0
      %1169 = vmatpush1.msra.mxu0 %v1055
      %1170 = vmatprep.subr.mxu0 0.0
      %1171 = vmatpush1.msra.mxu0 %v1058
      %1172 = vmatprep.subr.mxu0 0.0
      %1173 = vmatpush1.msra.mxu0 %v1061
      %1174 = vmatprep.subr.mxu0 0.0
      %1175 = vmatpush1.msra.mxu0 %v1064
      %1176 = vmatprep.subr.mxu0 0.0
      %1177 = vmatpush1.msra.mxu0 %v1067
      %1178 = vmatprep.subr.mxu0 0.0
      %1179 = vmatpush1.msra.mxu0 %v1070
      %1180 = vmatprep.subr.mxu0 0.0
      %1181 = vmatpush1.msra.mxu0 %v1073
      %1182 = vmatprep.subr.mxu0 0.0
      %1183 = vmatpush1.msra.mxu0 %v1076
      %1184 = vmatprep.subr.mxu0 0.0
      %1185 = vmatpush1.msra.mxu0 %v1079
      %1186 = vmatprep.subr.mxu0 0.0
      %1187 = vmatpush1.msra.mxu0 %v1082
      %1188 = vmatprep.subr.mxu0 0.0
      %1189 = vmatpush1.msra.mxu0 %v1085
      %1190 = vmatprep.subr.mxu0 0.0
      %1191 = vmatpush1.msra.mxu0 %v1088
      %1192 = vmatprep.subr.mxu0 0.0
      %1193 = vmatpush1.msra.mxu0 0.0
      %1194 = vmatprep.subr.mxu0 0.0
      %1195 = vmatpush1.msra.mxu0 0.0
      %1196 = vmatprep.subr.mxu0 0.0
      %1197 = vmatpush1.msra.mxu0 0.0
      %1198 = vmatprep.subr.mxu0 0.0
      %1199 = vmatpush1.msra.mxu0 0.0
      %1200 = vmatprep.subr.mxu0 0.0
      %1201 = vmatpush1.msra.mxu0 0.0
      %1202 = vmatprep.subr.mxu0 0.0
      %1203 = vmatpush1.msra.mxu0 0.0
      %1204 = vmatprep.subr.mxu0 0.0
      %1205 = vmatpush1.msra.mxu0 0.0
      %1206 = vmatprep.subr.mxu0 0.0
      %1207 = vmatpush1.msra.mxu0 0.0
      %1208 = vmatprep.subr.mxu0 0.0
      %1209 = vmatpush1.msra.mxu0 0.0
      %1210 = vmatprep.subr.mxu0 0.0
      %1211 = vmatpush1.msra.mxu0 0.0
      %1212 = vmatprep.subr.mxu0 0.0
      %1213 = vmatpush1.msra.mxu0 0.0
      %1214 = vmatprep.subr.mxu0 0.0
      %1215 = vmatpush1.msra.mxu0 0.0
      %1216 = vmatprep.subr.mxu0 0.0
      %1217 = vmatpush1.msra.mxu0 0.0
      %1218 = vmatprep.subr.mxu0 0.0
      %1219 = vmatpush1.msra.mxu0 0.0
      %1220 = vmatprep.subr.mxu0 0.0
      %1221 = vmatpush1.msra.mxu0 0.0
      %1222 = vmatprep.subr.mxu0 0.0
      %1223 = vmatpush1.msra.mxu0 0.0
      %1224 = vmatprep.mubr.f32.mxu0 0.0
      %1225 = vmatmul.mubr.f32.gmra.mrb[0].mxu0 %v1040
      %v1226 = vpop.f32.mrb[0].mxu0
      %v1227 = vadd.f32 %v458, %v1226
      %v1228 = vpop.f32.mrb[0].mxu0
      %1229 = vdwg.mxu0
      %v1230 = vadd.f32 %v871, %v607
      %v1231 = vadd.f32 %v873, %v611
      %v1232 = vadd.f32 %v942, %v615
      %v1233 = vadd.f32 %v1156, %v1230
      %v1234 = vadd.f32 %v1158, %v1231
      %v1235 = vxor.u32 %v1233, 2147483648
      %v1236 = vxor.u32 %v1234, 2147483648
      %v1237 = vmul.f32 %v1235, 1.442695
      %v1238 = vpow.pop %v1237
      %v1239 = vmul.f32 %v1236, 1.442695
      %v1240 = vpow.pop %v1239
      %v1241 = vadd.f32 %v1238, 1.0
      %v1242 = vadd.f32 %v1240, 1.0
      %v1243 = vrcp.pop %v1241
      %v1244 = vmul.f32 1.0, %v1243
      %v1245 = vrcp.pop %v1242
      %v1246 = vmul.f32 1.0, %v1245
      %v1247 = vmul.f32 %v1244, %v1232
      %v1248 = vadd.f32 %v1227, %v1247
      %v1249 = vtanh.pop %v1248
      %v1250 = vsub.f32 1.0, %v1246
      %v1251 = vmul.f32 %v1250, %v1249
      %v1252 = vmul.f32 %v1246, %v650
      %v1253 = vadd.f32 %v1251, %v1252
      %s1254 = scalar_lea.vmem [#allocation2], %s652
      %1255 = vst [vmem:[%s1254] sm:$0x1] %v1253
      %s1256 = sadd.s32 %s651, 2
      %v1257 = vld [vmem:[#allocation6] sm:$0xff]
      %v1258 = vld [vmem:[#allocation6 + $0x8] sm:$0xff]
      %v1259 = vld [vmem:[#allocation6 + $0x10] sm:$0xff]
      %v1260 = vld [vmem:[#allocation6 + $0x18] sm:$0xff]
      %v1261 = vld [vmem:[#allocation6 + $0x20] sm:$0xff]
      %v1262 = vld [vmem:[#allocation6 + $0x28] sm:$0xff]
      %v1263 = vld [vmem:[#allocation6 + $0x30] sm:$0xff]
      %v1264 = vld [vmem:[#allocation6 + $0x38] sm:$0xff]
      %v1265 = vld [vmem:[#allocation6 + $0x40] sm:$0xff]
      %v1266 = vld [vmem:[#allocation6 + $0x48] sm:$0xff]
      %v1267 = vld [vmem:[#allocation6 + $0x50] sm:$0xff]
      %v1268 = vld [vmem:[#allocation6 + $0x58] sm:$0xff]
      %v1269 = vld [vmem:[#allocation6 + $0x60] sm:$0xff]
      %v1270 = vld [vmem:[#allocation6 + $0x68] sm:$0xff]
      %v1271 = vld [vmem:[#allocation6 + $0x70] sm:$0xff]
      %v1272 = vld [vmem:[#allocation6 + $0x78] sm:$0xff]
      %v1273 = vld [vmem:[#allocation6 + $0x80] sm:$0xff]
      %v1274 = vld [vmem:[#allocation6 + $0x88] sm:$0xff]
      %v1275 = vld [vmem:[#allocation6 + $0x90] sm:$0xff]
      %v1276 = vld [vmem:[#allocation6 + $0x98] sm:$0xff]
      %v1277 = vld [vmem:[#allocation6 + $0xa0] sm:$0xff]
      %v1278 = vld [vmem:[#allocation6 + $0xa8] sm:$0xff]
      %v1279 = vld [vmem:[#allocation6 + $0xb0] sm:$0xff]
      %v1280 = vld [vmem:[#allocation6 + $0xb8] sm:$0xff]
      %v1281 = vld [vmem:[#allocation6 + $0xc0] sm:$0xff]
      %v1282 = vld [vmem:[#allocation6 + $0xc8] sm:$0xff]
      %v1283 = vld [vmem:[#allocation6 + $0xd0] sm:$0xff]
      %v1284 = vld [vmem:[#allocation6 + $0xd8] sm:$0xff]
      %v1285 = vld [vmem:[#allocation6 + $0xe0] sm:$0xff]
      %v1286 = vld [vmem:[#allocation6 + $0xe8] sm:$0xff]
      %v1287 = vld [vmem:[#allocation6 + $0xf0] sm:$0xff]
      %v1288 = vld [vmem:[#allocation6 + $0xf8] sm:$0xff]
      %v1289 = vld [vmem:[#allocation6 + $0x100] sm:$0xff]
      %v1290 = vld [vmem:[#allocation6 + $0x108] sm:$0xff]
      %v1291 = vld [vmem:[#allocation6 + $0x110] sm:$0xff]
      %v1292 = vld [vmem:[#allocation6 + $0x118] sm:$0xff]
      %v1293 = vld [vmem:[#allocation6 + $0x120] sm:$0xff]
      %v1294 = vld [vmem:[#allocation6 + $0x128] sm:$0xff]
      %v1295 = vld [vmem:[#allocation6 + $0x130] sm:$0xff]
      %v1296 = vld [vmem:[#allocation6 + $0x138] sm:$0xff]
      %v1297 = vld [vmem:[#allocation6 + $0x140] sm:$0xff]
      %v1298 = vld [vmem:[#allocation6 + $0x148] sm:$0xff]
      %v1299 = vld [vmem:[#allocation6 + $0x150] sm:$0xff]
      %v1300 = vld [vmem:[#allocation6 + $0x158] sm:$0xff]
      %v1301 = vld [vmem:[#allocation6 + $0x160] sm:$0xff]
      %v1302 = vld [vmem:[#allocation6 + $0x168] sm:$0xff]
      %v1303 = vld [vmem:[#allocation6 + $0x170] sm:$0xff]
      %v1304 = vld [vmem:[#allocation6 + $0x178] sm:$0xff]
      %v1305 = vld [vmem:[#allocation6 + $0x180] sm:$0xff]
      %v1306 = vld [vmem:[#allocation6 + $0x188] sm:$0xff]
      %v1307 = vld [vmem:[#allocation6 + $0x190] sm:$0xff]
      %v1308 = vld [vmem:[#allocation6 + $0x198] sm:$0xff]
      %v1309 = vld [vmem:[#allocation6 + $0x1a0] sm:$0xff]
      %v1310 = vld [vmem:[#allocation6 + $0x1a8] sm:$0xff]
      %v1311 = vld [vmem:[#allocation6 + $0x1b0] sm:$0xff]
      %v1312 = vld [vmem:[#allocation6 + $0x1b8] sm:$0xff]
      %v1313 = vld [vmem:[#allocation6 + $0x1c0] sm:$0xff]
      %v1314 = vld [vmem:[#allocation6 + $0x1c8] sm:$0xff]
      %v1315 = vld [vmem:[#allocation6 + $0x1d0] sm:$0xff]
      %v1316 = vld [vmem:[#allocation6 + $0x1d8] sm:$0xff]
      %v1317 = vld [vmem:[#allocation6 + $0x1e0] sm:$0xff]
      %v1318 = vld [vmem:[#allocation6 + $0x1e8] sm:$0xff]
      %v1319 = vld [vmem:[#allocation6 + $0x1f0] sm:$0xff]
      %v1320 = vld [vmem:[#allocation6 + $0x1f8] sm:$0xff]
      %v1321 = vld [vmem:[#allocation6 + $0x200] sm:$0xff]
      %v1322 = vld [vmem:[#allocation6 + $0x208] sm:$0xff]
      %v1323 = vld [vmem:[#allocation6 + $0x210] sm:$0xff]
      %v1324 = vld [vmem:[#allocation6 + $0x218] sm:$0xff]
      %v1325 = vld [vmem:[#allocation6 + $0x220] sm:$0xff]
      %v1326 = vld [vmem:[#allocation6 + $0x228] sm:$0xff]
      %v1327 = vld [vmem:[#allocation6 + $0x230] sm:$0xff]
      %v1328 = vld [vmem:[#allocation6 + $0x238] sm:$0xff]
      %v1329 = vld [vmem:[#allocation6 + $0x240] sm:$0xff]
      %v1330 = vld [vmem:[#allocation6 + $0x248] sm:$0xff]
      %v1331 = vld [vmem:[#allocation6 + $0x250] sm:$0xff]
      %v1332 = vld [vmem:[#allocation6 + $0x258] sm:$0xff]
      %v1333 = vld [vmem:[#allocation6 + $0x260] sm:$0xff]
      %v1334 = vld [vmem:[#allocation6 + $0x268] sm:$0xff]
      %v1335 = vld [vmem:[#allocation6 + $0x270] sm:$0xff]
      %v1336 = vld [vmem:[#allocation6 + $0x278] sm:$0xff]
      %1337 = vmatprep.subr.mxu0 %v1258
      %1338 = vmatpush1.msra.mxu0 %v1257
      %1339 = vmatprep.subr.mxu0 %v1263
      %1340 = vmatpush1.msra.mxu0 %v1262
      %1341 = vmatprep.subr.mxu0 %v1268
      %1342 = vmatpush1.msra.mxu0 %v1267
      %1343 = vmatprep.subr.mxu0 %v1273
      %1344 = vmatpush1.msra.mxu0 %v1272
      %1345 = vmatprep.subr.mxu0 %v1278
      %1346 = vmatpush1.msra.mxu0 %v1277
      %1347 = vmatprep.subr.mxu0 %v1283
      %1348 = vmatpush1.msra.mxu0 %v1282
      %1349 = vmatprep.subr.mxu0 %v1288
      %1350 = vmatpush1.msra.mxu0 %v1287
      %1351 = vmatprep.subr.mxu0 %v1293
      %1352 = vmatpush1.msra.mxu0 %v1292
      %1353 = vmatprep.subr.mxu0 %v1298
      %1354 = vmatpush1.msra.mxu0 %v1297
      %1355 = vmatprep.subr.mxu0 %v1303
      %1356 = vmatpush1.msra.mxu0 %v1302
      %1357 = vmatprep.subr.mxu0 %v1308
      %1358 = vmatpush1.msra.mxu0 %v1307
      %1359 = vmatprep.subr.mxu0 %v1313
      %1360 = vmatpush1.msra.mxu0 %v1312
      %1361 = vmatprep.subr.mxu0 %v1318
      %1362 = vmatpush1.msra.mxu0 %v1317
      %1363 = vmatprep.subr.mxu0 %v1323
      %1364 = vmatpush1.msra.mxu0 %v1322
      %1365 = vmatprep.subr.mxu0 %v1328
      %1366 = vmatpush1.msra.mxu0 %v1327
      %1367 = vmatprep.subr.mxu0 %v1333
      %1368 = vmatpush1.msra.mxu0 %v1332
      %1369 = vmatprep.subr.mxu0 0.0
      %1370 = vmatpush1.msra.mxu0 0.0
      %1371 = vmatprep.subr.mxu0 0.0
      %1372 = vmatpush1.msra.mxu0 0.0
      %1373 = vmatprep.subr.mxu0 0.0
      %1374 = vmatpush1.msra.mxu0 0.0
      %1375 = vmatprep.subr.mxu0 0.0
      %1376 = vmatpush1.msra.mxu0 0.0
      %1377 = vmatprep.subr.mxu0 0.0
      %1378 = vmatpush1.msra.mxu0 0.0
      %1379 = vmatprep.subr.mxu0 0.0
      %1380 = vmatpush1.msra.mxu0 0.0
      %1381 = vmatprep.subr.mxu0 0.0
      %1382 = vmatpush1.msra.mxu0 0.0
      %1383 = vmatprep.subr.mxu0 0.0
      %1384 = vmatpush1.msra.mxu0 0.0
      %1385 = vmatprep.subr.mxu0 0.0
      %1386 = vmatpush1.msra.mxu0 0.0
      %1387 = vmatprep.subr.mxu0 0.0
      %1388 = vmatpush1.msra.mxu0 0.0
      %1389 = vmatprep.subr.mxu0 0.0
      %1390 = vmatpush1.msra.mxu0 0.0
      %1391 = vmatprep.subr.mxu0 0.0
      %1392 = vmatpush1.msra.mxu0 0.0
      %1393 = vmatprep.subr.mxu0 0.0
      %1394 = vmatpush1.msra.mxu0 0.0
      %1395 = vmatprep.subr.mxu0 0.0
      %1396 = vmatpush1.msra.mxu0 0.0
      %1397 = vmatprep.subr.mxu0 0.0
      %1398 = vmatpush1.msra.mxu0 0.0
      %1399 = vmatprep.subr.mxu0 0.0
      %1400 = vmatpush1.msra.mxu0 0.0
      %1401 = vmatprep.mubr.f32.mxu0 0.0
      %1402 = vmatmul.mubr.f32.gmra.mrb[0].mxu0 %v1253
      %v1403 = vpop.f32.mrb[0].mxu0
      %v1404 = vadd.f32 0.0, %v1403
      %v1405 = vpop.f32.mrb[0].mxu0
      %v1406 = vadd.f32 0.0, %v1405
      %1407 = vdwg.mxu0
      %1408 = vmatprep.subr.mxu0 %v1260
      %1409 = vmatpush1.msra.mxu0 %v1259
      %1410 = vmatprep.subr.mxu0 %v1265
      %1411 = vmatpush1.msra.mxu0 %v1264
      %1412 = vmatprep.subr.mxu0 %v1270
      %1413 = vmatpush1.msra.mxu0 %v1269
      %1414 = vmatprep.subr.mxu0 %v1275
      %1415 = vmatpush1.msra.mxu0 %v1274
      %1416 = vmatprep.subr.mxu0 %v1280
      %1417 = vmatpush1.msra.mxu0 %v1279
      %1418 = vmatprep.subr.mxu0 %v1285
      %1419 = vmatpush1.msra.mxu0 %v1284
      %1420 = vmatprep.subr.mxu0 %v1290
      %1421 = vmatpush1.msra.mxu0 %v1289
      %1422 = vmatprep.subr.mxu0 %v1295
      %1423 = vmatpush1.msra.mxu0 %v1294
      %1424 = vmatprep.subr.mxu0 %v1300
      %1425 = vmatpush1.msra.mxu0 %v1299
      %1426 = vmatprep.subr.mxu0 %v1305
      %1427 = vmatpush1.msra.mxu0 %v1304
      %1428 = vmatprep.subr.mxu0 %v1310
      %1429 = vmatpush1.msra.mxu0 %v1309
      %1430 = vmatprep.subr.mxu0 %v1315
      %1431 = vmatpush1.msra.mxu0 %v1314
      %1432 = vmatprep.subr.mxu0 %v1320
      %1433 = vmatpush1.msra.mxu0 %v1319
      %1434 = vmatprep.subr.mxu0 %v1325
      %1435 = vmatpush1.msra.mxu0 %v1324
      %1436 = vmatprep.subr.mxu0 %v1330
      %1437 = vmatpush1.msra.mxu0 %v1329
      %1438 = vmatprep.subr.mxu0 %v1335
      %1439 = vmatpush1.msra.mxu0 %v1334
      %1440 = vmatprep.subr.mxu0 0.0
      %1441 = vmatpush1.msra.mxu0 0.0
      %1442 = vmatprep.subr.mxu0 0.0
      %1443 = vmatpush1.msra.mxu0 0.0
      %1444 = vmatprep.subr.mxu0 0.0
      %1445 = vmatpush1.msra.mxu0 0.0
      %1446 = vmatprep.subr.mxu0 0.0
      %1447 = vmatpush1.msra.mxu0 0.0
      %1448 = vmatprep.subr.mxu0 0.0
      %1449 = vmatpush1.msra.mxu0 0.0
      %1450 = vmatprep.subr.mxu0 0.0
      %1451 = vmatpush1.msra.mxu0 0.0
      %1452 = vmatprep.subr.mxu0 0.0
      %1453 = vmatpush1.msra.mxu0 0.0
      %1454 = vmatprep.subr.mxu0 0.0
      %1455 = vmatpush1.msra.mxu0 0.0
      %1456 = vmatprep.subr.mxu0 0.0
      %1457 = vmatpush1.msra.mxu0 0.0
      %1458 = vmatprep.subr.mxu0 0.0
      %1459 = vmatpush1.msra.mxu0 0.0
      %1460 = vmatprep.subr.mxu0 0.0
      %1461 = vmatpush1.msra.mxu0 0.0
      %1462 = vmatprep.subr.mxu0 0.0
      %1463 = vmatpush1.msra.mxu0 0.0
      %1464 = vmatprep.subr.mxu0 0.0
      %1465 = vmatpush1.msra.mxu0 0.0
      %1466 = vmatprep.subr.mxu0 0.0
      %1467 = vmatpush1.msra.mxu0 0.0
      %1468 = vmatprep.subr.mxu0 0.0
      %1469 = vmatpush1.msra.mxu0 0.0
      %1470 = vmatprep.subr.mxu0 0.0
      %1471 = vmatpush1.msra.mxu0 0.0
      %1472 = vmatprep.mubr.f32.mxu0 0.0
      %1473 = vmatmul.mubr.f32.gmra.mrb[0].mxu0 %v1253
      %v1474 = vpop.f32.mrb[0].mxu0
      %v1475 = vadd.f32 0.0, %v1474
      %v1476 = vpop.f32.mrb[0].mxu0
      %v1477 = vadd.f32 0.0, %v1476
      %1478 = vdwg.mxu0
      %1479 = vmatprep.subr.mxu0 0.0
      %1480 = vmatpush1.msra.mxu0 %v1261
      %1481 = vmatprep.subr.mxu0 0.0
      %1482 = vmatpush1.msra.mxu0 %v1266
      %1483 = vmatprep.subr.mxu0 0.0
      %1484 = vmatpush1.msra.mxu0 %v1271
      %1485 = vmatprep.subr.mxu0 0.0
      %1486 = vmatpush1.msra.mxu0 %v1276
      %1487 = vmatprep.subr.mxu0 0.0
      %1488 = vmatpush1.msra.mxu0 %v1281
      %1489 = vmatprep.subr.mxu0 0.0
      %1490 = vmatpush1.msra.mxu0 %v1286
      %1491 = vmatprep.subr.mxu0 0.0
      %1492 = vmatpush1.msra.mxu0 %v1291
      %1493 = vmatprep.subr.mxu0 0.0
      %1494 = vmatpush1.msra.mxu0 %v1296
      %1495 = vmatprep.subr.mxu0 0.0
      %1496 = vmatpush1.msra.mxu0 %v1301
      %1497 = vmatprep.subr.mxu0 0.0
      %1498 = vmatpush1.msra.mxu0 %v1306
      %1499 = vmatprep.subr.mxu0 0.0
      %1500 = vmatpush1.msra.mxu0 %v1311
      %1501 = vmatprep.subr.mxu0 0.0
      %1502 = vmatpush1.msra.mxu0 %v1316
      %1503 = vmatprep.subr.mxu0 0.0
      %1504 = vmatpush1.msra.mxu0 %v1321
      %1505 = vmatprep.subr.mxu0 0.0
      %1506 = vmatpush1.msra.mxu0 %v1326
      %1507 = vmatprep.subr.mxu0 0.0
      %1508 = vmatpush1.msra.mxu0 %v1331
      %1509 = vmatprep.subr.mxu0 0.0
      %1510 = vmatpush1.msra.mxu0 %v1336
      %1511 = vmatprep.subr.mxu0 0.0
      %1512 = vmatpush1.msra.mxu0 0.0
      %1513 = vmatprep.subr.mxu0 0.0
      %1514 = vmatpush1.msra.mxu0 0.0
      %1515 = vmatprep.subr.mxu0 0.0
      %1516 = vmatpush1.msra.mxu0 0.0
      %1517 = vmatprep.subr.mxu0 0.0
      %1518 = vmatpush1.msra.mxu0 0.0
      %1519 = vmatprep.subr.mxu0 0.0
      %1520 = vmatpush1.msra.mxu0 0.0
      %1521 = vmatprep.subr.mxu0 0.0
      %1522 = vmatpush1.msra.mxu0 0.0
      %1523 = vmatprep.subr.mxu0 0.0
      %1524 = vmatpush1.msra.mxu0 0.0
      %1525 = vmatprep.subr.mxu0 0.0
      %1526 = vmatpush1.msra.mxu0 0.0
      %1527 = vmatprep.subr.mxu0 0.0
      %1528 = vmatpush1.msra.mxu0 0.0
      %1529 = vmatprep.subr.mxu0 0.0
      %1530 = vmatpush1.msra.mxu0 0.0
      %1531 = vmatprep.subr.mxu0 0.0
      %1532 = vmatpush1.msra.mxu0 0.0
      %1533 = vmatprep.subr.mxu0 0.0
      %1534 = vmatpush1.msra.mxu0 0.0
      %1535 = vmatprep.subr.mxu0 0.0
      %1536 = vmatpush1.msra.mxu0 0.0
      %1537 = vmatprep.subr.mxu0 0.0
      %1538 = vmatpush1.msra.mxu0 0.0
      %1539 = vmatprep.subr.mxu0 0.0
      %1540 = vmatpush1.msra.mxu0 0.0
      %1541 = vmatprep.subr.mxu0 0.0
      %1542 = vmatpush1.msra.mxu0 0.0
      %1543 = vmatprep.mubr.f32.mxu0 0.0
      %1544 = vmatmul.mubr.f32.gmra.mrb[0].mxu0 %v1253
      %v1545 = vpop.f32.mrb[0].mxu0
      %v1546 = vadd.f32 0.0, %v1545
      %v1547 = vpop.f32.mrb[0].mxu0
      %1548 = vdwg.mxu0
      %v1549 = vadd.f32 %v1404, %v89
      %v1550 = vsel %vm301, %v1549, -inf
      %1551 = vmax.xlane.f32.xlu0 %v1550
      %v1552 = vpop.xlane.xlu0 %1551
      %v1553 = vsub.f32 %v1549, %v1552
      %v1554 = vmul.f32 %v1553, 1.442695
      %v1555 = vpow.pop %v1554
      %v1556 = vld [vmem:[%s1] sm:$0xff]
      %v1557 = vld [vmem:[%s1 + $0x8] sm:$0xff]
      %v1558 = vld [vmem:[%s1 + $0x10] sm:$0xff]
      %v1559 = vld [vmem:[%s1 + $0x18] sm:$0xff]
      %v1560 = vld [vmem:[%s1 + $0x20] sm:$0xff]
      %v1561 = vld [vmem:[%s1 + $0x28] sm:$0xff]
      %v1562 = vld [vmem:[%s1 + $0x30] sm:$0xff]
      %v1563 = vld [vmem:[%s1 + $0x38] sm:$0xff]
      %v1565 = vsel %vm316, %v1555, 0
      %1567 = vmatprep.subr.mxu0 0.0
      %1568 = vmatpush1.msra.mxu0 %v1556
      %1569 = vmatprep.subr.mxu0 0.0
      %1570 = vmatpush1.msra.mxu0 %v1557
      %1571 = vmatprep.subr.mxu0 0.0
      %1572 = vmatpush1.msra.mxu0 %v1558
      %1573 = vmatprep.subr.mxu0 0.0
      %1574 = vmatpush1.msra.mxu0 %v1559
      %1575 = vmatprep.subr.mxu0 0.0
      %1576 = vmatpush1.msra.mxu0 %v1560
      %1577 = vmatprep.subr.mxu0 0.0
      %1578 = vmatpush1.msra.mxu0 %v1561
      %1579 = vmatprep.subr.mxu0 0.0
      %1580 = vmatpush1.msra.mxu0 %v1562
      %1581 = vmatprep.subr.mxu0 0.0
      %1582 = vmatpush1.msra.mxu0 %v1563
      %1583 = vmatprep.subr.mxu0 0.0
      %1584 = vmatpush1.msra.mxu0 0.0
      %1585 = vmatprep.subr.mxu0 0.0
      %1586 = vmatpush1.msra.mxu0 0.0
      %1587 = vmatprep.subr.mxu0 0.0
      %1588 = vmatpush1.msra.mxu0 0.0
      %1589 = vmatprep.subr.mxu0 0.0
      %1590 = vmatpush1.msra.mxu0 0.0
      %1591 = vmatprep.subr.mxu0 0.0
      %1592 = vmatpush1.msra.mxu0 0.0
      %1593 = vmatprep.subr.mxu0 0.0
      %1594 = vmatpush1.msra.mxu0 0.0
      %1595 = vmatprep.subr.mxu0 0.0
      %1596 = vmatpush1.msra.mxu0 0.0
      %1597 = vmatprep.subr.mxu0 0.0
      %1598 = vmatpush1.msra.mxu0 0.0
      %1599 = vmatprep.subr.mxu0 0.0
      %1600 = vmatpush1.msra.mxu0 0.0
      %1601 = vmatprep.subr.mxu0 0.0
      %1602 = vmatpush1.msra.mxu0 0.0
      %1603 = vmatprep.subr.mxu0 0.0
      %1604 = vmatpush1.msra.mxu0 0.0
      %1605 = vmatprep.subr.mxu0 0.0
      %1606 = vmatpush1.msra.mxu0 0.0
      %1607 = vmatprep.subr.mxu0 0.0
      %1608 = vmatpush1.msra.mxu0 0.0
      %1609 = vmatprep.subr.mxu0 0.0
      %1610 = vmatpush1.msra.mxu0 0.0
      %1611 = vmatprep.subr.mxu0 0.0
      %1612 = vmatpush1.msra.mxu0 0.0
      %1613 = vmatprep.subr.mxu0 0.0
      %1614 = vmatpush1.msra.mxu0 0.0
      %1615 = vmatprep.subr.mxu0 0.0
      %1616 = vmatpush1.msra.mxu0 0.0
      %1617 = vmatprep.subr.mxu0 0.0
      %1618 = vmatpush1.msra.mxu0 0.0
      %1619 = vmatprep.subr.mxu0 0.0
      %1620 = vmatpush1.msra.mxu0 0.0
      %1621 = vmatprep.subr.mxu0 0.0
      %1622 = vmatpush1.msra.mxu0 0.0
      %1623 = vmatprep.subr.mxu0 0.0
      %1624 = vmatpush1.msra.mxu0 0.0
      %1625 = vmatprep.subr.mxu0 0.0
      %1626 = vmatpush1.msra.mxu0 0.0
      %1627 = vmatprep.subr.mxu0 0.0
      %1628 = vmatpush1.msra.mxu0 0.0
      %1629 = vmatprep.subr.mxu0 0.0
      %1630 = vmatpush1.msra.mxu0 0.0
      %1631 = vmatprep.mubr.f32.mxu0 0.0
      %1632 = vmatmul.mubr.f32.gmra.mrb[0].mxu0 %v1565
      %v1633 = vpop.f32.mrb[0].mxu0
      %v1634 = vadd.f32 0.0, %v1633
      %v1635 = vpop.f32.mrb[0].mxu0
      %1636 = vdwg.mxu0
      %v1637 = vsel %vm301, %v1555, 0.0
      %1638 = vadd.xlane.f32.xlu0 %v1637
      %v1639 = vpop.xlane.xlu0 %1638
      %v1640 = vrcp.pop %v1639
      %v1641 = vmul.f32 %v1634, %v1640
      %v1642 = vadd.f32 %v1406, %v1641
      %v1643 = vadd.f32 %v1642, %v90
      %v1644 = vmax.f32 %v1643, 0.0
      %v1645 = vld [vmem:[#allocation8] sm:$0xff]
      %v1646 = vld [vmem:[#allocation8 + $0x8] sm:$0xff]
      %v1647 = vld [vmem:[#allocation8 + $0x10] sm:$0xff]
      %v1648 = vld [vmem:[#allocation8 + $0x18] sm:$0xff]
      %v1649 = vld [vmem:[#allocation8 + $0x20] sm:$0xff]
      %v1650 = vld [vmem:[#allocation8 + $0x28] sm:$0xff]
      %v1651 = vld [vmem:[#allocation8 + $0x30] sm:$0xff]
      %v1652 = vld [vmem:[#allocation8 + $0x38] sm:$0xff]
      %v1653 = vld [vmem:[#allocation8 + $0x40] sm:$0xff]
      %v1654 = vld [vmem:[#allocation8 + $0x48] sm:$0xff]
      %v1655 = vld [vmem:[#allocation8 + $0x50] sm:$0xff]
      %v1656 = vld [vmem:[#allocation8 + $0x58] sm:$0xff]
      %v1657 = vld [vmem:[#allocation8 + $0x60] sm:$0xff]
      %v1658 = vld [vmem:[#allocation8 + $0x68] sm:$0xff]
      %v1659 = vld [vmem:[#allocation8 + $0x70] sm:$0xff]
      %v1660 = vld [vmem:[#allocation8 + $0x78] sm:$0xff]
      %v1661 = vld [vmem:[#allocation8 + $0x80] sm:$0xff]
      %v1662 = vld [vmem:[#allocation8 + $0x88] sm:$0xff]
      %v1663 = vld [vmem:[#allocation8 + $0x90] sm:$0xff]
      %v1664 = vld [vmem:[#allocation8 + $0x98] sm:$0xff]
      %v1665 = vld [vmem:[#allocation8 + $0xa0] sm:$0xff]
      %v1666 = vld [vmem:[#allocation8 + $0xa8] sm:$0xff]
      %v1667 = vld [vmem:[#allocation8 + $0xb0] sm:$0xff]
      %v1668 = vld [vmem:[#allocation8 + $0xb8] sm:$0xff]
      %v1669 = vld [vmem:[#allocation8 + $0xc0] sm:$0xff]
      %v1670 = vld [vmem:[#allocation8 + $0xc8] sm:$0xff]
      %v1671 = vld [vmem:[#allocation8 + $0xd0] sm:$0xff]
      %v1672 = vld [vmem:[#allocation8 + $0xd8] sm:$0xff]
      %v1673 = vld [vmem:[#allocation8 + $0xe0] sm:$0xff]
      %v1674 = vld [vmem:[#allocation8 + $0xe8] sm:$0xff]
      %v1675 = vld [vmem:[#allocation8 + $0xf0] sm:$0xff]
      %v1676 = vld [vmem:[#allocation8 + $0xf8] sm:$0xff]
      %v1677 = vld [vmem:[#allocation8 + $0x100] sm:$0xff]
      %v1678 = vld [vmem:[#allocation8 + $0x108] sm:$0xff]
      %v1679 = vld [vmem:[#allocation8 + $0x110] sm:$0xff]
      %v1680 = vld [vmem:[#allocation8 + $0x118] sm:$0xff]
      %v1681 = vld [vmem:[#allocation8 + $0x120] sm:$0xff]
      %v1682 = vld [vmem:[#allocation8 + $0x128] sm:$0xff]
      %v1683 = vld [vmem:[#allocation8 + $0x130] sm:$0xff]
      %v1684 = vld [vmem:[#allocation8 + $0x138] sm:$0xff]
      %v1685 = vld [vmem:[#allocation8 + $0x140] sm:$0xff]
      %v1686 = vld [vmem:[#allocation8 + $0x148] sm:$0xff]
      %v1687 = vld [vmem:[#allocation8 + $0x150] sm:$0xff]
      %v1688 = vld [vmem:[#allocation8 + $0x158] sm:$0xff]
      %v1689 = vld [vmem:[#allocation8 + $0x160] sm:$0xff]
      %v1690 = vld [vmem:[#allocation8 + $0x168] sm:$0xff]
      %v1691 = vld [vmem:[#allocation8 + $0x170] sm:$0xff]
      %v1692 = vld [vmem:[#allocation8 + $0x178] sm:$0xff]
      %1693 = vmatprep.subr.mxu0 %v1646
      %1694 = vmatpush1.msra.mxu0 %v1645
      %1695 = vmatprep.subr.mxu0 %v1649
      %1696 = vmatpush1.msra.mxu0 %v1648
      %1697 = vmatprep.subr.mxu0 %v1652
      %1698 = vmatpush1.msra.mxu0 %v1651
      %1699 = vmatprep.subr.mxu0 %v1655
      %1700 = vmatpush1.msra.mxu0 %v1654
      %1701 = vmatprep.subr.mxu0 %v1658
      %1702 = vmatpush1.msra.mxu0 %v1657
      %1703 = vmatprep.subr.mxu0 %v1661
      %1704 = vmatpush1.msra.mxu0 %v1660
      %1705 = vmatprep.subr.mxu0 %v1664
      %1706 = vmatpush1.msra.mxu0 %v1663
      %1707 = vmatprep.subr.mxu0 %v1667
      %1708 = vmatpush1.msra.mxu0 %v1666
      %1709 = vmatprep.subr.mxu0 %v1670
      %1710 = vmatpush1.msra.mxu0 %v1669
      %1711 = vmatprep.subr.mxu0 %v1673
      %1712 = vmatpush1.msra.mxu0 %v1672
      %1713 = vmatprep.subr.mxu0 %v1676
      %1714 = vmatpush1.msra.mxu0 %v1675
      %1715 = vmatprep.subr.mxu0 %v1679
      %1716 = vmatpush1.msra.mxu0 %v1678
      %1717 = vmatprep.subr.mxu0 %v1682
      %1718 = vmatpush1.msra.mxu0 %v1681
      %1719 = vmatprep.subr.mxu0 %v1685
      %1720 = vmatpush1.msra.mxu0 %v1684
      %1721 = vmatprep.subr.mxu0 %v1688
      %1722 = vmatpush1.msra.mxu0 %v1687
      %1723 = vmatprep.subr.mxu0 %v1691
      %1724 = vmatpush1.msra.mxu0 %v1690
      %1725 = vmatprep.subr.mxu0 0.0
      %1726 = vmatpush1.msra.mxu0 0.0
      %1727 = vmatprep.subr.mxu0 0.0
      %1728 = vmatpush1.msra.mxu0 0.0
      %1729 = vmatprep.subr.mxu0 0.0
      %1730 = vmatpush1.msra.mxu0 0.0
      %1731 = vmatprep.subr.mxu0 0.0
      %1732 = vmatpush1.msra.mxu0 0.0
      %1733 = vmatprep.subr.mxu0 0.0
      %1734 = vmatpush1.msra.mxu0 0.0
      %1735 = vmatprep.subr.mxu0 0.0
      %1736 = vmatpush1.msra.mxu0 0.0
      %1737 = vmatprep.subr.mxu0 0.0
      %1738 = vmatpush1.msra.mxu0 0.0
      %1739 = vmatprep.subr.mxu0 0.0
      %1740 = vmatpush1.msra.mxu0 0.0
      %1741 = vmatprep.subr.mxu0 0.0
      %1742 = vmatpush1.msra.mxu0 0.0
      %1743 = vmatprep.subr.mxu0 0.0
      %1744 = vmatpush1.msra.mxu0 0.0
      %1745 = vmatprep.subr.mxu0 0.0
      %1746 = vmatpush1.msra.mxu0 0.0
      %1747 = vmatprep.subr.mxu0 0.0
      %1748 = vmatpush1.msra.mxu0 0.0
      %1749 = vmatprep.subr.mxu0 0.0
      %1750 = vmatpush1.msra.mxu0 0.0
      %1751 = vmatprep.subr.mxu0 0.0
      %1752 = vmatpush1.msra.mxu0 0.0
      %1753 = vmatprep.subr.mxu0 0.0
      %1754 = vmatpush1.msra.mxu0 0.0
      %1755 = vmatprep.subr.mxu0 0.0
      %1756 = vmatpush1.msra.mxu0 0.0
      %1757 = vmatprep.mubr.f32.mxu0 0.0
      %1758 = vmatmul.mubr.f32.gmra.mrb[0].mxu0 %v1644
      %v1759 = vpop.f32.mrb[0].mxu0
      %v1760 = vadd.f32 %v450, %v1759
      %v1761 = vpop.f32.mrb[0].mxu0
      %v1762 = vadd.f32 %v454, %v1761
      %1763 = vdwg.mxu0
      %1764 = vmatprep.subr.mxu0 0.0
      %1765 = vmatpush1.msra.mxu0 %v1647
      %1766 = vmatprep.subr.mxu0 0.0
      %1767 = vmatpush1.msra.mxu0 %v1650
      %1768 = vmatprep.subr.mxu0 0.0
      %1769 = vmatpush1.msra.mxu0 %v1653
      %1770 = vmatprep.subr.mxu0 0.0
      %1771 = vmatpush1.msra.mxu0 %v1656
      %1772 = vmatprep.subr.mxu0 0.0
      %1773 = vmatpush1.msra.mxu0 %v1659
      %1774 = vmatprep.subr.mxu0 0.0
      %1775 = vmatpush1.msra.mxu0 %v1662
      %1776 = vmatprep.subr.mxu0 0.0
      %1777 = vmatpush1.msra.mxu0 %v1665
      %1778 = vmatprep.subr.mxu0 0.0
      %1779 = vmatpush1.msra.mxu0 %v1668
      %1780 = vmatprep.subr.mxu0 0.0
      %1781 = vmatpush1.msra.mxu0 %v1671
      %1782 = vmatprep.subr.mxu0 0.0
      %1783 = vmatpush1.msra.mxu0 %v1674
      %1784 = vmatprep.subr.mxu0 0.0
      %1785 = vmatpush1.msra.mxu0 %v1677
      %1786 = vmatprep.subr.mxu0 0.0
      %1787 = vmatpush1.msra.mxu0 %v1680
      %1788 = vmatprep.subr.mxu0 0.0
      %1789 = vmatpush1.msra.mxu0 %v1683
      %1790 = vmatprep.subr.mxu0 0.0
      %1791 = vmatpush1.msra.mxu0 %v1686
      %1792 = vmatprep.subr.mxu0 0.0
      %1793 = vmatpush1.msra.mxu0 %v1689
      %1794 = vmatprep.subr.mxu0 0.0
      %1795 = vmatpush1.msra.mxu0 %v1692
      %1796 = vmatprep.subr.mxu0 0.0
      %1797 = vmatpush1.msra.mxu0 0.0
      %1798 = vmatprep.subr.mxu0 0.0
      %1799 = vmatpush1.msra.mxu0 0.0
      %1800 = vmatprep.subr.mxu0 0.0
      %1801 = vmatpush1.msra.mxu0 0.0
      %1802 = vmatprep.subr.mxu0 0.0
      %1803 = vmatpush1.msra.mxu0 0.0
      %1804 = vmatprep.subr.mxu0 0.0
      %1805 = vmatpush1.msra.mxu0 0.0
      %1806 = vmatprep.subr.mxu0 0.0
      %1807 = vmatpush1.msra.mxu0 0.0
      %1808 = vmatprep.subr.mxu0 0.0
      %1809 = vmatpush1.msra.mxu0 0.0
      %1810 = vmatprep.subr.mxu0 0.0
      %1811 = vmatpush1.msra.mxu0 0.0
      %1812 = vmatprep.subr.mxu0 0.0
      %1813 = vmatpush1.msra.mxu0 0.0
      %1814 = vmatprep.subr.mxu0 0.0
      %1815 = vmatpush1.msra.mxu0 0.0
      %1816 = vmatprep.subr.mxu0 0.0
      %1817 = vmatpush1.msra.mxu0 0.0
      %1818 = vmatprep.subr.mxu0 0.0
      %1819 = vmatpush1.msra.mxu0 0.0
      %1820 = vmatprep.subr.mxu0 0.0
      %1821 = vmatpush1.msra.mxu0 0.0
      %1822 = vmatprep.subr.mxu0 0.0
      %1823 = vmatpush1.msra.mxu0 0.0
      %1824 = vmatprep.subr.mxu0 0.0
      %1825 = vmatpush1.msra.mxu0 0.0
      %1826 = vmatprep.subr.mxu0 0.0
      %1827 = vmatpush1.msra.mxu0 0.0
      %1828 = vmatprep.mubr.f32.mxu0 0.0
      %1829 = vmatmul.mubr.f32.gmra.mrb[0].mxu0 %v1644
      %v1830 = vpop.f32.mrb[0].mxu0
      %v1831 = vadd.f32 %v458, %v1830
      %v1832 = vpop.f32.mrb[0].mxu0
      %1833 = vdwg.mxu0
      %v1834 = vadd.f32 %v1475, %v607
      %v1835 = vadd.f32 %v1477, %v611
      %v1836 = vadd.f32 %v1546, %v615
      %v1837 = vadd.f32 %v1760, %v1834
      %v1838 = vadd.f32 %v1762, %v1835
      %v1839 = vxor.u32 %v1837, 2147483648
      %v1840 = vxor.u32 %v1838, 2147483648
      %v1841 = vmul.f32 %v1839, 1.442695
      %v1842 = vpow.pop %v1841
      %v1843 = vmul.f32 %v1840, 1.442695
      %v1844 = vpow.pop %v1843
      %v1845 = vadd.f32 %v1842, 1.0
      %v1846 = vadd.f32 %v1844, 1.0
      %v1847 = vrcp.pop %v1845
      %v1848 = vmul.f32 1.0, %v1847
      %v1849 = vrcp.pop %v1846
      %v1850 = vmul.f32 1.0, %v1849
      %v1851 = vmul.f32 %v1848, %v1836
      %v1852 = vadd.f32 %v1831, %v1851
      %v1853 = vtanh.pop %v1852
      %v1854 = vsub.f32 1.0, %v1850
      %v1855 = vmul.f32 %v1854, %v1853
      %v1856 = vmul.f32 %v1850, %v1253
      %v1857 = vadd.f32 %v1855, %v1856
      %s1858 = scalar_lea.vmem [#allocation2], %s1256
      %1859 = vst [vmem:[%s1858] sm:$0x1] %v1857
      %s1860 = sadd.s32 %s651, 3
      %v1861 = vld [vmem:[#allocation6] sm:$0xff]
      %v1862 = vld [vmem:[#allocation6 + $0x8] sm:$0xff]
      %v1863 = vld [vmem:[#allocation6 + $0x10] sm:$0xff]
      %v1864 = vld [vmem:[#allocation6 + $0x18] sm:$0xff]
      %v1865 = vld [vmem:[#allocation6 + $0x20] sm:$0xff]
      %v1866 = vld [vmem:[#allocation6 + $0x28] sm:$0xff]
      %v1867 = vld [vmem:[#allocation6 + $0x30] sm:$0xff]
      %v1868 = vld [vmem:[#allocation6 + $0x38] sm:$0xff]
      %v1869 = vld [vmem:[#allocation6 + $0x40] sm:$0xff]
      %v1870 = vld [vmem:[#allocation6 + $0x48] sm:$0xff]
      %v1871 = vld [vmem:[#allocation6 + $0x50] sm:$0xff]
      %v1872 = vld [vmem:[#allocation6 + $0x58] sm:$0xff]
      %v1873 = vld [vmem:[#allocation6 + $0x60] sm:$0xff]
      %v1874 = vld [vmem:[#allocation6 + $0x68] sm:$0xff]
      %v1875 = vld [vmem:[#allocation6 + $0x70] sm:$0xff]
      %v1876 = vld [vmem:[#allocation6 + $0x78] sm:$0xff]
      %v1877 = vld [vmem:[#allocation6 + $0x80] sm:$0xff]
      %v1878 = vld [vmem:[#allocation6 + $0x88] sm:$0xff]
      %v1879 = vld [vmem:[#allocation6 + $0x90] sm:$0xff]
      %v1880 = vld [vmem:[#allocation6 + $0x98] sm:$0xff]
      %v1881 = vld [vmem:[#allocation6 + $0xa0] sm:$0xff]
      %v1882 = vld [vmem:[#allocation6 + $0xa8] sm:$0xff]
      %v1883 = vld [vmem:[#allocation6 + $0xb0] sm:$0xff]
      %v1884 = vld [vmem:[#allocation6 + $0xb8] sm:$0xff]
      %v1885 = vld [vmem:[#allocation6 + $0xc0] sm:$0xff]
      %v1886 = vld [vmem:[#allocation6 + $0xc8] sm:$0xff]
      %v1887 = vld [vmem:[#allocation6 + $0xd0] sm:$0xff]
      %v1888 = vld [vmem:[#allocation6 + $0xd8] sm:$0xff]
      %v1889 = vld [vmem:[#allocation6 + $0xe0] sm:$0xff]
      %v1890 = vld [vmem:[#allocation6 + $0xe8] sm:$0xff]
      %v1891 = vld [vmem:[#allocation6 + $0xf0] sm:$0xff]
      %v1892 = vld [vmem:[#allocation6 + $0xf8] sm:$0xff]
      %v1893 = vld [vmem:[#allocation6 + $0x100] sm:$0xff]
      %v1894 = vld [vmem:[#allocation6 + $0x108] sm:$0xff]
      %v1895 = vld [vmem:[#allocation6 + $0x110] sm:$0xff]
      %v1896 = vld [vmem:[#allocation6 + $0x118] sm:$0xff]
      %v1897 = vld [vmem:[#allocation6 + $0x120] sm:$0xff]
      %v1898 = vld [vmem:[#allocation6 + $0x128] sm:$0xff]
      %v1899 = vld [vmem:[#allocation6 + $0x130] sm:$0xff]
      %v1900 = vld [vmem:[#allocation6 + $0x138] sm:$0xff]
      %v1901 = vld [vmem:[#allocation6 + $0x140] sm:$0xff]
      %v1902 = vld [vmem:[#allocation6 + $0x148] sm:$0xff]
      %v1903 = vld [vmem:[#allocation6 + $0x150] sm:$0xff]
      %v1904 = vld [vmem:[#allocation6 + $0x158] sm:$0xff]
      %v1905 = vld [vmem:[#allocation6 + $0x160] sm:$0xff]
      %v1906 = vld [vmem:[#allocation6 + $0x168] sm:$0xff]
      %v1907 = vld [vmem:[#allocation6 + $0x170] sm:$0xff]
      %v1908 = vld [vmem:[#allocation6 + $0x178] sm:$0xff]
      %v1909 = vld [vmem:[#allocation6 + $0x180] sm:$0xff]
      %v1910 = vld [vmem:[#allocation6 + $0x188] sm:$0xff]
      %v1911 = vld [vmem:[#allocation6 + $0x190] sm:$0xff]
      %v1912 = vld [vmem:[#allocation6 + $0x198] sm:$0xff]
      %v1913 = vld [vmem:[#allocation6 + $0x1a0] sm:$0xff]
      %v1914 = vld [vmem:[#allocation6 + $0x1a8] sm:$0xff]
      %v1915 = vld [vmem:[#allocation6 + $0x1b0] sm:$0xff]
      %v1916 = vld [vmem:[#allocation6 + $0x1b8] sm:$0xff]
      %v1917 = vld [vmem:[#allocation6 + $0x1c0] sm:$0xff]
      %v1918 = vld [vmem:[#allocation6 + $0x1c8] sm:$0xff]
      %v1919 = vld [vmem:[#allocation6 + $0x1d0] sm:$0xff]
      %v1920 = vld [vmem:[#allocation6 + $0x1d8] sm:$0xff]
      %v1921 = vld [vmem:[#allocation6 + $0x1e0] sm:$0xff]
      %v1922 = vld [vmem:[#allocation6 + $0x1e8] sm:$0xff]
      %v1923 = vld [vmem:[#allocation6 + $0x1f0] sm:$0xff]
      %v1924 = vld [vmem:[#allocation6 + $0x1f8] sm:$0xff]
      %v1925 = vld [vmem:[#allocation6 + $0x200] sm:$0xff]
      %v1926 = vld [vmem:[#allocation6 + $0x208] sm:$0xff]
      %v1927 = vld [vmem:[#allocation6 + $0x210] sm:$0xff]
      %v1928 = vld [vmem:[#allocation6 + $0x218] sm:$0xff]
      %v1929 = vld [vmem:[#allocation6 + $0x220] sm:$0xff]
      %v1930 = vld [vmem:[#allocation6 + $0x228] sm:$0xff]
      %v1931 = vld [vmem:[#allocation6 + $0x230] sm:$0xff]
      %v1932 = vld [vmem:[#allocation6 + $0x238] sm:$0xff]
      %v1933 = vld [vmem:[#allocation6 + $0x240] sm:$0xff]
      %v1934 = vld [vmem:[#allocation6 + $0x248] sm:$0xff]
      %v1935 = vld [vmem:[#allocation6 + $0x250] sm:$0xff]
      %v1936 = vld [vmem:[#allocation6 + $0x258] sm:$0xff]
      %v1937 = vld [vmem:[#allocation6 + $0x260] sm:$0xff]
      %v1938 = vld [vmem:[#allocation6 + $0x268] sm:$0xff]
      %v1939 = vld [vmem:[#allocation6 + $0x270] sm:$0xff]
      %v1940 = vld [vmem:[#allocation6 + $0x278] sm:$0xff]
      %1941 = vmatprep.subr.mxu0 %v1862
      %1942 = vmatpush1.msra.mxu0 %v1861
      %1943 = vmatprep.subr.mxu0 %v1867
      %1944 = vmatpush1.msra.mxu0 %v1866
      %1945 = vmatprep.subr.mxu0 %v1872
      %1946 = vmatpush1.msra.mxu0 %v1871
      %1947 = vmatprep.subr.mxu0 %v1877
      %1948 = vmatpush1.msra.mxu0 %v1876
      %1949 = vmatprep.subr.mxu0 %v1882
      %1950 = vmatpush1.msra.mxu0 %v1881
      %1951 = vmatprep.subr.mxu0 %v1887
      %1952 = vmatpush1.msra.mxu0 %v1886
      %1953 = vmatprep.subr.mxu0 %v1892
      %1954 = vmatpush1.msra.mxu0 %v1891
      %1955 = vmatprep.subr.mxu0 %v1897
      %1956 = vmatpush1.msra.mxu0 %v1896
      %1957 = vmatprep.subr.mxu0 %v1902
      %1958 = vmatpush1.msra.mxu0 %v1901
      %1959 = vmatprep.subr.mxu0 %v1907
      %1960 = vmatpush1.msra.mxu0 %v1906
      %1961 = vmatprep.subr.mxu0 %v1912
      %1962 = vmatpush1.msra.mxu0 %v1911
      %1963 = vmatprep.subr.mxu0 %v1917
      %1964 = vmatpush1.msra.mxu0 %v1916
      %1965 = vmatprep.subr.mxu0 %v1922
      %1966 = vmatpush1.msra.mxu0 %v1921
      %1967 = vmatprep.subr.mxu0 %v1927
      %1968 = vmatpush1.msra.mxu0 %v1926
      %1969 = vmatprep.subr.mxu0 %v1932
      %1970 = vmatpush1.msra.mxu0 %v1931
      %1971 = vmatprep.subr.mxu0 %v1937
      %1972 = vmatpush1.msra.mxu0 %v1936
      %1973 = vmatprep.subr.mxu0 0.0
      %1974 = vmatpush1.msra.mxu0 0.0
      %1975 = vmatprep.subr.mxu0 0.0
      %1976 = vmatpush1.msra.mxu0 0.0
      %1977 = vmatprep.subr.mxu0 0.0
      %1978 = vmatpush1.msra.mxu0 0.0
      %1979 = vmatprep.subr.mxu0 0.0
      %1980 = vmatpush1.msra.mxu0 0.0
      %1981 = vmatprep.subr.mxu0 0.0
      %1982 = vmatpush1.msra.mxu0 0.0
      %1983 = vmatprep.subr.mxu0 0.0
      %1984 = vmatpush1.msra.mxu0 0.0
      %1985 = vmatprep.subr.mxu0 0.0
      %1986 = vmatpush1.msra.mxu0 0.0
      %1987 = vmatprep.subr.mxu0 0.0
      %1988 = vmatpush1.msra.mxu0 0.0
      %1989 = vmatprep.subr.mxu0 0.0
      %1990 = vmatpush1.msra.mxu0 0.0
      %1991 = vmatprep.subr.mxu0 0.0
      %1992 = vmatpush1.msra.mxu0 0.0
      %1993 = vmatprep.subr.mxu0 0.0
      %1994 = vmatpush1.msra.mxu0 0.0
      %1995 = vmatprep.subr.mxu0 0.0
      %1996 = vmatpush1.msra.mxu0 0.0
      %1997 = vmatprep.subr.mxu0 0.0
      %1998 = vmatpush1.msra.mxu0 0.0
      %1999 = vmatprep.subr.mxu0 0.0
      %2000 = vmatpush1.msra.mxu0 0.0
      %2001 = vmatprep.subr.mxu0 0.0
      %2002 = vmatpush1.msra.mxu0 0.0
      %2003 = vmatprep.subr.mxu0 0.0
      %2004 = vmatpush1.msra.mxu0 0.0
      %2005 = vmatprep.mubr.f32.mxu0 0.0
      %2006 = vmatmul.mubr.f32.gmra.mrb[0].mxu0 %v1857
      %v2007 = vpop.f32.mrb[0].mxu0
      %v2008 = vadd.f32 0.0, %v2007
      %v2009 = vpop.f32.mrb[0].mxu0
      %v2010 = vadd.f32 0.0, %v2009
      %2011 = vdwg.mxu0
      %2012 = vmatprep.subr.mxu0 %v1864
      %2013 = vmatpush1.msra.mxu0 %v1863
      %2014 = vmatprep.subr.mxu0 %v1869
      %2015 = vmatpush1.msra.mxu0 %v1868
      %2016 = vmatprep.subr.mxu0 %v1874
      %2017 = vmatpush1.msra.mxu0 %v1873
      %2018 = vmatprep.subr.mxu0 %v1879
      %2019 = vmatpush1.msra.mxu0 %v1878
      %2020 = vmatprep.subr.mxu0 %v1884
      %2021 = vmatpush1.msra.mxu0 %v1883
      %2022 = vmatprep.subr.mxu0 %v1889
      %2023 = vmatpush1.msra.mxu0 %v1888
      %2024 = vmatprep.subr.mxu0 %v1894
      %2025 = vmatpush1.msra.mxu0 %v1893
      %2026 = vmatprep.subr.mxu0 %v1899
      %2027 = vmatpush1.msra.mxu0 %v1898
      %2028 = vmatprep.subr.mxu0 %v1904
      %2029 = vmatpush1.msra.mxu0 %v1903
      %2030 = vmatprep.subr.mxu0 %v1909
      %2031 = vmatpush1.msra.mxu0 %v1908
      %2032 = vmatprep.subr.mxu0 %v1914
      %2033 = vmatpush1.msra.mxu0 %v1913
      %2034 = vmatprep.subr.mxu0 %v1919
      %2035 = vmatpush1.msra.mxu0 %v1918
      %2036 = vmatprep.subr.mxu0 %v1924
      %2037 = vmatpush1.msra.mxu0 %v1923
      %2038 = vmatprep.subr.mxu0 %v1929
      %2039 = vmatpush1.msra.mxu0 %v1928
      %2040 = vmatprep.subr.mxu0 %v1934
      %2041 = vmatpush1.msra.mxu0 %v1933
      %2042 = vmatprep.subr.mxu0 %v1939
      %2043 = vmatpush1.msra.mxu0 %v1938
      %2044 = vmatprep.subr.mxu0 0.0
      %2045 = vmatpush1.msra.mxu0 0.0
      %2046 = vmatprep.subr.mxu0 0.0
      %2047 = vmatpush1.msra.mxu0 0.0
      %2048 = vmatprep.subr.mxu0 0.0
      %2049 = vmatpush1.msra.mxu0 0.0
      %2050 = vmatprep.subr.mxu0 0.0
      %2051 = vmatpush1.msra.mxu0 0.0
      %2052 = vmatprep.subr.mxu0 0.0
      %2053 = vmatpush1.msra.mxu0 0.0
      %2054 = vmatprep.subr.mxu0 0.0
      %2055 = vmatpush1.msra.mxu0 0.0
      %2056 = vmatprep.subr.mxu0 0.0
      %2057 = vmatpush1.msra.mxu0 0.0
      %2058 = vmatprep.subr.mxu0 0.0
      %2059 = vmatpush1.msra.mxu0 0.0
      %2060 = vmatprep.subr.mxu0 0.0
      %2061 = vmatpush1.msra.mxu0 0.0
      %2062 = vmatprep.subr.mxu0 0.0
      %2063 = vmatpush1.msra.mxu0 0.0
      %2064 = vmatprep.subr.mxu0 0.0
      %2065 = vmatpush1.msra.mxu0 0.0
      %2066 = vmatprep.subr.mxu0 0.0
      %2067 = vmatpush1.msra.mxu0 0.0
      %2068 = vmatprep.subr.mxu0 0.0
      %2069 = vmatpush1.msra.mxu0 0.0
      %2070 = vmatprep.subr.mxu0 0.0
      %2071 = vmatpush1.msra.mxu0 0.0
      %2072 = vmatprep.subr.mxu0 0.0
      %2073 = vmatpush1.msra.mxu0 0.0
      %2074 = vmatprep.subr.mxu0 0.0
      %2075 = vmatpush1.msra.mxu0 0.0
      %2076 = vmatprep.mubr.f32.mxu0 0.0
      %2077 = vmatmul.mubr.f32.gmra.mrb[0].mxu0 %v1857
      %v2078 = vpop.f32.mrb[0].mxu0
      %v2079 = vadd.f32 0.0, %v2078
      %v2080 = vpop.f32.mrb[0].mxu0
      %v2081 = vadd.f32 0.0, %v2080
      %2082 = vdwg.mxu0
      %2083 = vmatprep.subr.mxu0 0.0
      %2084 = vmatpush1.msra.mxu0 %v1865
      %2085 = vmatprep.subr.mxu0 0.0
      %2086 = vmatpush1.msra.mxu0 %v1870
      %2087 = vmatprep.subr.mxu0 0.0
      %2088 = vmatpush1.msra.mxu0 %v1875
      %2089 = vmatprep.subr.mxu0 0.0
      %2090 = vmatpush1.msra.mxu0 %v1880
      %2091 = vmatprep.subr.mxu0 0.0
      %2092 = vmatpush1.msra.mxu0 %v1885
      %2093 = vmatprep.subr.mxu0 0.0
      %2094 = vmatpush1.msra.mxu0 %v1890
      %2095 = vmatprep.subr.mxu0 0.0
      %2096 = vmatpush1.msra.mxu0 %v1895
      %2097 = vmatprep.subr.mxu0 0.0
      %2098 = vmatpush1.msra.mxu0 %v1900
      %2099 = vmatprep.subr.mxu0 0.0
      %2100 = vmatpush1.msra.mxu0 %v1905
      %2101 = vmatprep.subr.mxu0 0.0
      %2102 = vmatpush1.msra.mxu0 %v1910
      %2103 = vmatprep.subr.mxu0 0.0
      %2104 = vmatpush1.msra.mxu0 %v1915
      %2105 = vmatprep.subr.mxu0 0.0
      %2106 = vmatpush1.msra.mxu0 %v1920
      %2107 = vmatprep.subr.mxu0 0.0
      %2108 = vmatpush1.msra.mxu0 %v1925
      %2109 = vmatprep.subr.mxu0 0.0
      %2110 = vmatpush1.msra.mxu0 %v1930
      %2111 = vmatprep.subr.mxu0 0.0
      %2112 = vmatpush1.msra.mxu0 %v1935
      %2113 = vmatprep.subr.mxu0 0.0
      %2114 = vmatpush1.msra.mxu0 %v1940
      %2115 = vmatprep.subr.mxu0 0.0
      %2116 = vmatpush1.msra.mxu0 0.0
      %2117 = vmatprep.subr.mxu0 0.0
      %2118 = vmatpush1.msra.mxu0 0.0
      %2119 = vmatprep.subr.mxu0 0.0
      %2120 = vmatpush1.msra.mxu0 0.0
      %2121 = vmatprep.subr.mxu0 0.0
      %2122 = vmatpush1.msra.mxu0 0.0
      %2123 = vmatprep.subr.mxu0 0.0
      %2124 = vmatpush1.msra.mxu0 0.0
      %2125 = vmatprep.subr.mxu0 0.0
      %2126 = vmatpush1.msra.mxu0 0.0
      %2127 = vmatprep.subr.mxu0 0.0
      %2128 = vmatpush1.msra.mxu0 0.0
      %2129 = vmatprep.subr.mxu0 0.0
      %2130 = vmatpush1.msra.mxu0 0.0
      %2131 = vmatprep.subr.mxu0 0.0
      %2132 = vmatpush1.msra.mxu0 0.0
      %2133 = vmatprep.subr.mxu0 0.0
      %2134 = vmatpush1.msra.mxu0 0.0
      %2135 = vmatprep.subr.mxu0 0.0
      %2136 = vmatpush1.msra.mxu0 0.0
      %2137 = vmatprep.subr.mxu0 0.0
      %2138 = vmatpush1.msra.mxu0 0.0
      %2139 = vmatprep.subr.mxu0 0.0
      %2140 = vmatpush1.msra.mxu0 0.0
      %2141 = vmatprep.subr.mxu0 0.0
      %2142 = vmatpush1.msra.mxu0 0.0
      %2143 = vmatprep.subr.mxu0 0.0
      %2144 = vmatpush1.msra.mxu0 0.0
      %2145 = vmatprep.subr.mxu0 0.0
      %2146 = vmatpush1.msra.mxu0 0.0
      %2147 = vmatprep.mubr.f32.mxu0 0.0
      %2148 = vmatmul.mubr.f32.gmra.mrb[0].mxu0 %v1857
      %v2149 = vpop.f32.mrb[0].mxu0
      %v2150 = vadd.f32 0.0, %v2149
      %v2151 = vpop.f32.mrb[0].mxu0
      %2152 = vdwg.mxu0
      %v2153 = vadd.f32 %v2008, %v89
      %v2154 = vsel %vm301, %v2153, -inf
      %2155 = vmax.xlane.f32.xlu0 %v2154
      %v2156 = vpop.xlane.xlu0 %2155
      %v2157 = vsub.f32 %v2153, %v2156
      %v2158 = vmul.f32 %v2157, 1.442695
      %v2159 = vpow.pop %v2158
      %v2160 = vld [vmem:[%s1] sm:$0xff]
      %v2161 = vld [vmem:[%s1 + $0x8] sm:$0xff]
      %v2162 = vld [vmem:[%s1 + $0x10] sm:$0xff]
      %v2163 = vld [vmem:[%s1 + $0x18] sm:$0xff]
      %v2164 = vld [vmem:[%s1 + $0x20] sm:$0xff]
      %v2165 = vld [vmem:[%s1 + $0x28] sm:$0xff]
      %v2166 = vld [vmem:[%s1 + $0x30] sm:$0xff]
      %v2167 = vld [vmem:[%s1 + $0x38] sm:$0xff]
      %v2169 = vsel %vm316, %v2159, 0
      %2171 = vmatprep.subr.mxu0 0.0
      %2172 = vmatpush1.msra.mxu0 %v2160
      %2173 = vmatprep.subr.mxu0 0.0
      %2174 = vmatpush1.msra.mxu0 %v2161
      %2175 = vmatprep.subr.mxu0 0.0
      %2176 = vmatpush1.msra.mxu0 %v2162
      %2177 = vmatprep.subr.mxu0 0.0
      %2178 = vmatpush1.msra.mxu0 %v2163
      %2179 = vmatprep.subr.mxu0 0.0
      %2180 = vmatpush1.msra.mxu0 %v2164
      %2181 = vmatprep.subr.mxu0 0.0
      %2182 = vmatpush1.msra.mxu0 %v2165
      %2183 = vmatprep.subr.mxu0 0.0
      %2184 = vmatpush1.msra.mxu0 %v2166
      %2185 = vmatprep.subr.mxu0 0.0
      %2186 = vmatpush1.msra.mxu0 %v2167
      %2187 = vmatprep.subr.mxu0 0.0
      %2188 = vmatpush1.msra.mxu0 0.0
      %2189 = vmatprep.subr.mxu0 0.0
      %2190 = vmatpush1.msra.mxu0 0.0
      %2191 = vmatprep.subr.mxu0 0.0
      %2192 = vmatpush1.msra.mxu0 0.0
      %2193 = vmatprep.subr.mxu0 0.0
      %2194 = vmatpush1.msra.mxu0 0.0
      %2195 = vmatprep.subr.mxu0 0.0
      %2196 = vmatpush1.msra.mxu0 0.0
      %2197 = vmatprep.subr.mxu0 0.0
      %2198 = vmatpush1.msra.mxu0 0.0
      %2199 = vmatprep.subr.mxu0 0.0
      %2200 = vmatpush1.msra.mxu0 0.0
      %2201 = vmatprep.subr.mxu0 0.0
      %2202 = vmatpush1.msra.mxu0 0.0
      %2203 = vmatprep.subr.mxu0 0.0
      %2204 = vmatpush1.msra.mxu0 0.0
      %2205 = vmatprep.subr.mxu0 0.0
      %2206 = vmatpush1.msra.mxu0 0.0
      %2207 = vmatprep.subr.mxu0 0.0
      %2208 = vmatpush1.msra.mxu0 0.0
      %2209 = vmatprep.subr.mxu0 0.0
      %2210 = vmatpush1.msra.mxu0 0.0
      %2211 = vmatprep.subr.mxu0 0.0
      %2212 = vmatpush1.msra.mxu0 0.0
      %2213 = vmatprep.subr.mxu0 0.0
      %2214 = vmatpush1.msra.mxu0 0.0
      %2215 = vmatprep.subr.mxu0 0.0
      %2216 = vmatpush1.msra.mxu0 0.0
      %2217 = vmatprep.subr.mxu0 0.0
      %2218 = vmatpush1.msra.mxu0 0.0
      %2219 = vmatprep.subr.mxu0 0.0
      %2220 = vmatpush1.msra.mxu0 0.0
      %2221 = vmatprep.subr.mxu0 0.0
      %2222 = vmatpush1.msra.mxu0 0.0
      %2223 = vmatprep.subr.mxu0 0.0
      %2224 = vmatpush1.msra.mxu0 0.0
      %2225 = vmatprep.subr.mxu0 0.0
      %2226 = vmatpush1.msra.mxu0 0.0
      %2227 = vmatprep.subr.mxu0 0.0
      %2228 = vmatpush1.msra.mxu0 0.0
      %2229 = vmatprep.subr.mxu0 0.0
      %2230 = vmatpush1.msra.mxu0 0.0
      %2231 = vmatprep.subr.mxu0 0.0
      %2232 = vmatpush1.msra.mxu0 0.0
      %2233 = vmatprep.subr.mxu0 0.0
      %2234 = vmatpush1.msra.mxu0 0.0
      %2235 = vmatprep.mubr.f32.mxu0 0.0
      %2236 = vmatmul.mubr.f32.gmra.mrb[0].mxu0 %v2169
      %v2237 = vpop.f32.mrb[0].mxu0
      %v2238 = vadd.f32 0.0, %v2237
      %v2239 = vpop.f32.mrb[0].mxu0
      %2240 = vdwg.mxu0
      %v2241 = vsel %vm301, %v2159, 0.0
      %2242 = vadd.xlane.f32.xlu0 %v2241
      %v2243 = vpop.xlane.xlu0 %2242
      %v2244 = vrcp.pop %v2243
      %v2245 = vmul.f32 %v2238, %v2244
      %v2246 = vadd.f32 %v2010, %v2245
      %v2247 = vadd.f32 %v2246, %v90
      %v2248 = vmax.f32 %v2247, 0.0
      %v2249 = vld [vmem:[#allocation8] sm:$0xff]
      %v2250 = vld [vmem:[#allocation8 + $0x8] sm:$0xff]
      %v2251 = vld [vmem:[#allocation8 + $0x10] sm:$0xff]
      %v2252 = vld [vmem:[#allocation8 + $0x18] sm:$0xff]
      %v2253 = vld [vmem:[#allocation8 + $0x20] sm:$0xff]
      %v2254 = vld [vmem:[#allocation8 + $0x28] sm:$0xff]
      %v2255 = vld [vmem:[#allocation8 + $0x30] sm:$0xff]
      %v2256 = vld [vmem:[#allocation8 + $0x38] sm:$0xff]
      %v2257 = vld [vmem:[#allocation8 + $0x40] sm:$0xff]
      %v2258 = vld [vmem:[#allocation8 + $0x48] sm:$0xff]
      %v2259 = vld [vmem:[#allocation8 + $0x50] sm:$0xff]
      %v2260 = vld [vmem:[#allocation8 + $0x58] sm:$0xff]
      %v2261 = vld [vmem:[#allocation8 + $0x60] sm:$0xff]
      %v2262 = vld [vmem:[#allocation8 + $0x68] sm:$0xff]
      %v2263 = vld [vmem:[#allocation8 + $0x70] sm:$0xff]
      %v2264 = vld [vmem:[#allocation8 + $0x78] sm:$0xff]
      %v2265 = vld [vmem:[#allocation8 + $0x80] sm:$0xff]
      %v2266 = vld [vmem:[#allocation8 + $0x88] sm:$0xff]
      %v2267 = vld [vmem:[#allocation8 + $0x90] sm:$0xff]
      %v2268 = vld [vmem:[#allocation8 + $0x98] sm:$0xff]
      %v2269 = vld [vmem:[#allocation8 + $0xa0] sm:$0xff]
      %v2270 = vld [vmem:[#allocation8 + $0xa8] sm:$0xff]
      %v2271 = vld [vmem:[#allocation8 + $0xb0] sm:$0xff]
      %v2272 = vld [vmem:[#allocation8 + $0xb8] sm:$0xff]
      %v2273 = vld [vmem:[#allocation8 + $0xc0] sm:$0xff]
      %v2274 = vld [vmem:[#allocation8 + $0xc8] sm:$0xff]
      %v2275 = vld [vmem:[#allocation8 + $0xd0] sm:$0xff]
      %v2276 = vld [vmem:[#allocation8 + $0xd8] sm:$0xff]
      %v2277 = vld [vmem:[#allocation8 + $0xe0] sm:$0xff]
      %v2278 = vld [vmem:[#allocation8 + $0xe8] sm:$0xff]
      %v2279 = vld [vmem:[#allocation8 + $0xf0] sm:$0xff]
      %v2280 = vld [vmem:[#allocation8 + $0xf8] sm:$0xff]
      %v2281 = vld [vmem:[#allocation8 + $0x100] sm:$0xff]
      %v2282 = vld [vmem:[#allocation8 + $0x108] sm:$0xff]
      %v2283 = vld [vmem:[#allocation8 + $0x110] sm:$0xff]
      %v2284 = vld [vmem:[#allocation8 + $0x118] sm:$0xff]
      %v2285 = vld [vmem:[#allocation8 + $0x120] sm:$0xff]
      %v2286 = vld [vmem:[#allocation8 + $0x128] sm:$0xff]
      %v2287 = vld [vmem:[#allocation8 + $0x130] sm:$0xff]
      %v2288 = vld [vmem:[#allocation8 + $0x138] sm:$0xff]
      %v2289 = vld [vmem:[#allocation8 + $0x140] sm:$0xff]
      %v2290 = vld [vmem:[#allocation8 + $0x148] sm:$0xff]
      %v2291 = vld [vmem:[#allocation8 + $0x150] sm:$0xff]
      %v2292 = vld [vmem:[#allocation8 + $0x158] sm:$0xff]
      %v2293 = vld [vmem:[#allocation8 + $0x160] sm:$0xff]
      %v2294 = vld [vmem:[#allocation8 + $0x168] sm:$0xff]
      %v2295 = vld [vmem:[#allocation8 + $0x170] sm:$0xff]
      %v2296 = vld [vmem:[#allocation8 + $0x178] sm:$0xff]
      %2297 = vmatprep.subr.mxu0 %v2250
      %2298 = vmatpush1.msra.mxu0 %v2249
      %2299 = vmatprep.subr.mxu0 %v2253
      %2300 = vmatpush1.msra.mxu0 %v2252
      %2301 = vmatprep.subr.mxu0 %v2256
      %2302 = vmatpush1.msra.mxu0 %v2255
      %2303 = vmatprep.subr.mxu0 %v2259
      %2304 = vmatpush1.msra.mxu0 %v2258
      %2305 = vmatprep.subr.mxu0 %v2262
      %2306 = vmatpush1.msra.mxu0 %v2261
      %2307 = vmatprep.subr.mxu0 %v2265
      %2308 = vmatpush1.msra.mxu0 %v2264
      %2309 = vmatprep.subr.mxu0 %v2268
      %2310 = vmatpush1.msra.mxu0 %v2267
      %2311 = vmatprep.subr.mxu0 %v2271
      %2312 = vmatpush1.msra.mxu0 %v2270
      %2313 = vmatprep.subr.mxu0 %v2274
      %2314 = vmatpush1.msra.mxu0 %v2273
      %2315 = vmatprep.subr.mxu0 %v2277
      %2316 = vmatpush1.msra.mxu0 %v2276
      %2317 = vmatprep.subr.mxu0 %v2280
      %2318 = vmatpush1.msra.mxu0 %v2279
      %2319 = vmatprep.subr.mxu0 %v2283
      %2320 = vmatpush1.msra.mxu0 %v2282
      %2321 = vmatprep.subr.mxu0 %v2286
      %2322 = vmatpush1.msra.mxu0 %v2285
      %2323 = vmatprep.subr.mxu0 %v2289
      %2324 = vmatpush1.msra.mxu0 %v2288
      %2325 = vmatprep.subr.mxu0 %v2292
      %2326 = vmatpush1.msra.mxu0 %v2291
      %2327 = vmatprep.subr.mxu0 %v2295
      %2328 = vmatpush1.msra.mxu0 %v2294
      %2329 = vmatprep.subr.mxu0 0.0
      %2330 = vmatpush1.msra.mxu0 0.0
      %2331 = vmatprep.subr.mxu0 0.0
      %2332 = vmatpush1.msra.mxu0 0.0
      %2333 = vmatprep.subr.mxu0 0.0
      %2334 = vmatpush1.msra.mxu0 0.0
      %2335 = vmatprep.subr.mxu0 0.0
      %2336 = vmatpush1.msra.mxu0 0.0
      %2337 = vmatprep.subr.mxu0 0.0
      %2338 = vmatpush1.msra.mxu0 0.0
      %2339 = vmatprep.subr.mxu0 0.0
      %2340 = vmatpush1.msra.mxu0 0.0
      %2341 = vmatprep.subr.mxu0 0.0
      %2342 = vmatpush1.msra.mxu0 0.0
      %2343 = vmatprep.subr.mxu0 0.0
      %2344 = vmatpush1.msra.mxu0 0.0
      %2345 = vmatprep.subr.mxu0 0.0
      %2346 = vmatpush1.msra.mxu0 0.0
      %2347 = vmatprep.subr.mxu0 0.0
      %2348 = vmatpush1.msra.mxu0 0.0
      %2349 = vmatprep.subr.mxu0 0.0
      %2350 = vmatpush1.msra.mxu0 0.0
      %2351 = vmatprep.subr.mxu0 0.0
      %2352 = vmatpush1.msra.mxu0 0.0
      %2353 = vmatprep.subr.mxu0 0.0
      %2354 = vmatpush1.msra.mxu0 0.0
      %2355 = vmatprep.subr.mxu0 0.0
      %2356 = vmatpush1.msra.mxu0 0.0
      %2357 = vmatprep.subr.mxu0 0.0
      %2358 = vmatpush1.msra.mxu0 0.0
      %2359 = vmatprep.subr.mxu0 0.0
      %2360 = vmatpush1.msra.mxu0 0.0
      %2361 = vmatprep.mubr.f32.mxu0 0.0
      %2362 = vmatmul.mubr.f32.gmra.mrb[0].mxu0 %v2248
      %v2363 = vpop.f32.mrb[0].mxu0
      %v2364 = vadd.f32 %v450, %v2363
      %v2365 = vpop.f32.mrb[0].mxu0
      %v2366 = vadd.f32 %v454, %v2365
      %2367 = vdwg.mxu0
      %2368 = vmatprep.subr.mxu0 0.0
      %2369 = vmatpush1.msra.mxu0 %v2251
      %2370 = vmatprep.subr.mxu0 0.0
      %2371 = vmatpush1.msra.mxu0 %v2254
      %2372 = vmatprep.subr.mxu0 0.0
      %2373 = vmatpush1.msra.mxu0 %v2257
      %2374 = vmatprep.subr.mxu0 0.0
      %2375 = vmatpush1.msra.mxu0 %v2260
      %2376 = vmatprep.subr.mxu0 0.0
      %2377 = vmatpush1.msra.mxu0 %v2263
      %2378 = vmatprep.subr.mxu0 0.0
      %2379 = vmatpush1.msra.mxu0 %v2266
      %2380 = vmatprep.subr.mxu0 0.0
      %2381 = vmatpush1.msra.mxu0 %v2269
      %2382 = vmatprep.subr.mxu0 0.0
      %2383 = vmatpush1.msra.mxu0 %v2272
      %2384 = vmatprep.subr.mxu0 0.0
      %2385 = vmatpush1.msra.mxu0 %v2275
      %2386 = vmatprep.subr.mxu0 0.0
      %2387 = vmatpush1.msra.mxu0 %v2278
      %2388 = vmatprep.subr.mxu0 0.0
      %2389 = vmatpush1.msra.mxu0 %v2281
      %2390 = vmatprep.subr.mxu0 0.0
      %2391 = vmatpush1.msra.mxu0 %v2284
      %2392 = vmatprep.subr.mxu0 0.0
      %2393 = vmatpush1.msra.mxu0 %v2287
      %2394 = vmatprep.subr.mxu0 0.0
      %2395 = vmatpush1.msra.mxu0 %v2290
      %2396 = vmatprep.subr.mxu0 0.0
      %2397 = vmatpush1.msra.mxu0 %v2293
      %2398 = vmatprep.subr.mxu0 0.0
      %2399 = vmatpush1.msra.mxu0 %v2296
      %2400 = vmatprep.subr.mxu0 0.0
      %2401 = vmatpush1.msra.mxu0 0.0
      %2402 = vmatprep.subr.mxu0 0.0
      %2403 = vmatpush1.msra.mxu0 0.0
      %2404 = vmatprep.subr.mxu0 0.0
      %2405 = vmatpush1.msra.mxu0 0.0
      %2406 = vmatprep.subr.mxu0 0.0
      %2407 = vmatpush1.msra.mxu0 0.0
      %2408 = vmatprep.subr.mxu0 0.0
      %2409 = vmatpush1.msra.mxu0 0.0
      %2410 = vmatprep.subr.mxu0 0.0
      %2411 = vmatpush1.msra.mxu0 0.0
      %2412 = vmatprep.subr.mxu0 0.0
      %2413 = vmatpush1.msra.mxu0 0.0
      %2414 = vmatprep.subr.mxu0 0.0
      %2415 = vmatpush1.msra.mxu0 0.0
      %2416 = vmatprep.subr.mxu0 0.0
      %2417 = vmatpush1.msra.mxu0 0.0
      %2418 = vmatprep.subr.mxu0 0.0
      %2419 = vmatpush1.msra.mxu0 0.0
      %2420 = vmatprep.subr.mxu0 0.0
      %2421 = vmatpush1.msra.mxu0 0.0
      %2422 = vmatprep.subr.mxu0 0.0
      %2423 = vmatpush1.msra.mxu0 0.0
      %2424 = vmatprep.subr.mxu0 0.0
      %2425 = vmatpush1.msra.mxu0 0.0
      %2426 = vmatprep.subr.mxu0 0.0
      %2427 = vmatpush1.msra.mxu0 0.0
      %2428 = vmatprep.subr.mxu0 0.0
      %2429 = vmatpush1.msra.mxu0 0.0
      %2430 = vmatprep.subr.mxu0 0.0
      %2431 = vmatpush1.msra.mxu0 0.0
      %2432 = vmatprep.mubr.f32.mxu0 0.0
      %2433 = vmatmul.mubr.f32.gmra.mrb[0].mxu0 %v2248
      %v2434 = vpop.f32.mrb[0].mxu0
      %v2435 = vadd.f32 %v458, %v2434
      %v2436 = vpop.f32.mrb[0].mxu0
      %2437 = vdwg.mxu0
      %v2438 = vadd.f32 %v2079, %v607
      %v2439 = vadd.f32 %v2081, %v611
      %v2440 = vadd.f32 %v2150, %v615
      %v2441 = vadd.f32 %v2364, %v2438
      %v2442 = vadd.f32 %v2366, %v2439
      %v2443 = vxor.u32 %v2441, 2147483648
      %v2444 = vxor.u32 %v2442, 2147483648
      %v2445 = vmul.f32 %v2443, 1.442695
      %v2446 = vpow.pop %v2445
      %v2447 = vmul.f32 %v2444, 1.442695
      %v2448 = vpow.pop %v2447
      %v2449 = vadd.f32 %v2446, 1.0
      %v2450 = vadd.f32 %v2448, 1.0
      %v2451 = vrcp.pop %v2449
      %v2452 = vmul.f32 1.0, %v2451
      %v2453 = vrcp.pop %v2450
      %v2454 = vmul.f32 1.0, %v2453
      %v2455 = vmul.f32 %v2452, %v2440
      %v2456 = vadd.f32 %v2435, %v2455
      %v2457 = vtanh.pop %v2456
      %v2458 = vsub.f32 1.0, %v2454
      %v2459 = vmul.f32 %v2458, %v2457
      %v2460 = vmul.f32 %v2454, %v1857
      %v2461 = vadd.f32 %v2459, %v2460
      %s2462 = scalar_lea.vmem [#allocation2], %s1860
      %2463 = vst [vmem:[%s2462] sm:$0x1] %v2461
      %s2464 = sadd.s32 %s651, 4
      %v2465 = vld [vmem:[#allocation6] sm:$0xff]
      %v2466 = vld [vmem:[#allocation6 + $0x8] sm:$0xff]
      %v2467 = vld [vmem:[#allocation6 + $0x10] sm:$0xff]
      %v2468 = vld [vmem:[#allocation6 + $0x18] sm:$0xff]
      %v2469 = vld [vmem:[#allocation6 + $0x20] sm:$0xff]
      %v2470 = vld [vmem:[#allocation6 + $0x28] sm:$0xff]
      %v2471 = vld [vmem:[#allocation6 + $0x30] sm:$0xff]
      %v2472 = vld [vmem:[#allocation6 + $0x38] sm:$0xff]
      %v2473 = vld [vmem:[#allocation6 + $0x40] sm:$0xff]
      %v2474 = vld [vmem:[#allocation6 + $0x48] sm:$0xff]
      %v2475 = vld [vmem:[#allocation6 + $0x50] sm:$0xff]
      %v2476 = vld [vmem:[#allocation6 + $0x58] sm:$0xff]
      %v2477 = vld [vmem:[#allocation6 + $0x60] sm:$0xff]
      %v2478 = vld [vmem:[#allocation6 + $0x68] sm:$0xff]
      %v2479 = vld [vmem:[#allocation6 + $0x70] sm:$0xff]
      %v2480 = vld [vmem:[#allocation6 + $0x78] sm:$0xff]
      %v2481 = vld [vmem:[#allocation6 + $0x80] sm:$0xff]
      %v2482 = vld [vmem:[#allocation6 + $0x88] sm:$0xff]
      %v2483 = vld [vmem:[#allocation6 + $0x90] sm:$0xff]
      %v2484 = vld [vmem:[#allocation6 + $0x98] sm:$0xff]
      %v2485 = vld [vmem:[#allocation6 + $0xa0] sm:$0xff]
      %v2486 = vld [vmem:[#allocation6 + $0xa8] sm:$0xff]
      %v2487 = vld [vmem:[#allocation6 + $0xb0] sm:$0xff]
      %v2488 = vld [vmem:[#allocation6 + $0xb8] sm:$0xff]
      %v2489 = vld [vmem:[#allocation6 + $0xc0] sm:$0xff]
      %v2490 = vld [vmem:[#allocation6 + $0xc8] sm:$0xff]
      %v2491 = vld [vmem:[#allocation6 + $0xd0] sm:$0xff]
      %v2492 = vld [vmem:[#allocation6 + $0xd8] sm:$0xff]
      %v2493 = vld [vmem:[#allocation6 + $0xe0] sm:$0xff]
      %v2494 = vld [vmem:[#allocation6 + $0xe8] sm:$0xff]
      %v2495 = vld [vmem:[#allocation6 + $0xf0] sm:$0xff]
      %v2496 = vld [vmem:[#allocation6 + $0xf8] sm:$0xff]
      %v2497 = vld [vmem:[#allocation6 + $0x100] sm:$0xff]
      %v2498 = vld [vmem:[#allocation6 + $0x108] sm:$0xff]
      %v2499 = vld [vmem:[#allocation6 + $0x110] sm:$0xff]
      %v2500 = vld [vmem:[#allocation6 + $0x118] sm:$0xff]
      %v2501 = vld [vmem:[#allocation6 + $0x120] sm:$0xff]
      %v2502 = vld [vmem:[#allocation6 + $0x128] sm:$0xff]
      %v2503 = vld [vmem:[#allocation6 + $0x130] sm:$0xff]
      %v2504 = vld [vmem:[#allocation6 + $0x138] sm:$0xff]
      %v2505 = vld [vmem:[#allocation6 + $0x140] sm:$0xff]
      %v2506 = vld [vmem:[#allocation6 + $0x148] sm:$0xff]
      %v2507 = vld [vmem:[#allocation6 + $0x150] sm:$0xff]
      %v2508 = vld [vmem:[#allocation6 + $0x158] sm:$0xff]
      %v2509 = vld [vmem:[#allocation6 + $0x160] sm:$0xff]
      %v2510 = vld [vmem:[#allocation6 + $0x168] sm:$0xff]
      %v2511 = vld [vmem:[#allocation6 + $0x170] sm:$0xff]
      %v2512 = vld [vmem:[#allocation6 + $0x178] sm:$0xff]
      %v2513 = vld [vmem:[#allocation6 + $0x180] sm:$0xff]
      %v2514 = vld [vmem:[#allocation6 + $0x188] sm:$0xff]
      %v2515 = vld [vmem:[#allocation6 + $0x190] sm:$0xff]
      %v2516 = vld [vmem:[#allocation6 + $0x198] sm:$0xff]
      %v2517 = vld [vmem:[#allocation6 + $0x1a0] sm:$0xff]
      %v2518 = vld [vmem:[#allocation6 + $0x1a8] sm:$0xff]
      %v2519 = vld [vmem:[#allocation6 + $0x1b0] sm:$0xff]
      %v2520 = vld [vmem:[#allocation6 + $0x1b8] sm:$0xff]
      %v2521 = vld [vmem:[#allocation6 + $0x1c0] sm:$0xff]
      %v2522 = vld [vmem:[#allocation6 + $0x1c8] sm:$0xff]
      %v2523 = vld [vmem:[#allocation6 + $0x1d0] sm:$0xff]
      %v2524 = vld [vmem:[#allocation6 + $0x1d8] sm:$0xff]
      %v2525 = vld [vmem:[#allocation6 + $0x1e0] sm:$0xff]
      %v2526 = vld [vmem:[#allocation6 + $0x1e8] sm:$0xff]
      %v2527 = vld [vmem:[#allocation6 + $0x1f0] sm:$0xff]
      %v2528 = vld [vmem:[#allocation6 + $0x1f8] sm:$0xff]
      %v2529 = vld [vmem:[#allocation6 + $0x200] sm:$0xff]
      %v2530 = vld [vmem:[#allocation6 + $0x208] sm:$0xff]
      %v2531 = vld [vmem:[#allocation6 + $0x210] sm:$0xff]
      %v2532 = vld [vmem:[#allocation6 + $0x218] sm:$0xff]
      %v2533 = vld [vmem:[#allocation6 + $0x220] sm:$0xff]
      %v2534 = vld [vmem:[#allocation6 + $0x228] sm:$0xff]
      %v2535 = vld [vmem:[#allocation6 + $0x230] sm:$0xff]
      %v2536 = vld [vmem:[#allocation6 + $0x238] sm:$0xff]
      %v2537 = vld [vmem:[#allocation6 + $0x240] sm:$0xff]
      %v2538 = vld [vmem:[#allocation6 + $0x248] sm:$0xff]
      %v2539 = vld [vmem:[#allocation6 + $0x250] sm:$0xff]
      %v2540 = vld [vmem:[#allocation6 + $0x258] sm:$0xff]
      %v2541 = vld [vmem:[#allocation6 + $0x260] sm:$0xff]
      %v2542 = vld [vmem:[#allocation6 + $0x268] sm:$0xff]
      %v2543 = vld [vmem:[#allocation6 + $0x270] sm:$0xff]
      %v2544 = vld [vmem:[#allocation6 + $0x278] sm:$0xff]
      %2545 = vmatprep.subr.mxu0 %v2466
      %2546 = vmatpush1.msra.mxu0 %v2465
      %2547 = vmatprep.subr.mxu0 %v2471
      %2548 = vmatpush1.msra.mxu0 %v2470
      %2549 = vmatprep.subr.mxu0 %v2476
      %2550 = vmatpush1.msra.mxu0 %v2475
      %2551 = vmatprep.subr.mxu0 %v2481
      %2552 = vmatpush1.msra.mxu0 %v2480
      %2553 = vmatprep.subr.mxu0 %v2486
      %2554 = vmatpush1.msra.mxu0 %v2485
      %2555 = vmatprep.subr.mxu0 %v2491
      %2556 = vmatpush1.msra.mxu0 %v2490
      %2557 = vmatprep.subr.mxu0 %v2496
      %2558 = vmatpush1.msra.mxu0 %v2495
      %2559 = vmatprep.subr.mxu0 %v2501
      %2560 = vmatpush1.msra.mxu0 %v2500
      %2561 = vmatprep.subr.mxu0 %v2506
      %2562 = vmatpush1.msra.mxu0 %v2505
      %2563 = vmatprep.subr.mxu0 %v2511
      %2564 = vmatpush1.msra.mxu0 %v2510
      %2565 = vmatprep.subr.mxu0 %v2516
      %2566 = vmatpush1.msra.mxu0 %v2515
      %2567 = vmatprep.subr.mxu0 %v2521
      %2568 = vmatpush1.msra.mxu0 %v2520
      %2569 = vmatprep.subr.mxu0 %v2526
      %2570 = vmatpush1.msra.mxu0 %v2525
      %2571 = vmatprep.subr.mxu0 %v2531
      %2572 = vmatpush1.msra.mxu0 %v2530
      %2573 = vmatprep.subr.mxu0 %v2536
      %2574 = vmatpush1.msra.mxu0 %v2535
      %2575 = vmatprep.subr.mxu0 %v2541
      %2576 = vmatpush1.msra.mxu0 %v2540
      %2577 = vmatprep.subr.mxu0 0.0
      %2578 = vmatpush1.msra.mxu0 0.0
      %2579 = vmatprep.subr.mxu0 0.0
      %2580 = vmatpush1.msra.mxu0 0.0
      %2581 = vmatprep.subr.mxu0 0.0
      %2582 = vmatpush1.msra.mxu0 0.0
      %2583 = vmatprep.subr.mxu0 0.0
      %2584 = vmatpush1.msra.mxu0 0.0
      %2585 = vmatprep.subr.mxu0 0.0
      %2586 = vmatpush1.msra.mxu0 0.0
      %2587 = vmatprep.subr.mxu0 0.0
      %2588 = vmatpush1.msra.mxu0 0.0
      %2589 = vmatprep.subr.mxu0 0.0
      %2590 = vmatpush1.msra.mxu0 0.0
      %2591 = vmatprep.subr.mxu0 0.0
      %2592 = vmatpush1.msra.mxu0 0.0
      %2593 = vmatprep.subr.mxu0 0.0
      %2594 = vmatpush1.msra.mxu0 0.0
      %2595 = vmatprep.subr.mxu0 0.0
      %2596 = vmatpush1.msra.mxu0 0.0
      %2597 = vmatprep.subr.mxu0 0.0
      %2598 = vmatpush1.msra.mxu0 0.0
      %2599 = vmatprep.subr.mxu0 0.0
      %2600 = vmatpush1.msra.mxu0 0.0
      %2601 = vmatprep.subr.mxu0 0.0
      %2602 = vmatpush1.msra.mxu0 0.0
      %2603 = vmatprep.subr.mxu0 0.0
      %2604 = vmatpush1.msra.mxu0 0.0
      %2605 = vmatprep.subr.mxu0 0.0
      %2606 = vmatpush1.msra.mxu0 0.0
      %2607 = vmatprep.subr.mxu0 0.0
      %2608 = vmatpush1.msra.mxu0 0.0
      %2609 = vmatprep.mubr.f32.mxu0 0.0
      %2610 = vmatmul.mubr.f32.gmra.mrb[0].mxu0 %v2461
      %v2611 = vpop.f32.mrb[0].mxu0
      %v2612 = vadd.f32 0.0, %v2611
      %v2613 = vpop.f32.mrb[0].mxu0
      %v2614 = vadd.f32 0.0, %v2613
      %2615 = vdwg.mxu0
      %2616 = vmatprep.subr.mxu0 %v2468
      %2617 = vmatpush1.msra.mxu0 %v2467
      %2618 = vmatprep.subr.mxu0 %v2473
      %2619 = vmatpush1.msra.mxu0 %v2472
      %2620 = vmatprep.subr.mxu0 %v2478
      %2621 = vmatpush1.msra.mxu0 %v2477
      %2622 = vmatprep.subr.mxu0 %v2483
      %2623 = vmatpush1.msra.mxu0 %v2482
      %2624 = vmatprep.subr.mxu0 %v2488
      %2625 = vmatpush1.msra.mxu0 %v2487
      %2626 = vmatprep.subr.mxu0 %v2493
      %2627 = vmatpush1.msra.mxu0 %v2492
      %2628 = vmatprep.subr.mxu0 %v2498
      %2629 = vmatpush1.msra.mxu0 %v2497
      %2630 = vmatprep.subr.mxu0 %v2503
      %2631 = vmatpush1.msra.mxu0 %v2502
      %2632 = vmatprep.subr.mxu0 %v2508
      %2633 = vmatpush1.msra.mxu0 %v2507
      %2634 = vmatprep.subr.mxu0 %v2513
      %2635 = vmatpush1.msra.mxu0 %v2512
      %2636 = vmatprep.subr.mxu0 %v2518
      %2637 = vmatpush1.msra.mxu0 %v2517
      %2638 = vmatprep.subr.mxu0 %v2523
      %2639 = vmatpush1.msra.mxu0 %v2522
      %2640 = vmatprep.subr.mxu0 %v2528
      %2641 = vmatpush1.msra.mxu0 %v2527
      %2642 = vmatprep.subr.mxu0 %v2533
      %2643 = vmatpush1.msra.mxu0 %v2532
      %2644 = vmatprep.subr.mxu0 %v2538
      %2645 = vmatpush1.msra.mxu0 %v2537
      %2646 = vmatprep.subr.mxu0 %v2543
      %2647 = vmatpush1.msra.mxu0 %v2542
      %2648 = vmatprep.subr.mxu0 0.0
      %2649 = vmatpush1.msra.mxu0 0.0
      %2650 = vmatprep.subr.mxu0 0.0
      %2651 = vmatpush1.msra.mxu0 0.0
      %2652 = vmatprep.subr.mxu0 0.0
      %2653 = vmatpush1.msra.mxu0 0.0
      %2654 = vmatprep.subr.mxu0 0.0
      %2655 = vmatpush1.msra.mxu0 0.0
      %2656 = vmatprep.subr.mxu0 0.0
      %2657 = vmatpush1.msra.mxu0 0.0
      %2658 = vmatprep.subr.mxu0 0.0
      %2659 = vmatpush1.msra.mxu0 0.0
      %2660 = vmatprep.subr.mxu0 0.0
      %2661 = vmatpush1.msra.mxu0 0.0
      %2662 = vmatprep.subr.mxu0 0.0
      %2663 = vmatpush1.msra.mxu0 0.0
      %2664 = vmatprep.subr.mxu0 0.0
      %2665 = vmatpush1.msra.mxu0 0.0
      %2666 = vmatprep.subr.mxu0 0.0
      %2667 = vmatpush1.msra.mxu0 0.0
      %2668 = vmatprep.subr.mxu0 0.0
      %2669 = vmatpush1.msra.mxu0 0.0
      %2670 = vmatprep.subr.mxu0 0.0
      %2671 = vmatpush1.msra.mxu0 0.0
      %2672 = vmatprep.subr.mxu0 0.0
      %2673 = vmatpush1.msra.mxu0 0.0
      %2674 = vmatprep.subr.mxu0 0.0
      %2675 = vmatpush1.msra.mxu0 0.0
      %2676 = vmatprep.subr.mxu0 0.0
      %2677 = vmatpush1.msra.mxu0 0.0
      %2678 = vmatprep.subr.mxu0 0.0
      %2679 = vmatpush1.msra.mxu0 0.0
      %2680 = vmatprep.mubr.f32.mxu0 0.0
      %2681 = vmatmul.mubr.f32.gmra.mrb[0].mxu0 %v2461
      %v2682 = vpop.f32.mrb[0].mxu0
      %v2683 = vadd.f32 0.0, %v2682
      %v2684 = vpop.f32.mrb[0].mxu0
      %v2685 = vadd.f32 0.0, %v2684
      %2686 = vdwg.mxu0
      %2687 = vmatprep.subr.mxu0 0.0
      %2688 = vmatpush1.msra.mxu0 %v2469
      %2689 = vmatprep.subr.mxu0 0.0
      %2690 = vmatpush1.msra.mxu0 %v2474
      %2691 = vmatprep.subr.mxu0 0.0
      %2692 = vmatpush1.msra.mxu0 %v2479
      %2693 = vmatprep.subr.mxu0 0.0
      %2694 = vmatpush1.msra.mxu0 %v2484
      %2695 = vmatprep.subr.mxu0 0.0
      %2696 = vmatpush1.msra.mxu0 %v2489
      %2697 = vmatprep.subr.mxu0 0.0
      %2698 = vmatpush1.msra.mxu0 %v2494
      %2699 = vmatprep.subr.mxu0 0.0
      %2700 = vmatpush1.msra.mxu0 %v2499
      %2701 = vmatprep.subr.mxu0 0.0
      %2702 = vmatpush1.msra.mxu0 %v2504
      %2703 = vmatprep.subr.mxu0 0.0
      %2704 = vmatpush1.msra.mxu0 %v2509
      %2705 = vmatprep.subr.mxu0 0.0
      %2706 = vmatpush1.msra.mxu0 %v2514
      %2707 = vmatprep.subr.mxu0 0.0
      %2708 = vmatpush1.msra.mxu0 %v2519
      %2709 = vmatprep.subr.mxu0 0.0
      %2710 = vmatpush1.msra.mxu0 %v2524
      %2711 = vmatprep.subr.mxu0 0.0
      %2712 = vmatpush1.msra.mxu0 %v2529
      %2713 = vmatprep.subr.mxu0 0.0
      %2714 = vmatpush1.msra.mxu0 %v2534
      %2715 = vmatprep.subr.mxu0 0.0
      %2716 = vmatpush1.msra.mxu0 %v2539
      %2717 = vmatprep.subr.mxu0 0.0
      %2718 = vmatpush1.msra.mxu0 %v2544
      %2719 = vmatprep.subr.mxu0 0.0
      %2720 = vmatpush1.msra.mxu0 0.0
      %2721 = vmatprep.subr.mxu0 0.0
      %2722 = vmatpush1.msra.mxu0 0.0
      %2723 = vmatprep.subr.mxu0 0.0
      %2724 = vmatpush1.msra.mxu0 0.0
      %2725 = vmatprep.subr.mxu0 0.0
      %2726 = vmatpush1.msra.mxu0 0.0
      %2727 = vmatprep.subr.mxu0 0.0
      %2728 = vmatpush1.msra.mxu0 0.0
      %2729 = vmatprep.subr.mxu0 0.0
      %2730 = vmatpush1.msra.mxu0 0.0
      %2731 = vmatprep.subr.mxu0 0.0
      %2732 = vmatpush1.msra.mxu0 0.0
      %2733 = vmatprep.subr.mxu0 0.0
      %2734 = vmatpush1.msra.mxu0 0.0
      %2735 = vmatprep.subr.mxu0 0.0
      %2736 = vmatpush1.msra.mxu0 0.0
      %2737 = vmatprep.subr.mxu0 0.0
      %2738 = vmatpush1.msra.mxu0 0.0
      %2739 = vmatprep.subr.mxu0 0.0
      %2740 = vmatpush1.msra.mxu0 0.0
      %2741 = vmatprep.subr.mxu0 0.0
      %2742 = vmatpush1.msra.mxu0 0.0
      %2743 = vmatprep.subr.mxu0 0.0
      %2744 = vmatpush1.msra.mxu0 0.0
      %2745 = vmatprep.subr.mxu0 0.0
      %2746 = vmatpush1.msra.mxu0 0.0
      %2747 = vmatprep.subr.mxu0 0.0
      %2748 = vmatpush1.msra.mxu0 0.0
      %2749 = vmatprep.subr.mxu0 0.0
      %2750 = vmatpush1.msra.mxu0 0.0
      %2751 = vmatprep.mubr.f32.mxu0 0.0
      %2752 = vmatmul.mubr.f32.gmra.mrb[0].mxu0 %v2461
      %v2753 = vpop.f32.mrb[0].mxu0
      %v2754 = vadd.f32 0.0, %v2753
      %v2755 = vpop.f32.mrb[0].mxu0
      %2756 = vdwg.mxu0
      %v2757 = vadd.f32 %v2612, %v89
      %v2758 = vsel %vm301, %v2757, -inf
      %2759 = vmax.xlane.f32.xlu0 %v2758
      %v2760 = vpop.xlane.xlu0 %2759
      %v2761 = vsub.f32 %v2757, %v2760
      %v2762 = vmul.f32 %v2761, 1.442695
      %v2763 = vpow.pop %v2762
      %v2764 = vld [vmem:[%s1] sm:$0xff]
      %v2765 = vld [vmem:[%s1 + $0x8] sm:$0xff]
      %v2766 = vld [vmem:[%s1 + $0x10] sm:$0xff]
      %v2767 = vld [vmem:[%s1 + $0x18] sm:$0xff]
      %v2768 = vld [vmem:[%s1 + $0x20] sm:$0xff]
      %v2769 = vld [vmem:[%s1 + $0x28] sm:$0xff]
      %v2770 = vld [vmem:[%s1 + $0x30] sm:$0xff]
      %v2771 = vld [vmem:[%s1 + $0x38] sm:$0xff]
      %v2773 = vsel %vm316, %v2763, 0
      %2775 = vmatprep.subr.mxu0 0.0
      %2776 = vmatpush1.msra.mxu0 %v2764
      %2777 = vmatprep.subr.mxu0 0.0
      %2778 = vmatpush1.msra.mxu0 %v2765
      %2779 = vmatprep.subr.mxu0 0.0
      %2780 = vmatpush1.msra.mxu0 %v2766
      %2781 = vmatprep.subr.mxu0 0.0
      %2782 = vmatpush1.msra.mxu0 %v2767
      %2783 = vmatprep.subr.mxu0 0.0
      %2784 = vmatpush1.msra.mxu0 %v2768
      %2785 = vmatprep.subr.mxu0 0.0
      %2786 = vmatpush1.msra.mxu0 %v2769
      %2787 = vmatprep.subr.mxu0 0.0
      %2788 = vmatpush1.msra.mxu0 %v2770
      %2789 = vmatprep.subr.mxu0 0.0
      %2790 = vmatpush1.msra.mxu0 %v2771
      %2791 = vmatprep.subr.mxu0 0.0
      %2792 = vmatpush1.msra.mxu0 0.0
      %2793 = vmatprep.subr.mxu0 0.0
      %2794 = vmatpush1.msra.mxu0 0.0
      %2795 = vmatprep.subr.mxu0 0.0
      %2796 = vmatpush1.msra.mxu0 0.0
      %2797 = vmatprep.subr.mxu0 0.0
      %2798 = vmatpush1.msra.mxu0 0.0
      %2799 = vmatprep.subr.mxu0 0.0
      %2800 = vmatpush1.msra.mxu0 0.0
      %2801 = vmatprep.subr.mxu0 0.0
      %2802 = vmatpush1.msra.mxu0 0.0
      %2803 = vmatprep.subr.mxu0 0.0
      %2804 = vmatpush1.msra.mxu0 0.0
      %2805 = vmatprep.subr.mxu0 0.0
      %2806 = vmatpush1.msra.mxu0 0.0
      %2807 = vmatprep.subr.mxu0 0.0
      %2808 = vmatpush1.msra.mxu0 0.0
      %2809 = vmatprep.subr.mxu0 0.0
      %2810 = vmatpush1.msra.mxu0 0.0
      %2811 = vmatprep.subr.mxu0 0.0
      %2812 = vmatpush1.msra.mxu0 0.0
      %2813 = vmatprep.subr.mxu0 0.0
      %2814 = vmatpush1.msra.mxu0 0.0
      %2815 = vmatprep.subr.mxu0 0.0
      %2816 = vmatpush1.msra.mxu0 0.0
      %2817 = vmatprep.subr.mxu0 0.0
      %2818 = vmatpush1.msra.mxu0 0.0
      %2819 = vmatprep.subr.mxu0 0.0
      %2820 = vmatpush1.msra.mxu0 0.0
      %2821 = vmatprep.subr.mxu0 0.0
      %2822 = vmatpush1.msra.mxu0 0.0
      %2823 = vmatprep.subr.mxu0 0.0
      %2824 = vmatpush1.msra.mxu0 0.0
      %2825 = vmatprep.subr.mxu0 0.0
      %2826 = vmatpush1.msra.mxu0 0.0
      %2827 = vmatprep.subr.mxu0 0.0
      %2828 = vmatpush1.msra.mxu0 0.0
      %2829 = vmatprep.subr.mxu0 0.0
      %2830 = vmatpush1.msra.mxu0 0.0
      %2831 = vmatprep.subr.mxu0 0.0
      %2832 = vmatpush1.msra.mxu0 0.0
      %2833 = vmatprep.subr.mxu0 0.0
      %2834 = vmatpush1.msra.mxu0 0.0
      %2835 = vmatprep.subr.mxu0 0.0
      %2836 = vmatpush1.msra.mxu0 0.0
      %2837 = vmatprep.subr.mxu0 0.0
      %2838 = vmatpush1.msra.mxu0 0.0
      %2839 = vmatprep.mubr.f32.mxu0 0.0
      %2840 = vmatmul.mubr.f32.gmra.mrb[0].mxu0 %v2773
      %v2841 = vpop.f32.mrb[0].mxu0
      %v2842 = vadd.f32 0.0, %v2841
      %v2843 = vpop.f32.mrb[0].mxu0
      %2844 = vdwg.mxu0
      %v2845 = vsel %vm301, %v2763, 0.0
      %2846 = vadd.xlane.f32.xlu0 %v2845
      %v2847 = vpop.xlane.xlu0 %2846
      %v2848 = vrcp.pop %v2847
      %v2849 = vmul.f32 %v2842, %v2848
      %v2850 = vadd.f32 %v2614, %v2849
      %v2851 = vadd.f32 %v2850, %v90
      %v2852 = vmax.f32 %v2851, 0.0
      %v2853 = vld [vmem:[#allocation8] sm:$0xff]
      %v2854 = vld [vmem:[#allocation8 + $0x8] sm:$0xff]
      %v2855 = vld [vmem:[#allocation8 + $0x10] sm:$0xff]
      %v2856 = vld [vmem:[#allocation8 + $0x18] sm:$0xff]
      %v2857 = vld [vmem:[#allocation8 + $0x20] sm:$0xff]
      %v2858 = vld [vmem:[#allocation8 + $0x28] sm:$0xff]
      %v2859 = vld [vmem:[#allocation8 + $0x30] sm:$0xff]
      %v2860 = vld [vmem:[#allocation8 + $0x38] sm:$0xff]
      %v2861 = vld [vmem:[#allocation8 + $0x40] sm:$0xff]
      %v2862 = vld [vmem:[#allocation8 + $0x48] sm:$0xff]
      %v2863 = vld [vmem:[#allocation8 + $0x50] sm:$0xff]
      %v2864 = vld [vmem:[#allocation8 + $0x58] sm:$0xff]
      %v2865 = vld [vmem:[#allocation8 + $0x60] sm:$0xff]
      %v2866 = vld [vmem:[#allocation8 + $0x68] sm:$0xff]
      %v2867 = vld [vmem:[#allocation8 + $0x70] sm:$0xff]
      %v2868 = vld [vmem:[#allocation8 + $0x78] sm:$0xff]
      %v2869 = vld [vmem:[#allocation8 + $0x80] sm:$0xff]
      %v2870 = vld [vmem:[#allocation8 + $0x88] sm:$0xff]
      %v2871 = vld [vmem:[#allocation8 + $0x90] sm:$0xff]
      %v2872 = vld [vmem:[#allocation8 + $0x98] sm:$0xff]
      %v2873 = vld [vmem:[#allocation8 + $0xa0] sm:$0xff]
      %v2874 = vld [vmem:[#allocation8 + $0xa8] sm:$0xff]
      %v2875 = vld [vmem:[#allocation8 + $0xb0] sm:$0xff]
      %v2876 = vld [vmem:[#allocation8 + $0xb8] sm:$0xff]
      %v2877 = vld [vmem:[#allocation8 + $0xc0] sm:$0xff]
      %v2878 = vld [vmem:[#allocation8 + $0xc8] sm:$0xff]
      %v2879 = vld [vmem:[#allocation8 + $0xd0] sm:$0xff]
      %v2880 = vld [vmem:[#allocation8 + $0xd8] sm:$0xff]
      %v2881 = vld [vmem:[#allocation8 + $0xe0] sm:$0xff]
      %v2882 = vld [vmem:[#allocation8 + $0xe8] sm:$0xff]
      %v2883 = vld [vmem:[#allocation8 + $0xf0] sm:$0xff]
      %v2884 = vld [vmem:[#allocation8 + $0xf8] sm:$0xff]
      %v2885 = vld [vmem:[#allocation8 + $0x100] sm:$0xff]
      %v2886 = vld [vmem:[#allocation8 + $0x108] sm:$0xff]
      %v2887 = vld [vmem:[#allocation8 + $0x110] sm:$0xff]
      %v2888 = vld [vmem:[#allocation8 + $0x118] sm:$0xff]
      %v2889 = vld [vmem:[#allocation8 + $0x120] sm:$0xff]
      %v2890 = vld [vmem:[#allocation8 + $0x128] sm:$0xff]
      %v2891 = vld [vmem:[#allocation8 + $0x130] sm:$0xff]
      %v2892 = vld [vmem:[#allocation8 + $0x138] sm:$0xff]
      %v2893 = vld [vmem:[#allocation8 + $0x140] sm:$0xff]
      %v2894 = vld [vmem:[#allocation8 + $0x148] sm:$0xff]
      %v2895 = vld [vmem:[#allocation8 + $0x150] sm:$0xff]
      %v2896 = vld [vmem:[#allocation8 + $0x158] sm:$0xff]
      %v2897 = vld [vmem:[#allocation8 + $0x160] sm:$0xff]
      %v2898 = vld [vmem:[#allocation8 + $0x168] sm:$0xff]
      %v2899 = vld [vmem:[#allocation8 + $0x170] sm:$0xff]
      %v2900 = vld [vmem:[#allocation8 + $0x178] sm:$0xff]
      %2901 = vmatprep.subr.mxu0 %v2854
      %2902 = vmatpush1.msra.mxu0 %v2853
      %2903 = vmatprep.subr.mxu0 %v2857
      %2904 = vmatpush1.msra.mxu0 %v2856
      %2905 = vmatprep.subr.mxu0 %v2860
      %2906 = vmatpush1.msra.mxu0 %v2859
      %2907 = vmatprep.subr.mxu0 %v2863
      %2908 = vmatpush1.msra.mxu0 %v2862
      %2909 = vmatprep.subr.mxu0 %v2866
      %2910 = vmatpush1.msra.mxu0 %v2865
      %2911 = vmatprep.subr.mxu0 %v2869
      %2912 = vmatpush1.msra.mxu0 %v2868
      %2913 = vmatprep.subr.mxu0 %v2872
      %2914 = vmatpush1.msra.mxu0 %v2871
      %2915 = vmatprep.subr.mxu0 %v2875
      %2916 = vmatpush1.msra.mxu0 %v2874
      %2917 = vmatprep.subr.mxu0 %v2878
      %2918 = vmatpush1.msra.mxu0 %v2877
      %2919 = vmatprep.subr.mxu0 %v2881
      %2920 = vmatpush1.msra.mxu0 %v2880
      %2921 = vmatprep.subr.mxu0 %v2884
      %2922 = vmatpush1.msra.mxu0 %v2883
      %2923 = vmatprep.subr.mxu0 %v2887
      %2924 = vmatpush1.msra.mxu0 %v2886
      %2925 = vmatprep.subr.mxu0 %v2890
      %2926 = vmatpush1.msra.mxu0 %v2889
      %2927 = vmatprep.subr.mxu0 %v2893
      %2928 = vmatpush1.msra.mxu0 %v2892
      %2929 = vmatprep.subr.mxu0 %v2896
      %2930 = vmatpush1.msra.mxu0 %v2895
      %2931 = vmatprep.subr.mxu0 %v2899
      %2932 = vmatpush1.msra.mxu0 %v2898
      %2933 = vmatprep.subr.mxu0 0.0
      %2934 = vmatpush1.msra.mxu0 0.0
      %2935 = vmatprep.subr.mxu0 0.0
      %2936 = vmatpush1.msra.mxu0 0.0
      %2937 = vmatprep.subr.mxu0 0.0
      %2938 = vmatpush1.msra.mxu0 0.0
      %2939 = vmatprep.subr.mxu0 0.0
      %2940 = vmatpush1.msra.mxu0 0.0
      %2941 = vmatprep.subr.mxu0 0.0
      %2942 = vmatpush1.msra.mxu0 0.0
      %2943 = vmatprep.subr.mxu0 0.0
      %2944 = vmatpush1.msra.mxu0 0.0
      %2945 = vmatprep.subr.mxu0 0.0
      %2946 = vmatpush1.msra.mxu0 0.0
      %2947 = vmatprep.subr.mxu0 0.0
      %2948 = vmatpush1.msra.mxu0 0.0
      %2949 = vmatprep.subr.mxu0 0.0
      %2950 = vmatpush1.msra.mxu0 0.0
      %2951 = vmatprep.subr.mxu0 0.0
      %2952 = vmatpush1.msra.mxu0 0.0
      %2953 = vmatprep.subr.mxu0 0.0
      %2954 = vmatpush1.msra.mxu0 0.0
      %2955 = vmatprep.subr.mxu0 0.0
      %2956 = vmatpush1.msra.mxu0 0.0
      %2957 = vmatprep.subr.mxu0 0.0
      %2958 = vmatpush1.msra.mxu0 0.0
      %2959 = vmatprep.subr.mxu0 0.0
      %2960 = vmatpush1.msra.mxu0 0.0
      %2961 = vmatprep.subr.mxu0 0.0
      %2962 = vmatpush1.msra.mxu0 0.0
      %2963 = vmatprep.subr.mxu0 0.0
      %2964 = vmatpush1.msra.mxu0 0.0
      %2965 = vmatprep.mubr.f32.mxu0 0.0
      %2966 = vmatmul.mubr.f32.gmra.mrb[0].mxu0 %v2852
      %v2967 = vpop.f32.mrb[0].mxu0
      %v2968 = vadd.f32 %v450, %v2967
      %v2969 = vpop.f32.mrb[0].mxu0
      %v2970 = vadd.f32 %v454, %v2969
      %2971 = vdwg.mxu0
      %2972 = vmatprep.subr.mxu0 0.0
      %2973 = vmatpush1.msra.mxu0 %v2855
      %2974 = vmatprep.subr.mxu0 0.0
      %2975 = vmatpush1.msra.mxu0 %v2858
      %2976 = vmatprep.subr.mxu0 0.0
      %2977 = vmatpush1.msra.mxu0 %v2861
      %2978 = vmatprep.subr.mxu0 0.0
      %2979 = vmatpush1.msra.mxu0 %v2864
      %2980 = vmatprep.subr.mxu0 0.0
      %2981 = vmatpush1.msra.mxu0 %v2867
      %2982 = vmatprep.subr.mxu0 0.0
      %2983 = vmatpush1.msra.mxu0 %v2870
      %2984 = vmatprep.subr.mxu0 0.0
      %2985 = vmatpush1.msra.mxu0 %v2873
      %2986 = vmatprep.subr.mxu0 0.0
      %2987 = vmatpush1.msra.mxu0 %v2876
      %2988 = vmatprep.subr.mxu0 0.0
      %2989 = vmatpush1.msra.mxu0 %v2879
      %2990 = vmatprep.subr.mxu0 0.0
      %2991 = vmatpush1.msra.mxu0 %v2882
      %2992 = vmatprep.subr.mxu0 0.0
      %2993 = vmatpush1.msra.mxu0 %v2885
      %2994 = vmatprep.subr.mxu0 0.0
      %2995 = vmatpush1.msra.mxu0 %v2888
      %2996 = vmatprep.subr.mxu0 0.0
      %2997 = vmatpush1.msra.mxu0 %v2891
      %2998 = vmatprep.subr.mxu0 0.0
      %2999 = vmatpush1.msra.mxu0 %v2894
      %3000 = vmatprep.subr.mxu0 0.0
      %3001 = vmatpush1.msra.mxu0 %v2897
      %3002 = vmatprep.subr.mxu0 0.0
      %3003 = vmatpush1.msra.mxu0 %v2900
      %3004 = vmatprep.subr.mxu0 0.0
      %3005 = vmatpush1.msra.mxu0 0.0
      %3006 = vmatprep.subr.mxu0 0.0
      %3007 = vmatpush1.msra.mxu0 0.0
      %3008 = vmatprep.subr.mxu0 0.0
      %3009 = vmatpush1.msra.mxu0 0.0
      %3010 = vmatprep.subr.mxu0 0.0
      %3011 = vmatpush1.msra.mxu0 0.0
      %3012 = vmatprep.subr.mxu0 0.0
      %3013 = vmatpush1.msra.mxu0 0.0
      %3014 = vmatprep.subr.mxu0 0.0
      %3015 = vmatpush1.msra.mxu0 0.0
      %3016 = vmatprep.subr.mxu0 0.0
      %3017 = vmatpush1.msra.mxu0 0.0
      %3018 = vmatprep.subr.mxu0 0.0
      %3019 = vmatpush1.msra.mxu0 0.0
      %3020 = vmatprep.subr.mxu0 0.0
      %3021 = vmatpush1.msra.mxu0 0.0
      %3022 = vmatprep.subr.mxu0 0.0
      %3023 = vmatpush1.msra.mxu0 0.0
      %3024 = vmatprep.subr.mxu0 0.0
      %3025 = vmatpush1.msra.mxu0 0.0
      %3026 = vmatprep.subr.mxu0 0.0
      %3027 = vmatpush1.msra.mxu0 0.0
      %3028 = vmatprep.subr.mxu0 0.0
      %3029 = vmatpush1.msra.mxu0 0.0
      %3030 = vmatprep.subr.mxu0 0.0
      %3031 = vmatpush1.msra.mxu0 0.0
      %3032 = vmatprep.subr.mxu0 0.0
      %3033 = vmatpush1.msra.mxu0 0.0
      %3034 = vmatprep.subr.mxu0 0.0
      %3035 = vmatpush1.msra.mxu0 0.0
      %3036 = vmatprep.mubr.f32.mxu0 0.0
      %3037 = vmatmul.mubr.f32.gmra.mrb[0].mxu0 %v2852
      %v3038 = vpop.f32.mrb[0].mxu0
      %v3039 = vadd.f32 %v458, %v3038
      %v3040 = vpop.f32.mrb[0].mxu0
      %3041 = vdwg.mxu0
      %v3042 = vadd.f32 %v2683, %v607
      %v3043 = vadd.f32 %v2685, %v611
      %v3044 = vadd.f32 %v2754, %v615
      %v3045 = vadd.f32 %v2968, %v3042
      %v3046 = vadd.f32 %v2970, %v3043
      %v3047 = vxor.u32 %v3045, 2147483648
      %v3048 = vxor.u32 %v3046, 2147483648
      %v3049 = vmul.f32 %v3047, 1.442695
      %v3050 = vpow.pop %v3049
      %v3051 = vmul.f32 %v3048, 1.442695
      %v3052 = vpow.pop %v3051
      %v3053 = vadd.f32 %v3050, 1.0
      %v3054 = vadd.f32 %v3052, 1.0
      %v3055 = vrcp.pop %v3053
      %v3056 = vmul.f32 1.0, %v3055
      %v3057 = vrcp.pop %v3054
      %v3058 = vmul.f32 1.0, %v3057
      %v3059 = vmul.f32 %v3056, %v3044
      %v3060 = vadd.f32 %v3039, %v3059
      %v3061 = vtanh.pop %v3060
      %v3062 = vsub.f32 1.0, %v3058
      %v3063 = vmul.f32 %v3062, %v3061
      %v3064 = vmul.f32 %v3058, %v2461
      %v3065 = vadd.f32 %v3063, %v3064
      %s3066 = scalar_lea.vmem [#allocation2], %s2464
      %3067 = vst [vmem:[%s3066] sm:$0x1] %v3065
      %s3068 = sadd.s32 %s651, 5
      %v3069 = vld [vmem:[#allocation6] sm:$0xff]
      %v3070 = vld [vmem:[#allocation6 + $0x8] sm:$0xff]
      %v3071 = vld [vmem:[#allocation6 + $0x10] sm:$0xff]
      %v3072 = vld [vmem:[#allocation6 + $0x18] sm:$0xff]
      %v3073 = vld [vmem:[#allocation6 + $0x20] sm:$0xff]
      %v3074 = vld [vmem:[#allocation6 + $0x28] sm:$0xff]
      %v3075 = vld [vmem:[#allocation6 + $0x30] sm:$0xff]
      %v3076 = vld [vmem:[#allocation6 + $0x38] sm:$0xff]
      %v3077 = vld [vmem:[#allocation6 + $0x40] sm:$0xff]
      %v3078 = vld [vmem:[#allocation6 + $0x48] sm:$0xff]
      %v3079 = vld [vmem:[#allocation6 + $0x50] sm:$0xff]
      %v3080 = vld [vmem:[#allocation6 + $0x58] sm:$0xff]
      %v3081 = vld [vmem:[#allocation6 + $0x60] sm:$0xff]
      %v3082 = vld [vmem:[#allocation6 + $0x68] sm:$0xff]
      %v3083 = vld [vmem:[#allocation6 + $0x70] sm:$0xff]
      %v3084 = vld [vmem:[#allocation6 + $0x78] sm:$0xff]
      %v3085 = vld [vmem:[#allocation6 + $0x80] sm:$0xff]
      %v3086 = vld [vmem:[#allocation6 + $0x88] sm:$0xff]
      %v3087 = vld [vmem:[#allocation6 + $0x90] sm:$0xff]
      %v3088 = vld [vmem:[#allocation6 + $0x98] sm:$0xff]
      %v3089 = vld [vmem:[#allocation6 + $0xa0] sm:$0xff]
      %v3090 = vld [vmem:[#allocation6 + $0xa8] sm:$0xff]
      %v3091 = vld [vmem:[#allocation6 + $0xb0] sm:$0xff]
      %v3092 = vld [vmem:[#allocation6 + $0xb8] sm:$0xff]
      %v3093 = vld [vmem:[#allocation6 + $0xc0] sm:$0xff]
      %v3094 = vld [vmem:[#allocation6 + $0xc8] sm:$0xff]
      %v3095 = vld [vmem:[#allocation6 + $0xd0] sm:$0xff]
      %v3096 = vld [vmem:[#allocation6 + $0xd8] sm:$0xff]
      %v3097 = vld [vmem:[#allocation6 + $0xe0] sm:$0xff]
      %v3098 = vld [vmem:[#allocation6 + $0xe8] sm:$0xff]
      %v3099 = vld [vmem:[#allocation6 + $0xf0] sm:$0xff]
      %v3100 = vld [vmem:[#allocation6 + $0xf8] sm:$0xff]
      %v3101 = vld [vmem:[#allocation6 + $0x100] sm:$0xff]
      %v3102 = vld [vmem:[#allocation6 + $0x108] sm:$0xff]
      %v3103 = vld [vmem:[#allocation6 + $0x110] sm:$0xff]
      %v3104 = vld [vmem:[#allocation6 + $0x118] sm:$0xff]
      %v3105 = vld [vmem:[#allocation6 + $0x120] sm:$0xff]
      %v3106 = vld [vmem:[#allocation6 + $0x128] sm:$0xff]
      %v3107 = vld [vmem:[#allocation6 + $0x130] sm:$0xff]
      %v3108 = vld [vmem:[#allocation6 + $0x138] sm:$0xff]
      %v3109 = vld [vmem:[#allocation6 + $0x140] sm:$0xff]
      %v3110 = vld [vmem:[#allocation6 + $0x148] sm:$0xff]
      %v3111 = vld [vmem:[#allocation6 + $0x150] sm:$0xff]
      %v3112 = vld [vmem:[#allocation6 + $0x158] sm:$0xff]
      %v3113 = vld [vmem:[#allocation6 + $0x160] sm:$0xff]
      %v3114 = vld [vmem:[#allocation6 + $0x168] sm:$0xff]
      %v3115 = vld [vmem:[#allocation6 + $0x170] sm:$0xff]
      %v3116 = vld [vmem:[#allocation6 + $0x178] sm:$0xff]
      %v3117 = vld [vmem:[#allocation6 + $0x180] sm:$0xff]
      %v3118 = vld [vmem:[#allocation6 + $0x188] sm:$0xff]
      %v3119 = vld [vmem:[#allocation6 + $0x190] sm:$0xff]
      %v3120 = vld [vmem:[#allocation6 + $0x198] sm:$0xff]
      %v3121 = vld [vmem:[#allocation6 + $0x1a0] sm:$0xff]
      %v3122 = vld [vmem:[#allocation6 + $0x1a8] sm:$0xff]
      %v3123 = vld [vmem:[#allocation6 + $0x1b0] sm:$0xff]
      %v3124 = vld [vmem:[#allocation6 + $0x1b8] sm:$0xff]
      %v3125 = vld [vmem:[#allocation6 + $0x1c0] sm:$0xff]
      %v3126 = vld [vmem:[#allocation6 + $0x1c8] sm:$0xff]
      %v3127 = vld [vmem:[#allocation6 + $0x1d0] sm:$0xff]
      %v3128 = vld [vmem:[#allocation6 + $0x1d8] sm:$0xff]
      %v3129 = vld [vmem:[#allocation6 + $0x1e0] sm:$0xff]
      %v3130 = vld [vmem:[#allocation6 + $0x1e8] sm:$0xff]
      %v3131 = vld [vmem:[#allocation6 + $0x1f0] sm:$0xff]
      %v3132 = vld [vmem:[#allocation6 + $0x1f8] sm:$0xff]
      %v3133 = vld [vmem:[#allocation6 + $0x200] sm:$0xff]
      %v3134 = vld [vmem:[#allocation6 + $0x208] sm:$0xff]
      %v3135 = vld [vmem:[#allocation6 + $0x210] sm:$0xff]
      %v3136 = vld [vmem:[#allocation6 + $0x218] sm:$0xff]
      %v3137 = vld [vmem:[#allocation6 + $0x220] sm:$0xff]
      %v3138 = vld [vmem:[#allocation6 + $0x228] sm:$0xff]
      %v3139 = vld [vmem:[#allocation6 + $0x230] sm:$0xff]
      %v3140 = vld [vmem:[#allocation6 + $0x238] sm:$0xff]
      %v3141 = vld [vmem:[#allocation6 + $0x240] sm:$0xff]
      %v3142 = vld [vmem:[#allocation6 + $0x248] sm:$0xff]
      %v3143 = vld [vmem:[#allocation6 + $0x250] sm:$0xff]
      %v3144 = vld [vmem:[#allocation6 + $0x258] sm:$0xff]
      %v3145 = vld [vmem:[#allocation6 + $0x260] sm:$0xff]
      %v3146 = vld [vmem:[#allocation6 + $0x268] sm:$0xff]
      %v3147 = vld [vmem:[#allocation6 + $0x270] sm:$0xff]
      %v3148 = vld [vmem:[#allocation6 + $0x278] sm:$0xff]
      %3149 = vmatprep.subr.mxu0 %v3070
      %3150 = vmatpush1.msra.mxu0 %v3069
      %3151 = vmatprep.subr.mxu0 %v3075
      %3152 = vmatpush1.msra.mxu0 %v3074
      %3153 = vmatprep.subr.mxu0 %v3080
      %3154 = vmatpush1.msra.mxu0 %v3079
      %3155 = vmatprep.subr.mxu0 %v3085
      %3156 = vmatpush1.msra.mxu0 %v3084
      %3157 = vmatprep.subr.mxu0 %v3090
      %3158 = vmatpush1.msra.mxu0 %v3089
      %3159 = vmatprep.subr.mxu0 %v3095
      %3160 = vmatpush1.msra.mxu0 %v3094
      %3161 = vmatprep.subr.mxu0 %v3100
      %3162 = vmatpush1.msra.mxu0 %v3099
      %3163 = vmatprep.subr.mxu0 %v3105
      %3164 = vmatpush1.msra.mxu0 %v3104
      %3165 = vmatprep.subr.mxu0 %v3110
      %3166 = vmatpush1.msra.mxu0 %v3109
      %3167 = vmatprep.subr.mxu0 %v3115
      %3168 = vmatpush1.msra.mxu0 %v3114
      %3169 = vmatprep.subr.mxu0 %v3120
      %3170 = vmatpush1.msra.mxu0 %v3119
      %3171 = vmatprep.subr.mxu0 %v3125
      %3172 = vmatpush1.msra.mxu0 %v3124
      %3173 = vmatprep.subr.mxu0 %v3130
      %3174 = vmatpush1.msra.mxu0 %v3129
      %3175 = vmatprep.subr.mxu0 %v3135
      %3176 = vmatpush1.msra.mxu0 %v3134
      %3177 = vmatprep.subr.mxu0 %v3140
      %3178 = vmatpush1.msra.mxu0 %v3139
      %3179 = vmatprep.subr.mxu0 %v3145
      %3180 = vmatpush1.msra.mxu0 %v3144
      %3181 = vmatprep.subr.mxu0 0.0
      %3182 = vmatpush1.msra.mxu0 0.0
      %3183 = vmatprep.subr.mxu0 0.0
      %3184 = vmatpush1.msra.mxu0 0.0
      %3185 = vmatprep.subr.mxu0 0.0
      %3186 = vmatpush1.msra.mxu0 0.0
      %3187 = vmatprep.subr.mxu0 0.0
      %3188 = vmatpush1.msra.mxu0 0.0
      %3189 = vmatprep.subr.mxu0 0.0
      %3190 = vmatpush1.msra.mxu0 0.0
      %3191 = vmatprep.subr.mxu0 0.0
      %3192 = vmatpush1.msra.mxu0 0.0
      %3193 = vmatprep.subr.mxu0 0.0
      %3194 = vmatpush1.msra.mxu0 0.0
      %3195 = vmatprep.subr.mxu0 0.0
      %3196 = vmatpush1.msra.mxu0 0.0
      %3197 = vmatprep.subr.mxu0 0.0
      %3198 = vmatpush1.msra.mxu0 0.0
      %3199 = vmatprep.subr.mxu0 0.0
      %3200 = vmatpush1.msra.mxu0 0.0
      %3201 = vmatprep.subr.mxu0 0.0
      %3202 = vmatpush1.msra.mxu0 0.0
      %3203 = vmatprep.subr.mxu0 0.0
      %3204 = vmatpush1.msra.mxu0 0.0
      %3205 = vmatprep.subr.mxu0 0.0
      %3206 = vmatpush1.msra.mxu0 0.0
      %3207 = vmatprep.subr.mxu0 0.0
      %3208 = vmatpush1.msra.mxu0 0.0
      %3209 = vmatprep.subr.mxu0 0.0
      %3210 = vmatpush1.msra.mxu0 0.0
      %3211 = vmatprep.subr.mxu0 0.0
      %3212 = vmatpush1.msra.mxu0 0.0
      %3213 = vmatprep.mubr.f32.mxu0 0.0
      %3214 = vmatmul.mubr.f32.gmra.mrb[0].mxu0 %v3065
      %v3215 = vpop.f32.mrb[0].mxu0
      %v3216 = vadd.f32 0.0, %v3215
      %v3217 = vpop.f32.mrb[0].mxu0
      %v3218 = vadd.f32 0.0, %v3217
      %3219 = vdwg.mxu0
      %3220 = vmatprep.subr.mxu0 %v3072
      %3221 = vmatpush1.msra.mxu0 %v3071
      %3222 = vmatprep.subr.mxu0 %v3077
      %3223 = vmatpush1.msra.mxu0 %v3076
      %3224 = vmatprep.subr.mxu0 %v3082
      %3225 = vmatpush1.msra.mxu0 %v3081
      %3226 = vmatprep.subr.mxu0 %v3087
      %3227 = vmatpush1.msra.mxu0 %v3086
      %3228 = vmatprep.subr.mxu0 %v3092
      %3229 = vmatpush1.msra.mxu0 %v3091
      %3230 = vmatprep.subr.mxu0 %v3097
      %3231 = vmatpush1.msra.mxu0 %v3096
      %3232 = vmatprep.subr.mxu0 %v3102
      %3233 = vmatpush1.msra.mxu0 %v3101
      %3234 = vmatprep.subr.mxu0 %v3107
      %3235 = vmatpush1.msra.mxu0 %v3106
      %3236 = vmatprep.subr.mxu0 %v3112
      %3237 = vmatpush1.msra.mxu0 %v3111
      %3238 = vmatprep.subr.mxu0 %v3117
      %3239 = vmatpush1.msra.mxu0 %v3116
      %3240 = vmatprep.subr.mxu0 %v3122
      %3241 = vmatpush1.msra.mxu0 %v3121
      %3242 = vmatprep.subr.mxu0 %v3127
      %3243 = vmatpush1.msra.mxu0 %v3126
      %3244 = vmatprep.subr.mxu0 %v3132
      %3245 = vmatpush1.msra.mxu0 %v3131
      %3246 = vmatprep.subr.mxu0 %v3137
      %3247 = vmatpush1.msra.mxu0 %v3136
      %3248 = vmatprep.subr.mxu0 %v3142
      %3249 = vmatpush1.msra.mxu0 %v3141
      %3250 = vmatprep.subr.mxu0 %v3147
      %3251 = vmatpush1.msra.mxu0 %v3146
      %3252 = vmatprep.subr.mxu0 0.0
      %3253 = vmatpush1.msra.mxu0 0.0
      %3254 = vmatprep.subr.mxu0 0.0
      %3255 = vmatpush1.msra.mxu0 0.0
      %3256 = vmatprep.subr.mxu0 0.0
      %3257 = vmatpush1.msra.mxu0 0.0
      %3258 = vmatprep.subr.mxu0 0.0
      %3259 = vmatpush1.msra.mxu0 0.0
      %3260 = vmatprep.subr.mxu0 0.0
      %3261 = vmatpush1.msra.mxu0 0.0
      %3262 = vmatprep.subr.mxu0 0.0
      %3263 = vmatpush1.msra.mxu0 0.0
      %3264 = vmatprep.subr.mxu0 0.0
      %3265 = vmatpush1.msra.mxu0 0.0
      %3266 = vmatprep.subr.mxu0 0.0
      %3267 = vmatpush1.msra.mxu0 0.0
      %3268 = vmatprep.subr.mxu0 0.0
      %3269 = vmatpush1.msra.mxu0 0.0
      %3270 = vmatprep.subr.mxu0 0.0
      %3271 = vmatpush1.msra.mxu0 0.0
      %3272 = vmatprep.subr.mxu0 0.0
      %3273 = vmatpush1.msra.mxu0 0.0
      %3274 = vmatprep.subr.mxu0 0.0
      %3275 = vmatpush1.msra.mxu0 0.0
      %3276 = vmatprep.subr.mxu0 0.0
      %3277 = vmatpush1.msra.mxu0 0.0
      %3278 = vmatprep.subr.mxu0 0.0
      %3279 = vmatpush1.msra.mxu0 0.0
      %3280 = vmatprep.subr.mxu0 0.0
      %3281 = vmatpush1.msra.mxu0 0.0
      %3282 = vmatprep.subr.mxu0 0.0
      %3283 = vmatpush1.msra.mxu0 0.0
      %3284 = vmatprep.mubr.f32.mxu0 0.0
      %3285 = vmatmul.mubr.f32.gmra.mrb[0].mxu0 %v3065
      %v3286 = vpop.f32.mrb[0].mxu0
      %v3287 = vadd.f32 0.0, %v3286
      %v3288 = vpop.f32.mrb[0].mxu0
      %v3289 = vadd.f32 0.0, %v3288
      %3290 = vdwg.mxu0
      %3291 = vmatprep.subr.mxu0 0.0
      %3292 = vmatpush1.msra.mxu0 %v3073
      %3293 = vmatprep.subr.mxu0 0.0
      %3294 = vmatpush1.msra.mxu0 %v3078
      %3295 = vmatprep.subr.mxu0 0.0
      %3296 = vmatpush1.msra.mxu0 %v3083
      %3297 = vmatprep.subr.mxu0 0.0
      %3298 = vmatpush1.msra.mxu0 %v3088
      %3299 = vmatprep.subr.mxu0 0.0
      %3300 = vmatpush1.msra.mxu0 %v3093
      %3301 = vmatprep.subr.mxu0 0.0
      %3302 = vmatpush1.msra.mxu0 %v3098
      %3303 = vmatprep.subr.mxu0 0.0
      %3304 = vmatpush1.msra.mxu0 %v3103
      %3305 = vmatprep.subr.mxu0 0.0
      %3306 = vmatpush1.msra.mxu0 %v3108
      %3307 = vmatprep.subr.mxu0 0.0
      %3308 = vmatpush1.msra.mxu0 %v3113
      %3309 = vmatprep.subr.mxu0 0.0
      %3310 = vmatpush1.msra.mxu0 %v3118
      %3311 = vmatprep.subr.mxu0 0.0
      %3312 = vmatpush1.msra.mxu0 %v3123
      %3313 = vmatprep.subr.mxu0 0.0
      %3314 = vmatpush1.msra.mxu0 %v3128
      %3315 = vmatprep.subr.mxu0 0.0
      %3316 = vmatpush1.msra.mxu0 %v3133
      %3317 = vmatprep.subr.mxu0 0.0
      %3318 = vmatpush1.msra.mxu0 %v3138
      %3319 = vmatprep.subr.mxu0 0.0
      %3320 = vmatpush1.msra.mxu0 %v3143
      %3321 = vmatprep.subr.mxu0 0.0
      %3322 = vmatpush1.msra.mxu0 %v3148
      %3323 = vmatprep.subr.mxu0 0.0
      %3324 = vmatpush1.msra.mxu0 0.0
      %3325 = vmatprep.subr.mxu0 0.0
      %3326 = vmatpush1.msra.mxu0 0.0
      %3327 = vmatprep.subr.mxu0 0.0
      %3328 = vmatpush1.msra.mxu0 0.0
      %3329 = vmatprep.subr.mxu0 0.0
      %3330 = vmatpush1.msra.mxu0 0.0
      %3331 = vmatprep.subr.mxu0 0.0
      %3332 = vmatpush1.msra.mxu0 0.0
      %3333 = vmatprep.subr.mxu0 0.0
      %3334 = vmatpush1.msra.mxu0 0.0
      %3335 = vmatprep.subr.mxu0 0.0
      %3336 = vmatpush1.msra.mxu0 0.0
      %3337 = vmatprep.subr.mxu0 0.0
      %3338 = vmatpush1.msra.mxu0 0.0
      %3339 = vmatprep.subr.mxu0 0.0
      %3340 = vmatpush1.msra.mxu0 0.0
      %3341 = vmatprep.subr.mxu0 0.0
      %3342 = vmatpush1.msra.mxu0 0.0
      %3343 = vmatprep.subr.mxu0 0.0
      %3344 = vmatpush1.msra.mxu0 0.0
      %3345 = vmatprep.subr.mxu0 0.0
      %3346 = vmatpush1.msra.mxu0 0.0
      %3347 = vmatprep.subr.mxu0 0.0
      %3348 = vmatpush1.msra.mxu0 0.0
      %3349 = vmatprep.subr.mxu0 0.0
      %3350 = vmatpush1.msra.mxu0 0.0
      %3351 = vmatprep.subr.mxu0 0.0
      %3352 = vmatpush1.msra.mxu0 0.0
      %3353 = vmatprep.subr.mxu0 0.0
      %3354 = vmatpush1.msra.mxu0 0.0
      %3355 = vmatprep.mubr.f32.mxu0 0.0
      %3356 = vmatmul.mubr.f32.gmra.mrb[0].mxu0 %v3065
      %v3357 = vpop.f32.mrb[0].mxu0
      %v3358 = vadd.f32 0.0, %v3357
      %v3359 = vpop.f32.mrb[0].mxu0
      %3360 = vdwg.mxu0
      %v3361 = vadd.f32 %v3216, %v89
      %v3362 = vsel %vm301, %v3361, -inf
      %3363 = vmax.xlane.f32.xlu0 %v3362
      %v3364 = vpop.xlane.xlu0 %3363
      %v3365 = vsub.f32 %v3361, %v3364
      %v3366 = vmul.f32 %v3365, 1.442695
      %v3367 = vpow.pop %v3366
      %v3368 = vld [vmem:[%s1] sm:$0xff]
      %v3369 = vld [vmem:[%s1 + $0x8] sm:$0xff]
      %v3370 = vld [vmem:[%s1 + $0x10] sm:$0xff]
      %v3371 = vld [vmem:[%s1 + $0x18] sm:$0xff]
      %v3372 = vld [vmem:[%s1 + $0x20] sm:$0xff]
      %v3373 = vld [vmem:[%s1 + $0x28] sm:$0xff]
      %v3374 = vld [vmem:[%s1 + $0x30] sm:$0xff]
      %v3375 = vld [vmem:[%s1 + $0x38] sm:$0xff]
      %v3377 = vsel %vm316, %v3367, 0
      %3379 = vmatprep.subr.mxu0 0.0
      %3380 = vmatpush1.msra.mxu0 %v3368
      %3381 = vmatprep.subr.mxu0 0.0
      %3382 = vmatpush1.msra.mxu0 %v3369
      %3383 = vmatprep.subr.mxu0 0.0
      %3384 = vmatpush1.msra.mxu0 %v3370
      %3385 = vmatprep.subr.mxu0 0.0
      %3386 = vmatpush1.msra.mxu0 %v3371
      %3387 = vmatprep.subr.mxu0 0.0
      %3388 = vmatpush1.msra.mxu0 %v3372
      %3389 = vmatprep.subr.mxu0 0.0
      %3390 = vmatpush1.msra.mxu0 %v3373
      %3391 = vmatprep.subr.mxu0 0.0
      %3392 = vmatpush1.msra.mxu0 %v3374
      %3393 = vmatprep.subr.mxu0 0.0
      %3394 = vmatpush1.msra.mxu0 %v3375
      %3395 = vmatprep.subr.mxu0 0.0
      %3396 = vmatpush1.msra.mxu0 0.0
      %3397 = vmatprep.subr.mxu0 0.0
      %3398 = vmatpush1.msra.mxu0 0.0
      %3399 = vmatprep.subr.mxu0 0.0
      %3400 = vmatpush1.msra.mxu0 0.0
      %3401 = vmatprep.subr.mxu0 0.0
      %3402 = vmatpush1.msra.mxu0 0.0
      %3403 = vmatprep.subr.mxu0 0.0
      %3404 = vmatpush1.msra.mxu0 0.0
      %3405 = vmatprep.subr.mxu0 0.0
      %3406 = vmatpush1.msra.mxu0 0.0
      %3407 = vmatprep.subr.mxu0 0.0
      %3408 = vmatpush1.msra.mxu0 0.0
      %3409 = vmatprep.subr.mxu0 0.0
      %3410 = vmatpush1.msra.mxu0 0.0
      %3411 = vmatprep.subr.mxu0 0.0
      %3412 = vmatpush1.msra.mxu0 0.0
      %3413 = vmatprep.subr.mxu0 0.0
      %3414 = vmatpush1.msra.mxu0 0.0
      %3415 = vmatprep.subr.mxu0 0.0
      %3416 = vmatpush1.msra.mxu0 0.0
      %3417 = vmatprep.subr.mxu0 0.0
      %3418 = vmatpush1.msra.mxu0 0.0
      %3419 = vmatprep.subr.mxu0 0.0
      %3420 = vmatpush1.msra.mxu0 0.0
      %3421 = vmatprep.subr.mxu0 0.0
      %3422 = vmatpush1.msra.mxu0 0.0
      %3423 = vmatprep.subr.mxu0 0.0
      %3424 = vmatpush1.msra.mxu0 0.0
      %3425 = vmatprep.subr.mxu0 0.0
      %3426 = vmatpush1.msra.mxu0 0.0
      %3427 = vmatprep.subr.mxu0 0.0
      %3428 = vmatpush1.msra.mxu0 0.0
      %3429 = vmatprep.subr.mxu0 0.0
      %3430 = vmatpush1.msra.mxu0 0.0
      %3431 = vmatprep.subr.mxu0 0.0
      %3432 = vmatpush1.msra.mxu0 0.0
      %3433 = vmatprep.subr.mxu0 0.0
      %3434 = vmatpush1.msra.mxu0 0.0
      %3435 = vmatprep.subr.mxu0 0.0
      %3436 = vmatpush1.msra.mxu0 0.0
      %3437 = vmatprep.subr.mxu0 0.0
      %3438 = vmatpush1.msra.mxu0 0.0
      %3439 = vmatprep.subr.mxu0 0.0
      %3440 = vmatpush1.msra.mxu0 0.0
      %3441 = vmatprep.subr.mxu0 0.0
      %3442 = vmatpush1.msra.mxu0 0.0
      %3443 = vmatprep.mubr.f32.mxu0 0.0
      %3444 = vmatmul.mubr.f32.gmra.mrb[0].mxu0 %v3377
      %v3445 = vpop.f32.mrb[0].mxu0
      %v3446 = vadd.f32 0.0, %v3445
      %v3447 = vpop.f32.mrb[0].mxu0
      %3448 = vdwg.mxu0
      %v3449 = vsel %vm301, %v3367, 0.0
      %3450 = vadd.xlane.f32.xlu0 %v3449
      %v3451 = vpop.xlane.xlu0 %3450
      %v3452 = vrcp.pop %v3451
      %v3453 = vmul.f32 %v3446, %v3452
      %v3454 = vadd.f32 %v3218, %v3453
      %v3455 = vadd.f32 %v3454, %v90
      %v3456 = vmax.f32 %v3455, 0.0
      %v3457 = vld [vmem:[#allocation8] sm:$0xff]
      %v3458 = vld [vmem:[#allocation8 + $0x8] sm:$0xff]
      %v3459 = vld [vmem:[#allocation8 + $0x10] sm:$0xff]
      %v3460 = vld [vmem:[#allocation8 + $0x18] sm:$0xff]
      %v3461 = vld [vmem:[#allocation8 + $0x20] sm:$0xff]
      %v3462 = vld [vmem:[#allocation8 + $0x28] sm:$0xff]
      %v3463 = vld [vmem:[#allocation8 + $0x30] sm:$0xff]
      %v3464 = vld [vmem:[#allocation8 + $0x38] sm:$0xff]
      %v3465 = vld [vmem:[#allocation8 + $0x40] sm:$0xff]
      %v3466 = vld [vmem:[#allocation8 + $0x48] sm:$0xff]
      %v3467 = vld [vmem:[#allocation8 + $0x50] sm:$0xff]
      %v3468 = vld [vmem:[#allocation8 + $0x58] sm:$0xff]
      %v3469 = vld [vmem:[#allocation8 + $0x60] sm:$0xff]
      %v3470 = vld [vmem:[#allocation8 + $0x68] sm:$0xff]
      %v3471 = vld [vmem:[#allocation8 + $0x70] sm:$0xff]
      %v3472 = vld [vmem:[#allocation8 + $0x78] sm:$0xff]
      %v3473 = vld [vmem:[#allocation8 + $0x80] sm:$0xff]
      %v3474 = vld [vmem:[#allocation8 + $0x88] sm:$0xff]
      %v3475 = vld [vmem:[#allocation8 + $0x90] sm:$0xff]
      %v3476 = vld [vmem:[#allocation8 + $0x98] sm:$0xff]
      %v3477 = vld [vmem:[#allocation8 + $0xa0] sm:$0xff]
      %v3478 = vld [vmem:[#allocation8 + $0xa8] sm:$0xff]
      %v3479 = vld [vmem:[#allocation8 + $0xb0] sm:$0xff]
      %v3480 = vld [vmem:[#allocation8 + $0xb8] sm:$0xff]
      %v3481 = vld [vmem:[#allocation8 + $0xc0] sm:$0xff]
      %v3482 = vld [vmem:[#allocation8 + $0xc8] sm:$0xff]
      %v3483 = vld [vmem:[#allocation8 + $0xd0] sm:$0xff]
      %v3484 = vld [vmem:[#allocation8 + $0xd8] sm:$0xff]
      %v3485 = vld [vmem:[#allocation8 + $0xe0] sm:$0xff]
      %v3486 = vld [vmem:[#allocation8 + $0xe8] sm:$0xff]
      %v3487 = vld [vmem:[#allocation8 + $0xf0] sm:$0xff]
      %v3488 = vld [vmem:[#allocation8 + $0xf8] sm:$0xff]
      %v3489 = vld [vmem:[#allocation8 + $0x100] sm:$0xff]
      %v3490 = vld [vmem:[#allocation8 + $0x108] sm:$0xff]
      %v3491 = vld [vmem:[#allocation8 + $0x110] sm:$0xff]
      %v3492 = vld [vmem:[#allocation8 + $0x118] sm:$0xff]
      %v3493 = vld [vmem:[#allocation8 + $0x120] sm:$0xff]
      %v3494 = vld [vmem:[#allocation8 + $0x128] sm:$0xff]
      %v3495 = vld [vmem:[#allocation8 + $0x130] sm:$0xff]
      %v3496 = vld [vmem:[#allocation8 + $0x138] sm:$0xff]
      %v3497 = vld [vmem:[#allocation8 + $0x140] sm:$0xff]
      %v3498 = vld [vmem:[#allocation8 + $0x148] sm:$0xff]
      %v3499 = vld [vmem:[#allocation8 + $0x150] sm:$0xff]
      %v3500 = vld [vmem:[#allocation8 + $0x158] sm:$0xff]
      %v3501 = vld [vmem:[#allocation8 + $0x160] sm:$0xff]
      %v3502 = vld [vmem:[#allocation8 + $0x168] sm:$0xff]
      %v3503 = vld [vmem:[#allocation8 + $0x170] sm:$0xff]
      %v3504 = vld [vmem:[#allocation8 + $0x178] sm:$0xff]
      %3505 = vmatprep.subr.mxu0 %v3458
      %3506 = vmatpush1.msra.mxu0 %v3457
      %3507 = vmatprep.subr.mxu0 %v3461
      %3508 = vmatpush1.msra.mxu0 %v3460
      %3509 = vmatprep.subr.mxu0 %v3464
      %3510 = vmatpush1.msra.mxu0 %v3463
      %3511 = vmatprep.subr.mxu0 %v3467
      %3512 = vmatpush1.msra.mxu0 %v3466
      %3513 = vmatprep.subr.mxu0 %v3470
      %3514 = vmatpush1.msra.mxu0 %v3469
      %3515 = vmatprep.subr.mxu0 %v3473
      %3516 = vmatpush1.msra.mxu0 %v3472
      %3517 = vmatprep.subr.mxu0 %v3476
      %3518 = vmatpush1.msra.mxu0 %v3475
      %3519 = vmatprep.subr.mxu0 %v3479
      %3520 = vmatpush1.msra.mxu0 %v3478
      %3521 = vmatprep.subr.mxu0 %v3482
      %3522 = vmatpush1.msra.mxu0 %v3481
      %3523 = vmatprep.subr.mxu0 %v3485
      %3524 = vmatpush1.msra.mxu0 %v3484
      %3525 = vmatprep.subr.mxu0 %v3488
      %3526 = vmatpush1.msra.mxu0 %v3487
      %3527 = vmatprep.subr.mxu0 %v3491
      %3528 = vmatpush1.msra.mxu0 %v3490
      %3529 = vmatprep.subr.mxu0 %v3494
      %3530 = vmatpush1.msra.mxu0 %v3493
      %3531 = vmatprep.subr.mxu0 %v3497
      %3532 = vmatpush1.msra.mxu0 %v3496
      %3533 = vmatprep.subr.mxu0 %v3500
      %3534 = vmatpush1.msra.mxu0 %v3499
      %3535 = vmatprep.subr.mxu0 %v3503
      %3536 = vmatpush1.msra.mxu0 %v3502
      %3537 = vmatprep.subr.mxu0 0.0
      %3538 = vmatpush1.msra.mxu0 0.0
      %3539 = vmatprep.subr.mxu0 0.0
      %3540 = vmatpush1.msra.mxu0 0.0
      %3541 = vmatprep.subr.mxu0 0.0
      %3542 = vmatpush1.msra.mxu0 0.0
      %3543 = vmatprep.subr.mxu0 0.0
      %3544 = vmatpush1.msra.mxu0 0.0
      %3545 = vmatprep.subr.mxu0 0.0
      %3546 = vmatpush1.msra.mxu0 0.0
      %3547 = vmatprep.subr.mxu0 0.0
      %3548 = vmatpush1.msra.mxu0 0.0
      %3549 = vmatprep.subr.mxu0 0.0
      %3550 = vmatpush1.msra.mxu0 0.0
      %3551 = vmatprep.subr.mxu0 0.0
      %3552 = vmatpush1.msra.mxu0 0.0
      %3553 = vmatprep.subr.mxu0 0.0
      %3554 = vmatpush1.msra.mxu0 0.0
      %3555 = vmatprep.subr.mxu0 0.0
      %3556 = vmatpush1.msra.mxu0 0.0
      %3557 = vmatprep.subr.mxu0 0.0
      %3558 = vmatpush1.msra.mxu0 0.0
      %3559 = vmatprep.subr.mxu0 0.0
      %3560 = vmatpush1.msra.mxu0 0.0
      %3561 = vmatprep.subr.mxu0 0.0
      %3562 = vmatpush1.msra.mxu0 0.0
      %3563 = vmatprep.subr.mxu0 0.0
      %3564 = vmatpush1.msra.mxu0 0.0
      %3565 = vmatprep.subr.mxu0 0.0
      %3566 = vmatpush1.msra.mxu0 0.0
      %3567 = vmatprep.subr.mxu0 0.0
      %3568 = vmatpush1.msra.mxu0 0.0
      %3569 = vmatprep.mubr.f32.mxu0 0.0
      %3570 = vmatmul.mubr.f32.gmra.mrb[0].mxu0 %v3456
      %v3571 = vpop.f32.mrb[0].mxu0
      %v3572 = vadd.f32 %v450, %v3571
      %v3573 = vpop.f32.mrb[0].mxu0
      %v3574 = vadd.f32 %v454, %v3573
      %3575 = vdwg.mxu0
      %3576 = vmatprep.subr.mxu0 0.0
      %3577 = vmatpush1.msra.mxu0 %v3459
      %3578 = vmatprep.subr.mxu0 0.0
      %3579 = vmatpush1.msra.mxu0 %v3462
      %3580 = vmatprep.subr.mxu0 0.0
      %3581 = vmatpush1.msra.mxu0 %v3465
      %3582 = vmatprep.subr.mxu0 0.0
      %3583 = vmatpush1.msra.mxu0 %v3468
      %3584 = vmatprep.subr.mxu0 0.0
      %3585 = vmatpush1.msra.mxu0 %v3471
      %3586 = vmatprep.subr.mxu0 0.0
      %3587 = vmatpush1.msra.mxu0 %v3474
      %3588 = vmatprep.subr.mxu0 0.0
      %3589 = vmatpush1.msra.mxu0 %v3477
      %3590 = vmatprep.subr.mxu0 0.0
      %3591 = vmatpush1.msra.mxu0 %v3480
      %3592 = vmatprep.subr.mxu0 0.0
      %3593 = vmatpush1.msra.mxu0 %v3483
      %3594 = vmatprep.subr.mxu0 0.0
      %3595 = vmatpush1.msra.mxu0 %v3486
      %3596 = vmatprep.subr.mxu0 0.0
      %3597 = vmatpush1.msra.mxu0 %v3489
      %3598 = vmatprep.subr.mxu0 0.0
      %3599 = vmatpush1.msra.mxu0 %v3492
      %3600 = vmatprep.subr.mxu0 0.0
      %3601 = vmatpush1.msra.mxu0 %v3495
      %3602 = vmatprep.subr.mxu0 0.0
      %3603 = vmatpush1.msra.mxu0 %v3498
      %3604 = vmatprep.subr.mxu0 0.0
      %3605 = vmatpush1.msra.mxu0 %v3501
      %3606 = vmatprep.subr.mxu0 0.0
      %3607 = vmatpush1.msra.mxu0 %v3504
      %3608 = vmatprep.subr.mxu0 0.0
      %3609 = vmatpush1.msra.mxu0 0.0
      %3610 = vmatprep.subr.mxu0 0.0
      %3611 = vmatpush1.msra.mxu0 0.0
      %3612 = vmatprep.subr.mxu0 0.0
      %3613 = vmatpush1.msra.mxu0 0.0
      %3614 = vmatprep.subr.mxu0 0.0
      %3615 = vmatpush1.msra.mxu0 0.0
      %3616 = vmatprep.subr.mxu0 0.0
      %3617 = vmatpush1.msra.mxu0 0.0
      %3618 = vmatprep.subr.mxu0 0.0
      %3619 = vmatpush1.msra.mxu0 0.0
      %3620 = vmatprep.subr.mxu0 0.0
      %3621 = vmatpush1.msra.mxu0 0.0
      %3622 = vmatprep.subr.mxu0 0.0
      %3623 = vmatpush1.msra.mxu0 0.0
      %3624 = vmatprep.subr.mxu0 0.0
      %3625 = vmatpush1.msra.mxu0 0.0
      %3626 = vmatprep.subr.mxu0 0.0
      %3627 = vmatpush1.msra.mxu0 0.0
      %3628 = vmatprep.subr.mxu0 0.0
      %3629 = vmatpush1.msra.mxu0 0.0
      %3630 = vmatprep.subr.mxu0 0.0
      %3631 = vmatpush1.msra.mxu0 0.0
      %3632 = vmatprep.subr.mxu0 0.0
      %3633 = vmatpush1.msra.mxu0 0.0
      %3634 = vmatprep.subr.mxu0 0.0
      %3635 = vmatpush1.msra.mxu0 0.0
      %3636 = vmatprep.subr.mxu0 0.0
      %3637 = vmatpush1.msra.mxu0 0.0
      %3638 = vmatprep.subr.mxu0 0.0
      %3639 = vmatpush1.msra.mxu0 0.0
      %3640 = vmatprep.mubr.f32.mxu0 0.0
      %3641 = vmatmul.mubr.f32.gmra.mrb[0].mxu0 %v3456
      %v3642 = vpop.f32.mrb[0].mxu0
      %v3643 = vadd.f32 %v458, %v3642
      %v3644 = vpop.f32.mrb[0].mxu0
      %3645 = vdwg.mxu0
      %v3646 = vadd.f32 %v3287, %v607
      %v3647 = vadd.f32 %v3289, %v611
      %v3648 = vadd.f32 %v3358, %v615
      %v3649 = vadd.f32 %v3572, %v3646
      %v3650 = vadd.f32 %v3574, %v3647
      %v3651 = vxor.u32 %v3649, 2147483648
      %v3652 = vxor.u32 %v3650, 2147483648
      %v3653 = vmul.f32 %v3651, 1.442695
      %v3654 = vpow.pop %v3653
      %v3655 = vmul.f32 %v3652, 1.442695
      %v3656 = vpow.pop %v3655
      %v3657 = vadd.f32 %v3654, 1.0
      %v3658 = vadd.f32 %v3656, 1.0
      %v3659 = vrcp.pop %v3657
      %v3660 = vmul.f32 1.0, %v3659
      %v3661 = vrcp.pop %v3658
      %v3662 = vmul.f32 1.0, %v3661
      %v3663 = vmul.f32 %v3660, %v3648
      %v3664 = vadd.f32 %v3643, %v3663
      %v3665 = vtanh.pop %v3664
      %v3666 = vsub.f32 1.0, %v3662
      %v3667 = vmul.f32 %v3666, %v3665
      %v3668 = vmul.f32 %v3662, %v3065
      %v3669 = vadd.f32 %v3667, %v3668
      %s3670 = scalar_lea.vmem [#allocation2], %s3068
      %3671 = vst [vmem:[%s3670] sm:$0x1] %v3669
      %s3672 = sadd.s32 %s651, 6
      %v3673 = vld [vmem:[#allocation6] sm:$0xff]
      %v3674 = vld [vmem:[#allocation6 + $0x8] sm:$0xff]
      %v3675 = vld [vmem:[#allocation6 + $0x10] sm:$0xff]
      %v3676 = vld [vmem:[#allocation6 + $0x18] sm:$0xff]
      %v3677 = vld [vmem:[#allocation6 + $0x20] sm:$0xff]
      %v3678 = vld [vmem:[#allocation6 + $0x28] sm:$0xff]
      %v3679 = vld [vmem:[#allocation6 + $0x30] sm:$0xff]
      %v3680 = vld [vmem:[#allocation6 + $0x38] sm:$0xff]
      %v3681 = vld [vmem:[#allocation6 + $0x40] sm:$0xff]
      %v3682 = vld [vmem:[#allocation6 + $0x48] sm:$0xff]
      %v3683 = vld [vmem:[#allocation6 + $0x50] sm:$0xff]
      %v3684 = vld [vmem:[#allocation6 + $0x58] sm:$0xff]
      %v3685 = vld [vmem:[#allocation6 + $0x60] sm:$0xff]
      %v3686 = vld [vmem:[#allocation6 + $0x68] sm:$0xff]
      %v3687 = vld [vmem:[#allocation6 + $0x70] sm:$0xff]
      %v3688 = vld [vmem:[#allocation6 + $0x78] sm:$0xff]
      %v3689 = vld [vmem:[#allocation6 + $0x80] sm:$0xff]
      %v3690 = vld [vmem:[#allocation6 + $0x88] sm:$0xff]
      %v3691 = vld [vmem:[#allocation6 + $0x90] sm:$0xff]
      %v3692 = vld [vmem:[#allocation6 + $0x98] sm:$0xff]
      %v3693 = vld [vmem:[#allocation6 + $0xa0] sm:$0xff]
      %v3694 = vld [vmem:[#allocation6 + $0xa8] sm:$0xff]
      %v3695 = vld [vmem:[#allocation6 + $0xb0] sm:$0xff]
      %v3696 = vld [vmem:[#allocation6 + $0xb8] sm:$0xff]
      %v3697 = vld [vmem:[#allocation6 + $0xc0] sm:$0xff]
      %v3698 = vld [vmem:[#allocation6 + $0xc8] sm:$0xff]
      %v3699 = vld [vmem:[#allocation6 + $0xd0] sm:$0xff]
      %v3700 = vld [vmem:[#allocation6 + $0xd8] sm:$0xff]
      %v3701 = vld [vmem:[#allocation6 + $0xe0] sm:$0xff]
      %v3702 = vld [vmem:[#allocation6 + $0xe8] sm:$0xff]
      %v3703 = vld [vmem:[#allocation6 + $0xf0] sm:$0xff]
      %v3704 = vld [vmem:[#allocation6 + $0xf8] sm:$0xff]
      %v3705 = vld [vmem:[#allocation6 + $0x100] sm:$0xff]
      %v3706 = vld [vmem:[#allocation6 + $0x108] sm:$0xff]
      %v3707 = vld [vmem:[#allocation6 + $0x110] sm:$0xff]
      %v3708 = vld [vmem:[#allocation6 + $0x118] sm:$0xff]
      %v3709 = vld [vmem:[#allocation6 + $0x120] sm:$0xff]
      %v3710 = vld [vmem:[#allocation6 + $0x128] sm:$0xff]
      %v3711 = vld [vmem:[#allocation6 + $0x130] sm:$0xff]
      %v3712 = vld [vmem:[#allocation6 + $0x138] sm:$0xff]
      %v3713 = vld [vmem:[#allocation6 + $0x140] sm:$0xff]
      %v3714 = vld [vmem:[#allocation6 + $0x148] sm:$0xff]
      %v3715 = vld [vmem:[#allocation6 + $0x150] sm:$0xff]
      %v3716 = vld [vmem:[#allocation6 + $0x158] sm:$0xff]
      %v3717 = vld [vmem:[#allocation6 + $0x160] sm:$0xff]
      %v3718 = vld [vmem:[#allocation6 + $0x168] sm:$0xff]
      %v3719 = vld [vmem:[#allocation6 + $0x170] sm:$0xff]
      %v3720 = vld [vmem:[#allocation6 + $0x178] sm:$0xff]
      %v3721 = vld [vmem:[#allocation6 + $0x180] sm:$0xff]
      %v3722 = vld [vmem:[#allocation6 + $0x188] sm:$0xff]
      %v3723 = vld [vmem:[#allocation6 + $0x190] sm:$0xff]
      %v3724 = vld [vmem:[#allocation6 + $0x198] sm:$0xff]
      %v3725 = vld [vmem:[#allocation6 + $0x1a0] sm:$0xff]
      %v3726 = vld [vmem:[#allocation6 + $0x1a8] sm:$0xff]
      %v3727 = vld [vmem:[#allocation6 + $0x1b0] sm:$0xff]
      %v3728 = vld [vmem:[#allocation6 + $0x1b8] sm:$0xff]
      %v3729 = vld [vmem:[#allocation6 + $0x1c0] sm:$0xff]
      %v3730 = vld [vmem:[#allocation6 + $0x1c8] sm:$0xff]
      %v3731 = vld [vmem:[#allocation6 + $0x1d0] sm:$0xff]
      %v3732 = vld [vmem:[#allocation6 + $0x1d8] sm:$0xff]
      %v3733 = vld [vmem:[#allocation6 + $0x1e0] sm:$0xff]
      %v3734 = vld [vmem:[#allocation6 + $0x1e8] sm:$0xff]
      %v3735 = vld [vmem:[#allocation6 + $0x1f0] sm:$0xff]
      %v3736 = vld [vmem:[#allocation6 + $0x1f8] sm:$0xff]
      %v3737 = vld [vmem:[#allocation6 + $0x200] sm:$0xff]
      %v3738 = vld [vmem:[#allocation6 + $0x208] sm:$0xff]
      %v3739 = vld [vmem:[#allocation6 + $0x210] sm:$0xff]
      %v3740 = vld [vmem:[#allocation6 + $0x218] sm:$0xff]
      %v3741 = vld [vmem:[#allocation6 + $0x220] sm:$0xff]
      %v3742 = vld [vmem:[#allocation6 + $0x228] sm:$0xff]
      %v3743 = vld [vmem:[#allocation6 + $0x230] sm:$0xff]
      %v3744 = vld [vmem:[#allocation6 + $0x238] sm:$0xff]
      %v3745 = vld [vmem:[#allocation6 + $0x240] sm:$0xff]
      %v3746 = vld [vmem:[#allocation6 + $0x248] sm:$0xff]
      %v3747 = vld [vmem:[#allocation6 + $0x250] sm:$0xff]
      %v3748 = vld [vmem:[#allocation6 + $0x258] sm:$0xff]
      %v3749 = vld [vmem:[#allocation6 + $0x260] sm:$0xff]
      %v3750 = vld [vmem:[#allocation6 + $0x268] sm:$0xff]
      %v3751 = vld [vmem:[#allocation6 + $0x270] sm:$0xff]
      %v3752 = vld [vmem:[#allocation6 + $0x278] sm:$0xff]
      %3753 = vmatprep.subr.mxu0 %v3674
      %3754 = vmatpush1.msra.mxu0 %v3673
      %3755 = vmatprep.subr.mxu0 %v3679
      %3756 = vmatpush1.msra.mxu0 %v3678
      %3757 = vmatprep.subr.mxu0 %v3684
      %3758 = vmatpush1.msra.mxu0 %v3683
      %3759 = vmatprep.subr.mxu0 %v3689
      %3760 = vmatpush1.msra.mxu0 %v3688
      %3761 = vmatprep.subr.mxu0 %v3694
      %3762 = vmatpush1.msra.mxu0 %v3693
      %3763 = vmatprep.subr.mxu0 %v3699
      %3764 = vmatpush1.msra.mxu0 %v3698
      %3765 = vmatprep.subr.mxu0 %v3704
      %3766 = vmatpush1.msra.mxu0 %v3703
      %3767 = vmatprep.subr.mxu0 %v3709
      %3768 = vmatpush1.msra.mxu0 %v3708
      %3769 = vmatprep.subr.mxu0 %v3714
      %3770 = vmatpush1.msra.mxu0 %v3713
      %3771 = vmatprep.subr.mxu0 %v3719
      %3772 = vmatpush1.msra.mxu0 %v3718
      %3773 = vmatprep.subr.mxu0 %v3724
      %3774 = vmatpush1.msra.mxu0 %v3723
      %3775 = vmatprep.subr.mxu0 %v3729
      %3776 = vmatpush1.msra.mxu0 %v3728
      %3777 = vmatprep.subr.mxu0 %v3734
      %3778 = vmatpush1.msra.mxu0 %v3733
      %3779 = vmatprep.subr.mxu0 %v3739
      %3780 = vmatpush1.msra.mxu0 %v3738
      %3781 = vmatprep.subr.mxu0 %v3744
      %3782 = vmatpush1.msra.mxu0 %v3743
      %3783 = vmatprep.subr.mxu0 %v3749
      %3784 = vmatpush1.msra.mxu0 %v3748
      %3785 = vmatprep.subr.mxu0 0.0
      %3786 = vmatpush1.msra.mxu0 0.0
      %3787 = vmatprep.subr.mxu0 0.0
      %3788 = vmatpush1.msra.mxu0 0.0
      %3789 = vmatprep.subr.mxu0 0.0
      %3790 = vmatpush1.msra.mxu0 0.0
      %3791 = vmatprep.subr.mxu0 0.0
      %3792 = vmatpush1.msra.mxu0 0.0
      %3793 = vmatprep.subr.mxu0 0.0
      %3794 = vmatpush1.msra.mxu0 0.0
      %3795 = vmatprep.subr.mxu0 0.0
      %3796 = vmatpush1.msra.mxu0 0.0
      %3797 = vmatprep.subr.mxu0 0.0
      %3798 = vmatpush1.msra.mxu0 0.0
      %3799 = vmatprep.subr.mxu0 0.0
      %3800 = vmatpush1.msra.mxu0 0.0
      %3801 = vmatprep.subr.mxu0 0.0
      %3802 = vmatpush1.msra.mxu0 0.0
      %3803 = vmatprep.subr.mxu0 0.0
      %3804 = vmatpush1.msra.mxu0 0.0
      %3805 = vmatprep.subr.mxu0 0.0
      %3806 = vmatpush1.msra.mxu0 0.0
      %3807 = vmatprep.subr.mxu0 0.0
      %3808 = vmatpush1.msra.mxu0 0.0
      %3809 = vmatprep.subr.mxu0 0.0
      %3810 = vmatpush1.msra.mxu0 0.0
      %3811 = vmatprep.subr.mxu0 0.0
      %3812 = vmatpush1.msra.mxu0 0.0
      %3813 = vmatprep.subr.mxu0 0.0
      %3814 = vmatpush1.msra.mxu0 0.0
      %3815 = vmatprep.subr.mxu0 0.0
      %3816 = vmatpush1.msra.mxu0 0.0
      %3817 = vmatprep.mubr.f32.mxu0 0.0
      %3818 = vmatmul.mubr.f32.gmra.mrb[0].mxu0 %v3669
      %v3819 = vpop.f32.mrb[0].mxu0
      %v3820 = vadd.f32 0.0, %v3819
      %v3821 = vpop.f32.mrb[0].mxu0
      %v3822 = vadd.f32 0.0, %v3821
      %3823 = vdwg.mxu0
      %3824 = vmatprep.subr.mxu0 %v3676
      %3825 = vmatpush1.msra.mxu0 %v3675
      %3826 = vmatprep.subr.mxu0 %v3681
      %3827 = vmatpush1.msra.mxu0 %v3680
      %3828 = vmatprep.subr.mxu0 %v3686
      %3829 = vmatpush1.msra.mxu0 %v3685
      %3830 = vmatprep.subr.mxu0 %v3691
      %3831 = vmatpush1.msra.mxu0 %v3690
      %3832 = vmatprep.subr.mxu0 %v3696
      %3833 = vmatpush1.msra.mxu0 %v3695
      %3834 = vmatprep.subr.mxu0 %v3701
      %3835 = vmatpush1.msra.mxu0 %v3700
      %3836 = vmatprep.subr.mxu0 %v3706
      %3837 = vmatpush1.msra.mxu0 %v3705
      %3838 = vmatprep.subr.mxu0 %v3711
      %3839 = vmatpush1.msra.mxu0 %v3710
      %3840 = vmatprep.subr.mxu0 %v3716
      %3841 = vmatpush1.msra.mxu0 %v3715
      %3842 = vmatprep.subr.mxu0 %v3721
      %3843 = vmatpush1.msra.mxu0 %v3720
      %3844 = vmatprep.subr.mxu0 %v3726
      %3845 = vmatpush1.msra.mxu0 %v3725
      %3846 = vmatprep.subr.mxu0 %v3731
      %3847 = vmatpush1.msra.mxu0 %v3730
      %3848 = vmatprep.subr.mxu0 %v3736
      %3849 = vmatpush1.msra.mxu0 %v3735
      %3850 = vmatprep.subr.mxu0 %v3741
      %3851 = vmatpush1.msra.mxu0 %v3740
      %3852 = vmatprep.subr.mxu0 %v3746
      %3853 = vmatpush1.msra.mxu0 %v3745
      %3854 = vmatprep.subr.mxu0 %v3751
      %3855 = vmatpush1.msra.mxu0 %v3750
      %3856 = vmatprep.subr.mxu0 0.0
      %3857 = vmatpush1.msra.mxu0 0.0
      %3858 = vmatprep.subr.mxu0 0.0
      %3859 = vmatpush1.msra.mxu0 0.0
      %3860 = vmatprep.subr.mxu0 0.0
      %3861 = vmatpush1.msra.mxu0 0.0
      %3862 = vmatprep.subr.mxu0 0.0
      %3863 = vmatpush1.msra.mxu0 0.0
      %3864 = vmatprep.subr.mxu0 0.0
      %3865 = vmatpush1.msra.mxu0 0.0
      %3866 = vmatprep.subr.mxu0 0.0
      %3867 = vmatpush1.msra.mxu0 0.0
      %3868 = vmatprep.subr.mxu0 0.0
      %3869 = vmatpush1.msra.mxu0 0.0
      %3870 = vmatprep.subr.mxu0 0.0
      %3871 = vmatpush1.msra.mxu0 0.0
      %3872 = vmatprep.subr.mxu0 0.0
      %3873 = vmatpush1.msra.mxu0 0.0
      %3874 = vmatprep.subr.mxu0 0.0
      %3875 = vmatpush1.msra.mxu0 0.0
      %3876 = vmatprep.subr.mxu0 0.0
      %3877 = vmatpush1.msra.mxu0 0.0
      %3878 = vmatprep.subr.mxu0 0.0
      %3879 = vmatpush1.msra.mxu0 0.0
      %3880 = vmatprep.subr.mxu0 0.0
      %3881 = vmatpush1.msra.mxu0 0.0
      %3882 = vmatprep.subr.mxu0 0.0
      %3883 = vmatpush1.msra.mxu0 0.0
      %3884 = vmatprep.subr.mxu0 0.0
      %3885 = vmatpush1.msra.mxu0 0.0
      %3886 = vmatprep.subr.mxu0 0.0
      %3887 = vmatpush1.msra.mxu0 0.0
      %3888 = vmatprep.mubr.f32.mxu0 0.0
      %3889 = vmatmul.mubr.f32.gmra.mrb[0].mxu0 %v3669
      %v3890 = vpop.f32.mrb[0].mxu0
      %v3891 = vadd.f32 0.0, %v3890
      %v3892 = vpop.f32.mrb[0].mxu0
      %v3893 = vadd.f32 0.0, %v3892
      %3894 = vdwg.mxu0
      %3895 = vmatprep.subr.mxu0 0.0
      %3896 = vmatpush1.msra.mxu0 %v3677
      %3897 = vmatprep.subr.mxu0 0.0
      %3898 = vmatpush1.msra.mxu0 %v3682
      %3899 = vmatprep.subr.mxu0 0.0
      %3900 = vmatpush1.msra.mxu0 %v3687
      %3901 = vmatprep.subr.mxu0 0.0
      %3902 = vmatpush1.msra.mxu0 %v3692
      %3903 = vmatprep.subr.mxu0 0.0
      %3904 = vmatpush1.msra.mxu0 %v3697
      %3905 = vmatprep.subr.mxu0 0.0
      %3906 = vmatpush1.msra.mxu0 %v3702
      %3907 = vmatprep.subr.mxu0 0.0
      %3908 = vmatpush1.msra.mxu0 %v3707
      %3909 = vmatprep.subr.mxu0 0.0
      %3910 = vmatpush1.msra.mxu0 %v3712
      %3911 = vmatprep.subr.mxu0 0.0
      %3912 = vmatpush1.msra.mxu0 %v3717
      %3913 = vmatprep.subr.mxu0 0.0
      %3914 = vmatpush1.msra.mxu0 %v3722
      %3915 = vmatprep.subr.mxu0 0.0
      %3916 = vmatpush1.msra.mxu0 %v3727
      %3917 = vmatprep.subr.mxu0 0.0
      %3918 = vmatpush1.msra.mxu0 %v3732
      %3919 = vmatprep.subr.mxu0 0.0
      %3920 = vmatpush1.msra.mxu0 %v3737
      %3921 = vmatprep.subr.mxu0 0.0
      %3922 = vmatpush1.msra.mxu0 %v3742
      %3923 = vmatprep.subr.mxu0 0.0
      %3924 = vmatpush1.msra.mxu0 %v3747
      %3925 = vmatprep.subr.mxu0 0.0
      %3926 = vmatpush1.msra.mxu0 %v3752
      %3927 = vmatprep.subr.mxu0 0.0
      %3928 = vmatpush1.msra.mxu0 0.0
      %3929 = vmatprep.subr.mxu0 0.0
      %3930 = vmatpush1.msra.mxu0 0.0
      %3931 = vmatprep.subr.mxu0 0.0
      %3932 = vmatpush1.msra.mxu0 0.0
      %3933 = vmatprep.subr.mxu0 0.0
      %3934 = vmatpush1.msra.mxu0 0.0
      %3935 = vmatprep.subr.mxu0 0.0
      %3936 = vmatpush1.msra.mxu0 0.0
      %3937 = vmatprep.subr.mxu0 0.0
      %3938 = vmatpush1.msra.mxu0 0.0
      %3939 = vmatprep.subr.mxu0 0.0
      %3940 = vmatpush1.msra.mxu0 0.0
      %3941 = vmatprep.subr.mxu0 0.0
      %3942 = vmatpush1.msra.mxu0 0.0
      %3943 = vmatprep.subr.mxu0 0.0
      %3944 = vmatpush1.msra.mxu0 0.0
      %3945 = vmatprep.subr.mxu0 0.0
      %3946 = vmatpush1.msra.mxu0 0.0
      %3947 = vmatprep.subr.mxu0 0.0
      %3948 = vmatpush1.msra.mxu0 0.0
      %3949 = vmatprep.subr.mxu0 0.0
      %3950 = vmatpush1.msra.mxu0 0.0
      %3951 = vmatprep.subr.mxu0 0.0
      %3952 = vmatpush1.msra.mxu0 0.0
      %3953 = vmatprep.subr.mxu0 0.0
      %3954 = vmatpush1.msra.mxu0 0.0
      %3955 = vmatprep.subr.mxu0 0.0
      %3956 = vmatpush1.msra.mxu0 0.0
      %3957 = vmatprep.subr.mxu0 0.0
      %3958 = vmatpush1.msra.mxu0 0.0
      %3959 = vmatprep.mubr.f32.mxu0 0.0
      %3960 = vmatmul.mubr.f32.gmra.mrb[0].mxu0 %v3669
      %v3961 = vpop.f32.mrb[0].mxu0
      %v3962 = vadd.f32 0.0, %v3961
      %v3963 = vpop.f32.mrb[0].mxu0
      %3964 = vdwg.mxu0
      %v3965 = vadd.f32 %v3820, %v89
      %v3966 = vsel %vm301, %v3965, -inf
      %3967 = vmax.xlane.f32.xlu0 %v3966
      %v3968 = vpop.xlane.xlu0 %3967
      %v3969 = vsub.f32 %v3965, %v3968
      %v3970 = vmul.f32 %v3969, 1.442695
      %v3971 = vpow.pop %v3970
      %v3972 = vld [vmem:[%s1] sm:$0xff]
      %v3973 = vld [vmem:[%s1 + $0x8] sm:$0xff]
      %v3974 = vld [vmem:[%s1 + $0x10] sm:$0xff]
      %v3975 = vld [vmem:[%s1 + $0x18] sm:$0xff]
      %v3976 = vld [vmem:[%s1 + $0x20] sm:$0xff]
      %v3977 = vld [vmem:[%s1 + $0x28] sm:$0xff]
      %v3978 = vld [vmem:[%s1 + $0x30] sm:$0xff]
      %v3979 = vld [vmem:[%s1 + $0x38] sm:$0xff]
      %v3981 = vsel %vm316, %v3971, 0
      %3983 = vmatprep.subr.mxu0 0.0
      %3984 = vmatpush1.msra.mxu0 %v3972
      %3985 = vmatprep.subr.mxu0 0.0
      %3986 = vmatpush1.msra.mxu0 %v3973
      %3987 = vmatprep.subr.mxu0 0.0
      %3988 = vmatpush1.msra.mxu0 %v3974
      %3989 = vmatprep.subr.mxu0 0.0
      %3990 = vmatpush1.msra.mxu0 %v3975
      %3991 = vmatprep.subr.mxu0 0.0
      %3992 = vmatpush1.msra.mxu0 %v3976
      %3993 = vmatprep.subr.mxu0 0.0
      %3994 = vmatpush1.msra.mxu0 %v3977
      %3995 = vmatprep.subr.mxu0 0.0
      %3996 = vmatpush1.msra.mxu0 %v3978
      %3997 = vmatprep.subr.mxu0 0.0
      %3998 = vmatpush1.msra.mxu0 %v3979
      %3999 = vmatprep.subr.mxu0 0.0
      %4000 = vmatpush1.msra.mxu0 0.0
      %4001 = vmatprep.subr.mxu0 0.0
      %4002 = vmatpush1.msra.mxu0 0.0
      %4003 = vmatprep.subr.mxu0 0.0
      %4004 = vmatpush1.msra.mxu0 0.0
      %4005 = vmatprep.subr.mxu0 0.0
      %4006 = vmatpush1.msra.mxu0 0.0
      %4007 = vmatprep.subr.mxu0 0.0
      %4008 = vmatpush1.msra.mxu0 0.0
      %4009 = vmatprep.subr.mxu0 0.0
      %4010 = vmatpush1.msra.mxu0 0.0
      %4011 = vmatprep.subr.mxu0 0.0
      %4012 = vmatpush1.msra.mxu0 0.0
      %4013 = vmatprep.subr.mxu0 0.0
      %4014 = vmatpush1.msra.mxu0 0.0
      %4015 = vmatprep.subr.mxu0 0.0
      %4016 = vmatpush1.msra.mxu0 0.0
      %4017 = vmatprep.subr.mxu0 0.0
      %4018 = vmatpush1.msra.mxu0 0.0
      %4019 = vmatprep.subr.mxu0 0.0
      %4020 = vmatpush1.msra.mxu0 0.0
      %4021 = vmatprep.subr.mxu0 0.0
      %4022 = vmatpush1.msra.mxu0 0.0
      %4023 = vmatprep.subr.mxu0 0.0
      %4024 = vmatpush1.msra.mxu0 0.0
      %4025 = vmatprep.subr.mxu0 0.0
      %4026 = vmatpush1.msra.mxu0 0.0
      %4027 = vmatprep.subr.mxu0 0.0
      %4028 = vmatpush1.msra.mxu0 0.0
      %4029 = vmatprep.subr.mxu0 0.0
      %4030 = vmatpush1.msra.mxu0 0.0
      %4031 = vmatprep.subr.mxu0 0.0
      %4032 = vmatpush1.msra.mxu0 0.0
      %4033 = vmatprep.subr.mxu0 0.0
      %4034 = vmatpush1.msra.mxu0 0.0
      %4035 = vmatprep.subr.mxu0 0.0
      %4036 = vmatpush1.msra.mxu0 0.0
      %4037 = vmatprep.subr.mxu0 0.0
      %4038 = vmatpush1.msra.mxu0 0.0
      %4039 = vmatprep.subr.mxu0 0.0
      %4040 = vmatpush1.msra.mxu0 0.0
      %4041 = vmatprep.subr.mxu0 0.0
      %4042 = vmatpush1.msra.mxu0 0.0
      %4043 = vmatprep.subr.mxu0 0.0
      %4044 = vmatpush1.msra.mxu0 0.0
      %4045 = vmatprep.subr.mxu0 0.0
      %4046 = vmatpush1.msra.mxu0 0.0
      %4047 = vmatprep.mubr.f32.mxu0 0.0
      %4048 = vmatmul.mubr.f32.gmra.mrb[0].mxu0 %v3981
      %v4049 = vpop.f32.mrb[0].mxu0
      %v4050 = vadd.f32 0.0, %v4049
      %v4051 = vpop.f32.mrb[0].mxu0
      %4052 = vdwg.mxu0
      %v4053 = vsel %vm301, %v3971, 0.0
      %4054 = vadd.xlane.f32.xlu0 %v4053
      %v4055 = vpop.xlane.xlu0 %4054
      %v4056 = vrcp.pop %v4055
      %v4057 = vmul.f32 %v4050, %v4056
      %v4058 = vadd.f32 %v3822, %v4057
      %v4059 = vadd.f32 %v4058, %v90
      %v4060 = vmax.f32 %v4059, 0.0
      %v4061 = vld [vmem:[#allocation8] sm:$0xff]
      %v4062 = vld [vmem:[#allocation8 + $0x8] sm:$0xff]
      %v4063 = vld [vmem:[#allocation8 + $0x10] sm:$0xff]
      %v4064 = vld [vmem:[#allocation8 + $0x18] sm:$0xff]
      %v4065 = vld [vmem:[#allocation8 + $0x20] sm:$0xff]
      %v4066 = vld [vmem:[#allocation8 + $0x28] sm:$0xff]
      %v4067 = vld [vmem:[#allocation8 + $0x30] sm:$0xff]
      %v4068 = vld [vmem:[#allocation8 + $0x38] sm:$0xff]
      %v4069 = vld [vmem:[#allocation8 + $0x40] sm:$0xff]
      %v4070 = vld [vmem:[#allocation8 + $0x48] sm:$0xff]
      %v4071 = vld [vmem:[#allocation8 + $0x50] sm:$0xff]
      %v4072 = vld [vmem:[#allocation8 + $0x58] sm:$0xff]
      %v4073 = vld [vmem:[#allocation8 + $0x60] sm:$0xff]
      %v4074 = vld [vmem:[#allocation8 + $0x68] sm:$0xff]
      %v4075 = vld [vmem:[#allocation8 + $0x70] sm:$0xff]
      %v4076 = vld [vmem:[#allocation8 + $0x78] sm:$0xff]
      %v4077 = vld [vmem:[#allocation8 + $0x80] sm:$0xff]
      %v4078 = vld [vmem:[#allocation8 + $0x88] sm:$0xff]
      %v4079 = vld [vmem:[#allocation8 + $0x90] sm:$0xff]
      %v4080 = vld [vmem:[#allocation8 + $0x98] sm:$0xff]
      %v4081 = vld [vmem:[#allocation8 + $0xa0] sm:$0xff]
      %v4082 = vld [vmem:[#allocation8 + $0xa8] sm:$0xff]
      %v4083 = vld [vmem:[#allocation8 + $0xb0] sm:$0xff]
      %v4084 = vld [vmem:[#allocation8 + $0xb8] sm:$0xff]
      %v4085 = vld [vmem:[#allocation8 + $0xc0] sm:$0xff]
      %v4086 = vld [vmem:[#allocation8 + $0xc8] sm:$0xff]
      %v4087 = vld [vmem:[#allocation8 + $0xd0] sm:$0xff]
      %v4088 = vld [vmem:[#allocation8 + $0xd8] sm:$0xff]
      %v4089 = vld [vmem:[#allocation8 + $0xe0] sm:$0xff]
      %v4090 = vld [vmem:[#allocation8 + $0xe8] sm:$0xff]
      %v4091 = vld [vmem:[#allocation8 + $0xf0] sm:$0xff]
      %v4092 = vld [vmem:[#allocation8 + $0xf8] sm:$0xff]
      %v4093 = vld [vmem:[#allocation8 + $0x100] sm:$0xff]
      %v4094 = vld [vmem:[#allocation8 + $0x108] sm:$0xff]
      %v4095 = vld [vmem:[#allocation8 + $0x110] sm:$0xff]
      %v4096 = vld [vmem:[#allocation8 + $0x118] sm:$0xff]
      %v4097 = vld [vmem:[#allocation8 + $0x120] sm:$0xff]
      %v4098 = vld [vmem:[#allocation8 + $0x128] sm:$0xff]
      %v4099 = vld [vmem:[#allocation8 + $0x130] sm:$0xff]
      %v4100 = vld [vmem:[#allocation8 + $0x138] sm:$0xff]
      %v4101 = vld [vmem:[#allocation8 + $0x140] sm:$0xff]
      %v4102 = vld [vmem:[#allocation8 + $0x148] sm:$0xff]
      %v4103 = vld [vmem:[#allocation8 + $0x150] sm:$0xff]
      %v4104 = vld [vmem:[#allocation8 + $0x158] sm:$0xff]
      %v4105 = vld [vmem:[#allocation8 + $0x160] sm:$0xff]
      %v4106 = vld [vmem:[#allocation8 + $0x168] sm:$0xff]
      %v4107 = vld [vmem:[#allocation8 + $0x170] sm:$0xff]
      %v4108 = vld [vmem:[#allocation8 + $0x178] sm:$0xff]
      %4109 = vmatprep.subr.mxu0 %v4062
      %4110 = vmatpush1.msra.mxu0 %v4061
      %4111 = vmatprep.subr.mxu0 %v4065
      %4112 = vmatpush1.msra.mxu0 %v4064
      %4113 = vmatprep.subr.mxu0 %v4068
      %4114 = vmatpush1.msra.mxu0 %v4067
      %4115 = vmatprep.subr.mxu0 %v4071
      %4116 = vmatpush1.msra.mxu0 %v4070
      %4117 = vmatprep.subr.mxu0 %v4074
      %4118 = vmatpush1.msra.mxu0 %v4073
      %4119 = vmatprep.subr.mxu0 %v4077
      %4120 = vmatpush1.msra.mxu0 %v4076
      %4121 = vmatprep.subr.mxu0 %v4080
      %4122 = vmatpush1.msra.mxu0 %v4079
      %4123 = vmatprep.subr.mxu0 %v4083
      %4124 = vmatpush1.msra.mxu0 %v4082
      %4125 = vmatprep.subr.mxu0 %v4086
      %4126 = vmatpush1.msra.mxu0 %v4085
      %4127 = vmatprep.subr.mxu0 %v4089
      %4128 = vmatpush1.msra.mxu0 %v4088
      %4129 = vmatprep.subr.mxu0 %v4092
      %4130 = vmatpush1.msra.mxu0 %v4091
      %4131 = vmatprep.subr.mxu0 %v4095
      %4132 = vmatpush1.msra.mxu0 %v4094
      %4133 = vmatprep.subr.mxu0 %v4098
      %4134 = vmatpush1.msra.mxu0 %v4097
      %4135 = vmatprep.subr.mxu0 %v4101
      %4136 = vmatpush1.msra.mxu0 %v4100
      %4137 = vmatprep.subr.mxu0 %v4104
      %4138 = vmatpush1.msra.mxu0 %v4103
      %4139 = vmatprep.subr.mxu0 %v4107
      %4140 = vmatpush1.msra.mxu0 %v4106
      %4141 = vmatprep.subr.mxu0 0.0
      %4142 = vmatpush1.msra.mxu0 0.0
      %4143 = vmatprep.subr.mxu0 0.0
      %4144 = vmatpush1.msra.mxu0 0.0
      %4145 = vmatprep.subr.mxu0 0.0
      %4146 = vmatpush1.msra.mxu0 0.0
      %4147 = vmatprep.subr.mxu0 0.0
      %4148 = vmatpush1.msra.mxu0 0.0
      %4149 = vmatprep.subr.mxu0 0.0
      %4150 = vmatpush1.msra.mxu0 0.0
      %4151 = vmatprep.subr.mxu0 0.0
      %4152 = vmatpush1.msra.mxu0 0.0
      %4153 = vmatprep.subr.mxu0 0.0
      %4154 = vmatpush1.msra.mxu0 0.0
      %4155 = vmatprep.subr.mxu0 0.0
      %4156 = vmatpush1.msra.mxu0 0.0
      %4157 = vmatprep.subr.mxu0 0.0
      %4158 = vmatpush1.msra.mxu0 0.0
      %4159 = vmatprep.subr.mxu0 0.0
      %4160 = vmatpush1.msra.mxu0 0.0
      %4161 = vmatprep.subr.mxu0 0.0
      %4162 = vmatpush1.msra.mxu0 0.0
      %4163 = vmatprep.subr.mxu0 0.0
      %4164 = vmatpush1.msra.mxu0 0.0
      %4165 = vmatprep.subr.mxu0 0.0
      %4166 = vmatpush1.msra.mxu0 0.0
      %4167 = vmatprep.subr.mxu0 0.0
      %4168 = vmatpush1.msra.mxu0 0.0
      %4169 = vmatprep.subr.mxu0 0.0
      %4170 = vmatpush1.msra.mxu0 0.0
      %4171 = vmatprep.subr.mxu0 0.0
      %4172 = vmatpush1.msra.mxu0 0.0
      %4173 = vmatprep.mubr.f32.mxu0 0.0
      %4174 = vmatmul.mubr.f32.gmra.mrb[0].mxu0 %v4060
      %v4175 = vpop.f32.mrb[0].mxu0
      %v4176 = vadd.f32 %v450, %v4175
      %v4177 = vpop.f32.mrb[0].mxu0
      %v4178 = vadd.f32 %v454, %v4177
      %4179 = vdwg.mxu0
      %4180 = vmatprep.subr.mxu0 0.0
      %4181 = vmatpush1.msra.mxu0 %v4063
      %4182 = vmatprep.subr.mxu0 0.0
      %4183 = vmatpush1.msra.mxu0 %v4066
      %4184 = vmatprep.subr.mxu0 0.0
      %4185 = vmatpush1.msra.mxu0 %v4069
      %4186 = vmatprep.subr.mxu0 0.0
      %4187 = vmatpush1.msra.mxu0 %v4072
      %4188 = vmatprep.subr.mxu0 0.0
      %4189 = vmatpush1.msra.mxu0 %v4075
      %4190 = vmatprep.subr.mxu0 0.0
      %4191 = vmatpush1.msra.mxu0 %v4078
      %4192 = vmatprep.subr.mxu0 0.0
      %4193 = vmatpush1.msra.mxu0 %v4081
      %4194 = vmatprep.subr.mxu0 0.0
      %4195 = vmatpush1.msra.mxu0 %v4084
      %4196 = vmatprep.subr.mxu0 0.0
      %4197 = vmatpush1.msra.mxu0 %v4087
      %4198 = vmatprep.subr.mxu0 0.0
      %4199 = vmatpush1.msra.mxu0 %v4090
      %4200 = vmatprep.subr.mxu0 0.0
      %4201 = vmatpush1.msra.mxu0 %v4093
      %4202 = vmatprep.subr.mxu0 0.0
      %4203 = vmatpush1.msra.mxu0 %v4096
      %4204 = vmatprep.subr.mxu0 0.0
      %4205 = vmatpush1.msra.mxu0 %v4099
      %4206 = vmatprep.subr.mxu0 0.0
      %4207 = vmatpush1.msra.mxu0 %v4102
      %4208 = vmatprep.subr.mxu0 0.0
      %4209 = vmatpush1.msra.mxu0 %v4105
      %4210 = vmatprep.subr.mxu0 0.0
      %4211 = vmatpush1.msra.mxu0 %v4108
      %4212 = vmatprep.subr.mxu0 0.0
      %4213 = vmatpush1.msra.mxu0 0.0
      %4214 = vmatprep.subr.mxu0 0.0
      %4215 = vmatpush1.msra.mxu0 0.0
      %4216 = vmatprep.subr.mxu0 0.0
      %4217 = vmatpush1.msra.mxu0 0.0
      %4218 = vmatprep.subr.mxu0 0.0
      %4219 = vmatpush1.msra.mxu0 0.0
      %4220 = vmatprep.subr.mxu0 0.0
      %4221 = vmatpush1.msra.mxu0 0.0
      %4222 = vmatprep.subr.mxu0 0.0
      %4223 = vmatpush1.msra.mxu0 0.0
      %4224 = vmatprep.subr.mxu0 0.0
      %4225 = vmatpush1.msra.mxu0 0.0
      %4226 = vmatprep.subr.mxu0 0.0
      %4227 = vmatpush1.msra.mxu0 0.0
      %4228 = vmatprep.subr.mxu0 0.0
      %4229 = vmatpush1.msra.mxu0 0.0
      %4230 = vmatprep.subr.mxu0 0.0
      %4231 = vmatpush1.msra.mxu0 0.0
      %4232 = vmatprep.subr.mxu0 0.0
      %4233 = vmatpush1.msra.mxu0 0.0
      %4234 = vmatprep.subr.mxu0 0.0
      %4235 = vmatpush1.msra.mxu0 0.0
      %4236 = vmatprep.subr.mxu0 0.0
      %4237 = vmatpush1.msra.mxu0 0.0
      %4238 = vmatprep.subr.mxu0 0.0
      %4239 = vmatpush1.msra.mxu0 0.0
      %4240 = vmatprep.subr.mxu0 0.0
      %4241 = vmatpush1.msra.mxu0 0.0
      %4242 = vmatprep.subr.mxu0 0.0
      %4243 = vmatpush1.msra.mxu0 0.0
      %4244 = vmatprep.mubr.f32.mxu0 0.0
      %4245 = vmatmul.mubr.f32.gmra.mrb[0].mxu0 %v4060
      %v4246 = vpop.f32.mrb[0].mxu0
      %v4247 = vadd.f32 %v458, %v4246
      %v4248 = vpop.f32.mrb[0].mxu0
      %4249 = vdwg.mxu0
      %v4250 = vadd.f32 %v3891, %v607
      %v4251 = vadd.f32 %v3893, %v611
      %v4252 = vadd.f32 %v3962, %v615
      %v4253 = vadd.f32 %v4176, %v4250
      %v4254 = vadd.f32 %v4178, %v4251
      %v4255 = vxor.u32 %v4253, 2147483648
      %v4256 = vxor.u32 %v4254, 2147483648
      %v4257 = vmul.f32 %v4255, 1.442695
      %v4258 = vpow.pop %v4257
      %v4259 = vmul.f32 %v4256, 1.442695
      %v4260 = vpow.pop %v4259
      %v4261 = vadd.f32 %v4258, 1.0
      %v4262 = vadd.f32 %v4260, 1.0
      %v4263 = vrcp.pop %v4261
      %v4264 = vmul.f32 1.0, %v4263
      %v4265 = vrcp.pop %v4262
      %v4266 = vmul.f32 1.0, %v4265
      %v4267 = vmul.f32 %v4264, %v4252
      %v4268 = vadd.f32 %v4247, %v4267
      %v4269 = vtanh.pop %v4268
      %v4270 = vsub.f32 1.0, %v4266
      %v4271 = vmul.f32 %v4270, %v4269
      %v4272 = vmul.f32 %v4266, %v3669
      %v4273 = vadd.f32 %v4271, %v4272
      %s4274 = scalar_lea.vmem [#allocation2], %s3672
      %4275 = vst [vmem:[%s4274] sm:$0x1] %v4273
      %s4276 = sadd.s32 %s651, 7
      %v4277 = vld [vmem:[#allocation6] sm:$0xff]
      %v4278 = vld [vmem:[#allocation6 + $0x8] sm:$0xff]
      %v4279 = vld [vmem:[#allocation6 + $0x10] sm:$0xff]
      %v4280 = vld [vmem:[#allocation6 + $0x18] sm:$0xff]
      %v4281 = vld [vmem:[#allocation6 + $0x20] sm:$0xff]
      %v4282 = vld [vmem:[#allocation6 + $0x28] sm:$0xff]
      %v4283 = vld [vmem:[#allocation6 + $0x30] sm:$0xff]
      %v4284 = vld [vmem:[#allocation6 + $0x38] sm:$0xff]
      %v4285 = vld [vmem:[#allocation6 + $0x40] sm:$0xff]
      %v4286 = vld [vmem:[#allocation6 + $0x48] sm:$0xff]
      %v4287 = vld [vmem:[#allocation6 + $0x50] sm:$0xff]
      %v4288 = vld [vmem:[#allocation6 + $0x58] sm:$0xff]
      %v4289 = vld [vmem:[#allocation6 + $0x60] sm:$0xff]
      %v4290 = vld [vmem:[#allocation6 + $0x68] sm:$0xff]
      %v4291 = vld [vmem:[#allocation6 + $0x70] sm:$0xff]
      %v4292 = vld [vmem:[#allocation6 + $0x78] sm:$0xff]
      %v4293 = vld [vmem:[#allocation6 + $0x80] sm:$0xff]
      %v4294 = vld [vmem:[#allocation6 + $0x88] sm:$0xff]
      %v4295 = vld [vmem:[#allocation6 + $0x90] sm:$0xff]
      %v4296 = vld [vmem:[#allocation6 + $0x98] sm:$0xff]
      %v4297 = vld [vmem:[#allocation6 + $0xa0] sm:$0xff]
      %v4298 = vld [vmem:[#allocation6 + $0xa8] sm:$0xff]
      %v4299 = vld [vmem:[#allocation6 + $0xb0] sm:$0xff]
      %v4300 = vld [vmem:[#allocation6 + $0xb8] sm:$0xff]
      %v4301 = vld [vmem:[#allocation6 + $0xc0] sm:$0xff]
      %v4302 = vld [vmem:[#allocation6 + $0xc8] sm:$0xff]
      %v4303 = vld [vmem:[#allocation6 + $0xd0] sm:$0xff]
      %v4304 = vld [vmem:[#allocation6 + $0xd8] sm:$0xff]
      %v4305 = vld [vmem:[#allocation6 + $0xe0] sm:$0xff]
      %v4306 = vld [vmem:[#allocation6 + $0xe8] sm:$0xff]
      %v4307 = vld [vmem:[#allocation6 + $0xf0] sm:$0xff]
      %v4308 = vld [vmem:[#allocation6 + $0xf8] sm:$0xff]
      %v4309 = vld [vmem:[#allocation6 + $0x100] sm:$0xff]
      %v4310 = vld [vmem:[#allocation6 + $0x108] sm:$0xff]
      %v4311 = vld [vmem:[#allocation6 + $0x110] sm:$0xff]
      %v4312 = vld [vmem:[#allocation6 + $0x118] sm:$0xff]
      %v4313 = vld [vmem:[#allocation6 + $0x120] sm:$0xff]
      %v4314 = vld [vmem:[#allocation6 + $0x128] sm:$0xff]
      %v4315 = vld [vmem:[#allocation6 + $0x130] sm:$0xff]
      %v4316 = vld [vmem:[#allocation6 + $0x138] sm:$0xff]
      %v4317 = vld [vmem:[#allocation6 + $0x140] sm:$0xff]
      %v4318 = vld [vmem:[#allocation6 + $0x148] sm:$0xff]
      %v4319 = vld [vmem:[#allocation6 + $0x150] sm:$0xff]
      %v4320 = vld [vmem:[#allocation6 + $0x158] sm:$0xff]
      %v4321 = vld [vmem:[#allocation6 + $0x160] sm:$0xff]
      %v4322 = vld [vmem:[#allocation6 + $0x168] sm:$0xff]
      %v4323 = vld [vmem:[#allocation6 + $0x170] sm:$0xff]
      %v4324 = vld [vmem:[#allocation6 + $0x178] sm:$0xff]
      %v4325 = vld [vmem:[#allocation6 + $0x180] sm:$0xff]
      %v4326 = vld [vmem:[#allocation6 + $0x188] sm:$0xff]
      %v4327 = vld [vmem:[#allocation6 + $0x190] sm:$0xff]
      %v4328 = vld [vmem:[#allocation6 + $0x198] sm:$0xff]
      %v4329 = vld [vmem:[#allocation6 + $0x1a0] sm:$0xff]
      %v4330 = vld [vmem:[#allocation6 + $0x1a8] sm:$0xff]
      %v4331 = vld [vmem:[#allocation6 + $0x1b0] sm:$0xff]
      %v4332 = vld [vmem:[#allocation6 + $0x1b8] sm:$0xff]
      %v4333 = vld [vmem:[#allocation6 + $0x1c0] sm:$0xff]
      %v4334 = vld [vmem:[#allocation6 + $0x1c8] sm:$0xff]
      %v4335 = vld [vmem:[#allocation6 + $0x1d0] sm:$0xff]
      %v4336 = vld [vmem:[#allocation6 + $0x1d8] sm:$0xff]
      %v4337 = vld [vmem:[#allocation6 + $0x1e0] sm:$0xff]
      %v4338 = vld [vmem:[#allocation6 + $0x1e8] sm:$0xff]
      %v4339 = vld [vmem:[#allocation6 + $0x1f0] sm:$0xff]
      %v4340 = vld [vmem:[#allocation6 + $0x1f8] sm:$0xff]
      %v4341 = vld [vmem:[#allocation6 + $0x200] sm:$0xff]
      %v4342 = vld [vmem:[#allocation6 + $0x208] sm:$0xff]
      %v4343 = vld [vmem:[#allocation6 + $0x210] sm:$0xff]
      %v4344 = vld [vmem:[#allocation6 + $0x218] sm:$0xff]
      %v4345 = vld [vmem:[#allocation6 + $0x220] sm:$0xff]
      %v4346 = vld [vmem:[#allocation6 + $0x228] sm:$0xff]
      %v4347 = vld [vmem:[#allocation6 + $0x230] sm:$0xff]
      %v4348 = vld [vmem:[#allocation6 + $0x238] sm:$0xff]
      %v4349 = vld [vmem:[#allocation6 + $0x240] sm:$0xff]
      %v4350 = vld [vmem:[#allocation6 + $0x248] sm:$0xff]
      %v4351 = vld [vmem:[#allocation6 + $0x250] sm:$0xff]
      %v4352 = vld [vmem:[#allocation6 + $0x258] sm:$0xff]
      %v4353 = vld [vmem:[#allocation6 + $0x260] sm:$0xff]
      %v4354 = vld [vmem:[#allocation6 + $0x268] sm:$0xff]
      %v4355 = vld [vmem:[#allocation6 + $0x270] sm:$0xff]
      %v4356 = vld [vmem:[#allocation6 + $0x278] sm:$0xff]
      %4357 = vmatprep.subr.mxu0 %v4278
      %4358 = vmatpush1.msra.mxu0 %v4277
      %4359 = vmatprep.subr.mxu0 %v4283
      %4360 = vmatpush1.msra.mxu0 %v4282
      %4361 = vmatprep.subr.mxu0 %v4288
      %4362 = vmatpush1.msra.mxu0 %v4287
      %4363 = vmatprep.subr.mxu0 %v4293
      %4364 = vmatpush1.msra.mxu0 %v4292
      %4365 = vmatprep.subr.mxu0 %v4298
      %4366 = vmatpush1.msra.mxu0 %v4297
      %4367 = vmatprep.subr.mxu0 %v4303
      %4368 = vmatpush1.msra.mxu0 %v4302
      %4369 = vmatprep.subr.mxu0 %v4308
      %4370 = vmatpush1.msra.mxu0 %v4307
      %4371 = vmatprep.subr.mxu0 %v4313
      %4372 = vmatpush1.msra.mxu0 %v4312
      %4373 = vmatprep.subr.mxu0 %v4318
      %4374 = vmatpush1.msra.mxu0 %v4317
      %4375 = vmatprep.subr.mxu0 %v4323
      %4376 = vmatpush1.msra.mxu0 %v4322
      %4377 = vmatprep.subr.mxu0 %v4328
      %4378 = vmatpush1.msra.mxu0 %v4327
      %4379 = vmatprep.subr.mxu0 %v4333
      %4380 = vmatpush1.msra.mxu0 %v4332
      %4381 = vmatprep.subr.mxu0 %v4338
      %4382 = vmatpush1.msra.mxu0 %v4337
      %4383 = vmatprep.subr.mxu0 %v4343
      %4384 = vmatpush1.msra.mxu0 %v4342
      %4385 = vmatprep.subr.mxu0 %v4348
      %4386 = vmatpush1.msra.mxu0 %v4347
      %4387 = vmatprep.subr.mxu0 %v4353
      %4388 = vmatpush1.msra.mxu0 %v4352
      %4389 = vmatprep.subr.mxu0 0.0
      %4390 = vmatpush1.msra.mxu0 0.0
      %4391 = vmatprep.subr.mxu0 0.0
      %4392 = vmatpush1.msra.mxu0 0.0
      %4393 = vmatprep.subr.mxu0 0.0
      %4394 = vmatpush1.msra.mxu0 0.0
      %4395 = vmatprep.subr.mxu0 0.0
      %4396 = vmatpush1.msra.mxu0 0.0
      %4397 = vmatprep.subr.mxu0 0.0
      %4398 = vmatpush1.msra.mxu0 0.0
      %4399 = vmatprep.subr.mxu0 0.0
      %4400 = vmatpush1.msra.mxu0 0.0
      %4401 = vmatprep.subr.mxu0 0.0
      %4402 = vmatpush1.msra.mxu0 0.0
      %4403 = vmatprep.subr.mxu0 0.0
      %4404 = vmatpush1.msra.mxu0 0.0
      %4405 = vmatprep.subr.mxu0 0.0
      %4406 = vmatpush1.msra.mxu0 0.0
      %4407 = vmatprep.subr.mxu0 0.0
      %4408 = vmatpush1.msra.mxu0 0.0
      %4409 = vmatprep.subr.mxu0 0.0
      %4410 = vmatpush1.msra.mxu0 0.0
      %4411 = vmatprep.subr.mxu0 0.0
      %4412 = vmatpush1.msra.mxu0 0.0
      %4413 = vmatprep.subr.mxu0 0.0
      %4414 = vmatpush1.msra.mxu0 0.0
      %4415 = vmatprep.subr.mxu0 0.0
      %4416 = vmatpush1.msra.mxu0 0.0
      %4417 = vmatprep.subr.mxu0 0.0
      %4418 = vmatpush1.msra.mxu0 0.0
      %4419 = vmatprep.subr.mxu0 0.0
      %4420 = vmatpush1.msra.mxu0 0.0
      %4421 = vmatprep.mubr.f32.mxu0 0.0
      %4422 = vmatmul.mubr.f32.gmra.mrb[0].mxu0 %v4273
      %v4423 = vpop.f32.mrb[0].mxu0
      %v4424 = vadd.f32 0.0, %v4423
      %v4425 = vpop.f32.mrb[0].mxu0
      %v4426 = vadd.f32 0.0, %v4425
      %4427 = vdwg.mxu0
      %4428 = vmatprep.subr.mxu0 %v4280
      %4429 = vmatpush1.msra.mxu0 %v4279
      %4430 = vmatprep.subr.mxu0 %v4285
      %4431 = vmatpush1.msra.mxu0 %v4284
      %4432 = vmatprep.subr.mxu0 %v4290
      %4433 = vmatpush1.msra.mxu0 %v4289
      %4434 = vmatprep.subr.mxu0 %v4295
      %4435 = vmatpush1.msra.mxu0 %v4294
      %4436 = vmatprep.subr.mxu0 %v4300
      %4437 = vmatpush1.msra.mxu0 %v4299
      %4438 = vmatprep.subr.mxu0 %v4305
      %4439 = vmatpush1.msra.mxu0 %v4304
      %4440 = vmatprep.subr.mxu0 %v4310
      %4441 = vmatpush1.msra.mxu0 %v4309
      %4442 = vmatprep.subr.mxu0 %v4315
      %4443 = vmatpush1.msra.mxu0 %v4314
      %4444 = vmatprep.subr.mxu0 %v4320
      %4445 = vmatpush1.msra.mxu0 %v4319
      %4446 = vmatprep.subr.mxu0 %v4325
      %4447 = vmatpush1.msra.mxu0 %v4324
      %4448 = vmatprep.subr.mxu0 %v4330
      %4449 = vmatpush1.msra.mxu0 %v4329
      %4450 = vmatprep.subr.mxu0 %v4335
      %4451 = vmatpush1.msra.mxu0 %v4334
      %4452 = vmatprep.subr.mxu0 %v4340
      %4453 = vmatpush1.msra.mxu0 %v4339
      %4454 = vmatprep.subr.mxu0 %v4345
      %4455 = vmatpush1.msra.mxu0 %v4344
      %4456 = vmatprep.subr.mxu0 %v4350
      %4457 = vmatpush1.msra.mxu0 %v4349
      %4458 = vmatprep.subr.mxu0 %v4355
      %4459 = vmatpush1.msra.mxu0 %v4354
      %4460 = vmatprep.subr.mxu0 0.0
      %4461 = vmatpush1.msra.mxu0 0.0
      %4462 = vmatprep.subr.mxu0 0.0
      %4463 = vmatpush1.msra.mxu0 0.0
      %4464 = vmatprep.subr.mxu0 0.0
      %4465 = vmatpush1.msra.mxu0 0.0
      %4466 = vmatprep.subr.mxu0 0.0
      %4467 = vmatpush1.msra.mxu0 0.0
      %4468 = vmatprep.subr.mxu0 0.0
      %4469 = vmatpush1.msra.mxu0 0.0
      %4470 = vmatprep.subr.mxu0 0.0
      %4471 = vmatpush1.msra.mxu0 0.0
      %4472 = vmatprep.subr.mxu0 0.0
      %4473 = vmatpush1.msra.mxu0 0.0
      %4474 = vmatprep.subr.mxu0 0.0
      %4475 = vmatpush1.msra.mxu0 0.0
      %4476 = vmatprep.subr.mxu0 0.0
      %4477 = vmatpush1.msra.mxu0 0.0
      %4478 = vmatprep.subr.mxu0 0.0
      %4479 = vmatpush1.msra.mxu0 0.0
      %4480 = vmatprep.subr.mxu0 0.0
      %4481 = vmatpush1.msra.mxu0 0.0
      %4482 = vmatprep.subr.mxu0 0.0
      %4483 = vmatpush1.msra.mxu0 0.0
      %4484 = vmatprep.subr.mxu0 0.0
      %4485 = vmatpush1.msra.mxu0 0.0
      %4486 = vmatprep.subr.mxu0 0.0
      %4487 = vmatpush1.msra.mxu0 0.0
      %4488 = vmatprep.subr.mxu0 0.0
      %4489 = vmatpush1.msra.mxu0 0.0
      %4490 = vmatprep.subr.mxu0 0.0
      %4491 = vmatpush1.msra.mxu0 0.0
      %4492 = vmatprep.mubr.f32.mxu0 0.0
      %4493 = vmatmul.mubr.f32.gmra.mrb[0].mxu0 %v4273
      %v4494 = vpop.f32.mrb[0].mxu0
      %v4495 = vadd.f32 0.0, %v4494
      %v4496 = vpop.f32.mrb[0].mxu0
      %v4497 = vadd.f32 0.0, %v4496
      %4498 = vdwg.mxu0
      %4499 = vmatprep.subr.mxu0 0.0
      %4500 = vmatpush1.msra.mxu0 %v4281
      %4501 = vmatprep.subr.mxu0 0.0
      %4502 = vmatpush1.msra.mxu0 %v4286
      %4503 = vmatprep.subr.mxu0 0.0
      %4504 = vmatpush1.msra.mxu0 %v4291
      %4505 = vmatprep.subr.mxu0 0.0
      %4506 = vmatpush1.msra.mxu0 %v4296
      %4507 = vmatprep.subr.mxu0 0.0
      %4508 = vmatpush1.msra.mxu0 %v4301
      %4509 = vmatprep.subr.mxu0 0.0
      %4510 = vmatpush1.msra.mxu0 %v4306
      %4511 = vmatprep.subr.mxu0 0.0
      %4512 = vmatpush1.msra.mxu0 %v4311
      %4513 = vmatprep.subr.mxu0 0.0
      %4514 = vmatpush1.msra.mxu0 %v4316
      %4515 = vmatprep.subr.mxu0 0.0
      %4516 = vmatpush1.msra.mxu0 %v4321
      %4517 = vmatprep.subr.mxu0 0.0
      %4518 = vmatpush1.msra.mxu0 %v4326
      %4519 = vmatprep.subr.mxu0 0.0
      %4520 = vmatpush1.msra.mxu0 %v4331
      %4521 = vmatprep.subr.mxu0 0.0
      %4522 = vmatpush1.msra.mxu0 %v4336
      %4523 = vmatprep.subr.mxu0 0.0
      %4524 = vmatpush1.msra.mxu0 %v4341
      %4525 = vmatprep.subr.mxu0 0.0
      %4526 = vmatpush1.msra.mxu0 %v4346
      %4527 = vmatprep.subr.mxu0 0.0
      %4528 = vmatpush1.msra.mxu0 %v4351
      %4529 = vmatprep.subr.mxu0 0.0
      %4530 = vmatpush1.msra.mxu0 %v4356
      %4531 = vmatprep.subr.mxu0 0.0
      %4532 = vmatpush1.msra.mxu0 0.0
      %4533 = vmatprep.subr.mxu0 0.0
      %4534 = vmatpush1.msra.mxu0 0.0
      %4535 = vmatprep.subr.mxu0 0.0
      %4536 = vmatpush1.msra.mxu0 0.0
      %4537 = vmatprep.subr.mxu0 0.0
      %4538 = vmatpush1.msra.mxu0 0.0
      %4539 = vmatprep.subr.mxu0 0.0
      %4540 = vmatpush1.msra.mxu0 0.0
      %4541 = vmatprep.subr.mxu0 0.0
      %4542 = vmatpush1.msra.mxu0 0.0
      %4543 = vmatprep.subr.mxu0 0.0
      %4544 = vmatpush1.msra.mxu0 0.0
      %4545 = vmatprep.subr.mxu0 0.0
      %4546 = vmatpush1.msra.mxu0 0.0
      %4547 = vmatprep.subr.mxu0 0.0
      %4548 = vmatpush1.msra.mxu0 0.0
      %4549 = vmatprep.subr.mxu0 0.0
      %4550 = vmatpush1.msra.mxu0 0.0
      %4551 = vmatprep.subr.mxu0 0.0
      %4552 = vmatpush1.msra.mxu0 0.0
      %4553 = vmatprep.subr.mxu0 0.0
      %4554 = vmatpush1.msra.mxu0 0.0
      %4555 = vmatprep.subr.mxu0 0.0
      %4556 = vmatpush1.msra.mxu0 0.0
      %4557 = vmatprep.subr.mxu0 0.0
      %4558 = vmatpush1.msra.mxu0 0.0
      %4559 = vmatprep.subr.mxu0 0.0
      %4560 = vmatpush1.msra.mxu0 0.0
      %4561 = vmatprep.subr.mxu0 0.0
      %4562 = vmatpush1.msra.mxu0 0.0
      %4563 = vmatprep.mubr.f32.mxu0 0.0
      %4564 = vmatmul.mubr.f32.gmra.mrb[0].mxu0 %v4273
      %v4565 = vpop.f32.mrb[0].mxu0
      %v4566 = vadd.f32 0.0, %v4565
      %v4567 = vpop.f32.mrb[0].mxu0
      %4568 = vdwg.mxu0
      %v4569 = vadd.f32 %v4424, %v89
      %v4570 = vsel %vm301, %v4569, -inf
      %4571 = vmax.xlane.f32.xlu0 %v4570
      %v4572 = vpop.xlane.xlu0 %4571
      %v4573 = vsub.f32 %v4569, %v4572
      %v4574 = vmul.f32 %v4573, 1.442695
      %v4575 = vpow.pop %v4574
      %v4576 = vld [vmem:[%s1] sm:$0xff]
      %v4577 = vld [vmem:[%s1 + $0x8] sm:$0xff]
      %v4578 = vld [vmem:[%s1 + $0x10] sm:$0xff]
      %v4579 = vld [vmem:[%s1 + $0x18] sm:$0xff]
      %v4580 = vld [vmem:[%s1 + $0x20] sm:$0xff]
      %v4581 = vld [vmem:[%s1 + $0x28] sm:$0xff]
      %v4582 = vld [vmem:[%s1 + $0x30] sm:$0xff]
      %v4583 = vld [vmem:[%s1 + $0x38] sm:$0xff]
      %v4585 = vsel %vm316, %v4575, 0
      %4587 = vmatprep.subr.mxu0 0.0
      %4588 = vmatpush1.msra.mxu0 %v4576
      %4589 = vmatprep.subr.mxu0 0.0
      %4590 = vmatpush1.msra.mxu0 %v4577
      %4591 = vmatprep.subr.mxu0 0.0
      %4592 = vmatpush1.msra.mxu0 %v4578
      %4593 = vmatprep.subr.mxu0 0.0
      %4594 = vmatpush1.msra.mxu0 %v4579
      %4595 = vmatprep.subr.mxu0 0.0
      %4596 = vmatpush1.msra.mxu0 %v4580
      %4597 = vmatprep.subr.mxu0 0.0
      %4598 = vmatpush1.msra.mxu0 %v4581
      %4599 = vmatprep.subr.mxu0 0.0
      %4600 = vmatpush1.msra.mxu0 %v4582
      %4601 = vmatprep.subr.mxu0 0.0
      %4602 = vmatpush1.msra.mxu0 %v4583
      %4603 = vmatprep.subr.mxu0 0.0
      %4604 = vmatpush1.msra.mxu0 0.0
      %4605 = vmatprep.subr.mxu0 0.0
      %4606 = vmatpush1.msra.mxu0 0.0
      %4607 = vmatprep.subr.mxu0 0.0
      %4608 = vmatpush1.msra.mxu0 0.0
      %4609 = vmatprep.subr.mxu0 0.0
      %4610 = vmatpush1.msra.mxu0 0.0
      %4611 = vmatprep.subr.mxu0 0.0
      %4612 = vmatpush1.msra.mxu0 0.0
      %4613 = vmatprep.subr.mxu0 0.0
      %4614 = vmatpush1.msra.mxu0 0.0
      %4615 = vmatprep.subr.mxu0 0.0
      %4616 = vmatpush1.msra.mxu0 0.0
      %4617 = vmatprep.subr.mxu0 0.0
      %4618 = vmatpush1.msra.mxu0 0.0
      %4619 = vmatprep.subr.mxu0 0.0
      %4620 = vmatpush1.msra.mxu0 0.0
      %4621 = vmatprep.subr.mxu0 0.0
      %4622 = vmatpush1.msra.mxu0 0.0
      %4623 = vmatprep.subr.mxu0 0.0
      %4624 = vmatpush1.msra.mxu0 0.0
      %4625 = vmatprep.subr.mxu0 0.0
      %4626 = vmatpush1.msra.mxu0 0.0
      %4627 = vmatprep.subr.mxu0 0.0
      %4628 = vmatpush1.msra.mxu0 0.0
      %4629 = vmatprep.subr.mxu0 0.0
      %4630 = vmatpush1.msra.mxu0 0.0
      %4631 = vmatprep.subr.mxu0 0.0
      %4632 = vmatpush1.msra.mxu0 0.0
      %4633 = vmatprep.subr.mxu0 0.0
      %4634 = vmatpush1.msra.mxu0 0.0
      %4635 = vmatprep.subr.mxu0 0.0
      %4636 = vmatpush1.msra.mxu0 0.0
      %4637 = vmatprep.subr.mxu0 0.0
      %4638 = vmatpush1.msra.mxu0 0.0
      %4639 = vmatprep.subr.mxu0 0.0
      %4640 = vmatpush1.msra.mxu0 0.0
      %4641 = vmatprep.subr.mxu0 0.0
      %4642 = vmatpush1.msra.mxu0 0.0
      %4643 = vmatprep.subr.mxu0 0.0
      %4644 = vmatpush1.msra.mxu0 0.0
      %4645 = vmatprep.subr.mxu0 0.0
      %4646 = vmatpush1.msra.mxu0 0.0
      %4647 = vmatprep.subr.mxu0 0.0
      %4648 = vmatpush1.msra.mxu0 0.0
      %4649 = vmatprep.subr.mxu0 0.0
      %4650 = vmatpush1.msra.mxu0 0.0
      %4651 = vmatprep.mubr.f32.mxu0 0.0
      %4652 = vmatmul.mubr.f32.gmra.mrb[0].mxu0 %v4585
      %v4653 = vpop.f32.mrb[0].mxu0
      %v4654 = vadd.f32 0.0, %v4653
      %v4655 = vpop.f32.mrb[0].mxu0
      %4656 = vdwg.mxu0
      %v4657 = vsel %vm301, %v4575, 0.0
      %4658 = vadd.xlane.f32.xlu0 %v4657
      %v4659 = vpop.xlane.xlu0 %4658
      %v4660 = vrcp.pop %v4659
      %v4661 = vmul.f32 %v4654, %v4660
      %v4662 = vadd.f32 %v4426, %v4661
      %v4663 = vadd.f32 %v4662, %v90
      %v4664 = vmax.f32 %v4663, 0.0
      %v4665 = vld [vmem:[#allocation8] sm:$0xff]
      %v4666 = vld [vmem:[#allocation8 + $0x8] sm:$0xff]
      %v4667 = vld [vmem:[#allocation8 + $0x10] sm:$0xff]
      %v4668 = vld [vmem:[#allocation8 + $0x18] sm:$0xff]
      %v4669 = vld [vmem:[#allocation8 + $0x20] sm:$0xff]
      %v4670 = vld [vmem:[#allocation8 + $0x28] sm:$0xff]
      %v4671 = vld [vmem:[#allocation8 + $0x30] sm:$0xff]
      %v4672 = vld [vmem:[#allocation8 + $0x38] sm:$0xff]
      %v4673 = vld [vmem:[#allocation8 + $0x40] sm:$0xff]
      %v4674 = vld [vmem:[#allocation8 + $0x48] sm:$0xff]
      %v4675 = vld [vmem:[#allocation8 + $0x50] sm:$0xff]
      %v4676 = vld [vmem:[#allocation8 + $0x58] sm:$0xff]
      %v4677 = vld [vmem:[#allocation8 + $0x60] sm:$0xff]
      %v4678 = vld [vmem:[#allocation8 + $0x68] sm:$0xff]
      %v4679 = vld [vmem:[#allocation8 + $0x70] sm:$0xff]
      %v4680 = vld [vmem:[#allocation8 + $0x78] sm:$0xff]
      %v4681 = vld [vmem:[#allocation8 + $0x80] sm:$0xff]
      %v4682 = vld [vmem:[#allocation8 + $0x88] sm:$0xff]
      %v4683 = vld [vmem:[#allocation8 + $0x90] sm:$0xff]
      %v4684 = vld [vmem:[#allocation8 + $0x98] sm:$0xff]
      %v4685 = vld [vmem:[#allocation8 + $0xa0] sm:$0xff]
      %v4686 = vld [vmem:[#allocation8 + $0xa8] sm:$0xff]
      %v4687 = vld [vmem:[#allocation8 + $0xb0] sm:$0xff]
      %v4688 = vld [vmem:[#allocation8 + $0xb8] sm:$0xff]
      %v4689 = vld [vmem:[#allocation8 + $0xc0] sm:$0xff]
      %v4690 = vld [vmem:[#allocation8 + $0xc8] sm:$0xff]
      %v4691 = vld [vmem:[#allocation8 + $0xd0] sm:$0xff]
      %v4692 = vld [vmem:[#allocation8 + $0xd8] sm:$0xff]
      %v4693 = vld [vmem:[#allocation8 + $0xe0] sm:$0xff]
      %v4694 = vld [vmem:[#allocation8 + $0xe8] sm:$0xff]
      %v4695 = vld [vmem:[#allocation8 + $0xf0] sm:$0xff]
      %v4696 = vld [vmem:[#allocation8 + $0xf8] sm:$0xff]
      %v4697 = vld [vmem:[#allocation8 + $0x100] sm:$0xff]
      %v4698 = vld [vmem:[#allocation8 + $0x108] sm:$0xff]
      %v4699 = vld [vmem:[#allocation8 + $0x110] sm:$0xff]
      %v4700 = vld [vmem:[#allocation8 + $0x118] sm:$0xff]
      %v4701 = vld [vmem:[#allocation8 + $0x120] sm:$0xff]
      %v4702 = vld [vmem:[#allocation8 + $0x128] sm:$0xff]
      %v4703 = vld [vmem:[#allocation8 + $0x130] sm:$0xff]
      %v4704 = vld [vmem:[#allocation8 + $0x138] sm:$0xff]
      %v4705 = vld [vmem:[#allocation8 + $0x140] sm:$0xff]
      %v4706 = vld [vmem:[#allocation8 + $0x148] sm:$0xff]
      %v4707 = vld [vmem:[#allocation8 + $0x150] sm:$0xff]
      %v4708 = vld [vmem:[#allocation8 + $0x158] sm:$0xff]
      %v4709 = vld [vmem:[#allocation8 + $0x160] sm:$0xff]
      %v4710 = vld [vmem:[#allocation8 + $0x168] sm:$0xff]
      %v4711 = vld [vmem:[#allocation8 + $0x170] sm:$0xff]
      %v4712 = vld [vmem:[#allocation8 + $0x178] sm:$0xff]
      %4713 = vmatprep.subr.mxu0 %v4666
      %4714 = vmatpush1.msra.mxu0 %v4665
      %4715 = vmatprep.subr.mxu0 %v4669
      %4716 = vmatpush1.msra.mxu0 %v4668
      %4717 = vmatprep.subr.mxu0 %v4672
      %4718 = vmatpush1.msra.mxu0 %v4671
      %4719 = vmatprep.subr.mxu0 %v4675
      %4720 = vmatpush1.msra.mxu0 %v4674
      %4721 = vmatprep.subr.mxu0 %v4678
      %4722 = vmatpush1.msra.mxu0 %v4677
      %4723 = vmatprep.subr.mxu0 %v4681
      %4724 = vmatpush1.msra.mxu0 %v4680
      %4725 = vmatprep.subr.mxu0 %v4684
      %4726 = vmatpush1.msra.mxu0 %v4683
      %4727 = vmatprep.subr.mxu0 %v4687
      %4728 = vmatpush1.msra.mxu0 %v4686
      %4729 = vmatprep.subr.mxu0 %v4690
      %4730 = vmatpush1.msra.mxu0 %v4689
      %4731 = vmatprep.subr.mxu0 %v4693
      %4732 = vmatpush1.msra.mxu0 %v4692
      %4733 = vmatprep.subr.mxu0 %v4696
      %4734 = vmatpush1.msra.mxu0 %v4695
      %4735 = vmatprep.subr.mxu0 %v4699
      %4736 = vmatpush1.msra.mxu0 %v4698
      %4737 = vmatprep.subr.mxu0 %v4702
      %4738 = vmatpush1.msra.mxu0 %v4701
      %4739 = vmatprep.subr.mxu0 %v4705
      %4740 = vmatpush1.msra.mxu0 %v4704
      %4741 = vmatprep.subr.mxu0 %v4708
      %4742 = vmatpush1.msra.mxu0 %v4707
      %4743 = vmatprep.subr.mxu0 %v4711
      %4744 = vmatpush1.msra.mxu0 %v4710
      %4745 = vmatprep.subr.mxu0 0.0
      %4746 = vmatpush1.msra.mxu0 0.0
      %4747 = vmatprep.subr.mxu0 0.0
      %4748 = vmatpush1.msra.mxu0 0.0
      %4749 = vmatprep.subr.mxu0 0.0
      %4750 = vmatpush1.msra.mxu0 0.0
      %4751 = vmatprep.subr.mxu0 0.0
      %4752 = vmatpush1.msra.mxu0 0.0
      %4753 = vmatprep.subr.mxu0 0.0
      %4754 = vmatpush1.msra.mxu0 0.0
      %4755 = vmatprep.subr.mxu0 0.0
      %4756 = vmatpush1.msra.mxu0 0.0
      %4757 = vmatprep.subr.mxu0 0.0
      %4758 = vmatpush1.msra.mxu0 0.0
      %4759 = vmatprep.subr.mxu0 0.0
      %4760 = vmatpush1.msra.mxu0 0.0
      %4761 = vmatprep.subr.mxu0 0.0
      %4762 = vmatpush1.msra.mxu0 0.0
      %4763 = vmatprep.subr.mxu0 0.0
      %4764 = vmatpush1.msra.mxu0 0.0
      %4765 = vmatprep.subr.mxu0 0.0
      %4766 = vmatpush1.msra.mxu0 0.0
      %4767 = vmatprep.subr.mxu0 0.0
      %4768 = vmatpush1.msra.mxu0 0.0
      %4769 = vmatprep.subr.mxu0 0.0
      %4770 = vmatpush1.msra.mxu0 0.0
      %4771 = vmatprep.subr.mxu0 0.0
      %4772 = vmatpush1.msra.mxu0 0.0
      %4773 = vmatprep.subr.mxu0 0.0
      %4774 = vmatpush1.msra.mxu0 0.0
      %4775 = vmatprep.subr.mxu0 0.0
      %4776 = vmatpush1.msra.mxu0 0.0
      %4777 = vmatprep.mubr.f32.mxu0 0.0
      %4778 = vmatmul.mubr.f32.gmra.mrb[0].mxu0 %v4664
      %v4779 = vpop.f32.mrb[0].mxu0
      %v4780 = vadd.f32 %v450, %v4779
      %v4781 = vpop.f32.mrb[0].mxu0
      %v4782 = vadd.f32 %v454, %v4781
      %4783 = vdwg.mxu0
      %4784 = vmatprep.subr.mxu0 0.0
      %4785 = vmatpush1.msra.mxu0 %v4667
      %4786 = vmatprep.subr.mxu0 0.0
      %4787 = vmatpush1.msra.mxu0 %v4670
      %4788 = vmatprep.subr.mxu0 0.0
      %4789 = vmatpush1.msra.mxu0 %v4673
      %4790 = vmatprep.subr.mxu0 0.0
      %4791 = vmatpush1.msra.mxu0 %v4676
      %4792 = vmatprep.subr.mxu0 0.0
      %4793 = vmatpush1.msra.mxu0 %v4679
      %4794 = vmatprep.subr.mxu0 0.0
      %4795 = vmatpush1.msra.mxu0 %v4682
      %4796 = vmatprep.subr.mxu0 0.0
      %4797 = vmatpush1.msra.mxu0 %v4685
      %4798 = vmatprep.subr.mxu0 0.0
      %4799 = vmatpush1.msra.mxu0 %v4688
      %4800 = vmatprep.subr.mxu0 0.0
      %4801 = vmatpush1.msra.mxu0 %v4691
      %4802 = vmatprep.subr.mxu0 0.0
      %4803 = vmatpush1.msra.mxu0 %v4694
      %4804 = vmatprep.subr.mxu0 0.0
      %4805 = vmatpush1.msra.mxu0 %v4697
      %4806 = vmatprep.subr.mxu0 0.0
      %4807 = vmatpush1.msra.mxu0 %v4700
      %4808 = vmatprep.subr.mxu0 0.0
      %4809 = vmatpush1.msra.mxu0 %v4703
      %4810 = vmatprep.subr.mxu0 0.0
      %4811 = vmatpush1.msra.mxu0 %v4706
      %4812 = vmatprep.subr.mxu0 0.0
      %4813 = vmatpush1.msra.mxu0 %v4709
      %4814 = vmatprep.subr.mxu0 0.0
      %4815 = vmatpush1.msra.mxu0 %v4712
      %4816 = vmatprep.subr.mxu0 0.0
      %4817 = vmatpush1.msra.mxu0 0.0
      %4818 = vmatprep.subr.mxu0 0.0
      %4819 = vmatpush1.msra.mxu0 0.0
      %4820 = vmatprep.subr.mxu0 0.0
      %4821 = vmatpush1.msra.mxu0 0.0
      %4822 = vmatprep.subr.mxu0 0.0
      %4823 = vmatpush1.msra.mxu0 0.0
      %4824 = vmatprep.subr.mxu0 0.0
      %4825 = vmatpush1.msra.mxu0 0.0
      %4826 = vmatprep.subr.mxu0 0.0
      %4827 = vmatpush1.msra.mxu0 0.0
      %4828 = vmatprep.subr.mxu0 0.0
      %4829 = vmatpush1.msra.mxu0 0.0
      %4830 = vmatprep.subr.mxu0 0.0
      %4831 = vmatpush1.msra.mxu0 0.0
      %4832 = vmatprep.subr.mxu0 0.0
      %4833 = vmatpush1.msra.mxu0 0.0
      %4834 = vmatprep.subr.mxu0 0.0
      %4835 = vmatpush1.msra.mxu0 0.0
      %4836 = vmatprep.subr.mxu0 0.0
      %4837 = vmatpush1.msra.mxu0 0.0
      %4838 = vmatprep.subr.mxu0 0.0
      %4839 = vmatpush1.msra.mxu0 0.0
      %4840 = vmatprep.subr.mxu0 0.0
      %4841 = vmatpush1.msra.mxu0 0.0
      %4842 = vmatprep.subr.mxu0 0.0
      %4843 = vmatpush1.msra.mxu0 0.0
      %4844 = vmatprep.subr.mxu0 0.0
      %4845 = vmatpush1.msra.mxu0 0.0
      %4846 = vmatprep.subr.mxu0 0.0
      %4847 = vmatpush1.msra.mxu0 0.0
      %4848 = vmatprep.mubr.f32.mxu0 0.0
      %4849 = vmatmul.mubr.f32.gmra.mrb[0].mxu0 %v4664
      %v4850 = vpop.f32.mrb[0].mxu0
      %v4851 = vadd.f32 %v458, %v4850
      %v4852 = vpop.f32.mrb[0].mxu0
      %4853 = vdwg.mxu0
      %v4854 = vadd.f32 %v4495, %v607
      %v4855 = vadd.f32 %v4497, %v611
      %v4856 = vadd.f32 %v4566, %v615
      %v4857 = vadd.f32 %v4780, %v4854
      %v4858 = vadd.f32 %v4782, %v4855
      %v4859 = vxor.u32 %v4857, 2147483648
      %v4860 = vxor.u32 %v4858, 2147483648
      %v4861 = vmul.f32 %v4859, 1.442695
      %v4862 = vpow.pop %v4861
      %v4863 = vmul.f32 %v4860, 1.442695
      %v4864 = vpow.pop %v4863
      %v4865 = vadd.f32 %v4862, 1.0
      %v4866 = vadd.f32 %v4864, 1.0
      %v4867 = vrcp.pop %v4865
      %v4868 = vmul.f32 1.0, %v4867
      %v4869 = vrcp.pop %v4866
      %v4870 = vmul.f32 1.0, %v4869
      %v4871 = vmul.f32 %v4868, %v4856
      %v4872 = vadd.f32 %v4851, %v4871
      %v4873 = vtanh.pop %v4872
      %v4874 = vsub.f32 1.0, %v4870
      %v4875 = vmul.f32 %v4874, %v4873
      %v4876 = vmul.f32 %v4870, %v4273
      %v4877 = vadd.f32 %v4875, %v4876
      %s4878 = scalar_lea.vmem [#allocation2], %s4276
      %4879 = vst [vmem:[%s4878] sm:$0x1] %v4877
      %s4880 = sadd.s32 %s651, 8
      %v4881 = vld [vmem:[#allocation6] sm:$0xff]
      %v4882 = vld [vmem:[#allocation6 + $0x8] sm:$0xff]
      %v4883 = vld [vmem:[#allocation6 + $0x10] sm:$0xff]
      %v4884 = vld [vmem:[#allocation6 + $0x18] sm:$0xff]
      %v4885 = vld [vmem:[#allocation6 + $0x20] sm:$0xff]
      %v4886 = vld [vmem:[#allocation6 + $0x28] sm:$0xff]
      %v4887 = vld [vmem:[#allocation6 + $0x30] sm:$0xff]
      %v4888 = vld [vmem:[#allocation6 + $0x38] sm:$0xff]
      %v4889 = vld [vmem:[#allocation6 + $0x40] sm:$0xff]
      %v4890 = vld [vmem:[#allocation6 + $0x48] sm:$0xff]
      %v4891 = vld [vmem:[#allocation6 + $0x50] sm:$0xff]
      %v4892 = vld [vmem:[#allocation6 + $0x58] sm:$0xff]
      %v4893 = vld [vmem:[#allocation6 + $0x60] sm:$0xff]
      %v4894 = vld [vmem:[#allocation6 + $0x68] sm:$0xff]
      %v4895 = vld [vmem:[#allocation6 + $0x70] sm:$0xff]
      %v4896 = vld [vmem:[#allocation6 + $0x78] sm:$0xff]
      %v4897 = vld [vmem:[#allocation6 + $0x80] sm:$0xff]
      %v4898 = vld [vmem:[#allocation6 + $0x88] sm:$0xff]
      %v4899 = vld [vmem:[#allocation6 + $0x90] sm:$0xff]
      %v4900 = vld [vmem:[#allocation6 + $0x98] sm:$0xff]
      %v4901 = vld [vmem:[#allocation6 + $0xa0] sm:$0xff]
      %v4902 = vld [vmem:[#allocation6 + $0xa8] sm:$0xff]
      %v4903 = vld [vmem:[#allocation6 + $0xb0] sm:$0xff]
      %v4904 = vld [vmem:[#allocation6 + $0xb8] sm:$0xff]
      %v4905 = vld [vmem:[#allocation6 + $0xc0] sm:$0xff]
      %v4906 = vld [vmem:[#allocation6 + $0xc8] sm:$0xff]
      %v4907 = vld [vmem:[#allocation6 + $0xd0] sm:$0xff]
      %v4908 = vld [vmem:[#allocation6 + $0xd8] sm:$0xff]
      %v4909 = vld [vmem:[#allocation6 + $0xe0] sm:$0xff]
      %v4910 = vld [vmem:[#allocation6 + $0xe8] sm:$0xff]
      %v4911 = vld [vmem:[#allocation6 + $0xf0] sm:$0xff]
      %v4912 = vld [vmem:[#allocation6 + $0xf8] sm:$0xff]
      %v4913 = vld [vmem:[#allocation6 + $0x100] sm:$0xff]
      %v4914 = vld [vmem:[#allocation6 + $0x108] sm:$0xff]
      %v4915 = vld [vmem:[#allocation6 + $0x110] sm:$0xff]
      %v4916 = vld [vmem:[#allocation6 + $0x118] sm:$0xff]
      %v4917 = vld [vmem:[#allocation6 + $0x120] sm:$0xff]
      %v4918 = vld [vmem:[#allocation6 + $0x128] sm:$0xff]
      %v4919 = vld [vmem:[#allocation6 + $0x130] sm:$0xff]
      %v4920 = vld [vmem:[#allocation6 + $0x138] sm:$0xff]
      %v4921 = vld [vmem:[#allocation6 + $0x140] sm:$0xff]
      %v4922 = vld [vmem:[#allocation6 + $0x148] sm:$0xff]
      %v4923 = vld [vmem:[#allocation6 + $0x150] sm:$0xff]
      %v4924 = vld [vmem:[#allocation6 + $0x158] sm:$0xff]
      %v4925 = vld [vmem:[#allocation6 + $0x160] sm:$0xff]
      %v4926 = vld [vmem:[#allocation6 + $0x168] sm:$0xff]
      %v4927 = vld [vmem:[#allocation6 + $0x170] sm:$0xff]
      %v4928 = vld [vmem:[#allocation6 + $0x178] sm:$0xff]
      %v4929 = vld [vmem:[#allocation6 + $0x180] sm:$0xff]
      %v4930 = vld [vmem:[#allocation6 + $0x188] sm:$0xff]
      %v4931 = vld [vmem:[#allocation6 + $0x190] sm:$0xff]
      %v4932 = vld [vmem:[#allocation6 + $0x198] sm:$0xff]
      %v4933 = vld [vmem:[#allocation6 + $0x1a0] sm:$0xff]
      %v4934 = vld [vmem:[#allocation6 + $0x1a8] sm:$0xff]
      %v4935 = vld [vmem:[#allocation6 + $0x1b0] sm:$0xff]
      %v4936 = vld [vmem:[#allocation6 + $0x1b8] sm:$0xff]
      %v4937 = vld [vmem:[#allocation6 + $0x1c0] sm:$0xff]
      %v4938 = vld [vmem:[#allocation6 + $0x1c8] sm:$0xff]
      %v4939 = vld [vmem:[#allocation6 + $0x1d0] sm:$0xff]
      %v4940 = vld [vmem:[#allocation6 + $0x1d8] sm:$0xff]
      %v4941 = vld [vmem:[#allocation6 + $0x1e0] sm:$0xff]
      %v4942 = vld [vmem:[#allocation6 + $0x1e8] sm:$0xff]
      %v4943 = vld [vmem:[#allocation6 + $0x1f0] sm:$0xff]
      %v4944 = vld [vmem:[#allocation6 + $0x1f8] sm:$0xff]
      %v4945 = vld [vmem:[#allocation6 + $0x200] sm:$0xff]
      %v4946 = vld [vmem:[#allocation6 + $0x208] sm:$0xff]
      %v4947 = vld [vmem:[#allocation6 + $0x210] sm:$0xff]
      %v4948 = vld [vmem:[#allocation6 + $0x218] sm:$0xff]
      %v4949 = vld [vmem:[#allocation6 + $0x220] sm:$0xff]
      %v4950 = vld [vmem:[#allocation6 + $0x228] sm:$0xff]
      %v4951 = vld [vmem:[#allocation6 + $0x230] sm:$0xff]
      %v4952 = vld [vmem:[#allocation6 + $0x238] sm:$0xff]
      %v4953 = vld [vmem:[#allocation6 + $0x240] sm:$0xff]
      %v4954 = vld [vmem:[#allocation6 + $0x248] sm:$0xff]
      %v4955 = vld [vmem:[#allocation6 + $0x250] sm:$0xff]
      %v4956 = vld [vmem:[#allocation6 + $0x258] sm:$0xff]
      %v4957 = vld [vmem:[#allocation6 + $0x260] sm:$0xff]
      %v4958 = vld [vmem:[#allocation6 + $0x268] sm:$0xff]
      %v4959 = vld [vmem:[#allocation6 + $0x270] sm:$0xff]
      %v4960 = vld [vmem:[#allocation6 + $0x278] sm:$0xff]
      %4961 = vmatprep.subr.mxu0 %v4882
      %4962 = vmatpush1.msra.mxu0 %v4881
      %4963 = vmatprep.subr.mxu0 %v4887
      %4964 = vmatpush1.msra.mxu0 %v4886
      %4965 = vmatprep.subr.mxu0 %v4892
      %4966 = vmatpush1.msra.mxu0 %v4891
      %4967 = vmatprep.subr.mxu0 %v4897
      %4968 = vmatpush1.msra.mxu0 %v4896
      %4969 = vmatprep.subr.mxu0 %v4902
      %4970 = vmatpush1.msra.mxu0 %v4901
      %4971 = vmatprep.subr.mxu0 %v4907
      %4972 = vmatpush1.msra.mxu0 %v4906
      %4973 = vmatprep.subr.mxu0 %v4912
      %4974 = vmatpush1.msra.mxu0 %v4911
      %4975 = vmatprep.subr.mxu0 %v4917
      %4976 = vmatpush1.msra.mxu0 %v4916
      %4977 = vmatprep.subr.mxu0 %v4922
      %4978 = vmatpush1.msra.mxu0 %v4921
      %4979 = vmatprep.subr.mxu0 %v4927
      %4980 = vmatpush1.msra.mxu0 %v4926
      %4981 = vmatprep.subr.mxu0 %v4932
      %4982 = vmatpush1.msra.mxu0 %v4931
      %4983 = vmatprep.subr.mxu0 %v4937
      %4984 = vmatpush1.msra.mxu0 %v4936
      %4985 = vmatprep.subr.mxu0 %v4942
      %4986 = vmatpush1.msra.mxu0 %v4941
      %4987 = vmatprep.subr.mxu0 %v4947
      %4988 = vmatpush1.msra.mxu0 %v4946
      %4989 = vmatprep.subr.mxu0 %v4952
      %4990 = vmatpush1.msra.mxu0 %v4951
      %4991 = vmatprep.subr.mxu0 %v4957
      %4992 = vmatpush1.msra.mxu0 %v4956
      %4993 = vmatprep.subr.mxu0 0.0
      %4994 = vmatpush1.msra.mxu0 0.0
      %4995 = vmatprep.subr.mxu0 0.0
      %4996 = vmatpush1.msra.mxu0 0.0
      %4997 = vmatprep.subr.mxu0 0.0
      %4998 = vmatpush1.msra.mxu0 0.0
      %4999 = vmatprep.subr.mxu0 0.0
      %5000 = vmatpush1.msra.mxu0 0.0
      %5001 = vmatprep.subr.mxu0 0.0
      %5002 = vmatpush1.msra.mxu0 0.0
      %5003 = vmatprep.subr.mxu0 0.0
      %5004 = vmatpush1.msra.mxu0 0.0
      %5005 = vmatprep.subr.mxu0 0.0
      %5006 = vmatpush1.msra.mxu0 0.0
      %5007 = vmatprep.subr.mxu0 0.0
      %5008 = vmatpush1.msra.mxu0 0.0
      %5009 = vmatprep.subr.mxu0 0.0
      %5010 = vmatpush1.msra.mxu0 0.0
      %5011 = vmatprep.subr.mxu0 0.0
      %5012 = vmatpush1.msra.mxu0 0.0
      %5013 = vmatprep.subr.mxu0 0.0
      %5014 = vmatpush1.msra.mxu0 0.0
      %5015 = vmatprep.subr.mxu0 0.0
      %5016 = vmatpush1.msra.mxu0 0.0
      %5017 = vmatprep.subr.mxu0 0.0
      %5018 = vmatpush1.msra.mxu0 0.0
      %5019 = vmatprep.subr.mxu0 0.0
      %5020 = vmatpush1.msra.mxu0 0.0
      %5021 = vmatprep.subr.mxu0 0.0
      %5022 = vmatpush1.msra.mxu0 0.0
      %5023 = vmatprep.subr.mxu0 0.0
      %5024 = vmatpush1.msra.mxu0 0.0
      %5025 = vmatprep.mubr.f32.mxu0 0.0
      %5026 = vmatmul.mubr.f32.gmra.mrb[0].mxu0 %v4877
      %v5027 = vpop.f32.mrb[0].mxu0
      %v5028 = vadd.f32 0.0, %v5027
      %v5029 = vpop.f32.mrb[0].mxu0
      %v5030 = vadd.f32 0.0, %v5029
      %5031 = vdwg.mxu0
      %5032 = vmatprep.subr.mxu0 %v4884
      %5033 = vmatpush1.msra.mxu0 %v4883
      %5034 = vmatprep.subr.mxu0 %v4889
      %5035 = vmatpush1.msra.mxu0 %v4888
      %5036 = vmatprep.subr.mxu0 %v4894
      %5037 = vmatpush1.msra.mxu0 %v4893
      %5038 = vmatprep.subr.mxu0 %v4899
      %5039 = vmatpush1.msra.mxu0 %v4898
      %5040 = vmatprep.subr.mxu0 %v4904
      %5041 = vmatpush1.msra.mxu0 %v4903
      %5042 = vmatprep.subr.mxu0 %v4909
      %5043 = vmatpush1.msra.mxu0 %v4908
      %5044 = vmatprep.subr.mxu0 %v4914
      %5045 = vmatpush1.msra.mxu0 %v4913
      %5046 = vmatprep.subr.mxu0 %v4919
      %5047 = vmatpush1.msra.mxu0 %v4918
      %5048 = vmatprep.subr.mxu0 %v4924
      %5049 = vmatpush1.msra.mxu0 %v4923
      %5050 = vmatprep.subr.mxu0 %v4929
      %5051 = vmatpush1.msra.mxu0 %v4928
      %5052 = vmatprep.subr.mxu0 %v4934
      %5053 = vmatpush1.msra.mxu0 %v4933
      %5054 = vmatprep.subr.mxu0 %v4939
      %5055 = vmatpush1.msra.mxu0 %v4938
      %5056 = vmatprep.subr.mxu0 %v4944
      %5057 = vmatpush1.msra.mxu0 %v4943
      %5058 = vmatprep.subr.mxu0 %v4949
      %5059 = vmatpush1.msra.mxu0 %v4948
      %5060 = vmatprep.subr.mxu0 %v4954
      %5061 = vmatpush1.msra.mxu0 %v4953
      %5062 = vmatprep.subr.mxu0 %v4959
      %5063 = vmatpush1.msra.mxu0 %v4958
      %5064 = vmatprep.subr.mxu0 0.0
      %5065 = vmatpush1.msra.mxu0 0.0
      %5066 = vmatprep.subr.mxu0 0.0
      %5067 = vmatpush1.msra.mxu0 0.0
      %5068 = vmatprep.subr.mxu0 0.0
      %5069 = vmatpush1.msra.mxu0 0.0
      %5070 = vmatprep.subr.mxu0 0.0
      %5071 = vmatpush1.msra.mxu0 0.0
      %5072 = vmatprep.subr.mxu0 0.0
      %5073 = vmatpush1.msra.mxu0 0.0
      %5074 = vmatprep.subr.mxu0 0.0
      %5075 = vmatpush1.msra.mxu0 0.0
      %5076 = vmatprep.subr.mxu0 0.0
      %5077 = vmatpush1.msra.mxu0 0.0
      %5078 = vmatprep.subr.mxu0 0.0
      %5079 = vmatpush1.msra.mxu0 0.0
      %5080 = vmatprep.subr.mxu0 0.0
      %5081 = vmatpush1.msra.mxu0 0.0
      %5082 = vmatprep.subr.mxu0 0.0
      %5083 = vmatpush1.msra.mxu0 0.0
      %5084 = vmatprep.subr.mxu0 0.0
      %5085 = vmatpush1.msra.mxu0 0.0
      %5086 = vmatprep.subr.mxu0 0.0
      %5087 = vmatpush1.msra.mxu0 0.0
      %5088 = vmatprep.subr.mxu0 0.0
      %5089 = vmatpush1.msra.mxu0 0.0
      %5090 = vmatprep.subr.mxu0 0.0
      %5091 = vmatpush1.msra.mxu0 0.0
      %5092 = vmatprep.subr.mxu0 0.0
      %5093 = vmatpush1.msra.mxu0 0.0
      %5094 = vmatprep.subr.mxu0 0.0
      %5095 = vmatpush1.msra.mxu0 0.0
      %5096 = vmatprep.mubr.f32.mxu0 0.0
      %5097 = vmatmul.mubr.f32.gmra.mrb[0].mxu0 %v4877
      %v5098 = vpop.f32.mrb[0].mxu0
      %v5099 = vadd.f32 0.0, %v5098
      %v5100 = vpop.f32.mrb[0].mxu0
      %v5101 = vadd.f32 0.0, %v5100
      %5102 = vdwg.mxu0
      %5103 = vmatprep.subr.mxu0 0.0
      %5104 = vmatpush1.msra.mxu0 %v4885
      %5105 = vmatprep.subr.mxu0 0.0
      %5106 = vmatpush1.msra.mxu0 %v4890
      %5107 = vmatprep.subr.mxu0 0.0
      %5108 = vmatpush1.msra.mxu0 %v4895
      %5109 = vmatprep.subr.mxu0 0.0
      %5110 = vmatpush1.msra.mxu0 %v4900
      %5111 = vmatprep.subr.mxu0 0.0
      %5112 = vmatpush1.msra.mxu0 %v4905
      %5113 = vmatprep.subr.mxu0 0.0
      %5114 = vmatpush1.msra.mxu0 %v4910
      %5115 = vmatprep.subr.mxu0 0.0
      %5116 = vmatpush1.msra.mxu0 %v4915
      %5117 = vmatprep.subr.mxu0 0.0
      %5118 = vmatpush1.msra.mxu0 %v4920
      %5119 = vmatprep.subr.mxu0 0.0
      %5120 = vmatpush1.msra.mxu0 %v4925
      %5121 = vmatprep.subr.mxu0 0.0
      %5122 = vmatpush1.msra.mxu0 %v4930
      %5123 = vmatprep.subr.mxu0 0.0
      %5124 = vmatpush1.msra.mxu0 %v4935
      %5125 = vmatprep.subr.mxu0 0.0
      %5126 = vmatpush1.msra.mxu0 %v4940
      %5127 = vmatprep.subr.mxu0 0.0
      %5128 = vmatpush1.msra.mxu0 %v4945
      %5129 = vmatprep.subr.mxu0 0.0
      %5130 = vmatpush1.msra.mxu0 %v4950
      %5131 = vmatprep.subr.mxu0 0.0
      %5132 = vmatpush1.msra.mxu0 %v4955
      %5133 = vmatprep.subr.mxu0 0.0
      %5134 = vmatpush1.msra.mxu0 %v4960
      %5135 = vmatprep.subr.mxu0 0.0
      %5136 = vmatpush1.msra.mxu0 0.0
      %5137 = vmatprep.subr.mxu0 0.0
      %5138 = vmatpush1.msra.mxu0 0.0
      %5139 = vmatprep.subr.mxu0 0.0
      %5140 = vmatpush1.msra.mxu0 0.0
      %5141 = vmatprep.subr.mxu0 0.0
      %5142 = vmatpush1.msra.mxu0 0.0
      %5143 = vmatprep.subr.mxu0 0.0
      %5144 = vmatpush1.msra.mxu0 0.0
      %5145 = vmatprep.subr.mxu0 0.0
      %5146 = vmatpush1.msra.mxu0 0.0
      %5147 = vmatprep.subr.mxu0 0.0
      %5148 = vmatpush1.msra.mxu0 0.0
      %5149 = vmatprep.subr.mxu0 0.0
      %5150 = vmatpush1.msra.mxu0 0.0
      %5151 = vmatprep.subr.mxu0 0.0
      %5152 = vmatpush1.msra.mxu0 0.0
      %5153 = vmatprep.subr.mxu0 0.0
      %5154 = vmatpush1.msra.mxu0 0.0
      %5155 = vmatprep.subr.mxu0 0.0
      %5156 = vmatpush1.msra.mxu0 0.0
      %5157 = vmatprep.subr.mxu0 0.0
      %5158 = vmatpush1.msra.mxu0 0.0
      %5159 = vmatprep.subr.mxu0 0.0
      %5160 = vmatpush1.msra.mxu0 0.0
      %5161 = vmatprep.subr.mxu0 0.0
      %5162 = vmatpush1.msra.mxu0 0.0
      %5163 = vmatprep.subr.mxu0 0.0
      %5164 = vmatpush1.msra.mxu0 0.0
      %5165 = vmatprep.subr.mxu0 0.0
      %5166 = vmatpush1.msra.mxu0 0.0
      %5167 = vmatprep.mubr.f32.mxu0 0.0
      %5168 = vmatmul.mubr.f32.gmra.mrb[0].mxu0 %v4877
      %v5169 = vpop.f32.mrb[0].mxu0
      %v5170 = vadd.f32 0.0, %v5169
      %v5171 = vpop.f32.mrb[0].mxu0
      %5172 = vdwg.mxu0
      %v5173 = vadd.f32 %v5028, %v89
      %v5174 = vsel %vm301, %v5173, -inf
      %5175 = vmax.xlane.f32.xlu0 %v5174
      %v5176 = vpop.xlane.xlu0 %5175
      %v5177 = vsub.f32 %v5173, %v5176
      %v5178 = vmul.f32 %v5177, 1.442695
      %v5179 = vpow.pop %v5178
      %v5180 = vld [vmem:[%s1] sm:$0xff]
      %v5181 = vld [vmem:[%s1 + $0x8] sm:$0xff]
      %v5182 = vld [vmem:[%s1 + $0x10] sm:$0xff]
      %v5183 = vld [vmem:[%s1 + $0x18] sm:$0xff]
      %v5184 = vld [vmem:[%s1 + $0x20] sm:$0xff]
      %v5185 = vld [vmem:[%s1 + $0x28] sm:$0xff]
      %v5186 = vld [vmem:[%s1 + $0x30] sm:$0xff]
      %v5187 = vld [vmem:[%s1 + $0x38] sm:$0xff]
      %v5189 = vsel %vm316, %v5179, 0
      %5191 = vmatprep.subr.mxu0 0.0
      %5192 = vmatpush1.msra.mxu0 %v5180
      %5193 = vmatprep.subr.mxu0 0.0
      %5194 = vmatpush1.msra.mxu0 %v5181
      %5195 = vmatprep.subr.mxu0 0.0
      %5196 = vmatpush1.msra.mxu0 %v5182
      %5197 = vmatprep.subr.mxu0 0.0
      %5198 = vmatpush1.msra.mxu0 %v5183
      %5199 = vmatprep.subr.mxu0 0.0
      %5200 = vmatpush1.msra.mxu0 %v5184
      %5201 = vmatprep.subr.mxu0 0.0
      %5202 = vmatpush1.msra.mxu0 %v5185
      %5203 = vmatprep.subr.mxu0 0.0
      %5204 = vmatpush1.msra.mxu0 %v5186
      %5205 = vmatprep.subr.mxu0 0.0
      %5206 = vmatpush1.msra.mxu0 %v5187
      %5207 = vmatprep.subr.mxu0 0.0
      %5208 = vmatpush1.msra.mxu0 0.0
      %5209 = vmatprep.subr.mxu0 0.0
      %5210 = vmatpush1.msra.mxu0 0.0
      %5211 = vmatprep.subr.mxu0 0.0
      %5212 = vmatpush1.msra.mxu0 0.0
      %5213 = vmatprep.subr.mxu0 0.0
      %5214 = vmatpush1.msra.mxu0 0.0
      %5215 = vmatprep.subr.mxu0 0.0
      %5216 = vmatpush1.msra.mxu0 0.0
      %5217 = vmatprep.subr.mxu0 0.0
      %5218 = vmatpush1.msra.mxu0 0.0
      %5219 = vmatprep.subr.mxu0 0.0
      %5220 = vmatpush1.msra.mxu0 0.0
      %5221 = vmatprep.subr.mxu0 0.0
      %5222 = vmatpush1.msra.mxu0 0.0
      %5223 = vmatprep.subr.mxu0 0.0
      %5224 = vmatpush1.msra.mxu0 0.0
      %5225 = vmatprep.subr.mxu0 0.0
      %5226 = vmatpush1.msra.mxu0 0.0
      %5227 = vmatprep.subr.mxu0 0.0
      %5228 = vmatpush1.msra.mxu0 0.0
      %5229 = vmatprep.subr.mxu0 0.0
      %5230 = vmatpush1.msra.mxu0 0.0
      %5231 = vmatprep.subr.mxu0 0.0
      %5232 = vmatpush1.msra.mxu0 0.0
      %5233 = vmatprep.subr.mxu0 0.0
      %5234 = vmatpush1.msra.mxu0 0.0
      %5235 = vmatprep.subr.mxu0 0.0
      %5236 = vmatpush1.msra.mxu0 0.0
      %5237 = vmatprep.subr.mxu0 0.0
      %5238 = vmatpush1.msra.mxu0 0.0
      %5239 = vmatprep.subr.mxu0 0.0
      %5240 = vmatpush1.msra.mxu0 0.0
      %5241 = vmatprep.subr.mxu0 0.0
      %5242 = vmatpush1.msra.mxu0 0.0
      %5243 = vmatprep.subr.mxu0 0.0
      %5244 = vmatpush1.msra.mxu0 0.0
      %5245 = vmatprep.subr.mxu0 0.0
      %5246 = vmatpush1.msra.mxu0 0.0
      %5247 = vmatprep.subr.mxu0 0.0
      %5248 = vmatpush1.msra.mxu0 0.0
      %5249 = vmatprep.subr.mxu0 0.0
      %5250 = vmatpush1.msra.mxu0 0.0
      %5251 = vmatprep.subr.mxu0 0.0
      %5252 = vmatpush1.msra.mxu0 0.0
      %5253 = vmatprep.subr.mxu0 0.0
      %5254 = vmatpush1.msra.mxu0 0.0
      %5255 = vmatprep.mubr.f32.mxu0 0.0
      %5256 = vmatmul.mubr.f32.gmra.mrb[0].mxu0 %v5189
      %v5257 = vpop.f32.mrb[0].mxu0
      %v5258 = vadd.f32 0.0, %v5257
      %v5259 = vpop.f32.mrb[0].mxu0
      %5260 = vdwg.mxu0
      %v5261 = vsel %vm301, %v5179, 0.0
      %5262 = vadd.xlane.f32.xlu0 %v5261
      %v5263 = vpop.xlane.xlu0 %5262
      %v5264 = vrcp.pop %v5263
      %v5265 = vmul.f32 %v5258, %v5264
      %v5266 = vadd.f32 %v5030, %v5265
      %v5267 = vadd.f32 %v5266, %v90
      %v5268 = vmax.f32 %v5267, 0.0
      %v5269 = vld [vmem:[#allocation8] sm:$0xff]
      %v5270 = vld [vmem:[#allocation8 + $0x8] sm:$0xff]
      %v5271 = vld [vmem:[#allocation8 + $0x10] sm:$0xff]
      %v5272 = vld [vmem:[#allocation8 + $0x18] sm:$0xff]
      %v5273 = vld [vmem:[#allocation8 + $0x20] sm:$0xff]
      %v5274 = vld [vmem:[#allocation8 + $0x28] sm:$0xff]
      %v5275 = vld [vmem:[#allocation8 + $0x30] sm:$0xff]
      %v5276 = vld [vmem:[#allocation8 + $0x38] sm:$0xff]
      %v5277 = vld [vmem:[#allocation8 + $0x40] sm:$0xff]
      %v5278 = vld [vmem:[#allocation8 + $0x48] sm:$0xff]
      %v5279 = vld [vmem:[#allocation8 + $0x50] sm:$0xff]
      %v5280 = vld [vmem:[#allocation8 + $0x58] sm:$0xff]
      %v5281 = vld [vmem:[#allocation8 + $0x60] sm:$0xff]
      %v5282 = vld [vmem:[#allocation8 + $0x68] sm:$0xff]
      %v5283 = vld [vmem:[#allocation8 + $0x70] sm:$0xff]
      %v5284 = vld [vmem:[#allocation8 + $0x78] sm:$0xff]
      %v5285 = vld [vmem:[#allocation8 + $0x80] sm:$0xff]
      %v5286 = vld [vmem:[#allocation8 + $0x88] sm:$0xff]
      %v5287 = vld [vmem:[#allocation8 + $0x90] sm:$0xff]
      %v5288 = vld [vmem:[#allocation8 + $0x98] sm:$0xff]
      %v5289 = vld [vmem:[#allocation8 + $0xa0] sm:$0xff]
      %v5290 = vld [vmem:[#allocation8 + $0xa8] sm:$0xff]
      %v5291 = vld [vmem:[#allocation8 + $0xb0] sm:$0xff]
      %v5292 = vld [vmem:[#allocation8 + $0xb8] sm:$0xff]
      %v5293 = vld [vmem:[#allocation8 + $0xc0] sm:$0xff]
      %v5294 = vld [vmem:[#allocation8 + $0xc8] sm:$0xff]
      %v5295 = vld [vmem:[#allocation8 + $0xd0] sm:$0xff]
      %v5296 = vld [vmem:[#allocation8 + $0xd8] sm:$0xff]
      %v5297 = vld [vmem:[#allocation8 + $0xe0] sm:$0xff]
      %v5298 = vld [vmem:[#allocation8 + $0xe8] sm:$0xff]
      %v5299 = vld [vmem:[#allocation8 + $0xf0] sm:$0xff]
      %v5300 = vld [vmem:[#allocation8 + $0xf8] sm:$0xff]
      %v5301 = vld [vmem:[#allocation8 + $0x100] sm:$0xff]
      %v5302 = vld [vmem:[#allocation8 + $0x108] sm:$0xff]
      %v5303 = vld [vmem:[#allocation8 + $0x110] sm:$0xff]
      %v5304 = vld [vmem:[#allocation8 + $0x118] sm:$0xff]
      %v5305 = vld [vmem:[#allocation8 + $0x120] sm:$0xff]
      %v5306 = vld [vmem:[#allocation8 + $0x128] sm:$0xff]
      %v5307 = vld [vmem:[#allocation8 + $0x130] sm:$0xff]
      %v5308 = vld [vmem:[#allocation8 + $0x138] sm:$0xff]
      %v5309 = vld [vmem:[#allocation8 + $0x140] sm:$0xff]
      %v5310 = vld [vmem:[#allocation8 + $0x148] sm:$0xff]
      %v5311 = vld [vmem:[#allocation8 + $0x150] sm:$0xff]
      %v5312 = vld [vmem:[#allocation8 + $0x158] sm:$0xff]
      %v5313 = vld [vmem:[#allocation8 + $0x160] sm:$0xff]
      %v5314 = vld [vmem:[#allocation8 + $0x168] sm:$0xff]
      %v5315 = vld [vmem:[#allocation8 + $0x170] sm:$0xff]
      %v5316 = vld [vmem:[#allocation8 + $0x178] sm:$0xff]
      %5317 = vmatprep.subr.mxu0 %v5270
      %5318 = vmatpush1.msra.mxu0 %v5269
      %5319 = vmatprep.subr.mxu0 %v5273
      %5320 = vmatpush1.msra.mxu0 %v5272
      %5321 = vmatprep.subr.mxu0 %v5276
      %5322 = vmatpush1.msra.mxu0 %v5275
      %5323 = vmatprep.subr.mxu0 %v5279
      %5324 = vmatpush1.msra.mxu0 %v5278
      %5325 = vmatprep.subr.mxu0 %v5282
      %5326 = vmatpush1.msra.mxu0 %v5281
      %5327 = vmatprep.subr.mxu0 %v5285
      %5328 = vmatpush1.msra.mxu0 %v5284
      %5329 = vmatprep.subr.mxu0 %v5288
      %5330 = vmatpush1.msra.mxu0 %v5287
      %5331 = vmatprep.subr.mxu0 %v5291
      %5332 = vmatpush1.msra.mxu0 %v5290
      %5333 = vmatprep.subr.mxu0 %v5294
      %5334 = vmatpush1.msra.mxu0 %v5293
      %5335 = vmatprep.subr.mxu0 %v5297
      %5336 = vmatpush1.msra.mxu0 %v5296
      %5337 = vmatprep.subr.mxu0 %v5300
      %5338 = vmatpush1.msra.mxu0 %v5299
      %5339 = vmatprep.subr.mxu0 %v5303
      %5340 = vmatpush1.msra.mxu0 %v5302
      %5341 = vmatprep.subr.mxu0 %v5306
      %5342 = vmatpush1.msra.mxu0 %v5305
      %5343 = vmatprep.subr.mxu0 %v5309
      %5344 = vmatpush1.msra.mxu0 %v5308
      %5345 = vmatprep.subr.mxu0 %v5312
      %5346 = vmatpush1.msra.mxu0 %v5311
      %5347 = vmatprep.subr.mxu0 %v5315
      %5348 = vmatpush1.msra.mxu0 %v5314
      %5349 = vmatprep.subr.mxu0 0.0
      %5350 = vmatpush1.msra.mxu0 0.0
      %5351 = vmatprep.subr.mxu0 0.0
      %5352 = vmatpush1.msra.mxu0 0.0
      %5353 = vmatprep.subr.mxu0 0.0
      %5354 = vmatpush1.msra.mxu0 0.0
      %5355 = vmatprep.subr.mxu0 0.0
      %5356 = vmatpush1.msra.mxu0 0.0
      %5357 = vmatprep.subr.mxu0 0.0
      %5358 = vmatpush1.msra.mxu0 0.0
      %5359 = vmatprep.subr.mxu0 0.0
      %5360 = vmatpush1.msra.mxu0 0.0
      %5361 = vmatprep.subr.mxu0 0.0
      %5362 = vmatpush1.msra.mxu0 0.0
      %5363 = vmatprep.subr.mxu0 0.0
      %5364 = vmatpush1.msra.mxu0 0.0
      %5365 = vmatprep.subr.mxu0 0.0
      %5366 = vmatpush1.msra.mxu0 0.0
      %5367 = vmatprep.subr.mxu0 0.0
      %5368 = vmatpush1.msra.mxu0 0.0
      %5369 = vmatprep.subr.mxu0 0.0
      %5370 = vmatpush1.msra.mxu0 0.0
      %5371 = vmatprep.subr.mxu0 0.0
      %5372 = vmatpush1.msra.mxu0 0.0
      %5373 = vmatprep.subr.mxu0 0.0
      %5374 = vmatpush1.msra.mxu0 0.0
      %5375 = vmatprep.subr.mxu0 0.0
      %5376 = vmatpush1.msra.mxu0 0.0
      %5377 = vmatprep.subr.mxu0 0.0
      %5378 = vmatpush1.msra.mxu0 0.0
      %5379 = vmatprep.subr.mxu0 0.0
      %5380 = vmatpush1.msra.mxu0 0.0
      %5381 = vmatprep.mubr.f32.mxu0 0.0
      %5382 = vmatmul.mubr.f32.gmra.mrb[0].mxu0 %v5268
      %v5383 = vpop.f32.mrb[0].mxu0
      %v5384 = vadd.f32 %v450, %v5383
      %v5385 = vpop.f32.mrb[0].mxu0
      %v5386 = vadd.f32 %v454, %v5385
      %5387 = vdwg.mxu0
      %5388 = vmatprep.subr.mxu0 0.0
      %5389 = vmatpush1.msra.mxu0 %v5271
      %5390 = vmatprep.subr.mxu0 0.0
      %5391 = vmatpush1.msra.mxu0 %v5274
      %5392 = vmatprep.subr.mxu0 0.0
      %5393 = vmatpush1.msra.mxu0 %v5277
      %5394 = vmatprep.subr.mxu0 0.0
      %5395 = vmatpush1.msra.mxu0 %v5280
      %5396 = vmatprep.subr.mxu0 0.0
      %5397 = vmatpush1.msra.mxu0 %v5283
      %5398 = vmatprep.subr.mxu0 0.0
      %5399 = vmatpush1.msra.mxu0 %v5286
      %5400 = vmatprep.subr.mxu0 0.0
      %5401 = vmatpush1.msra.mxu0 %v5289
      %5402 = vmatprep.subr.mxu0 0.0
      %5403 = vmatpush1.msra.mxu0 %v5292
      %5404 = vmatprep.subr.mxu0 0.0
      %5405 = vmatpush1.msra.mxu0 %v5295
      %5406 = vmatprep.subr.mxu0 0.0
      %5407 = vmatpush1.msra.mxu0 %v5298
      %5408 = vmatprep.subr.mxu0 0.0
      %5409 = vmatpush1.msra.mxu0 %v5301
      %5410 = vmatprep.subr.mxu0 0.0
      %5411 = vmatpush1.msra.mxu0 %v5304
      %5412 = vmatprep.subr.mxu0 0.0
      %5413 = vmatpush1.msra.mxu0 %v5307
      %5414 = vmatprep.subr.mxu0 0.0
      %5415 = vmatpush1.msra.mxu0 %v5310
      %5416 = vmatprep.subr.mxu0 0.0
      %5417 = vmatpush1.msra.mxu0 %v5313
      %5418 = vmatprep.subr.mxu0 0.0
      %5419 = vmatpush1.msra.mxu0 %v5316
      %5420 = vmatprep.subr.mxu0 0.0
      %5421 = vmatpush1.msra.mxu0 0.0
      %5422 = vmatprep.subr.mxu0 0.0
      %5423 = vmatpush1.msra.mxu0 0.0
      %5424 = vmatprep.subr.mxu0 0.0
      %5425 = vmatpush1.msra.mxu0 0.0
      %5426 = vmatprep.subr.mxu0 0.0
      %5427 = vmatpush1.msra.mxu0 0.0
      %5428 = vmatprep.subr.mxu0 0.0
      %5429 = vmatpush1.msra.mxu0 0.0
      %5430 = vmatprep.subr.mxu0 0.0
      %5431 = vmatpush1.msra.mxu0 0.0
      %5432 = vmatprep.subr.mxu0 0.0
      %5433 = vmatpush1.msra.mxu0 0.0
      %5434 = vmatprep.subr.mxu0 0.0
      %5435 = vmatpush1.msra.mxu0 0.0
      %5436 = vmatprep.subr.mxu0 0.0
      %5437 = vmatpush1.msra.mxu0 0.0
      %5438 = vmatprep.subr.mxu0 0.0
      %5439 = vmatpush1.msra.mxu0 0.0
      %5440 = vmatprep.subr.mxu0 0.0
      %5441 = vmatpush1.msra.mxu0 0.0
      %5442 = vmatprep.subr.mxu0 0.0
      %5443 = vmatpush1.msra.mxu0 0.0
      %5444 = vmatprep.subr.mxu0 0.0
      %5445 = vmatpush1.msra.mxu0 0.0
      %5446 = vmatprep.subr.mxu0 0.0
      %5447 = vmatpush1.msra.mxu0 0.0
      %5448 = vmatprep.subr.mxu0 0.0
      %5449 = vmatpush1.msra.mxu0 0.0
      %5450 = vmatprep.subr.mxu0 0.0
      %5451 = vmatpush1.msra.mxu0 0.0
      %5452 = vmatprep.mubr.f32.mxu0 0.0
      %5453 = vmatmul.mubr.f32.gmra.mrb[0].mxu0 %v5268
      %v5454 = vpop.f32.mrb[0].mxu0
      %v5455 = vadd.f32 %v458, %v5454
      %v5456 = vpop.f32.mrb[0].mxu0
      %5457 = vdwg.mxu0
      %v5458 = vadd.f32 %v5099, %v607
      %v5459 = vadd.f32 %v5101, %v611
      %v5460 = vadd.f32 %v5170, %v615
      %v5461 = vadd.f32 %v5384, %v5458
      %v5462 = vadd.f32 %v5386, %v5459
      %v5463 = vxor.u32 %v5461, 2147483648
      %v5464 = vxor.u32 %v5462, 2147483648
      %v5465 = vmul.f32 %v5463, 1.442695
      %v5466 = vpow.pop %v5465
      %v5467 = vmul.f32 %v5464, 1.442695
      %v5468 = vpow.pop %v5467
      %v5469 = vadd.f32 %v5466, 1.0
      %v5470 = vadd.f32 %v5468, 1.0
      %v5471 = vrcp.pop %v5469
      %v5472 = vmul.f32 1.0, %v5471
      %v5473 = vrcp.pop %v5470
      %v5474 = vmul.f32 1.0, %v5473
      %v5475 = vmul.f32 %v5472, %v5460
      %v5476 = vadd.f32 %v5455, %v5475
      %v5477 = vtanh.pop %v5476
      %v5478 = vsub.f32 1.0, %v5474
      %v5479 = vmul.f32 %v5478, %v5477
      %v5480 = vmul.f32 %v5474, %v4877
      %v5481 = vadd.f32 %v5479, %v5480
      %s5482 = scalar_lea.vmem [#allocation2], %s4880
      %5483 = vst [vmem:[%s5482] sm:$0x1] %v5481
      %s5484 = sadd.s32 %s651, 9
      %v5485 = vld [vmem:[#allocation6] sm:$0xff]
      %v5486 = vld [vmem:[#allocation6 + $0x8] sm:$0xff]
      %v5487 = vld [vmem:[#allocation6 + $0x10] sm:$0xff]
      %v5488 = vld [vmem:[#allocation6 + $0x18] sm:$0xff]
      %v5489 = vld [vmem:[#allocation6 + $0x20] sm:$0xff]
      %v5490 = vld [vmem:[#allocation6 + $0x28] sm:$0xff]
      %v5491 = vld [vmem:[#allocation6 + $0x30] sm:$0xff]
      %v5492 = vld [vmem:[#allocation6 + $0x38] sm:$0xff]
      %v5493 = vld [vmem:[#allocation6 + $0x40] sm:$0xff]
      %v5494 = vld [vmem:[#allocation6 + $0x48] sm:$0xff]
      %v5495 = vld [vmem:[#allocation6 + $0x50] sm:$0xff]
      %v5496 = vld [vmem:[#allocation6 + $0x58] sm:$0xff]
      %v5497 = vld [vmem:[#allocation6 + $0x60] sm:$0xff]
      %v5498 = vld [vmem:[#allocation6 + $0x68] sm:$0xff]
      %v5499 = vld [vmem:[#allocation6 + $0x70] sm:$0xff]
      %v5500 = vld [vmem:[#allocation6 + $0x78] sm:$0xff]
      %v5501 = vld [vmem:[#allocation6 + $0x80] sm:$0xff]
      %v5502 = vld [vmem:[#allocation6 + $0x88] sm:$0xff]
      %v5503 = vld [vmem:[#allocation6 + $0x90] sm:$0xff]
      %v5504 = vld [vmem:[#allocation6 + $0x98] sm:$0xff]
      %v5505 = vld [vmem:[#allocation6 + $0xa0] sm:$0xff]
      %v5506 = vld [vmem:[#allocation6 + $0xa8] sm:$0xff]
      %v5507 = vld [vmem:[#allocation6 + $0xb0] sm:$0xff]
      %v5508 = vld [vmem:[#allocation6 + $0xb8] sm:$0xff]
      %v5509 = vld [vmem:[#allocation6 + $0xc0] sm:$0xff]
      %v5510 = vld [vmem:[#allocation6 + $0xc8] sm:$0xff]
      %v5511 = vld [vmem:[#allocation6 + $0xd0] sm:$0xff]
      %v5512 = vld [vmem:[#allocation6 + $0xd8] sm:$0xff]
      %v5513 = vld [vmem:[#allocation6 + $0xe0] sm:$0xff]
      %v5514 = vld [vmem:[#allocation6 + $0xe8] sm:$0xff]
      %v5515 = vld [vmem:[#allocation6 + $0xf0] sm:$0xff]
      %v5516 = vld [vmem:[#allocation6 + $0xf8] sm:$0xff]
      %v5517 = vld [vmem:[#allocation6 + $0x100] sm:$0xff]
      %v5518 = vld [vmem:[#allocation6 + $0x108] sm:$0xff]
      %v5519 = vld [vmem:[#allocation6 + $0x110] sm:$0xff]
      %v5520 = vld [vmem:[#allocation6 + $0x118] sm:$0xff]
      %v5521 = vld [vmem:[#allocation6 + $0x120] sm:$0xff]
      %v5522 = vld [vmem:[#allocation6 + $0x128] sm:$0xff]
      %v5523 = vld [vmem:[#allocation6 + $0x130] sm:$0xff]
      %v5524 = vld [vmem:[#allocation6 + $0x138] sm:$0xff]
      %v5525 = vld [vmem:[#allocation6 + $0x140] sm:$0xff]
      %v5526 = vld [vmem:[#allocation6 + $0x148] sm:$0xff]
      %v5527 = vld [vmem:[#allocation6 + $0x150] sm:$0xff]
      %v5528 = vld [vmem:[#allocation6 + $0x158] sm:$0xff]
      %v5529 = vld [vmem:[#allocation6 + $0x160] sm:$0xff]
      %v5530 = vld [vmem:[#allocation6 + $0x168] sm:$0xff]
      %v5531 = vld [vmem:[#allocation6 + $0x170] sm:$0xff]
      %v5532 = vld [vmem:[#allocation6 + $0x178] sm:$0xff]
      %v5533 = vld [vmem:[#allocation6 + $0x180] sm:$0xff]
      %v5534 = vld [vmem:[#allocation6 + $0x188] sm:$0xff]
      %v5535 = vld [vmem:[#allocation6 + $0x190] sm:$0xff]
      %v5536 = vld [vmem:[#allocation6 + $0x198] sm:$0xff]
      %v5537 = vld [vmem:[#allocation6 + $0x1a0] sm:$0xff]
      %v5538 = vld [vmem:[#allocation6 + $0x1a8] sm:$0xff]
      %v5539 = vld [vmem:[#allocation6 + $0x1b0] sm:$0xff]
      %v5540 = vld [vmem:[#allocation6 + $0x1b8] sm:$0xff]
      %v5541 = vld [vmem:[#allocation6 + $0x1c0] sm:$0xff]
      %v5542 = vld [vmem:[#allocation6 + $0x1c8] sm:$0xff]
      %v5543 = vld [vmem:[#allocation6 + $0x1d0] sm:$0xff]
      %v5544 = vld [vmem:[#allocation6 + $0x1d8] sm:$0xff]
      %v5545 = vld [vmem:[#allocation6 + $0x1e0] sm:$0xff]
      %v5546 = vld [vmem:[#allocation6 + $0x1e8] sm:$0xff]
      %v5547 = vld [vmem:[#allocation6 + $0x1f0] sm:$0xff]
      %v5548 = vld [vmem:[#allocation6 + $0x1f8] sm:$0xff]
      %v5549 = vld [vmem:[#allocation6 + $0x200] sm:$0xff]
      %v5550 = vld [vmem:[#allocation6 + $0x208] sm:$0xff]
      %v5551 = vld [vmem:[#allocation6 + $0x210] sm:$0xff]
      %v5552 = vld [vmem:[#allocation6 + $0x218] sm:$0xff]
      %v5553 = vld [vmem:[#allocation6 + $0x220] sm:$0xff]
      %v5554 = vld [vmem:[#allocation6 + $0x228] sm:$0xff]
      %v5555 = vld [vmem:[#allocation6 + $0x230] sm:$0xff]
      %v5556 = vld [vmem:[#allocation6 + $0x238] sm:$0xff]
      %v5557 = vld [vmem:[#allocation6 + $0x240] sm:$0xff]
      %v5558 = vld [vmem:[#allocation6 + $0x248] sm:$0xff]
      %v5559 = vld [vmem:[#allocation6 + $0x250] sm:$0xff]
      %v5560 = vld [vmem:[#allocation6 + $0x258] sm:$0xff]
      %v5561 = vld [vmem:[#allocation6 + $0x260] sm:$0xff]
      %v5562 = vld [vmem:[#allocation6 + $0x268] sm:$0xff]
      %v5563 = vld [vmem:[#allocation6 + $0x270] sm:$0xff]
      %v5564 = vld [vmem:[#allocation6 + $0x278] sm:$0xff]
      %5565 = vmatprep.subr.mxu0 %v5486
      %5566 = vmatpush1.msra.mxu0 %v5485
      %5567 = vmatprep.subr.mxu0 %v5491
      %5568 = vmatpush1.msra.mxu0 %v5490
      %5569 = vmatprep.subr.mxu0 %v5496
      %5570 = vmatpush1.msra.mxu0 %v5495
      %5571 = vmatprep.subr.mxu0 %v5501
      %5572 = vmatpush1.msra.mxu0 %v5500
      %5573 = vmatprep.subr.mxu0 %v5506
      %5574 = vmatpush1.msra.mxu0 %v5505
      %5575 = vmatprep.subr.mxu0 %v5511
      %5576 = vmatpush1.msra.mxu0 %v5510
      %5577 = vmatprep.subr.mxu0 %v5516
      %5578 = vmatpush1.msra.mxu0 %v5515
      %5579 = vmatprep.subr.mxu0 %v5521
      %5580 = vmatpush1.msra.mxu0 %v5520
      %5581 = vmatprep.subr.mxu0 %v5526
      %5582 = vmatpush1.msra.mxu0 %v5525
      %5583 = vmatprep.subr.mxu0 %v5531
      %5584 = vmatpush1.msra.mxu0 %v5530
      %5585 = vmatprep.subr.mxu0 %v5536
      %5586 = vmatpush1.msra.mxu0 %v5535
      %5587 = vmatprep.subr.mxu0 %v5541
      %5588 = vmatpush1.msra.mxu0 %v5540
      %5589 = vmatprep.subr.mxu0 %v5546
      %5590 = vmatpush1.msra.mxu0 %v5545
      %5591 = vmatprep.subr.mxu0 %v5551
      %5592 = vmatpush1.msra.mxu0 %v5550
      %5593 = vmatprep.subr.mxu0 %v5556
      %5594 = vmatpush1.msra.mxu0 %v5555
      %5595 = vmatprep.subr.mxu0 %v5561
      %5596 = vmatpush1.msra.mxu0 %v5560
      %5597 = vmatprep.subr.mxu0 0.0
      %5598 = vmatpush1.msra.mxu0 0.0
      %5599 = vmatprep.subr.mxu0 0.0
      %5600 = vmatpush1.msra.mxu0 0.0
      %5601 = vmatprep.subr.mxu0 0.0
      %5602 = vmatpush1.msra.mxu0 0.0
      %5603 = vmatprep.subr.mxu0 0.0
      %5604 = vmatpush1.msra.mxu0 0.0
      %5605 = vmatprep.subr.mxu0 0.0
      %5606 = vmatpush1.msra.mxu0 0.0
      %5607 = vmatprep.subr.mxu0 0.0
      %5608 = vmatpush1.msra.mxu0 0.0
      %5609 = vmatprep.subr.mxu0 0.0
      %5610 = vmatpush1.msra.mxu0 0.0
      %5611 = vmatprep.subr.mxu0 0.0
      %5612 = vmatpush1.msra.mxu0 0.0
      %5613 = vmatprep.subr.mxu0 0.0
      %5614 = vmatpush1.msra.mxu0 0.0
      %5615 = vmatprep.subr.mxu0 0.0
      %5616 = vmatpush1.msra.mxu0 0.0
      %5617 = vmatprep.subr.mxu0 0.0
      %5618 = vmatpush1.msra.mxu0 0.0
      %5619 = vmatprep.subr.mxu0 0.0
      %5620 = vmatpush1.msra.mxu0 0.0
      %5621 = vmatprep.subr.mxu0 0.0
      %5622 = vmatpush1.msra.mxu0 0.0
      %5623 = vmatprep.subr.mxu0 0.0
      %5624 = vmatpush1.msra.mxu0 0.0
      %5625 = vmatprep.subr.mxu0 0.0
      %5626 = vmatpush1.msra.mxu0 0.0
      %5627 = vmatprep.subr.mxu0 0.0
      %5628 = vmatpush1.msra.mxu0 0.0
      %5629 = vmatprep.mubr.f32.mxu0 0.0
      %5630 = vmatmul.mubr.f32.gmra.mrb[0].mxu0 %v5481
      %v5631 = vpop.f32.mrb[0].mxu0
      %v5632 = vadd.f32 0.0, %v5631
      %v5633 = vpop.f32.mrb[0].mxu0
      %v5634 = vadd.f32 0.0, %v5633
      %5635 = vdwg.mxu0
      %5636 = vmatprep.subr.mxu0 %v5488
      %5637 = vmatpush1.msra.mxu0 %v5487
      %5638 = vmatprep.subr.mxu0 %v5493
      %5639 = vmatpush1.msra.mxu0 %v5492
      %5640 = vmatprep.subr.mxu0 %v5498
      %5641 = vmatpush1.msra.mxu0 %v5497
      %5642 = vmatprep.subr.mxu0 %v5503
      %5643 = vmatpush1.msra.mxu0 %v5502
      %5644 = vmatprep.subr.mxu0 %v5508
      %5645 = vmatpush1.msra.mxu0 %v5507
      %5646 = vmatprep.subr.mxu0 %v5513
      %5647 = vmatpush1.msra.mxu0 %v5512
      %5648 = vmatprep.subr.mxu0 %v5518
      %5649 = vmatpush1.msra.mxu0 %v5517
      %5650 = vmatprep.subr.mxu0 %v5523
      %5651 = vmatpush1.msra.mxu0 %v5522
      %5652 = vmatprep.subr.mxu0 %v5528
      %5653 = vmatpush1.msra.mxu0 %v5527
      %5654 = vmatprep.subr.mxu0 %v5533
      %5655 = vmatpush1.msra.mxu0 %v5532
      %5656 = vmatprep.subr.mxu0 %v5538
      %5657 = vmatpush1.msra.mxu0 %v5537
      %5658 = vmatprep.subr.mxu0 %v5543
      %5659 = vmatpush1.msra.mxu0 %v5542
      %5660 = vmatprep.subr.mxu0 %v5548
      %5661 = vmatpush1.msra.mxu0 %v5547
      %5662 = vmatprep.subr.mxu0 %v5553
      %5663 = vmatpush1.msra.mxu0 %v5552
      %5664 = vmatprep.subr.mxu0 %v5558
      %5665 = vmatpush1.msra.mxu0 %v5557
      %5666 = vmatprep.subr.mxu0 %v5563
      %5667 = vmatpush1.msra.mxu0 %v5562
      %5668 = vmatprep.subr.mxu0 0.0
      %5669 = vmatpush1.msra.mxu0 0.0
      %5670 = vmatprep.subr.mxu0 0.0
      %5671 = vmatpush1.msra.mxu0 0.0
      %5672 = vmatprep.subr.mxu0 0.0
      %5673 = vmatpush1.msra.mxu0 0.0
      %5674 = vmatprep.subr.mxu0 0.0
      %5675 = vmatpush1.msra.mxu0 0.0
      %5676 = vmatprep.subr.mxu0 0.0
      %5677 = vmatpush1.msra.mxu0 0.0
      %5678 = vmatprep.subr.mxu0 0.0
      %5679 = vmatpush1.msra.mxu0 0.0
      %5680 = vmatprep.subr.mxu0 0.0
      %5681 = vmatpush1.msra.mxu0 0.0
      %5682 = vmatprep.subr.mxu0 0.0
      %5683 = vmatpush1.msra.mxu0 0.0
      %5684 = vmatprep.subr.mxu0 0.0
      %5685 = vmatpush1.msra.mxu0 0.0
      %5686 = vmatprep.subr.mxu0 0.0
      %5687 = vmatpush1.msra.mxu0 0.0
      %5688 = vmatprep.subr.mxu0 0.0
      %5689 = vmatpush1.msra.mxu0 0.0
      %5690 = vmatprep.subr.mxu0 0.0
      %5691 = vmatpush1.msra.mxu0 0.0
      %5692 = vmatprep.subr.mxu0 0.0
      %5693 = vmatpush1.msra.mxu0 0.0
      %5694 = vmatprep.subr.mxu0 0.0
      %5695 = vmatpush1.msra.mxu0 0.0
      %5696 = vmatprep.subr.mxu0 0.0
      %5697 = vmatpush1.msra.mxu0 0.0
      %5698 = vmatprep.subr.mxu0 0.0
      %5699 = vmatpush1.msra.mxu0 0.0
      %5700 = vmatprep.mubr.f32.mxu0 0.0
      %5701 = vmatmul.mubr.f32.gmra.mrb[0].mxu0 %v5481
      %v5702 = vpop.f32.mrb[0].mxu0
      %v5703 = vadd.f32 0.0, %v5702
      %v5704 = vpop.f32.mrb[0].mxu0
      %v5705 = vadd.f32 0.0, %v5704
      %5706 = vdwg.mxu0
      %5707 = vmatprep.subr.mxu0 0.0
      %5708 = vmatpush1.msra.mxu0 %v5489
      %5709 = vmatprep.subr.mxu0 0.0
      %5710 = vmatpush1.msra.mxu0 %v5494
      %5711 = vmatprep.subr.mxu0 0.0
      %5712 = vmatpush1.msra.mxu0 %v5499
      %5713 = vmatprep.subr.mxu0 0.0
      %5714 = vmatpush1.msra.mxu0 %v5504
      %5715 = vmatprep.subr.mxu0 0.0
      %5716 = vmatpush1.msra.mxu0 %v5509
      %5717 = vmatprep.subr.mxu0 0.0
      %5718 = vmatpush1.msra.mxu0 %v5514
      %5719 = vmatprep.subr.mxu0 0.0
      %5720 = vmatpush1.msra.mxu0 %v5519
      %5721 = vmatprep.subr.mxu0 0.0
      %5722 = vmatpush1.msra.mxu0 %v5524
      %5723 = vmatprep.subr.mxu0 0.0
      %5724 = vmatpush1.msra.mxu0 %v5529
      %5725 = vmatprep.subr.mxu0 0.0
      %5726 = vmatpush1.msra.mxu0 %v5534
      %5727 = vmatprep.subr.mxu0 0.0
      %5728 = vmatpush1.msra.mxu0 %v5539
      %5729 = vmatprep.subr.mxu0 0.0
      %5730 = vmatpush1.msra.mxu0 %v5544
      %5731 = vmatprep.subr.mxu0 0.0
      %5732 = vmatpush1.msra.mxu0 %v5549
      %5733 = vmatprep.subr.mxu0 0.0
      %5734 = vmatpush1.msra.mxu0 %v5554
      %5735 = vmatprep.subr.mxu0 0.0
      %5736 = vmatpush1.msra.mxu0 %v5559
      %5737 = vmatprep.subr.mxu0 0.0
      %5738 = vmatpush1.msra.mxu0 %v5564
      %5739 = vmatprep.subr.mxu0 0.0
      %5740 = vmatpush1.msra.mxu0 0.0
      %5741 = vmatprep.subr.mxu0 0.0
      %5742 = vmatpush1.msra.mxu0 0.0
      %5743 = vmatprep.subr.mxu0 0.0
      %5744 = vmatpush1.msra.mxu0 0.0
      %5745 = vmatprep.subr.mxu0 0.0
      %5746 = vmatpush1.msra.mxu0 0.0
      %5747 = vmatprep.subr.mxu0 0.0
      %5748 = vmatpush1.msra.mxu0 0.0
      %5749 = vmatprep.subr.mxu0 0.0
      %5750 = vmatpush1.msra.mxu0 0.0
      %5751 = vmatprep.subr.mxu0 0.0
      %5752 = vmatpush1.msra.mxu0 0.0
      %5753 = vmatprep.subr.mxu0 0.0
      %5754 = vmatpush1.msra.mxu0 0.0
      %5755 = vmatprep.subr.mxu0 0.0
      %5756 = vmatpush1.msra.mxu0 0.0
      %5757 = vmatprep.subr.mxu0 0.0
      %5758 = vmatpush1.msra.mxu0 0.0
      %5759 = vmatprep.subr.mxu0 0.0
      %5760 = vmatpush1.msra.mxu0 0.0
      %5761 = vmatprep.subr.mxu0 0.0
      %5762 = vmatpush1.msra.mxu0 0.0
      %5763 = vmatprep.subr.mxu0 0.0
      %5764 = vmatpush1.msra.mxu0 0.0
      %5765 = vmatprep.subr.mxu0 0.0
      %5766 = vmatpush1.msra.mxu0 0.0
      %5767 = vmatprep.subr.mxu0 0.0
      %5768 = vmatpush1.msra.mxu0 0.0
      %5769 = vmatprep.subr.mxu0 0.0
      %5770 = vmatpush1.msra.mxu0 0.0
      %5771 = vmatprep.mubr.f32.mxu0 0.0
      %5772 = vmatmul.mubr.f32.gmra.mrb[0].mxu0 %v5481
      %v5773 = vpop.f32.mrb[0].mxu0
      %v5774 = vadd.f32 0.0, %v5773
      %v5775 = vpop.f32.mrb[0].mxu0
      %5776 = vdwg.mxu0
      %v5777 = vadd.f32 %v5632, %v89
      %v5778 = vsel %vm301, %v5777, -inf
      %5779 = vmax.xlane.f32.xlu0 %v5778
      %v5780 = vpop.xlane.xlu0 %5779
      %v5781 = vsub.f32 %v5777, %v5780
      %v5782 = vmul.f32 %v5781, 1.442695
      %v5783 = vpow.pop %v5782
      %v5784 = vld [vmem:[%s1] sm:$0xff]
      %v5785 = vld [vmem:[%s1 + $0x8] sm:$0xff]
      %v5786 = vld [vmem:[%s1 + $0x10] sm:$0xff]
      %v5787 = vld [vmem:[%s1 + $0x18] sm:$0xff]
      %v5788 = vld [vmem:[%s1 + $0x20] sm:$0xff]
      %v5789 = vld [vmem:[%s1 + $0x28] sm:$0xff]
      %v5790 = vld [vmem:[%s1 + $0x30] sm:$0xff]
      %v5791 = vld [vmem:[%s1 + $0x38] sm:$0xff]
      %v5793 = vsel %vm316, %v5783, 0
      %5795 = vmatprep.subr.mxu0 0.0
      %5796 = vmatpush1.msra.mxu0 %v5784
      %5797 = vmatprep.subr.mxu0 0.0
      %5798 = vmatpush1.msra.mxu0 %v5785
      %5799 = vmatprep.subr.mxu0 0.0
      %5800 = vmatpush1.msra.mxu0 %v5786
      %5801 = vmatprep.subr.mxu0 0.0
      %5802 = vmatpush1.msra.mxu0 %v5787
      %5803 = vmatprep.subr.mxu0 0.0
      %5804 = vmatpush1.msra.mxu0 %v5788
      %5805 = vmatprep.subr.mxu0 0.0
      %5806 = vmatpush1.msra.mxu0 %v5789
      %5807 = vmatprep.subr.mxu0 0.0
      %5808 = vmatpush1.msra.mxu0 %v5790
      %5809 = vmatprep.subr.mxu0 0.0
      %5810 = vmatpush1.msra.mxu0 %v5791
      %5811 = vmatprep.subr.mxu0 0.0
      %5812 = vmatpush1.msra.mxu0 0.0
      %5813 = vmatprep.subr.mxu0 0.0
      %5814 = vmatpush1.msra.mxu0 0.0
      %5815 = vmatprep.subr.mxu0 0.0
      %5816 = vmatpush1.msra.mxu0 0.0
      %5817 = vmatprep.subr.mxu0 0.0
      %5818 = vmatpush1.msra.mxu0 0.0
      %5819 = vmatprep.subr.mxu0 0.0
      %5820 = vmatpush1.msra.mxu0 0.0
      %5821 = vmatprep.subr.mxu0 0.0
      %5822 = vmatpush1.msra.mxu0 0.0
      %5823 = vmatprep.subr.mxu0 0.0
      %5824 = vmatpush1.msra.mxu0 0.0
      %5825 = vmatprep.subr.mxu0 0.0
      %5826 = vmatpush1.msra.mxu0 0.0
      %5827 = vmatprep.subr.mxu0 0.0
      %5828 = vmatpush1.msra.mxu0 0.0
      %5829 = vmatprep.subr.mxu0 0.0
      %5830 = vmatpush1.msra.mxu0 0.0
      %5831 = vmatprep.subr.mxu0 0.0
      %5832 = vmatpush1.msra.mxu0 0.0
      %5833 = vmatprep.subr.mxu0 0.0
      %5834 = vmatpush1.msra.mxu0 0.0
      %5835 = vmatprep.subr.mxu0 0.0
      %5836 = vmatpush1.msra.mxu0 0.0
      %5837 = vmatprep.subr.mxu0 0.0
      %5838 = vmatpush1.msra.mxu0 0.0
      %5839 = vmatprep.subr.mxu0 0.0
      %5840 = vmatpush1.msra.mxu0 0.0
      %5841 = vmatprep.subr.mxu0 0.0
      %5842 = vmatpush1.msra.mxu0 0.0
      %5843 = vmatprep.subr.mxu0 0.0
      %5844 = vmatpush1.msra.mxu0 0.0
      %5845 = vmatprep.subr.mxu0 0.0
      %5846 = vmatpush1.msra.mxu0 0.0
      %5847 = vmatprep.subr.mxu0 0.0
      %5848 = vmatpush1.msra.mxu0 0.0
      %5849 = vmatprep.subr.mxu0 0.0
      %5850 = vmatpush1.msra.mxu0 0.0
      %5851 = vmatprep.subr.mxu0 0.0
      %5852 = vmatpush1.msra.mxu0 0.0
      %5853 = vmatprep.subr.mxu0 0.0
      %5854 = vmatpush1.msra.mxu0 0.0
      %5855 = vmatprep.subr.mxu0 0.0
      %5856 = vmatpush1.msra.mxu0 0.0
      %5857 = vmatprep.subr.mxu0 0.0
      %5858 = vmatpush1.msra.mxu0 0.0
      %5859 = vmatprep.mubr.f32.mxu0 0.0
      %5860 = vmatmul.mubr.f32.gmra.mrb[0].mxu0 %v5793
      %v5861 = vpop.f32.mrb[0].mxu0
      %v5862 = vadd.f32 0.0, %v5861
      %v5863 = vpop.f32.mrb[0].mxu0
      %5864 = vdwg.mxu0
      %v5865 = vsel %vm301, %v5783, 0.0
      %5866 = vadd.xlane.f32.xlu0 %v5865
      %v5867 = vpop.xlane.xlu0 %5866
      %v5868 = vrcp.pop %v5867
      %v5869 = vmul.f32 %v5862, %v5868
      %v5870 = vadd.f32 %v5634, %v5869
      %v5871 = vadd.f32 %v5870, %v90
      %v5872 = vmax.f32 %v5871, 0.0
      %v5873 = vld [vmem:[#allocation8] sm:$0xff]
      %v5874 = vld [vmem:[#allocation8 + $0x8] sm:$0xff]
      %v5875 = vld [vmem:[#allocation8 + $0x10] sm:$0xff]
      %v5876 = vld [vmem:[#allocation8 + $0x18] sm:$0xff]
      %v5877 = vld [vmem:[#allocation8 + $0x20] sm:$0xff]
      %v5878 = vld [vmem:[#allocation8 + $0x28] sm:$0xff]
      %v5879 = vld [vmem:[#allocation8 + $0x30] sm:$0xff]
      %v5880 = vld [vmem:[#allocation8 + $0x38] sm:$0xff]
      %v5881 = vld [vmem:[#allocation8 + $0x40] sm:$0xff]
      %v5882 = vld [vmem:[#allocation8 + $0x48] sm:$0xff]
      %v5883 = vld [vmem:[#allocation8 + $0x50] sm:$0xff]
      %v5884 = vld [vmem:[#allocation8 + $0x58] sm:$0xff]
      %v5885 = vld [vmem:[#allocation8 + $0x60] sm:$0xff]
      %v5886 = vld [vmem:[#allocation8 + $0x68] sm:$0xff]
      %v5887 = vld [vmem:[#allocation8 + $0x70] sm:$0xff]
      %v5888 = vld [vmem:[#allocation8 + $0x78] sm:$0xff]
      %v5889 = vld [vmem:[#allocation8 + $0x80] sm:$0xff]
      %v5890 = vld [vmem:[#allocation8 + $0x88] sm:$0xff]
      %v5891 = vld [vmem:[#allocation8 + $0x90] sm:$0xff]
      %v5892 = vld [vmem:[#allocation8 + $0x98] sm:$0xff]
      %v5893 = vld [vmem:[#allocation8 + $0xa0] sm:$0xff]
      %v5894 = vld [vmem:[#allocation8 + $0xa8] sm:$0xff]
      %v5895 = vld [vmem:[#allocation8 + $0xb0] sm:$0xff]
      %v5896 = vld [vmem:[#allocation8 + $0xb8] sm:$0xff]
      %v5897 = vld [vmem:[#allocation8 + $0xc0] sm:$0xff]
      %v5898 = vld [vmem:[#allocation8 + $0xc8] sm:$0xff]
      %v5899 = vld [vmem:[#allocation8 + $0xd0] sm:$0xff]
      %v5900 = vld [vmem:[#allocation8 + $0xd8] sm:$0xff]
      %v5901 = vld [vmem:[#allocation8 + $0xe0] sm:$0xff]
      %v5902 = vld [vmem:[#allocation8 + $0xe8] sm:$0xff]
      %v5903 = vld [vmem:[#allocation8 + $0xf0] sm:$0xff]
      %v5904 = vld [vmem:[#allocation8 + $0xf8] sm:$0xff]
      %v5905 = vld [vmem:[#allocation8 + $0x100] sm:$0xff]
      %v5906 = vld [vmem:[#allocation8 + $0x108] sm:$0xff]
      %v5907 = vld [vmem:[#allocation8 + $0x110] sm:$0xff]
      %v5908 = vld [vmem:[#allocation8 + $0x118] sm:$0xff]
      %v5909 = vld [vmem:[#allocation8 + $0x120] sm:$0xff]
      %v5910 = vld [vmem:[#allocation8 + $0x128] sm:$0xff]
      %v5911 = vld [vmem:[#allocation8 + $0x130] sm:$0xff]
      %v5912 = vld [vmem:[#allocation8 + $0x138] sm:$0xff]
      %v5913 = vld [vmem:[#allocation8 + $0x140] sm:$0xff]
      %v5914 = vld [vmem:[#allocation8 + $0x148] sm:$0xff]
      %v5915 = vld [vmem:[#allocation8 + $0x150] sm:$0xff]
      %v5916 = vld [vmem:[#allocation8 + $0x158] sm:$0xff]
      %v5917 = vld [vmem:[#allocation8 + $0x160] sm:$0xff]
      %v5918 = vld [vmem:[#allocation8 + $0x168] sm:$0xff]
      %v5919 = vld [vmem:[#allocation8 + $0x170] sm:$0xff]
      %v5920 = vld [vmem:[#allocation8 + $0x178] sm:$0xff]
      %5921 = vmatprep.subr.mxu0 %v5874
      %5922 = vmatpush1.msra.mxu0 %v5873
      %5923 = vmatprep.subr.mxu0 %v5877
      %5924 = vmatpush1.msra.mxu0 %v5876
      %5925 = vmatprep.subr.mxu0 %v5880
      %5926 = vmatpush1.msra.mxu0 %v5879
      %5927 = vmatprep.subr.mxu0 %v5883
      %5928 = vmatpush1.msra.mxu0 %v5882
      %5929 = vmatprep.subr.mxu0 %v5886
      %5930 = vmatpush1.msra.mxu0 %v5885
      %5931 = vmatprep.subr.mxu0 %v5889
      %5932 = vmatpush1.msra.mxu0 %v5888
      %5933 = vmatprep.subr.mxu0 %v5892
      %5934 = vmatpush1.msra.mxu0 %v5891
      %5935 = vmatprep.subr.mxu0 %v5895
      %5936 = vmatpush1.msra.mxu0 %v5894
      %5937 = vmatprep.subr.mxu0 %v5898
      %5938 = vmatpush1.msra.mxu0 %v5897
      %5939 = vmatprep.subr.mxu0 %v5901
      %5940 = vmatpush1.msra.mxu0 %v5900
      %5941 = vmatprep.subr.mxu0 %v5904
      %5942 = vmatpush1.msra.mxu0 %v5903
      %5943 = vmatprep.subr.mxu0 %v5907
      %5944 = vmatpush1.msra.mxu0 %v5906
      %5945 = vmatprep.subr.mxu0 %v5910
      %5946 = vmatpush1.msra.mxu0 %v5909
      %5947 = vmatprep.subr.mxu0 %v5913
      %5948 = vmatpush1.msra.mxu0 %v5912
      %5949 = vmatprep.subr.mxu0 %v5916
      %5950 = vmatpush1.msra.mxu0 %v5915
      %5951 = vmatprep.subr.mxu0 %v5919
      %5952 = vmatpush1.msra.mxu0 %v5918
      %5953 = vmatprep.subr.mxu0 0.0
      %5954 = vmatpush1.msra.mxu0 0.0
      %5955 = vmatprep.subr.mxu0 0.0
      %5956 = vmatpush1.msra.mxu0 0.0
      %5957 = vmatprep.subr.mxu0 0.0
      %5958 = vmatpush1.msra.mxu0 0.0
      %5959 = vmatprep.subr.mxu0 0.0
      %5960 = vmatpush1.msra.mxu0 0.0
      %5961 = vmatprep.subr.mxu0 0.0
      %5962 = vmatpush1.msra.mxu0 0.0
      %5963 = vmatprep.subr.mxu0 0.0
      %5964 = vmatpush1.msra.mxu0 0.0
      %5965 = vmatprep.subr.mxu0 0.0
      %5966 = vmatpush1.msra.mxu0 0.0
      %5967 = vmatprep.subr.mxu0 0.0
      %5968 = vmatpush1.msra.mxu0 0.0
      %5969 = vmatprep.subr.mxu0 0.0
      %5970 = vmatpush1.msra.mxu0 0.0
      %5971 = vmatprep.subr.mxu0 0.0
      %5972 = vmatpush1.msra.mxu0 0.0
      %5973 = vmatprep.subr.mxu0 0.0
      %5974 = vmatpush1.msra.mxu0 0.0
      %5975 = vmatprep.subr.mxu0 0.0
      %5976 = vmatpush1.msra.mxu0 0.0
      %5977 = vmatprep.subr.mxu0 0.0
      %5978 = vmatpush1.msra.mxu0 0.0
      %5979 = vmatprep.subr.mxu0 0.0
      %5980 = vmatpush1.msra.mxu0 0.0
      %5981 = vmatprep.subr.mxu0 0.0
      %5982 = vmatpush1.msra.mxu0 0.0
      %5983 = vmatprep.subr.mxu0 0.0
      %5984 = vmatpush1.msra.mxu0 0.0
      %5985 = vmatprep.mubr.f32.mxu0 0.0
      %5986 = vmatmul.mubr.f32.gmra.mrb[0].mxu0 %v5872
      %v5987 = vpop.f32.mrb[0].mxu0
      %v5988 = vadd.f32 %v450, %v5987
      %v5989 = vpop.f32.mrb[0].mxu0
      %v5990 = vadd.f32 %v454, %v5989
      %5991 = vdwg.mxu0
      %5992 = vmatprep.subr.mxu0 0.0
      %5993 = vmatpush1.msra.mxu0 %v5875
      %5994 = vmatprep.subr.mxu0 0.0
      %5995 = vmatpush1.msra.mxu0 %v5878
      %5996 = vmatprep.subr.mxu0 0.0
      %5997 = vmatpush1.msra.mxu0 %v5881
      %5998 = vmatprep.subr.mxu0 0.0
      %5999 = vmatpush1.msra.mxu0 %v5884
      %6000 = vmatprep.subr.mxu0 0.0
      %6001 = vmatpush1.msra.mxu0 %v5887
      %6002 = vmatprep.subr.mxu0 0.0
      %6003 = vmatpush1.msra.mxu0 %v5890
      %6004 = vmatprep.subr.mxu0 0.0
      %6005 = vmatpush1.msra.mxu0 %v5893
      %6006 = vmatprep.subr.mxu0 0.0
      %6007 = vmatpush1.msra.mxu0 %v5896
      %6008 = vmatprep.subr.mxu0 0.0
      %6009 = vmatpush1.msra.mxu0 %v5899
      %6010 = vmatprep.subr.mxu0 0.0
      %6011 = vmatpush1.msra.mxu0 %v5902
      %6012 = vmatprep.subr.mxu0 0.0
      %6013 = vmatpush1.msra.mxu0 %v5905
      %6014 = vmatprep.subr.mxu0 0.0
      %6015 = vmatpush1.msra.mxu0 %v5908
      %6016 = vmatprep.subr.mxu0 0.0
      %6017 = vmatpush1.msra.mxu0 %v5911
      %6018 = vmatprep.subr.mxu0 0.0
      %6019 = vmatpush1.msra.mxu0 %v5914
      %6020 = vmatprep.subr.mxu0 0.0
      %6021 = vmatpush1.msra.mxu0 %v5917
      %6022 = vmatprep.subr.mxu0 0.0
      %6023 = vmatpush1.msra.mxu0 %v5920
      %6024 = vmatprep.subr.mxu0 0.0
      %6025 = vmatpush1.msra.mxu0 0.0
      %6026 = vmatprep.subr.mxu0 0.0
      %6027 = vmatpush1.msra.mxu0 0.0
      %6028 = vmatprep.subr.mxu0 0.0
      %6029 = vmatpush1.msra.mxu0 0.0
      %6030 = vmatprep.subr.mxu0 0.0
      %6031 = vmatpush1.msra.mxu0 0.0
      %6032 = vmatprep.subr.mxu0 0.0
      %6033 = vmatpush1.msra.mxu0 0.0
      %6034 = vmatprep.subr.mxu0 0.0
      %6035 = vmatpush1.msra.mxu0 0.0
      %6036 = vmatprep.subr.mxu0 0.0
      %6037 = vmatpush1.msra.mxu0 0.0
      %6038 = vmatprep.subr.mxu0 0.0
      %6039 = vmatpush1.msra.mxu0 0.0
      %6040 = vmatprep.subr.mxu0 0.0
      %6041 = vmatpush1.msra.mxu0 0.0
      %6042 = vmatprep.subr.mxu0 0.0
      %6043 = vmatpush1.msra.mxu0 0.0
      %6044 = vmatprep.subr.mxu0 0.0
      %6045 = vmatpush1.msra.mxu0 0.0
      %6046 = vmatprep.subr.mxu0 0.0
      %6047 = vmatpush1.msra.mxu0 0.0
      %6048 = vmatprep.subr.mxu0 0.0
      %6049 = vmatpush1.msra.mxu0 0.0
      %6050 = vmatprep.subr.mxu0 0.0
      %6051 = vmatpush1.msra.mxu0 0.0
      %6052 = vmatprep.subr.mxu0 0.0
      %6053 = vmatpush1.msra.mxu0 0.0
      %6054 = vmatprep.subr.mxu0 0.0
      %6055 = vmatpush1.msra.mxu0 0.0
      %6056 = vmatprep.mubr.f32.mxu0 0.0
      %6057 = vmatmul.mubr.f32.gmra.mrb[0].mxu0 %v5872
      %v6058 = vpop.f32.mrb[0].mxu0
      %v6059 = vadd.f32 %v458, %v6058
      %v6060 = vpop.f32.mrb[0].mxu0
      %6061 = vdwg.mxu0
      %v6062 = vadd.f32 %v5703, %v607
      %v6063 = vadd.f32 %v5705, %v611
      %v6064 = vadd.f32 %v5774, %v615
      %v6065 = vadd.f32 %v5988, %v6062
      %v6066 = vadd.f32 %v5990, %v6063
      %v6067 = vxor.u32 %v6065, 2147483648
      %v6068 = vxor.u32 %v6066, 2147483648
      %v6069 = vmul.f32 %v6067, 1.442695
      %v6070 = vpow.pop %v6069
      %v6071 = vmul.f32 %v6068, 1.442695
      %v6072 = vpow.pop %v6071
      %v6073 = vadd.f32 %v6070, 1.0
      %v6074 = vadd.f32 %v6072, 1.0
      %v6075 = vrcp.pop %v6073
      %v6076 = vmul.f32 1.0, %v6075
      %v6077 = vrcp.pop %v6074
      %v6078 = vmul.f32 1.0, %v6077
      %v6079 = vmul.f32 %v6076, %v6064
      %v6080 = vadd.f32 %v6059, %v6079
      %v6081 = vtanh.pop %v6080
      %v6082 = vsub.f32 1.0, %v6078
      %v6083 = vmul.f32 %v6082, %v6081
      %v6084 = vmul.f32 %v6078, %v5481
      %v6085 = vadd.f32 %v6083, %v6084
      %s6086 = scalar_lea.vmem [#allocation2], %s5484
      %6087 = vst [vmem:[%s6086] sm:$0x1] %v6085
    $region70: #{tpu_custom_call.1} parent=1 // loop_footer
      %s649 = sadd.s32 1, %s645
    $region71: #{tpu_custom_call.1} parent=1 // loop_footer_branch
      %644 = sbr.rel target = $region67
    $region72: #{tpu_custom_call.1} parent=1 // loop_exit
      _
    %6088 = vst [vmem:[#allocation10] sm:$0x1] %v650
    %v6089 = vld [vmem:[#allocation2] sm:$0xff]
    %v6090 = vld [vmem:[#allocation2 + $0x8] sm:$0xff]
    %v6091 = vld [vmem:[#allocation2 + $0x10] sm:$0xff]
    %v6092 = vld [vmem:[#allocation2 + $0x18] sm:$0xff]
    %v6093 = vld [vmem:[#allocation2 + $0x20] sm:$0xff]
    %v6094 = vld [vmem:[#allocation2 + $0x28] sm:$0xff]
    %v6095 = vld [vmem:[#allocation2 + $0x30] sm:$0xff]
    %v6096 = vld [vmem:[#allocation2 + $0x38] sm:$0xff]
    %v6097 = vld [vmem:[%s9] sm:$0xff]
    %v6098 = vld [vmem:[%s9 + $0x8] sm:$0xff]
    %v6099 = vld [vmem:[%s9 + $0x10] sm:$0xff]
    %v6100 = vld [vmem:[%s9 + $0x18] sm:$0xff]
    %v6101 = vld [vmem:[%s9 + $0x20] sm:$0xff]
    %v6102 = vld [vmem:[%s9 + $0x28] sm:$0xff]
    %v6103 = vld [vmem:[%s9 + $0x30] sm:$0xff]
    %v6104 = vld [vmem:[%s9 + $0x38] sm:$0xff]
    %v6105 = vld [vmem:[%s9 + $0x40] sm:$0xff]
    %v6106 = vld [vmem:[%s9 + $0x48] sm:$0xff]
    %v6107 = vld [vmem:[%s9 + $0x50] sm:$0xff]
    %v6108 = vld [vmem:[%s9 + $0x58] sm:$0xff]
    %v6109 = vld [vmem:[%s9 + $0x60] sm:$0xff]
    %v6110 = vld [vmem:[%s9 + $0x68] sm:$0xff]
    %v6111 = vld [vmem:[%s9 + $0x70] sm:$0xff]
    %v6112 = vld [vmem:[%s9 + $0x78] sm:$0xff]
    %v6113 = vld [vmem:[%s10] sm:$0x1]
    %v6115 = vlaneseq
    %v6116 = vshrl.u32 %v6115, 7
    %v6117 = vsub.s32 0, %v6116
    %v6118 = vrot.slane %v6113, %v6117
    %6120 = vmatprep.subr.mxu0 0.0
    %6121 = vmatpush1.msra.mxu0 %v6097
    %6122 = vmatprep.subr.mxu0 0.0
    %6123 = vmatpush1.msra.mxu0 %v6098
    %6124 = vmatprep.subr.mxu0 0.0
    %6125 = vmatpush1.msra.mxu0 %v6099
    %6126 = vmatprep.subr.mxu0 0.0
    %6127 = vmatpush1.msra.mxu0 %v6100
    %6128 = vmatprep.subr.mxu0 0.0
    %6129 = vmatpush1.msra.mxu0 %v6101
    %6130 = vmatprep.subr.mxu0 0.0
    %6131 = vmatpush1.msra.mxu0 %v6102
    %6132 = vmatprep.subr.mxu0 0.0
    %6133 = vmatpush1.msra.mxu0 %v6103
    %6134 = vmatprep.subr.mxu0 0.0
    %6135 = vmatpush1.msra.mxu0 %v6104
    %6136 = vmatprep.subr.mxu0 0.0
    %6137 = vmatpush1.msra.mxu0 %v6105
    %6138 = vmatprep.subr.mxu0 0.0
    %6139 = vmatpush1.msra.mxu0 %v6106
    %6140 = vmatprep.subr.mxu0 0.0
    %6141 = vmatpush1.msra.mxu0 %v6107
    %6142 = vmatprep.subr.mxu0 0.0
    %6143 = vmatpush1.msra.mxu0 %v6108
    %6144 = vmatprep.subr.mxu0 0.0
    %6145 = vmatpush1.msra.mxu0 %v6109
    %6146 = vmatprep.subr.mxu0 0.0
    %6147 = vmatpush1.msra.mxu0 %v6110
    %6148 = vmatprep.subr.mxu0 0.0
    %6149 = vmatpush1.msra.mxu0 %v6111
    %6150 = vmatprep.subr.mxu0 0.0
    %6151 = vmatpush1.msra.mxu0 %v6112
    %6152 = vmatprep.subr.mxu0 0.0
    %6153 = vmatpush1.msra.mxu0 0.0
    %6154 = vmatprep.subr.mxu0 0.0
    %6155 = vmatpush1.msra.mxu0 0.0
    %6156 = vmatprep.subr.mxu0 0.0
    %6157 = vmatpush1.msra.mxu0 0.0
    %6158 = vmatprep.subr.mxu0 0.0
    %6159 = vmatpush1.msra.mxu0 0.0
    %6160 = vmatprep.subr.mxu0 0.0
    %6161 = vmatpush1.msra.mxu0 0.0
    %6162 = vmatprep.subr.mxu0 0.0
    %6163 = vmatpush1.msra.mxu0 0.0
    %6164 = vmatprep.subr.mxu0 0.0
    %6165 = vmatpush1.msra.mxu0 0.0
    %6166 = vmatprep.subr.mxu0 0.0
    %6167 = vmatpush1.msra.mxu0 0.0
    %6168 = vmatprep.subr.mxu0 0.0
    %6169 = vmatpush1.msra.mxu0 0.0
    %6170 = vmatprep.subr.mxu0 0.0
    %6171 = vmatpush1.msra.mxu0 0.0
    %6172 = vmatprep.subr.mxu0 0.0
    %6173 = vmatpush1.msra.mxu0 0.0
    %6174 = vmatprep.subr.mxu0 0.0
    %6175 = vmatpush1.msra.mxu0 0.0
    %6176 = vmatprep.subr.mxu0 0.0
    %6177 = vmatpush1.msra.mxu0 0.0
    %6178 = vmatprep.subr.mxu0 0.0
    %6179 = vmatpush1.msra.mxu0 0.0
    %6180 = vmatprep.subr.mxu0 0.0
    %6181 = vmatpush1.msra.mxu0 0.0
    %6182 = vmatprep.subr.mxu0 0.0
    %6183 = vmatpush1.msra.mxu0 0.0
    %6184 = vmatprep.mubr.f32.mxu0 0.0
    %6185 = vmatmul.mubr.f32.gmra.mrb[0].mxu0 %v6089
    %v6186 = vpop.f32.mrb[0].mxu0
    %v6187 = vadd.f32 %v6118, %v6186
    %v6188 = vpop.f32.mrb[0].mxu0
    %6189 = vmatprep.mubr.f32.mxu0 0.0
    %6190 = vmatmul.mubr.f32.gmra.mrb[0].mxu0 %v6090
    %v6191 = vpop.f32.mrb[0].mxu0
    %v6192 = vadd.f32 %v6118, %v6191
    %v6193 = vpop.f32.mrb[0].mxu0
    %6194 = vmatprep.mubr.f32.mxu0 0.0
    %6195 = vmatmul.mubr.f32.gmra.mrb[0].mxu0 %v6091
    %v6196 = vpop.f32.mrb[0].mxu0
    %v6197 = vadd.f32 %v6118, %v6196
    %v6198 = vpop.f32.mrb[0].mxu0
    %6199 = vmatprep.mubr.f32.mxu0 0.0
    %6200 = vmatmul.mubr.f32.gmra.mrb[0].mxu0 %v6092
    %v6201 = vpop.f32.mrb[0].mxu0
    %v6202 = vadd.f32 %v6118, %v6201
    %v6203 = vpop.f32.mrb[0].mxu0
    %6204 = vmatprep.mubr.f32.mxu0 0.0
    %6205 = vmatmul.mubr.f32.gmra.mrb[0].mxu0 %v6093
    %v6206 = vpop.f32.mrb[0].mxu0
    %v6207 = vadd.f32 %v6118, %v6206
    %v6208 = vpop.f32.mrb[0].mxu0
    %6209 = vmatprep.mubr.f32.mxu0 0.0
    %6210 = vmatmul.mubr.f32.gmra.mrb[0].mxu0 %v6094
    %v6211 = vpop.f32.mrb[0].mxu0
    %v6212 = vadd.f32 %v6118, %v6211
    %v6213 = vpop.f32.mrb[0].mxu0
    %6214 = vmatprep.mubr.f32.mxu0 0.0
    %6215 = vmatmul.mubr.f32.gmra.mrb[0].mxu0 %v6095
    %v6216 = vpop.f32.mrb[0].mxu0
    %v6217 = vadd.f32 %v6118, %v6216
    %v6218 = vpop.f32.mrb[0].mxu0
    %6219 = vmatprep.mubr.f32.mxu0 0.0
    %6220 = vmatmul.mubr.f32.gmra.mrb[0].mxu0 %v6096
    %v6221 = vpop.f32.mrb[0].mxu0
    %v6222 = vadd.f32 %v6118, %v6221
    %v6223 = vpop.f32.mrb[0].mxu0
    %6224 = vdwg.mxu0
    %v6225 = vmax.f32 %v6187, 0.0
    %v6226 = vmax.f32 %v6192, 0.0
    %v6227 = vmax.f32 %v6197, 0.0
    %v6228 = vmax.f32 %v6202, 0.0
    %v6229 = vmax.f32 %v6207, 0.0
    %v6230 = vmax.f32 %v6212, 0.0
    %v6231 = vmax.f32 %v6217, 0.0
    %v6232 = vmax.f32 %v6222, 0.0
    %v6233 = vld [vmem:[%s11] sm:$0xff]
    %v6234 = vld [vmem:[%s11 + $0x8] sm:$0xff]
    %v6235 = vld [vmem:[%s11 + $0x10] sm:$0xff]
    %v6236 = vld [vmem:[%s11 + $0x18] sm:$0xff]
    %v6237 = vld [vmem:[%s11 + $0x20] sm:$0xff]
    %v6238 = vld [vmem:[%s11 + $0x28] sm:$0xff]
    %v6239 = vld [vmem:[%s11 + $0x30] sm:$0xff]
    %v6240 = vld [vmem:[%s11 + $0x38] sm:$0xff]
    %v6241 = vld [vmem:[%s12] sm:$0x1]
    %v6243 = vlaneseq
    %v6244 = vshrl.u32 %v6243, 7
    %v6245 = vsub.s32 0, %v6244
    %v6246 = vrot.slane %v6241, %v6245
    %v6249 = vsel %vm316, %v6225, 0
    %v6252 = vsel %vm316, %v6226, 0
    %v6255 = vsel %vm316, %v6227, 0
    %v6258 = vsel %vm316, %v6228, 0
    %v6261 = vsel %vm316, %v6229, 0
    %v6264 = vsel %vm316, %v6230, 0
    %v6267 = vsel %vm316, %v6231, 0
    %v6270 = vsel %vm316, %v6232, 0
    %6272 = vmatprep.subr.mxu0 0.0
    %6273 = vmatpush1.msra.mxu0 %v6233
    %6274 = vmatprep.subr.mxu0 0.0
    %6275 = vmatpush1.msra.mxu0 %v6234
    %6276 = vmatprep.subr.mxu0 0.0
    %6277 = vmatpush1.msra.mxu0 %v6235
    %6278 = vmatprep.subr.mxu0 0.0
    %6279 = vmatpush1.msra.mxu0 %v6236
    %6280 = vmatprep.subr.mxu0 0.0
    %6281 = vmatpush1.msra.mxu0 %v6237
    %6282 = vmatprep.subr.mxu0 0.0
    %6283 = vmatpush1.msra.mxu0 %v6238
    %6284 = vmatprep.subr.mxu0 0.0
    %6285 = vmatpush1.msra.mxu0 %v6239
    %6286 = vmatprep.subr.mxu0 0.0
    %6287 = vmatpush1.msra.mxu0 %v6240
    %6288 = vmatprep.subr.mxu0 0.0
    %6289 = vmatpush1.msra.mxu0 0.0
    %6290 = vmatprep.subr.mxu0 0.0
    %6291 = vmatpush1.msra.mxu0 0.0
    %6292 = vmatprep.subr.mxu0 0.0
    %6293 = vmatpush1.msra.mxu0 0.0
    %6294 = vmatprep.subr.mxu0 0.0
    %6295 = vmatpush1.msra.mxu0 0.0
    %6296 = vmatprep.subr.mxu0 0.0
    %6297 = vmatpush1.msra.mxu0 0.0
    %6298 = vmatprep.subr.mxu0 0.0
    %6299 = vmatpush1.msra.mxu0 0.0
    %6300 = vmatprep.subr.mxu0 0.0
    %6301 = vmatpush1.msra.mxu0 0.0
    %6302 = vmatprep.subr.mxu0 0.0
    %6303 = vmatpush1.msra.mxu0 0.0
    %6304 = vmatprep.subr.mxu0 0.0
    %6305 = vmatpush1.msra.mxu0 0.0
    %6306 = vmatprep.subr.mxu0 0.0
    %6307 = vmatpush1.msra.mxu0 0.0
    %6308 = vmatprep.subr.mxu0 0.0
    %6309 = vmatpush1.msra.mxu0 0.0
    %6310 = vmatprep.subr.mxu0 0.0
    %6311 = vmatpush1.msra.mxu0 0.0
    %6312 = vmatprep.subr.mxu0 0.0
    %6313 = vmatpush1.msra.mxu0 0.0
    %6314 = vmatprep.subr.mxu0 0.0
    %6315 = vmatpush1.msra.mxu0 0.0
    %6316 = vmatprep.subr.mxu0 0.0
    %6317 = vmatpush1.msra.mxu0 0.0
    %6318 = vmatprep.subr.mxu0 0.0
    %6319 = vmatpush1.msra.mxu0 0.0
    %6320 = vmatprep.subr.mxu0 0.0
    %6321 = vmatpush1.msra.mxu0 0.0
    %6322 = vmatprep.subr.mxu0 0.0
    %6323 = vmatpush1.msra.mxu0 0.0
    %6324 = vmatprep.subr.mxu0 0.0
    %6325 = vmatpush1.msra.mxu0 0.0
    %6326 = vmatprep.subr.mxu0 0.0
    %6327 = vmatpush1.msra.mxu0 0.0
    %6328 = vmatprep.subr.mxu0 0.0
    %6329 = vmatpush1.msra.mxu0 0.0
    %6330 = vmatprep.subr.mxu0 0.0
    %6331 = vmatpush1.msra.mxu0 0.0
    %6332 = vmatprep.subr.mxu0 0.0
    %6333 = vmatpush1.msra.mxu0 0.0
    %6334 = vmatprep.subr.mxu0 0.0
    %6335 = vmatpush1.msra.mxu0 0.0
    %6336 = vmatprep.mubr.f32.mxu0 0.0
    %6337 = vmatmul.mubr.f32.gmra.mrb[0].mxu0 %v6249
    %v6338 = vpop.f32.mrb[0].mxu0
    %v6339 = vadd.f32 %v6246, %v6338
    %v6340 = vpop.f32.mrb[0].mxu0
    %6341 = vmatprep.mubr.f32.mxu0 0.0
    %6342 = vmatmul.mubr.f32.gmra.mrb[0].mxu0 %v6252
    %v6343 = vpop.f32.mrb[0].mxu0
    %v6344 = vadd.f32 %v6246, %v6343
    %v6345 = vpop.f32.mrb[0].mxu0
    %6346 = vmatprep.mubr.f32.mxu0 0.0
    %6347 = vmatmul.mubr.f32.gmra.mrb[0].mxu0 %v6255
    %v6348 = vpop.f32.mrb[0].mxu0
    %v6349 = vadd.f32 %v6246, %v6348
    %v6350 = vpop.f32.mrb[0].mxu0
    %6351 = vmatprep.mubr.f32.mxu0 0.0
    %6352 = vmatmul.mubr.f32.gmra.mrb[0].mxu0 %v6258
    %v6353 = vpop.f32.mrb[0].mxu0
    %v6354 = vadd.f32 %v6246, %v6353
    %v6355 = vpop.f32.mrb[0].mxu0
    %6356 = vmatprep.mubr.f32.mxu0 0.0
    %6357 = vmatmul.mubr.f32.gmra.mrb[0].mxu0 %v6261
    %v6358 = vpop.f32.mrb[0].mxu0
    %v6359 = vadd.f32 %v6246, %v6358
    %v6360 = vpop.f32.mrb[0].mxu0
    %6361 = vmatprep.mubr.f32.mxu0 0.0
    %6362 = vmatmul.mubr.f32.gmra.mrb[0].mxu0 %v6264
    %v6363 = vpop.f32.mrb[0].mxu0
    %v6364 = vadd.f32 %v6246, %v6363
    %v6365 = vpop.f32.mrb[0].mxu0
    %6366 = vmatprep.mubr.f32.mxu0 0.0
    %6367 = vmatmul.mubr.f32.gmra.mrb[0].mxu0 %v6267
    %v6368 = vpop.f32.mrb[0].mxu0
    %v6369 = vadd.f32 %v6246, %v6368
    %v6370 = vpop.f32.mrb[0].mxu0
    %6371 = vmatprep.mubr.f32.mxu0 0.0
    %6372 = vmatmul.mubr.f32.gmra.mrb[0].mxu0 %v6270
    %v6373 = vpop.f32.mrb[0].mxu0
    %v6374 = vadd.f32 %v6246, %v6373
    %v6375 = vpop.f32.mrb[0].mxu0
    %6376 = vdwg.mxu0
    %6377 = vmax.xlane.f32.xlu0 %v6339
    %v6378 = vpop.xlane.xlu0 %6377
    %6379 = vmax.xlane.f32.xlu0 %v6344
    %v6380 = vpop.xlane.xlu0 %6379
    %6381 = vmax.xlane.f32.xlu0 %v6349
    %v6382 = vpop.xlane.xlu0 %6381
    %6383 = vmax.xlane.f32.xlu0 %v6354
    %v6384 = vpop.xlane.xlu0 %6383
    %6385 = vmax.xlane.f32.xlu0 %v6359
    %v6386 = vpop.xlane.xlu0 %6385
    %6387 = vmax.xlane.f32.xlu0 %v6364
    %v6388 = vpop.xlane.xlu0 %6387
    %6389 = vmax.xlane.f32.xlu0 %v6369
    %v6390 = vpop.xlane.xlu0 %6389
    %6391 = vmax.xlane.f32.xlu0 %v6374
    %v6392 = vpop.xlane.xlu0 %6391
    %v6393 = vsub.f32 %v6339, %v6378
    %v6394 = vsub.f32 %v6344, %v6380
    %v6395 = vsub.f32 %v6349, %v6382
    %v6396 = vsub.f32 %v6354, %v6384
    %v6397 = vsub.f32 %v6359, %v6386
    %v6398 = vsub.f32 %v6364, %v6388
    %v6399 = vsub.f32 %v6369, %v6390
    %v6400 = vsub.f32 %v6374, %v6392
    %v6401 = vmul.f32 %v6393, 1.442695
    %v6402 = vpow.pop %v6401
    %v6403 = vmul.f32 %v6394, 1.442695
    %v6404 = vpow.pop %v6403
    %v6405 = vmul.f32 %v6395, 1.442695
    %v6406 = vpow.pop %v6405
    %v6407 = vmul.f32 %v6396, 1.442695
    %v6408 = vpow.pop %v6407
    %v6409 = vmul.f32 %v6397, 1.442695
    %v6410 = vpow.pop %v6409
    %v6411 = vmul.f32 %v6398, 1.442695
    %v6412 = vpow.pop %v6411
    %v6413 = vmul.f32 %v6399, 1.442695
    %v6414 = vpow.pop %v6413
    %v6415 = vmul.f32 %v6400, 1.442695
    %v6416 = vpow.pop %v6415
    %6417 = vadd.xlane.f32.xlu0 %v6402
    %v6418 = vpop.xlane.xlu0 %6417
    %6419 = vadd.xlane.f32.xlu0 %v6404
    %v6420 = vpop.xlane.xlu0 %6419
    %6421 = vadd.xlane.f32.xlu0 %v6406
    %v6422 = vpop.xlane.xlu0 %6421
    %6423 = vadd.xlane.f32.xlu0 %v6408
    %v6424 = vpop.xlane.xlu0 %6423
    %6425 = vadd.xlane.f32.xlu0 %v6410
    %v6426 = vpop.xlane.xlu0 %6425
    %6427 = vadd.xlane.f32.xlu0 %v6412
    %v6428 = vpop.xlane.xlu0 %6427
    %6429 = vadd.xlane.f32.xlu0 %v6414
    %v6430 = vpop.xlane.xlu0 %6429
    %6431 = vadd.xlane.f32.xlu0 %v6416
    %v6432 = vpop.xlane.xlu0 %6431
    %v6433 = vrcp.pop %v6418
    %v6434 = vrcp.pop %v6420
    %v6435 = vrcp.pop %v6422
    %v6436 = vrcp.pop %v6424
    %v6437 = vrcp.pop %v6426
    %v6438 = vrcp.pop %v6428
    %v6439 = vrcp.pop %v6430
    %v6440 = vrcp.pop %v6432
    %v6441 = vmul.f32 %v6402, %v6433
    %v6442 = vmul.f32 %v6404, %v6434
    %v6443 = vmul.f32 %v6406, %v6435
    %v6444 = vmul.f32 %v6408, %v6436
    %v6445 = vmul.f32 %v6410, %v6437
    %v6446 = vmul.f32 %v6412, %v6438
    %v6447 = vmul.f32 %v6414, %v6439
    %v6448 = vmul.f32 %v6416, %v6440
    %6449 = vst [vmem:[#allocation9] sm:$0xff] %v6441
    %6450 = vst [vmem:[#allocation9 + $0x8] sm:$0xff] %v6442
    %6451 = vst [vmem:[#allocation9 + $0x10] sm:$0xff] %v6443
    %6452 = vst [vmem:[#allocation9 + $0x18] sm:$0xff] %v6444
    %6453 = vst [vmem:[#allocation9 + $0x20] sm:$0xff] %v6445
    %6454 = vst [vmem:[#allocation9 + $0x28] sm:$0xff] %v6446
    %6455 = vst [vmem:[#allocation9 + $0x30] sm:$0xff] %v6447
    %6456 = vst [vmem:[#allocation9 + $0x38] sm:$0xff] %v6448
    // Predicated region
    $region73: #{tpu_custom_call.1} parent=1 // pred_check
      _
    $region74: #{tpu_custom_call.1} parent=1 // pred_check_branch
      %6458 = sbr.rel (0) target = $region76
    $region75: #{tpu_custom_call.1} parent=1 // pred_region
      %s6460 = ssub.s32 1024, 1024
      %6461 = vsyncadd [#allocation5], %s6460
      %s6462 = sshll.u32 [#allocation9], 4
      %s6463 = int_to_ptr.vmem [resolvable:$true] %s6462
      %6468 = dma.vmem_to_hbm [thread:$0]  %s6463, 1024, %s13, [#allocation5], 128, 128, 8
    $region76: #{tpu_custom_call.1} parent=1 // pred_fallthru
      _
    // Predicated region
    $region77: #{tpu_custom_call.1} parent=1 // pred_check
      _
    $region78: #{tpu_custom_call.1} parent=1 // pred_check_branch
      %6470 = sbr.rel (0) target = $region80
    $region79: #{tpu_custom_call.1} parent=1 // pred_region
      %s6472 = ssub.s32 16, 16
      %6473 = vsyncadd [#allocation11], %s6472
      %s6475 = sshll.u32 [#allocation10], 4
      %s6476 = int_to_ptr.vmem [resolvable:$true] %s6475
      %6478 = dma.vmem_to_hbm [thread:$0]  %s6476, 16, %s14, [#allocation11]
    $region80: #{tpu_custom_call.1} parent=1 // pred_fallthru
      _
    // Predicated region
    $region81: #{tpu_custom_call.1} parent=1 // pred_check
      _
    $region82: #{tpu_custom_call.1} parent=1 // pred_check_branch
      %6480 = sbr.rel (0) target = $region84
    $region83: #{tpu_custom_call.1} parent=1 // pred_region
      %6481 = dma.done [#allocation5], 1024
    $region84: #{tpu_custom_call.1} parent=1 // pred_fallthru
      _
    // Predicated region
    $region85: #{tpu_custom_call.1} parent=1 // pred_check
      _
    $region86: #{tpu_custom_call.1} parent=1 // pred_check_branch
      %6483 = sbr.rel (0) target = $region88
    $region87: #{tpu_custom_call.1} parent=1 // pred_region
      %6484 = dma.done [#allocation11], 16
    $region88: #{tpu_custom_call.1} parent=1 // pred_fallthru
      _
    %6485 = vsyncpa [#allocation4], 1
    %6486 = vsyncpa [#allocation7], 1
    %6487 = vsyncpa [#allocation5], 1
    %6488 = vsyncpa [#allocation11], 1

</llo_original>
